<compile_context>
chip_gen: v7x
topology: tpu7x:2x2x1
jax: 0.10.0
libtpu: 0.0.40
codegen_flags: <defaults>
</compile_context>

<pallas_src>
import numpy as np
import jax
import jax.numpy as jnp
from jax.experimental import pallas as pl
from jax.experimental.pallas import tpu as pltpu


# --------------------------------------------------------------------------- #
# Bilinear resize matrix (PyTorch F.interpolate, bilinear, align_corners=False)
# --------------------------------------------------------------------------- #

def _interp_matrix(in_size: int, out_size: int) -> np.ndarray:
    """Dense (out_size, in_size) per-axis interpolation matrix matching PyTorch's
    bilinear resize with align_corners=False (separable).  float64 for exact
    host-side composition of the two resizes."""
    scale = in_size / out_size
    dst = np.arange(out_size, dtype=np.float64)
    src = np.maximum((dst + 0.5) * scale - 0.5, 0.0)
    lo = np.minimum(np.floor(src), in_size - 1).astype(np.int64)
    hi = np.minimum(lo + 1, in_size - 1)
    w_hi = src - lo
    m = np.zeros((out_size, in_size), np.float64)
    m[np.arange(out_size), lo] += 1.0 - w_hi
    m[np.arange(out_size), hi] += w_hi
    return m


# --------------------------------------------------------------------------- #
# Fused kernel: resize(x1) -> concat -> conv1+BN+ReLU -> conv2+BN+ReLU
# --------------------------------------------------------------------------- #

def _up_fused_kernel(x1_ref, x2_ref, wy_ref, wxt_ref,
                     w1_ref, b1_ref, w2_ref, b2_ref,
                     o_ref, xpad_ref, ypad_ref):
    # x1_ref:  (C1, H1, W1)      VMEM   input to be resized
    # x2_ref:  (C2, H2, W2)      VMEM   skip connection (first channels of concat)
    # wy_ref:  (H2, H1)          VMEM   composed row-interp matrix
    # wxt_ref: (W1, W2)          VMEM   composed col-interp matrix (transposed)
    # w1_ref:  (Cout*(C1+C2)*9,) SMEM   BN-folded conv1 weights
    # b1_ref:  (Cout,)           SMEM   BN-folded conv1 bias
    # w2_ref:  (Cout*Cout*9,)    SMEM   BN-folded conv2 weights
    # b2_ref:  (Cout,)           SMEM   BN-folded conv2 bias
    # o_ref:   (Cout, H2, W2)    output block
    # xpad_ref:(C1+C2, H2+2, W2+2) VMEM scratch  concat input, zero halo
    # ypad_ref:(Cout,  H2+2, W2+2) VMEM scratch  conv1 output, zero halo
    c1, h1, w1 = x1_ref.shape
    c2, h2, w2 = x2_ref.shape
    cout = o_ref.shape[0]
    cin1 = c1 + c2

    # -- zero the padded scratches; their 1-pixel borders implement padding=1 --
    xpad_ref[...] = jnp.zeros_like(xpad_ref)
    ypad_ref[...] = jnp.zeros_like(ypad_ref)

    # -- fused concat: x2 channels first (torch.cat([x2, x1], dim=1)) --
    for c in range(c2):
        xpad_ref[c, 1:1 + h2, 1:1 + w2] = x2_ref[c].astype(jnp.float32)

    # -- bilinear resize of x1 (single composed resize), per-channel rank-1 VPU FMAs --
    wy = wy_ref[...].astype(jnp.float32)     # (H2, H1)
    wxt = wxt_ref[...].astype(jnp.float32)   # (W1, W2)
    for c in range(c1):
        x = x1_ref[c].astype(jnp.float32)    # (H1, W1)
        t = wy[:, 0:1] * x[0:1, :]           # (H2, W1) row interpolation
        for r in range(1, h1):
            t = t + wy[:, r:r + 1] * x[r:r + 1, :]
        out = t[:, 0:1] * wxt[0:1, :]        # (H2, W2) col interpolation
        for v in range(1, w1):
            out = out + t[:, v:v + 1] * wxt[v:v + 1, :]
        xpad_ref[c2 + c, 1:1 + h2, 1:1 + w2] = out

    # -- conv1 (3x3, stride 1, pad 1) + folded BN + ReLU -> ypad interior --
    accs = [jnp.zeros((h2, w2), jnp.float32) for _ in range(cout)]
    for c in range(cin1):
        for ky in range(3):
            for kx in range(3):
                xs = xpad_ref[c, ky:ky + h2, kx:kx + w2]   # shifted stencil window
                for o in range(cout):
                    widx = ((o * cin1 + c) * 3 + ky) * 3 + kx
                    accs[o] = accs[o] + w1_ref[widx] * xs
    for o in range(cout):
        ypad_ref[o, 1:1 + h2, 1:1 + w2] = jnp.maximum(accs[o] + b1_ref[o], 0.0)

    # -- conv2 (3x3, stride 1, pad 1) + folded BN + ReLU -> output --
    accs = [jnp.zeros((h2, w2), jnp.float32) for _ in range(cout)]
    for c in range(cout):
        for ky in range(3):
            for kx in range(3):
                xs = ypad_ref[c, ky:ky + h2, kx:kx + w2]
                for o in range(cout):
                    widx = ((o * cout + c) * 3 + ky) * 3 + kx
                    accs[o] = accs[o] + w2_ref[widx] * xs
    for o in range(cout):
        o_ref[o] = jnp.maximum(accs[o] + b2_ref[o], 0.0).astype(o_ref.dtype)


# --------------------------------------------------------------------------- #
# Wrapper: BN folding, composed resize matrices, single pallas_call
# --------------------------------------------------------------------------- #

def _fold_bn(w, b, gamma, beta, mean, var, eps=1e-5):
    # y = ((conv(x, w) + b) - mean) / sqrt(var + eps) * gamma + beta
    scale = gamma / jnp.sqrt(var + eps)                       # (cout,)
    w_fold = (w * scale[:, None, None, None]).astype(jnp.float32)
    b_fold = (beta + scale * (b - mean)).astype(jnp.float32)
    return w_fold.reshape(-1), b_fold


def up_forward(x1, x2, p, eps=1e-5):
    n, c1, h1, w1 = x1.shape
    n2, c2, h2, w2 = x2.shape
    assert n == n2
    cout = int(p["w1"].shape[0])
    cin1 = c1 + c2
    assert p["w1"].shape == (cout, cin1, 3, 3)
    assert p["w2"].shape == (cout, cout, 3, 3)

    # Compose upsample(x2) followed by resize-to-(h2,w2) into one matrix per axis.
    # (When h2 == 2*h1 / w2 == 2*w1 the second factor is an exact identity.)
    wy_np = _interp_matrix(2 * h1, h2) @ _interp_matrix(h1, 2 * h1)   # (h2, h1)
    wx_np = _interp_matrix(2 * w1, w2) @ _interp_matrix(w1, 2 * w1)   # (w2, w1)
    wy = jnp.asarray(wy_np, dtype=jnp.float32)
    wxt = jnp.asarray(wx_np.T, dtype=jnp.float32)                     # (w1, w2)

    w1f, b1f = _fold_bn(p["w1"], p["b1"], p["g1"], p["be1"], p["m1"], p["v1"], eps)
    w2f, b2f = _fold_bn(p["w2"], p["b2"], p["g2"], p["be2"], p["m2"], p["v2"], eps)

    smem = pl.BlockSpec(memory_space=pltpu.MemorySpace.SMEM)
    return pl.pallas_call(
        _up_fused_kernel,
        out_shape=jax.ShapeDtypeStruct((n, cout, h2, w2), x1.dtype),
        grid=(n,),
        in_specs=[
            pl.BlockSpec((None, c1, h1, w1), lambda i: (i, 0, 0, 0)),   # x1
            pl.BlockSpec((None, c2, h2, w2), lambda i: (i, 0, 0, 0)),   # x2
            pl.BlockSpec((h2, h1), lambda i: (0, 0)),                   # wy
            pl.BlockSpec((w1, w2), lambda i: (0, 0)),                   # wxt
            smem,                                                       # w1 (folded)
            smem,                                                       # b1 (folded)
            smem,                                                       # w2 (folded)
            smem,                                                       # b2 (folded)
        ],
        out_specs=pl.BlockSpec((None, cout, h2, w2), lambda i: (i, 0, 0, 0)),
        scratch_shapes=[
            pltpu.VMEM((cin1, h2 + 2, w2 + 2), jnp.float32),   # padded concat input
            pltpu.VMEM((cout, h2 + 2, w2 + 2), jnp.float32),   # padded conv1 output
        ],
        compiler_params=pltpu.CompilerParams(
            dimension_semantics=("parallel",)),
    )(x1, x2, wy, wxt, w1f, b1f, w2f, b2f)


# --------------------------------------------------------------------------- #
# Pure-JAX reference (same inference-mode semantics) for validation
# --------------------------------------------------------------------------- #

def _reference_up(x1, x2, p, eps=1e-5):
    hp = jax.lax.Precision.HIGHEST  # keep the XLA reference in true f32

    def resize(x, oh, ow):
        _, _, hi, wi = x.shape
        wy = jnp.asarray(_interp_matrix(hi, oh), dtype=jnp.float32)
        wx = jnp.asarray(_interp_matrix(wi, ow), dtype=jnp.float32)
        t = jnp.einsum("oh,nchw->ncow", wy, x, precision=hp)
        return jnp.einsum("pw,ncow->ncop", wx, t, precision=hp)

    def conv_bn_relu(x, w, b, g, be, m, v):
        y = jax.lax.conv_general_dilated(
            x, w, window_strides=(1, 1), padding=((1, 1), (1, 1)),
            dimension_numbers=("NCHW", "OIHW", "NCHW"), precision=hp)
        y = y + b[None, :, None, None]
        y = (y - m[None, :, None, None]) / jnp.sqrt(v[None, :, None, None] + eps)
        y = y * g[None, :, None, None] + be[None, :, None, None]
        return jnp.maximum(y, 0.0)

    x1 = resize(x1, 2 * x1.shape[2], 2 * x1.shape[3])
    x1 = resize(x1, x2.shape[2], x2.shape[3])
    y = jnp.concatenate([x2, x1], axis=1)
    y = conv_bn_relu(y, p["w1"], p["b1"], p["g1"], p["be1"], p["m1"], p["v1"])
    y = conv_bn_relu(y, p["w2"], p["b2"], p["g2"], p["be2"], p["m2"], p["v2"])
    return y


if __name__ == "__main__":
    in_channels, out_channels = 8, 4
    N = 2
    H1 = W1 = 8            # x1 spatial size (before upsampling)
    H2 = W2 = 16           # x2 (skip connection) spatial size
    C1 = in_channels // 2  # x1 channels
    C2 = in_channels - C1  # x2 channels (concat -> in_channels)

    key = jax.random.PRNGKey(0)
    ks = jax.random.split(key, 14)

    x1 = jax.random.normal(ks[0], (N, C1, H1, W1), jnp.float32)
    x2 = jax.random.normal(ks[1], (N, C2, H2, W2), jnp.float32)

    def conv_init(kw, kb, cout, cin):
        bound = 1.0 / float(np.sqrt(cin * 9))
        w = jax.random.uniform(kw, (cout, cin, 3, 3), jnp.float32, -bound, bound)
        b = jax.random.uniform(kb, (cout,), jnp.float32, -bound, bound)
        return w, b

    def bn_init(kg, kb2, km, kv, c):
        g = jax.random.uniform(kg, (c,), jnp.float32, 0.5, 1.5)
        be = 0.1 * jax.random.normal(kb2, (c,), jnp.float32)
        m = 0.1 * jax.random.normal(km, (c,), jnp.float32)
        v = jax.random.uniform(kv, (c,), jnp.float32, 0.5, 1.5)
        return g, be, m, v

    w1, b1 = conv_init(ks[2], ks[3], out_channels, in_channels)
    w2, b2 = conv_init(ks[4], ks[5], out_channels, out_channels)
    g1, be1, m1, v1 = bn_init(ks[6], ks[7], ks[8], ks[9], out_channels)
    g2, be2, m2, v2 = bn_init(ks[10], ks[11], ks[12], ks[13], out_channels)

    params = dict(w1=w1, b1=b1, g1=g1, be1=be1, m1=m1, v1=v1,
                  w2=w2, b2=b2, g2=g2, be2=be2, m2=m2, v2=v2)

    y = jax.jit(up_forward)(x1, x2, params)
    jax.block_until_ready(y)

    ref = _reference_up(x1, x2, params)
    assert y.shape == (N, out_channels, H2, W2)
    err = float(jnp.max(jnp.abs(y - ref)))
    assert jnp.allclose(y, ref, atol=1e-4, rtol=1e-4), err

    print("KERNEL_OK")
</pallas_src>

<mosaic_0001>
module attributes {stable_mosaic.version = 11 : i64} {
  func.func @_up_fused_kernel(%arg0: i32, %arg1: memref<1x4x8x8xf32, #tpu.memory_space<vmem>>, %arg2: memref<1x4x16x16xf32, #tpu.memory_space<vmem>>, %arg3: memref<16x8xf32, #tpu.memory_space<vmem>>, %arg4: memref<8x16xf32, #tpu.memory_space<vmem>>, %arg5: memref<288xf32, #tpu.memory_space<smem>>, %arg6: memref<4xf32, #tpu.memory_space<smem>>, %arg7: memref<144xf32, #tpu.memory_space<smem>>, %arg8: memref<4xf32, #tpu.memory_space<smem>>, %arg9: memref<1x4x16x16xf32, #tpu.memory_space<vmem>>, %arg10: memref<8x18x18xf32, #tpu.memory_space<vmem>>, %arg11: memref<4x18x18xf32, #tpu.memory_space<vmem>>) attributes {dimension_semantics = [#tpu.dimension_semantics<parallel>], iteration_bounds = array<i64: 2>, scalar_prefetch = 0 : i64, scratch_operands = 2 : i64, tpu.core_type = #tpu.core_type<tc>, window_params = [{transform_indices = @transform_0, window_bounds = array<i64: 1, 4, 8, 8>}, {transform_indices = @transform_1, window_bounds = array<i64: 1, 4, 16, 16>}, {pipeline_mode = #tpu.pipeline_mode<synchronous>, transform_indices = @transform_2, window_bounds = array<i64: 16, 8>}, {pipeline_mode = #tpu.pipeline_mode<synchronous>, transform_indices = @transform_3, window_bounds = array<i64: 8, 16>}, {transform_indices = @transform_4, window_bounds = array<i64: 288>}, {transform_indices = @transform_5, window_bounds = array<i64: 4>}, {transform_indices = @transform_6, window_bounds = array<i64: 144>}, {transform_indices = @transform_7, window_bounds = array<i64: 4>}, {transform_indices = @transform_8, window_bounds = array<i64: 1, 4, 16, 16>}]} {
    %cst = arith.constant 0.000000e+00 : f32
    %0 = vector.broadcast %cst : f32 to vector<8x18x18xf32>
    %c0 = arith.constant 0 : index
    %c0_0 = arith.constant 0 : index
    %c0_1 = arith.constant 0 : index
    %1 = vector.load %arg10[%c0, %c0_0, %c0_1] : memref<8x18x18xf32, #tpu.memory_space<vmem>>, vector<8x18x18xf32>
    tpu.vector_store %arg10[%c0, %c0_0, %c0_1], %0 {strides = array<i32>} : memref<8x18x18xf32, #tpu.memory_space<vmem>>, vector<8x18x18xf32>,
    %cst_2 = arith.constant 0.000000e+00 : f32
    %2 = vector.broadcast %cst_2 : f32 to vector<4x18x18xf32>
    %c0_3 = arith.constant 0 : index
    %c0_4 = arith.constant 0 : index
    %c0_5 = arith.constant 0 : index
    %3 = vector.load %arg11[%c0_3, %c0_4, %c0_5] : memref<4x18x18xf32, #tpu.memory_space<vmem>>, vector<4x18x18xf32>
    tpu.vector_store %arg11[%c0_3, %c0_4, %c0_5], %2 {strides = array<i32>} : memref<4x18x18xf32, #tpu.memory_space<vmem>>, vector<4x18x18xf32>,
    %c0_6 = arith.constant 0 : index
    %c0_7 = arith.constant 0 : index
    %c0_8 = arith.constant 0 : index
    %c0_9 = arith.constant 0 : index
    %4 = vector.load %arg2[%c0_6, %c0_7, %c0_8, %c0_9] : memref<1x4x16x16xf32, #tpu.memory_space<vmem>>, vector<1x1x16x16xf32>
    %5 = vector.shape_cast %4 : vector<1x1x16x16xf32> to vector<16x16xf32>
    %c0_10 = arith.constant 0 : index
    %c1 = arith.constant 1 : index
    %c1_11 = arith.constant 1 : index
    %6 = vector.load %arg10[%c0_10, %c1, %c1_11] : memref<8x18x18xf32, #tpu.memory_space<vmem>>, vector<1x16x16xf32>
    %7 = vector.shape_cast %6 : vector<1x16x16xf32> to vector<16x16xf32>
    %8 = vector.shape_cast %5 : vector<16x16xf32> to vector<1x16x16xf32>
    tpu.vector_store %arg10[%c0_10, %c1, %c1_11], %8 {strides = array<i32>} : memref<8x18x18xf32, #tpu.memory_space<vmem>>, vector<1x16x16xf32>,
    %c0_12 = arith.constant 0 : index
    %c1_13 = arith.constant 1 : index
    %c0_14 = arith.constant 0 : index
    %c0_15 = arith.constant 0 : index
    %9 = vector.load %arg2[%c0_12, %c1_13, %c0_14, %c0_15] : memref<1x4x16x16xf32, #tpu.memory_space<vmem>>, vector<1x1x16x16xf32>
    %10 = vector.shape_cast %9 : vector<1x1x16x16xf32> to vector<16x16xf32>
    %c1_16 = arith.constant 1 : index
    %c1_17 = arith.constant 1 : index
    %c1_18 = arith.constant 1 : index
    %11 = vector.load %arg10[%c1_16, %c1_17, %c1_18] : memref<8x18x18xf32, #tpu.memory_space<vmem>>, vector<1x16x16xf32>
    %12 = vector.shape_cast %11 : vector<1x16x16xf32> to vector<16x16xf32>
    %13 = vector.shape_cast %10 : vector<16x16xf32> to vector<1x16x16xf32>
    tpu.vector_store %arg10[%c1_16, %c1_17, %c1_18], %13 {strides = array<i32>} : memref<8x18x18xf32, #tpu.memory_space<vmem>>, vector<1x16x16xf32>,
    %c0_19 = arith.constant 0 : index
    %c2 = arith.constant 2 : index
    %c0_20 = arith.constant 0 : index
    %c0_21 = arith.constant 0 : index
    %14 = vector.load %arg2[%c0_19, %c2, %c0_20, %c0_21] : memref<1x4x16x16xf32, #tpu.memory_space<vmem>>, vector<1x1x16x16xf32>
    %15 = vector.shape_cast %14 : vector<1x1x16x16xf32> to vector<16x16xf32>
    %c2_22 = arith.constant 2 : index
    %c1_23 = arith.constant 1 : index
    %c1_24 = arith.constant 1 : index
    %16 = vector.load %arg10[%c2_22, %c1_23, %c1_24] : memref<8x18x18xf32, #tpu.memory_space<vmem>>, vector<1x16x16xf32>
    %17 = vector.shape_cast %16 : vector<1x16x16xf32> to vector<16x16xf32>
    %18 = vector.shape_cast %15 : vector<16x16xf32> to vector<1x16x16xf32>
    tpu.vector_store %arg10[%c2_22, %c1_23, %c1_24], %18 {strides = array<i32>} : memref<8x18x18xf32, #tpu.memory_space<vmem>>, vector<1x16x16xf32>,
    %c0_25 = arith.constant 0 : index
    %c3 = arith.constant 3 : index
    %c0_26 = arith.constant 0 : index
    %c0_27 = arith.constant 0 : index
    %19 = vector.load %arg2[%c0_25, %c3, %c0_26, %c0_27] : memref<1x4x16x16xf32, #tpu.memory_space<vmem>>, vector<1x1x16x16xf32>
    %20 = vector.shape_cast %19 : vector<1x1x16x16xf32> to vector<16x16xf32>
    %c3_28 = arith.constant 3 : index
    %c1_29 = arith.constant 1 : index
    %c1_30 = arith.constant 1 : index
    %21 = vector.load %arg10[%c3_28, %c1_29, %c1_30] : memref<8x18x18xf32, #tpu.memory_space<vmem>>, vector<1x16x16xf32>
    %22 = vector.shape_cast %21 : vector<1x16x16xf32> to vector<16x16xf32>
    %23 = vector.shape_cast %20 : vector<16x16xf32> to vector<1x16x16xf32>
    tpu.vector_store %arg10[%c3_28, %c1_29, %c1_30], %23 {strides = array<i32>} : memref<8x18x18xf32, #tpu.memory_space<vmem>>, vector<1x16x16xf32>,
    %c0_31 = arith.constant 0 : index
    %c0_32 = arith.constant 0 : index
    %24 = vector.load %arg3[%c0_31, %c0_32] : memref<16x8xf32, #tpu.memory_space<vmem>>, vector<16x8xf32>
    %c0_33 = arith.constant 0 : index
    %c0_34 = arith.constant 0 : index
    %25 = vector.load %arg4[%c0_33, %c0_34] : memref<8x16xf32, #tpu.memory_space<vmem>>, vector<8x16xf32>
    %c0_35 = arith.constant 0 : index
    %c0_36 = arith.constant 0 : index
    %c0_37 = arith.constant 0 : index
    %c0_38 = arith.constant 0 : index
    %26 = vector.load %arg1[%c0_35, %c0_36, %c0_37, %c0_38] : memref<1x4x8x8xf32, #tpu.memory_space<vmem>>, vector<1x1x8x8xf32>
    %27 = vector.shape_cast %26 : vector<1x1x8x8xf32> to vector<8x8xf32>
    %28 = vector.extract_strided_slice %24 {offsets = [0, 0], sizes = [16, 1], strides = [1, 1]} : vector<16x8xf32> to vector<16x1xf32>
    %29 = vector.extract_strided_slice %27 {offsets = [0, 0], sizes = [1, 8], strides = [1, 1]} : vector<8x8xf32> to vector<1x8xf32>
    %30 = vector.broadcast %28 : vector<16x1xf32> to vector<16x8xf32>
    %31 = vector.broadcast %29 : vector<1x8xf32> to vector<16x8xf32>
    %32 = arith.mulf %30, %31 : vector<16x8xf32>
    %33 = vector.extract_strided_slice %24 {offsets = [0, 1], sizes = [16, 1], strides = [1, 1]} : vector<16x8xf32> to vector<16x1xf32>
    %34 = vector.extract_strided_slice %27 {offsets = [1, 0], sizes = [1, 8], strides = [1, 1]} : vector<8x8xf32> to vector<1x8xf32>
    %35 = vector.broadcast %33 : vector<16x1xf32> to vector<16x8xf32>
    %36 = vector.broadcast %34 : vector<1x8xf32> to vector<16x8xf32>
    %37 = arith.mulf %35, %36 : vector<16x8xf32>
    %38 = arith.addf %32, %37 : vector<16x8xf32>
    %39 = vector.extract_strided_slice %24 {offsets = [0, 2], sizes = [16, 1], strides = [1, 1]} : vector<16x8xf32> to vector<16x1xf32>
    %40 = vector.extract_strided_slice %27 {offsets = [2, 0], sizes = [1, 8], strides = [1, 1]} : vector<8x8xf32> to vector<1x8xf32>
    %41 = vector.broadcast %39 : vector<16x1xf32> to vector<16x8xf32>
    %42 = vector.broadcast %40 : vector<1x8xf32> to vector<16x8xf32>
    %43 = arith.mulf %41, %42 : vector<16x8xf32>
    %44 = arith.addf %38, %43 : vector<16x8xf32>
    %45 = vector.extract_strided_slice %24 {offsets = [0, 3], sizes = [16, 1], strides = [1, 1]} : vector<16x8xf32> to vector<16x1xf32>
    %46 = vector.extract_strided_slice %27 {offsets = [3, 0], sizes = [1, 8], strides = [1, 1]} : vector<8x8xf32> to vector<1x8xf32>
    %47 = vector.broadcast %45 : vector<16x1xf32> to vector<16x8xf32>
    %48 = vector.broadcast %46 : vector<1x8xf32> to vector<16x8xf32>
    %49 = arith.mulf %47, %48 : vector<16x8xf32>
    %50 = arith.addf %44, %49 : vector<16x8xf32>
    %51 = vector.extract_strided_slice %24 {offsets = [0, 4], sizes = [16, 1], strides = [1, 1]} : vector<16x8xf32> to vector<16x1xf32>
    %52 = vector.extract_strided_slice %27 {offsets = [4, 0], sizes = [1, 8], strides = [1, 1]} : vector<8x8xf32> to vector<1x8xf32>
    %53 = vector.broadcast %51 : vector<16x1xf32> to vector<16x8xf32>
    %54 = vector.broadcast %52 : vector<1x8xf32> to vector<16x8xf32>
    %55 = arith.mulf %53, %54 : vector<16x8xf32>
    %56 = arith.addf %50, %55 : vector<16x8xf32>
    %57 = vector.extract_strided_slice %24 {offsets = [0, 5], sizes = [16, 1], strides = [1, 1]} : vector<16x8xf32> to vector<16x1xf32>
    %58 = vector.extract_strided_slice %27 {offsets = [5, 0], sizes = [1, 8], strides = [1, 1]} : vector<8x8xf32> to vector<1x8xf32>
    %59 = vector.broadcast %57 : vector<16x1xf32> to vector<16x8xf32>
    %60 = vector.broadcast %58 : vector<1x8xf32> to vector<16x8xf32>
    %61 = arith.mulf %59, %60 : vector<16x8xf32>
    %62 = arith.addf %56, %61 : vector<16x8xf32>
    %63 = vector.extract_strided_slice %24 {offsets = [0, 6], sizes = [16, 1], strides = [1, 1]} : vector<16x8xf32> to vector<16x1xf32>
    %64 = vector.extract_strided_slice %27 {offsets = [6, 0], sizes = [1, 8], strides = [1, 1]} : vector<8x8xf32> to vector<1x8xf32>
    %65 = vector.broadcast %63 : vector<16x1xf32> to vector<16x8xf32>
    %66 = vector.broadcast %64 : vector<1x8xf32> to vector<16x8xf32>
    %67 = arith.mulf %65, %66 : vector<16x8xf32>
    %68 = arith.addf %62, %67 : vector<16x8xf32>
    %69 = vector.extract_strided_slice %24 {offsets = [0, 7], sizes = [16, 1], strides = [1, 1]} : vector<16x8xf32> to vector<16x1xf32>
    %70 = vector.extract_strided_slice %27 {offsets = [7, 0], sizes = [1, 8], strides = [1, 1]} : vector<8x8xf32> to vector<1x8xf32>
    %71 = vector.broadcast %69 : vector<16x1xf32> to vector<16x8xf32>
    %72 = vector.broadcast %70 : vector<1x8xf32> to vector<16x8xf32>
    %73 = arith.mulf %71, %72 : vector<16x8xf32>
    %74 = arith.addf %68, %73 : vector<16x8xf32>
    %75 = vector.extract_strided_slice %74 {offsets = [0, 0], sizes = [16, 1], strides = [1, 1]} : vector<16x8xf32> to vector<16x1xf32>
    %76 = vector.extract_strided_slice %25 {offsets = [0, 0], sizes = [1, 16], strides = [1, 1]} : vector<8x16xf32> to vector<1x16xf32>
    %77 = vector.broadcast %75 : vector<16x1xf32> to vector<16x16xf32>
    %78 = vector.broadcast %76 : vector<1x16xf32> to vector<16x16xf32>
    %79 = arith.mulf %77, %78 : vector<16x16xf32>
    %80 = vector.extract_strided_slice %74 {offsets = [0, 1], sizes = [16, 1], strides = [1, 1]} : vector<16x8xf32> to vector<16x1xf32>
    %81 = vector.extract_strided_slice %25 {offsets = [1, 0], sizes = [1, 16], strides = [1, 1]} : vector<8x16xf32> to vector<1x16xf32>
    %82 = vector.broadcast %80 : vector<16x1xf32> to vector<16x16xf32>
    %83 = vector.broadcast %81 : vector<1x16xf32> to vector<16x16xf32>
    %84 = arith.mulf %82, %83 : vector<16x16xf32>
    %85 = arith.addf %79, %84 : vector<16x16xf32>
    %86 = vector.extract_strided_slice %74 {offsets = [0, 2], sizes = [16, 1], strides = [1, 1]} : vector<16x8xf32> to vector<16x1xf32>
    %87 = vector.extract_strided_slice %25 {offsets = [2, 0], sizes = [1, 16], strides = [1, 1]} : vector<8x16xf32> to vector<1x16xf32>
    %88 = vector.broadcast %86 : vector<16x1xf32> to vector<16x16xf32>
    %89 = vector.broadcast %87 : vector<1x16xf32> to vector<16x16xf32>
    %90 = arith.mulf %88, %89 : vector<16x16xf32>
    %91 = arith.addf %85, %90 : vector<16x16xf32>
    %92 = vector.extract_strided_slice %74 {offsets = [0, 3], sizes = [16, 1], strides = [1, 1]} : vector<16x8xf32> to vector<16x1xf32>
    %93 = vector.extract_strided_slice %25 {offsets = [3, 0], sizes = [1, 16], strides = [1, 1]} : vector<8x16xf32> to vector<1x16xf32>
    %94 = vector.broadcast %92 : vector<16x1xf32> to vector<16x16xf32>
    %95 = vector.broadcast %93 : vector<1x16xf32> to vector<16x16xf32>
    %96 = arith.mulf %94, %95 : vector<16x16xf32>
    %97 = arith.addf %91, %96 : vector<16x16xf32>
    %98 = vector.extract_strided_slice %74 {offsets = [0, 4], sizes = [16, 1], strides = [1, 1]} : vector<16x8xf32> to vector<16x1xf32>
    %99 = vector.extract_strided_slice %25 {offsets = [4, 0], sizes = [1, 16], strides = [1, 1]} : vector<8x16xf32> to vector<1x16xf32>
    %100 = vector.broadcast %98 : vector<16x1xf32> to vector<16x16xf32>
    %101 = vector.broadcast %99 : vector<1x16xf32> to vector<16x16xf32>
    %102 = arith.mulf %100, %101 : vector<16x16xf32>
    %103 = arith.addf %97, %102 : vector<16x16xf32>
    %104 = vector.extract_strided_slice %74 {offsets = [0, 5], sizes = [16, 1], strides = [1, 1]} : vector<16x8xf32> to vector<16x1xf32>
    %105 = vector.extract_strided_slice %25 {offsets = [5, 0], sizes = [1, 16], strides = [1, 1]} : vector<8x16xf32> to vector<1x16xf32>
    %106 = vector.broadcast %104 : vector<16x1xf32> to vector<16x16xf32>
    %107 = vector.broadcast %105 : vector<1x16xf32> to vector<16x16xf32>
    %108 = arith.mulf %106, %107 : vector<16x16xf32>
    %109 = arith.addf %103, %108 : vector<16x16xf32>
    %110 = vector.extract_strided_slice %74 {offsets = [0, 6], sizes = [16, 1], strides = [1, 1]} : vector<16x8xf32> to vector<16x1xf32>
    %111 = vector.extract_strided_slice %25 {offsets = [6, 0], sizes = [1, 16], strides = [1, 1]} : vector<8x16xf32> to vector<1x16xf32>
    %112 = vector.broadcast %110 : vector<16x1xf32> to vector<16x16xf32>
    %113 = vector.broadcast %111 : vector<1x16xf32> to vector<16x16xf32>
    %114 = arith.mulf %112, %113 : vector<16x16xf32>
    %115 = arith.addf %109, %114 : vector<16x16xf32>
    %116 = vector.extract_strided_slice %74 {offsets = [0, 7], sizes = [16, 1], strides = [1, 1]} : vector<16x8xf32> to vector<16x1xf32>
    %117 = vector.extract_strided_slice %25 {offsets = [7, 0], sizes = [1, 16], strides = [1, 1]} : vector<8x16xf32> to vector<1x16xf32>
    %118 = vector.broadcast %116 : vector<16x1xf32> to vector<16x16xf32>
    %119 = vector.broadcast %117 : vector<1x16xf32> to vector<16x16xf32>
    %120 = arith.mulf %118, %119 : vector<16x16xf32>
    %121 = arith.addf %115, %120 : vector<16x16xf32>
    %c4 = arith.constant 4 : index
    %c1_39 = arith.constant 1 : index
    %c1_40 = arith.constant 1 : index
    %122 = vector.load %arg10[%c4, %c1_39, %c1_40] : memref<8x18x18xf32, #tpu.memory_space<vmem>>, vector<1x16x16xf32>
    %123 = vector.shape_cast %122 : vector<1x16x16xf32> to vector<16x16xf32>
    %124 = vector.shape_cast %121 : vector<16x16xf32> to vector<1x16x16xf32>
    tpu.vector_store %arg10[%c4, %c1_39, %c1_40], %124 {strides = array<i32>} : memref<8x18x18xf32, #tpu.memory_space<vmem>>, vector<1x16x16xf32>,
    %c0_41 = arith.constant 0 : index
    %c1_42 = arith.constant 1 : index
    %c0_43 = arith.constant 0 : index
    %c0_44 = arith.constant 0 : index
    %125 = vector.load %arg1[%c0_41, %c1_42, %c0_43, %c0_44] : memref<1x4x8x8xf32, #tpu.memory_space<vmem>>, vector<1x1x8x8xf32>
    %126 = vector.shape_cast %125 : vector<1x1x8x8xf32> to vector<8x8xf32>
    %127 = vector.extract_strided_slice %24 {offsets = [0, 0], sizes = [16, 1], strides = [1, 1]} : vector<16x8xf32> to vector<16x1xf32>
    %128 = vector.extract_strided_slice %126 {offsets = [0, 0], sizes = [1, 8], strides = [1, 1]} : vector<8x8xf32> to vector<1x8xf32>
    %129 = vector.broadcast %127 : vector<16x1xf32> to vector<16x8xf32>
    %130 = vector.broadcast %128 : vector<1x8xf32> to vector<16x8xf32>
    %131 = arith.mulf %129, %130 : vector<16x8xf32>
    %132 = vector.extract_strided_slice %24 {offsets = [0, 1], sizes = [16, 1], strides = [1, 1]} : vector<16x8xf32> to vector<16x1xf32>
    %133 = vector.extract_strided_slice %126 {offsets = [1, 0], sizes = [1, 8], strides = [1, 1]} : vector<8x8xf32> to vector<1x8xf32>
    %134 = vector.broadcast %132 : vector<16x1xf32> to vector<16x8xf32>
    %135 = vector.broadcast %133 : vector<1x8xf32> to vector<16x8xf32>
    %136 = arith.mulf %134, %135 : vector<16x8xf32>
    %137 = arith.addf %131, %136 : vector<16x8xf32>
    %138 = vector.extract_strided_slice %24 {offsets = [0, 2], sizes = [16, 1], strides = [1, 1]} : vector<16x8xf32> to vector<16x1xf32>
    %139 = vector.extract_strided_slice %126 {offsets = [2, 0], sizes = [1, 8], strides = [1, 1]} : vector<8x8xf32> to vector<1x8xf32>
    %140 = vector.broadcast %138 : vector<16x1xf32> to vector<16x8xf32>
    %141 = vector.broadcast %139 : vector<1x8xf32> to vector<16x8xf32>
    %142 = arith.mulf %140, %141 : vector<16x8xf32>
    %143 = arith.addf %137, %142 : vector<16x8xf32>
    %144 = vector.extract_strided_slice %24 {offsets = [0, 3], sizes = [16, 1], strides = [1, 1]} : vector<16x8xf32> to vector<16x1xf32>
    %145 = vector.extract_strided_slice %126 {offsets = [3, 0], sizes = [1, 8], strides = [1, 1]} : vector<8x8xf32> to vector<1x8xf32>
    %146 = vector.broadcast %144 : vector<16x1xf32> to vector<16x8xf32>
    %147 = vector.broadcast %145 : vector<1x8xf32> to vector<16x8xf32>
    %148 = arith.mulf %146, %147 : vector<16x8xf32>
    %149 = arith.addf %143, %148 : vector<16x8xf32>
    %150 = vector.extract_strided_slice %24 {offsets = [0, 4], sizes = [16, 1], strides = [1, 1]} : vector<16x8xf32> to vector<16x1xf32>
    %151 = vector.extract_strided_slice %126 {offsets = [4, 0], sizes = [1, 8], strides = [1, 1]} : vector<8x8xf32> to vector<1x8xf32>
    %152 = vector.broadcast %150 : vector<16x1xf32> to vector<16x8xf32>
    %153 = vector.broadcast %151 : vector<1x8xf32> to vector<16x8xf32>
    %154 = arith.mulf %152, %153 : vector<16x8xf32>
    %155 = arith.addf %149, %154 : vector<16x8xf32>
    %156 = vector.extract_strided_slice %24 {offsets = [0, 5], sizes = [16, 1], strides = [1, 1]} : vector<16x8xf32> to vector<16x1xf32>
    %157 = vector.extract_strided_slice %126 {offsets = [5, 0], sizes = [1, 8], strides = [1, 1]} : vector<8x8xf32> to vector<1x8xf32>
    %158 = vector.broadcast %156 : vector<16x1xf32> to vector<16x8xf32>
    %159 = vector.broadcast %157 : vector<1x8xf32> to vector<16x8xf32>
    %160 = arith.mulf %158, %159 : vector<16x8xf32>
    %161 = arith.addf %155, %160 : vector<16x8xf32>
    %162 = vector.extract_strided_slice %24 {offsets = [0, 6], sizes = [16, 1], strides = [1, 1]} : vector<16x8xf32> to vector<16x1xf32>
    %163 = vector.extract_strided_slice %126 {offsets = [6, 0], sizes = [1, 8], strides = [1, 1]} : vector<8x8xf32> to vector<1x8xf32>
    %164 = vector.broadcast %162 : vector<16x1xf32> to vector<16x8xf32>
    %165 = vector.broadcast %163 : vector<1x8xf32> to vector<16x8xf32>
    %166 = arith.mulf %164, %165 : vector<16x8xf32>
    %167 = arith.addf %161, %166 : vector<16x8xf32>
    %168 = vector.extract_strided_slice %24 {offsets = [0, 7], sizes = [16, 1], strides = [1, 1]} : vector<16x8xf32> to vector<16x1xf32>
    %169 = vector.extract_strided_slice %126 {offsets = [7, 0], sizes = [1, 8], strides = [1, 1]} : vector<8x8xf32> to vector<1x8xf32>
    %170 = vector.broadcast %168 : vector<16x1xf32> to vector<16x8xf32>
    %171 = vector.broadcast %169 : vector<1x8xf32> to vector<16x8xf32>
    %172 = arith.mulf %170, %171 : vector<16x8xf32>
    %173 = arith.addf %167, %172 : vector<16x8xf32>
    %174 = vector.extract_strided_slice %173 {offsets = [0, 0], sizes = [16, 1], strides = [1, 1]} : vector<16x8xf32> to vector<16x1xf32>
    %175 = vector.extract_strided_slice %25 {offsets = [0, 0], sizes = [1, 16], strides = [1, 1]} : vector<8x16xf32> to vector<1x16xf32>
    %176 = vector.broadcast %174 : vector<16x1xf32> to vector<16x16xf32>
    %177 = vector.broadcast %175 : vector<1x16xf32> to vector<16x16xf32>
    %178 = arith.mulf %176, %177 : vector<16x16xf32>
    %179 = vector.extract_strided_slice %173 {offsets = [0, 1], sizes = [16, 1], strides = [1, 1]} : vector<16x8xf32> to vector<16x1xf32>
    %180 = vector.extract_strided_slice %25 {offsets = [1, 0], sizes = [1, 16], strides = [1, 1]} : vector<8x16xf32> to vector<1x16xf32>
    %181 = vector.broadcast %179 : vector<16x1xf32> to vector<16x16xf32>
    %182 = vector.broadcast %180 : vector<1x16xf32> to vector<16x16xf32>
    %183 = arith.mulf %181, %182 : vector<16x16xf32>
    %184 = arith.addf %178, %183 : vector<16x16xf32>
    %185 = vector.extract_strided_slice %173 {offsets = [0, 2], sizes = [16, 1], strides = [1, 1]} : vector<16x8xf32> to vector<16x1xf32>
    %186 = vector.extract_strided_slice %25 {offsets = [2, 0], sizes = [1, 16], strides = [1, 1]} : vector<8x16xf32> to vector<1x16xf32>
    %187 = vector.broadcast %185 : vector<16x1xf32> to vector<16x16xf32>
    %188 = vector.broadcast %186 : vector<1x16xf32> to vector<16x16xf32>
    %189 = arith.mulf %187, %188 : vector<16x16xf32>
    %190 = arith.addf %184, %189 : vector<16x16xf32>
    %191 = vector.extract_strided_slice %173 {offsets = [0, 3], sizes = [16, 1], strides = [1, 1]} : vector<16x8xf32> to vector<16x1xf32>
    %192 = vector.extract_strided_slice %25 {offsets = [3, 0], sizes = [1, 16], strides = [1, 1]} : vector<8x16xf32> to vector<1x16xf32>
    %193 = vector.broadcast %191 : vector<16x1xf32> to vector<16x16xf32>
    %194 = vector.broadcast %192 : vector<1x16xf32> to vector<16x16xf32>
    %195 = arith.mulf %193, %194 : vector<16x16xf32>
    %196 = arith.addf %190, %195 : vector<16x16xf32>
    %197 = vector.extract_strided_slice %173 {offsets = [0, 4], sizes = [16, 1], strides = [1, 1]} : vector<16x8xf32> to vector<16x1xf32>
    %198 = vector.extract_strided_slice %25 {offsets = [4, 0], sizes = [1, 16], strides = [1, 1]} : vector<8x16xf32> to vector<1x16xf32>
    %199 = vector.broadcast %197 : vector<16x1xf32> to vector<16x16xf32>
    %200 = vector.broadcast %198 : vector<1x16xf32> to vector<16x16xf32>
    %201 = arith.mulf %199, %200 : vector<16x16xf32>
    %202 = arith.addf %196, %201 : vector<16x16xf32>
    %203 = vector.extract_strided_slice %173 {offsets = [0, 5], sizes = [16, 1], strides = [1, 1]} : vector<16x8xf32> to vector<16x1xf32>
    %204 = vector.extract_strided_slice %25 {offsets = [5, 0], sizes = [1, 16], strides = [1, 1]} : vector<8x16xf32> to vector<1x16xf32>
    %205 = vector.broadcast %203 : vector<16x1xf32> to vector<16x16xf32>
    %206 = vector.broadcast %204 : vector<1x16xf32> to vector<16x16xf32>
    %207 = arith.mulf %205, %206 : vector<16x16xf32>
    %208 = arith.addf %202, %207 : vector<16x16xf32>
    %209 = vector.extract_strided_slice %173 {offsets = [0, 6], sizes = [16, 1], strides = [1, 1]} : vector<16x8xf32> to vector<16x1xf32>
    %210 = vector.extract_strided_slice %25 {offsets = [6, 0], sizes = [1, 16], strides = [1, 1]} : vector<8x16xf32> to vector<1x16xf32>
    %211 = vector.broadcast %209 : vector<16x1xf32> to vector<16x16xf32>
    %212 = vector.broadcast %210 : vector<1x16xf32> to vector<16x16xf32>
    %213 = arith.mulf %211, %212 : vector<16x16xf32>
    %214 = arith.addf %208, %213 : vector<16x16xf32>
    %215 = vector.extract_strided_slice %173 {offsets = [0, 7], sizes = [16, 1], strides = [1, 1]} : vector<16x8xf32> to vector<16x1xf32>
    %216 = vector.extract_strided_slice %25 {offsets = [7, 0], sizes = [1, 16], strides = [1, 1]} : vector<8x16xf32> to vector<1x16xf32>
    %217 = vector.broadcast %215 : vector<16x1xf32> to vector<16x16xf32>
    %218 = vector.broadcast %216 : vector<1x16xf32> to vector<16x16xf32>
    %219 = arith.mulf %217, %218 : vector<16x16xf32>
    %220 = arith.addf %214, %219 : vector<16x16xf32>
    %c5 = arith.constant 5 : index
    %c1_45 = arith.constant 1 : index
    %c1_46 = arith.constant 1 : index
    %221 = vector.load %arg10[%c5, %c1_45, %c1_46] : memref<8x18x18xf32, #tpu.memory_space<vmem>>, vector<1x16x16xf32>
    %222 = vector.shape_cast %221 : vector<1x16x16xf32> to vector<16x16xf32>
    %223 = vector.shape_cast %220 : vector<16x16xf32> to vector<1x16x16xf32>
    tpu.vector_store %arg10[%c5, %c1_45, %c1_46], %223 {strides = array<i32>} : memref<8x18x18xf32, #tpu.memory_space<vmem>>, vector<1x16x16xf32>,
    %c0_47 = arith.constant 0 : index
    %c2_48 = arith.constant 2 : index
    %c0_49 = arith.constant 0 : index
    %c0_50 = arith.constant 0 : index
    %224 = vector.load %arg1[%c0_47, %c2_48, %c0_49, %c0_50] : memref<1x4x8x8xf32, #tpu.memory_space<vmem>>, vector<1x1x8x8xf32>
    %225 = vector.shape_cast %224 : vector<1x1x8x8xf32> to vector<8x8xf32>
    %226 = vector.extract_strided_slice %24 {offsets = [0, 0], sizes = [16, 1], strides = [1, 1]} : vector<16x8xf32> to vector<16x1xf32>
    %227 = vector.extract_strided_slice %225 {offsets = [0, 0], sizes = [1, 8], strides = [1, 1]} : vector<8x8xf32> to vector<1x8xf32>
    %228 = vector.broadcast %226 : vector<16x1xf32> to vector<16x8xf32>
    %229 = vector.broadcast %227 : vector<1x8xf32> to vector<16x8xf32>
    %230 = arith.mulf %228, %229 : vector<16x8xf32>
    %231 = vector.extract_strided_slice %24 {offsets = [0, 1], sizes = [16, 1], strides = [1, 1]} : vector<16x8xf32> to vector<16x1xf32>
    %232 = vector.extract_strided_slice %225 {offsets = [1, 0], sizes = [1, 8], strides = [1, 1]} : vector<8x8xf32> to vector<1x8xf32>
    %233 = vector.broadcast %231 : vector<16x1xf32> to vector<16x8xf32>
    %234 = vector.broadcast %232 : vector<1x8xf32> to vector<16x8xf32>
    %235 = arith.mulf %233, %234 : vector<16x8xf32>
    %236 = arith.addf %230, %235 : vector<16x8xf32>
    %237 = vector.extract_strided_slice %24 {offsets = [0, 2], sizes = [16, 1], strides = [1, 1]} : vector<16x8xf32> to vector<16x1xf32>
    %238 = vector.extract_strided_slice %225 {offsets = [2, 0], sizes = [1, 8], strides = [1, 1]} : vector<8x8xf32> to vector<1x8xf32>
    %239 = vector.broadcast %237 : vector<16x1xf32> to vector<16x8xf32>
    %240 = vector.broadcast %238 : vector<1x8xf32> to vector<16x8xf32>
    %241 = arith.mulf %239, %240 : vector<16x8xf32>
    %242 = arith.addf %236, %241 : vector<16x8xf32>
    %243 = vector.extract_strided_slice %24 {offsets = [0, 3], sizes = [16, 1], strides = [1, 1]} : vector<16x8xf32> to vector<16x1xf32>
    %244 = vector.extract_strided_slice %225 {offsets = [3, 0], sizes = [1, 8], strides = [1, 1]} : vector<8x8xf32> to vector<1x8xf32>
    %245 = vector.broadcast %243 : vector<16x1xf32> to vector<16x8xf32>
    %246 = vector.broadcast %244 : vector<1x8xf32> to vector<16x8xf32>
    %247 = arith.mulf %245, %246 : vector<16x8xf32>
    %248 = arith.addf %242, %247 : vector<16x8xf32>
    %249 = vector.extract_strided_slice %24 {offsets = [0, 4], sizes = [16, 1], strides = [1, 1]} : vector<16x8xf32> to vector<16x1xf32>
    %250 = vector.extract_strided_slice %225 {offsets = [4, 0], sizes = [1, 8], strides = [1, 1]} : vector<8x8xf32> to vector<1x8xf32>
    %251 = vector.broadcast %249 : vector<16x1xf32> to vector<16x8xf32>
    %252 = vector.broadcast %250 : vector<1x8xf32> to vector<16x8xf32>
    %253 = arith.mulf %251, %252 : vector<16x8xf32>
    %254 = arith.addf %248, %253 : vector<16x8xf32>
    %255 = vector.extract_strided_slice %24 {offsets = [0, 5], sizes = [16, 1], strides = [1, 1]} : vector<16x8xf32> to vector<16x1xf32>
    %256 = vector.extract_strided_slice %225 {offsets = [5, 0], sizes = [1, 8], strides = [1, 1]} : vector<8x8xf32> to vector<1x8xf32>
    %257 = vector.broadcast %255 : vector<16x1xf32> to vector<16x8xf32>
    %258 = vector.broadcast %256 : vector<1x8xf32> to vector<16x8xf32>
    %259 = arith.mulf %257, %258 : vector<16x8xf32>
    %260 = arith.addf %254, %259 : vector<16x8xf32>
    %261 = vector.extract_strided_slice %24 {offsets = [0, 6], sizes = [16, 1], strides = [1, 1]} : vector<16x8xf32> to vector<16x1xf32>
    %262 = vector.extract_strided_slice %225 {offsets = [6, 0], sizes = [1, 8], strides = [1, 1]} : vector<8x8xf32> to vector<1x8xf32>
    %263 = vector.broadcast %261 : vector<16x1xf32> to vector<16x8xf32>
    %264 = vector.broadcast %262 : vector<1x8xf32> to vector<16x8xf32>
    %265 = arith.mulf %263, %264 : vector<16x8xf32>
    %266 = arith.addf %260, %265 : vector<16x8xf32>
    %267 = vector.extract_strided_slice %24 {offsets = [0, 7], sizes = [16, 1], strides = [1, 1]} : vector<16x8xf32> to vector<16x1xf32>
    %268 = vector.extract_strided_slice %225 {offsets = [7, 0], sizes = [1, 8], strides = [1, 1]} : vector<8x8xf32> to vector<1x8xf32>
    %269 = vector.broadcast %267 : vector<16x1xf32> to vector<16x8xf32>
    %270 = vector.broadcast %268 : vector<1x8xf32> to vector<16x8xf32>
    %271 = arith.mulf %269, %270 : vector<16x8xf32>
    %272 = arith.addf %266, %271 : vector<16x8xf32>
    %273 = vector.extract_strided_slice %272 {offsets = [0, 0], sizes = [16, 1], strides = [1, 1]} : vector<16x8xf32> to vector<16x1xf32>
    %274 = vector.extract_strided_slice %25 {offsets = [0, 0], sizes = [1, 16], strides = [1, 1]} : vector<8x16xf32> to vector<1x16xf32>
    %275 = vector.broadcast %273 : vector<16x1xf32> to vector<16x16xf32>
    %276 = vector.broadcast %274 : vector<1x16xf32> to vector<16x16xf32>
    %277 = arith.mulf %275, %276 : vector<16x16xf32>
    %278 = vector.extract_strided_slice %272 {offsets = [0, 1], sizes = [16, 1], strides = [1, 1]} : vector<16x8xf32> to vector<16x1xf32>
    %279 = vector.extract_strided_slice %25 {offsets = [1, 0], sizes = [1, 16], strides = [1, 1]} : vector<8x16xf32> to vector<1x16xf32>
    %280 = vector.broadcast %278 : vector<16x1xf32> to vector<16x16xf32>
    %281 = vector.broadcast %279 : vector<1x16xf32> to vector<16x16xf32>
    %282 = arith.mulf %280, %281 : vector<16x16xf32>
    %283 = arith.addf %277, %282 : vector<16x16xf32>
    %284 = vector.extract_strided_slice %272 {offsets = [0, 2], sizes = [16, 1], strides = [1, 1]} : vector<16x8xf32> to vector<16x1xf32>
    %285 = vector.extract_strided_slice %25 {offsets = [2, 0], sizes = [1, 16], strides = [1, 1]} : vector<8x16xf32> to vector<1x16xf32>
    %286 = vector.broadcast %284 : vector<16x1xf32> to vector<16x16xf32>
    %287 = vector.broadcast %285 : vector<1x16xf32> to vector<16x16xf32>
    %288 = arith.mulf %286, %287 : vector<16x16xf32>
    %289 = arith.addf %283, %288 : vector<16x16xf32>
    %290 = vector.extract_strided_slice %272 {offsets = [0, 3], sizes = [16, 1], strides = [1, 1]} : vector<16x8xf32> to vector<16x1xf32>
    %291 = vector.extract_strided_slice %25 {offsets = [3, 0], sizes = [1, 16], strides = [1, 1]} : vector<8x16xf32> to vector<1x16xf32>
    %292 = vector.broadcast %290 : vector<16x1xf32> to vector<16x16xf32>
    %293 = vector.broadcast %291 : vector<1x16xf32> to vector<16x16xf32>
    %294 = arith.mulf %292, %293 : vector<16x16xf32>
    %295 = arith.addf %289, %294 : vector<16x16xf32>
    %296 = vector.extract_strided_slice %272 {offsets = [0, 4], sizes = [16, 1], strides = [1, 1]} : vector<16x8xf32> to vector<16x1xf32>
    %297 = vector.extract_strided_slice %25 {offsets = [4, 0], sizes = [1, 16], strides = [1, 1]} : vector<8x16xf32> to vector<1x16xf32>
    %298 = vector.broadcast %296 : vector<16x1xf32> to vector<16x16xf32>
    %299 = vector.broadcast %297 : vector<1x16xf32> to vector<16x16xf32>
    %300 = arith.mulf %298, %299 : vector<16x16xf32>
    %301 = arith.addf %295, %300 : vector<16x16xf32>
    %302 = vector.extract_strided_slice %272 {offsets = [0, 5], sizes = [16, 1], strides = [1, 1]} : vector<16x8xf32> to vector<16x1xf32>
    %303 = vector.extract_strided_slice %25 {offsets = [5, 0], sizes = [1, 16], strides = [1, 1]} : vector<8x16xf32> to vector<1x16xf32>
    %304 = vector.broadcast %302 : vector<16x1xf32> to vector<16x16xf32>
    %305 = vector.broadcast %303 : vector<1x16xf32> to vector<16x16xf32>
    %306 = arith.mulf %304, %305 : vector<16x16xf32>
    %307 = arith.addf %301, %306 : vector<16x16xf32>
    %308 = vector.extract_strided_slice %272 {offsets = [0, 6], sizes = [16, 1], strides = [1, 1]} : vector<16x8xf32> to vector<16x1xf32>
    %309 = vector.extract_strided_slice %25 {offsets = [6, 0], sizes = [1, 16], strides = [1, 1]} : vector<8x16xf32> to vector<1x16xf32>
    %310 = vector.broadcast %308 : vector<16x1xf32> to vector<16x16xf32>
    %311 = vector.broadcast %309 : vector<1x16xf32> to vector<16x16xf32>
    %312 = arith.mulf %310, %311 : vector<16x16xf32>
    %313 = arith.addf %307, %312 : vector<16x16xf32>
    %314 = vector.extract_strided_slice %272 {offsets = [0, 7], sizes = [16, 1], strides = [1, 1]} : vector<16x8xf32> to vector<16x1xf32>
    %315 = vector.extract_strided_slice %25 {offsets = [7, 0], sizes = [1, 16], strides = [1, 1]} : vector<8x16xf32> to vector<1x16xf32>
    %316 = vector.broadcast %314 : vector<16x1xf32> to vector<16x16xf32>
    %317 = vector.broadcast %315 : vector<1x16xf32> to vector<16x16xf32>
    %318 = arith.mulf %316, %317 : vector<16x16xf32>
    %319 = arith.addf %313, %318 : vector<16x16xf32>
    %c6 = arith.constant 6 : index
    %c1_51 = arith.constant 1 : index
    %c1_52 = arith.constant 1 : index
    %320 = vector.load %arg10[%c6, %c1_51, %c1_52] : memref<8x18x18xf32, #tpu.memory_space<vmem>>, vector<1x16x16xf32>
    %321 = vector.shape_cast %320 : vector<1x16x16xf32> to vector<16x16xf32>
    %322 = vector.shape_cast %319 : vector<16x16xf32> to vector<1x16x16xf32>
    tpu.vector_store %arg10[%c6, %c1_51, %c1_52], %322 {strides = array<i32>} : memref<8x18x18xf32, #tpu.memory_space<vmem>>, vector<1x16x16xf32>,
    %c0_53 = arith.constant 0 : index
    %c3_54 = arith.constant 3 : index
    %c0_55 = arith.constant 0 : index
    %c0_56 = arith.constant 0 : index
    %323 = vector.load %arg1[%c0_53, %c3_54, %c0_55, %c0_56] : memref<1x4x8x8xf32, #tpu.memory_space<vmem>>, vector<1x1x8x8xf32>
    %324 = vector.shape_cast %323 : vector<1x1x8x8xf32> to vector<8x8xf32>
    %325 = vector.extract_strided_slice %24 {offsets = [0, 0], sizes = [16, 1], strides = [1, 1]} : vector<16x8xf32> to vector<16x1xf32>
    %326 = vector.extract_strided_slice %324 {offsets = [0, 0], sizes = [1, 8], strides = [1, 1]} : vector<8x8xf32> to vector<1x8xf32>
    %327 = vector.broadcast %325 : vector<16x1xf32> to vector<16x8xf32>
    %328 = vector.broadcast %326 : vector<1x8xf32> to vector<16x8xf32>
    %329 = arith.mulf %327, %328 : vector<16x8xf32>
    %330 = vector.extract_strided_slice %24 {offsets = [0, 1], sizes = [16, 1], strides = [1, 1]} : vector<16x8xf32> to vector<16x1xf32>
    %331 = vector.extract_strided_slice %324 {offsets = [1, 0], sizes = [1, 8], strides = [1, 1]} : vector<8x8xf32> to vector<1x8xf32>
    %332 = vector.broadcast %330 : vector<16x1xf32> to vector<16x8xf32>
    %333 = vector.broadcast %331 : vector<1x8xf32> to vector<16x8xf32>
    %334 = arith.mulf %332, %333 : vector<16x8xf32>
    %335 = arith.addf %329, %334 : vector<16x8xf32>
    %336 = vector.extract_strided_slice %24 {offsets = [0, 2], sizes = [16, 1], strides = [1, 1]} : vector<16x8xf32> to vector<16x1xf32>
    %337 = vector.extract_strided_slice %324 {offsets = [2, 0], sizes = [1, 8], strides = [1, 1]} : vector<8x8xf32> to vector<1x8xf32>
    %338 = vector.broadcast %336 : vector<16x1xf32> to vector<16x8xf32>
    %339 = vector.broadcast %337 : vector<1x8xf32> to vector<16x8xf32>
    %340 = arith.mulf %338, %339 : vector<16x8xf32>
    %341 = arith.addf %335, %340 : vector<16x8xf32>
    %342 = vector.extract_strided_slice %24 {offsets = [0, 3], sizes = [16, 1], strides = [1, 1]} : vector<16x8xf32> to vector<16x1xf32>
    %343 = vector.extract_strided_slice %324 {offsets = [3, 0], sizes = [1, 8], strides = [1, 1]} : vector<8x8xf32> to vector<1x8xf32>
    %344 = vector.broadcast %342 : vector<16x1xf32> to vector<16x8xf32>
    %345 = vector.broadcast %343 : vector<1x8xf32> to vector<16x8xf32>
    %346 = arith.mulf %344, %345 : vector<16x8xf32>
    %347 = arith.addf %341, %346 : vector<16x8xf32>
    %348 = vector.extract_strided_slice %24 {offsets = [0, 4], sizes = [16, 1], strides = [1, 1]} : vector<16x8xf32> to vector<16x1xf32>
    %349 = vector.extract_strided_slice %324 {offsets = [4, 0], sizes = [1, 8], strides = [1, 1]} : vector<8x8xf32> to vector<1x8xf32>
    %350 = vector.broadcast %348 : vector<16x1xf32> to vector<16x8xf32>
    %351 = vector.broadcast %349 : vector<1x8xf32> to vector<16x8xf32>
    %352 = arith.mulf %350, %351 : vector<16x8xf32>
    %353 = arith.addf %347, %352 : vector<16x8xf32>
    %354 = vector.extract_strided_slice %24 {offsets = [0, 5], sizes = [16, 1], strides = [1, 1]} : vector<16x8xf32> to vector<16x1xf32>
    %355 = vector.extract_strided_slice %324 {offsets = [5, 0], sizes = [1, 8], strides = [1, 1]} : vector<8x8xf32> to vector<1x8xf32>
    %356 = vector.broadcast %354 : vector<16x1xf32> to vector<16x8xf32>
    %357 = vector.broadcast %355 : vector<1x8xf32> to vector<16x8xf32>
    %358 = arith.mulf %356, %357 : vector<16x8xf32>
    %359 = arith.addf %353, %358 : vector<16x8xf32>
    %360 = vector.extract_strided_slice %24 {offsets = [0, 6], sizes = [16, 1], strides = [1, 1]} : vector<16x8xf32> to vector<16x1xf32>
    %361 = vector.extract_strided_slice %324 {offsets = [6, 0], sizes = [1, 8], strides = [1, 1]} : vector<8x8xf32> to vector<1x8xf32>
    %362 = vector.broadcast %360 : vector<16x1xf32> to vector<16x8xf32>
    %363 = vector.broadcast %361 : vector<1x8xf32> to vector<16x8xf32>
    %364 = arith.mulf %362, %363 : vector<16x8xf32>
    %365 = arith.addf %359, %364 : vector<16x8xf32>
    %366 = vector.extract_strided_slice %24 {offsets = [0, 7], sizes = [16, 1], strides = [1, 1]} : vector<16x8xf32> to vector<16x1xf32>
    %367 = vector.extract_strided_slice %324 {offsets = [7, 0], sizes = [1, 8], strides = [1, 1]} : vector<8x8xf32> to vector<1x8xf32>
    %368 = vector.broadcast %366 : vector<16x1xf32> to vector<16x8xf32>
    %369 = vector.broadcast %367 : vector<1x8xf32> to vector<16x8xf32>
    %370 = arith.mulf %368, %369 : vector<16x8xf32>
    %371 = arith.addf %365, %370 : vector<16x8xf32>
    %372 = vector.extract_strided_slice %371 {offsets = [0, 0], sizes = [16, 1], strides = [1, 1]} : vector<16x8xf32> to vector<16x1xf32>
    %373 = vector.extract_strided_slice %25 {offsets = [0, 0], sizes = [1, 16], strides = [1, 1]} : vector<8x16xf32> to vector<1x16xf32>
    %374 = vector.broadcast %372 : vector<16x1xf32> to vector<16x16xf32>
    %375 = vector.broadcast %373 : vector<1x16xf32> to vector<16x16xf32>
    %376 = arith.mulf %374, %375 : vector<16x16xf32>
    %377 = vector.extract_strided_slice %371 {offsets = [0, 1], sizes = [16, 1], strides = [1, 1]} : vector<16x8xf32> to vector<16x1xf32>
    %378 = vector.extract_strided_slice %25 {offsets = [1, 0], sizes = [1, 16], strides = [1, 1]} : vector<8x16xf32> to vector<1x16xf32>
    %379 = vector.broadcast %377 : vector<16x1xf32> to vector<16x16xf32>
    %380 = vector.broadcast %378 : vector<1x16xf32> to vector<16x16xf32>
    %381 = arith.mulf %379, %380 : vector<16x16xf32>
    %382 = arith.addf %376, %381 : vector<16x16xf32>
    %383 = vector.extract_strided_slice %371 {offsets = [0, 2], sizes = [16, 1], strides = [1, 1]} : vector<16x8xf32> to vector<16x1xf32>
    %384 = vector.extract_strided_slice %25 {offsets = [2, 0], sizes = [1, 16], strides = [1, 1]} : vector<8x16xf32> to vector<1x16xf32>
    %385 = vector.broadcast %383 : vector<16x1xf32> to vector<16x16xf32>
    %386 = vector.broadcast %384 : vector<1x16xf32> to vector<16x16xf32>
    %387 = arith.mulf %385, %386 : vector<16x16xf32>
    %388 = arith.addf %382, %387 : vector<16x16xf32>
    %389 = vector.extract_strided_slice %371 {offsets = [0, 3], sizes = [16, 1], strides = [1, 1]} : vector<16x8xf32> to vector<16x1xf32>
    %390 = vector.extract_strided_slice %25 {offsets = [3, 0], sizes = [1, 16], strides = [1, 1]} : vector<8x16xf32> to vector<1x16xf32>
    %391 = vector.broadcast %389 : vector<16x1xf32> to vector<16x16xf32>
    %392 = vector.broadcast %390 : vector<1x16xf32> to vector<16x16xf32>
    %393 = arith.mulf %391, %392 : vector<16x16xf32>
    %394 = arith.addf %388, %393 : vector<16x16xf32>
    %395 = vector.extract_strided_slice %371 {offsets = [0, 4], sizes = [16, 1], strides = [1, 1]} : vector<16x8xf32> to vector<16x1xf32>
    %396 = vector.extract_strided_slice %25 {offsets = [4, 0], sizes = [1, 16], strides = [1, 1]} : vector<8x16xf32> to vector<1x16xf32>
    %397 = vector.broadcast %395 : vector<16x1xf32> to vector<16x16xf32>
    %398 = vector.broadcast %396 : vector<1x16xf32> to vector<16x16xf32>
    %399 = arith.mulf %397, %398 : vector<16x16xf32>
    %400 = arith.addf %394, %399 : vector<16x16xf32>
    %401 = vector.extract_strided_slice %371 {offsets = [0, 5], sizes = [16, 1], strides = [1, 1]} : vector<16x8xf32> to vector<16x1xf32>
    %402 = vector.extract_strided_slice %25 {offsets = [5, 0], sizes = [1, 16], strides = [1, 1]} : vector<8x16xf32> to vector<1x16xf32>
    %403 = vector.broadcast %401 : vector<16x1xf32> to vector<16x16xf32>
    %404 = vector.broadcast %402 : vector<1x16xf32> to vector<16x16xf32>
    %405 = arith.mulf %403, %404 : vector<16x16xf32>
    %406 = arith.addf %400, %405 : vector<16x16xf32>
    %407 = vector.extract_strided_slice %371 {offsets = [0, 6], sizes = [16, 1], strides = [1, 1]} : vector<16x8xf32> to vector<16x1xf32>
    %408 = vector.extract_strided_slice %25 {offsets = [6, 0], sizes = [1, 16], strides = [1, 1]} : vector<8x16xf32> to vector<1x16xf32>
    %409 = vector.broadcast %407 : vector<16x1xf32> to vector<16x16xf32>
    %410 = vector.broadcast %408 : vector<1x16xf32> to vector<16x16xf32>
    %411 = arith.mulf %409, %410 : vector<16x16xf32>
    %412 = arith.addf %406, %411 : vector<16x16xf32>
    %413 = vector.extract_strided_slice %371 {offsets = [0, 7], sizes = [16, 1], strides = [1, 1]} : vector<16x8xf32> to vector<16x1xf32>
    %414 = vector.extract_strided_slice %25 {offsets = [7, 0], sizes = [1, 16], strides = [1, 1]} : vector<8x16xf32> to vector<1x16xf32>
    %415 = vector.broadcast %413 : vector<16x1xf32> to vector<16x16xf32>
    %416 = vector.broadcast %414 : vector<1x16xf32> to vector<16x16xf32>
    %417 = arith.mulf %415, %416 : vector<16x16xf32>
    %418 = arith.addf %412, %417 : vector<16x16xf32>
    %c7 = arith.constant 7 : index
    %c1_57 = arith.constant 1 : index
    %c1_58 = arith.constant 1 : index
    %419 = vector.load %arg10[%c7, %c1_57, %c1_58] : memref<8x18x18xf32, #tpu.memory_space<vmem>>, vector<1x16x16xf32>
    %420 = vector.shape_cast %419 : vector<1x16x16xf32> to vector<16x16xf32>
    %421 = vector.shape_cast %418 : vector<16x16xf32> to vector<1x16x16xf32>
    tpu.vector_store %arg10[%c7, %c1_57, %c1_58], %421 {strides = array<i32>} : memref<8x18x18xf32, #tpu.memory_space<vmem>>, vector<1x16x16xf32>,
    %cst_59 = arith.constant 0.000000e+00 : f32
    %422 = vector.broadcast %cst_59 : f32 to vector<16x16xf32>
    %cst_60 = arith.constant 0.000000e+00 : f32
    %423 = vector.broadcast %cst_60 : f32 to vector<16x16xf32>
    %cst_61 = arith.constant 0.000000e+00 : f32
    %424 = vector.broadcast %cst_61 : f32 to vector<16x16xf32>
    %cst_62 = arith.constant 0.000000e+00 : f32
    %425 = vector.broadcast %cst_62 : f32 to vector<16x16xf32>
    %c0_63 = arith.constant 0 : index
    %c0_64 = arith.constant 0 : index
    %c0_65 = arith.constant 0 : index
    %426 = vector.load %arg10[%c0_63, %c0_64, %c0_65] : memref<8x18x18xf32, #tpu.memory_space<vmem>>, vector<1x16x16xf32>
    %427 = vector.shape_cast %426 : vector<1x16x16xf32> to vector<16x16xf32>
    %c0_66 = arith.constant 0 : index
    %428 = memref.load %arg5[%c0_66] : memref<288xf32, #tpu.memory_space<smem>>
    %429 = vector.broadcast %428 : f32 to vector<16x16xf32>
    %430 = arith.mulf %429, %427 : vector<16x16xf32>
    %431 = arith.addf %422, %430 : vector<16x16xf32>
    %c72 = arith.constant 72 : index
    %432 = memref.load %arg5[%c72] : memref<288xf32, #tpu.memory_space<smem>>
    %433 = vector.broadcast %432 : f32 to vector<16x16xf32>
    %434 = arith.mulf %433, %427 : vector<16x16xf32>
    %435 = arith.addf %423, %434 : vector<16x16xf32>
    %c144 = arith.constant 144 : index
    %436 = memref.load %arg5[%c144] : memref<288xf32, #tpu.memory_space<smem>>
    %437 = vector.broadcast %436 : f32 to vector<16x16xf32>
    %438 = arith.mulf %437, %427 : vector<16x16xf32>
    %439 = arith.addf %424, %438 : vector<16x16xf32>
    %c216 = arith.constant 216 : index
    %440 = memref.load %arg5[%c216] : memref<288xf32, #tpu.memory_space<smem>>
    %441 = vector.broadcast %440 : f32 to vector<16x16xf32>
    %442 = arith.mulf %441, %427 : vector<16x16xf32>
    %443 = arith.addf %425, %442 : vector<16x16xf32>
    %c0_67 = arith.constant 0 : index
    %c0_68 = arith.constant 0 : index
    %c1_69 = arith.constant 1 : index
    %444 = vector.load %arg10[%c0_67, %c0_68, %c1_69] : memref<8x18x18xf32, #tpu.memory_space<vmem>>, vector<1x16x16xf32>
    %445 = vector.shape_cast %444 : vector<1x16x16xf32> to vector<16x16xf32>
    %c1_70 = arith.constant 1 : index
    %446 = memref.load %arg5[%c1_70] : memref<288xf32, #tpu.memory_space<smem>>
    %447 = vector.broadcast %446 : f32 to vector<16x16xf32>
    %448 = arith.mulf %447, %445 : vector<16x16xf32>
    %449 = arith.addf %431, %448 : vector<16x16xf32>
    %c73 = arith.constant 73 : index
    %450 = memref.load %arg5[%c73] : memref<288xf32, #tpu.memory_space<smem>>
    %451 = vector.broadcast %450 : f32 to vector<16x16xf32>
    %452 = arith.mulf %451, %445 : vector<16x16xf32>
    %453 = arith.addf %435, %452 : vector<16x16xf32>
    %c145 = arith.constant 145 : index
    %454 = memref.load %arg5[%c145] : memref<288xf32, #tpu.memory_space<smem>>
    %455 = vector.broadcast %454 : f32 to vector<16x16xf32>
    %456 = arith.mulf %455, %445 : vector<16x16xf32>
    %457 = arith.addf %439, %456 : vector<16x16xf32>
    %c217 = arith.constant 217 : index
    %458 = memref.load %arg5[%c217] : memref<288xf32, #tpu.memory_space<smem>>
    %459 = vector.broadcast %458 : f32 to vector<16x16xf32>
    %460 = arith.mulf %459, %445 : vector<16x16xf32>
    %461 = arith.addf %443, %460 : vector<16x16xf32>
    %c0_71 = arith.constant 0 : index
    %c0_72 = arith.constant 0 : index
    %c2_73 = arith.constant 2 : index
    %462 = vector.load %arg10[%c0_71, %c0_72, %c2_73] : memref<8x18x18xf32, #tpu.memory_space<vmem>>, vector<1x16x16xf32>
    %463 = vector.shape_cast %462 : vector<1x16x16xf32> to vector<16x16xf32>
    %c2_74 = arith.constant 2 : index
    %464 = memref.load %arg5[%c2_74] : memref<288xf32, #tpu.memory_space<smem>>
    %465 = vector.broadcast %464 : f32 to vector<16x16xf32>
    %466 = arith.mulf %465, %463 : vector<16x16xf32>
    %467 = arith.addf %449, %466 : vector<16x16xf32>
    %c74 = arith.constant 74 : index
    %468 = memref.load %arg5[%c74] : memref<288xf32, #tpu.memory_space<smem>>
    %469 = vector.broadcast %468 : f32 to vector<16x16xf32>
    %470 = arith.mulf %469, %463 : vector<16x16xf32>
    %471 = arith.addf %453, %470 : vector<16x16xf32>
    %c146 = arith.constant 146 : index
    %472 = memref.load %arg5[%c146] : memref<288xf32, #tpu.memory_space<smem>>
    %473 = vector.broadcast %472 : f32 to vector<16x16xf32>
    %474 = arith.mulf %473, %463 : vector<16x16xf32>
    %475 = arith.addf %457, %474 : vector<16x16xf32>
    %c218 = arith.constant 218 : index
    %476 = memref.load %arg5[%c218] : memref<288xf32, #tpu.memory_space<smem>>
    %477 = vector.broadcast %476 : f32 to vector<16x16xf32>
    %478 = arith.mulf %477, %463 : vector<16x16xf32>
    %479 = arith.addf %461, %478 : vector<16x16xf32>
    %c0_75 = arith.constant 0 : index
    %c1_76 = arith.constant 1 : index
    %c0_77 = arith.constant 0 : index
    %480 = vector.load %arg10[%c0_75, %c1_76, %c0_77] : memref<8x18x18xf32, #tpu.memory_space<vmem>>, vector<1x16x16xf32>
    %481 = vector.shape_cast %480 : vector<1x16x16xf32> to vector<16x16xf32>
    %c3_78 = arith.constant 3 : index
    %482 = memref.load %arg5[%c3_78] : memref<288xf32, #tpu.memory_space<smem>>
    %483 = vector.broadcast %482 : f32 to vector<16x16xf32>
    %484 = arith.mulf %483, %481 : vector<16x16xf32>
    %485 = arith.addf %467, %484 : vector<16x16xf32>
    %c75 = arith.constant 75 : index
    %486 = memref.load %arg5[%c75] : memref<288xf32, #tpu.memory_space<smem>>
    %487 = vector.broadcast %486 : f32 to vector<16x16xf32>
    %488 = arith.mulf %487, %481 : vector<16x16xf32>
    %489 = arith.addf %471, %488 : vector<16x16xf32>
    %c147 = arith.constant 147 : index
    %490 = memref.load %arg5[%c147] : memref<288xf32, #tpu.memory_space<smem>>
    %491 = vector.broadcast %490 : f32 to vector<16x16xf32>
    %492 = arith.mulf %491, %481 : vector<16x16xf32>
    %493 = arith.addf %475, %492 : vector<16x16xf32>
    %c219 = arith.constant 219 : index
    %494 = memref.load %arg5[%c219] : memref<288xf32, #tpu.memory_space<smem>>
    %495 = vector.broadcast %494 : f32 to vector<16x16xf32>
    %496 = arith.mulf %495, %481 : vector<16x16xf32>
    %497 = arith.addf %479, %496 : vector<16x16xf32>
    %c0_79 = arith.constant 0 : index
    %c1_80 = arith.constant 1 : index
    %c1_81 = arith.constant 1 : index
    %498 = vector.load %arg10[%c0_79, %c1_80, %c1_81] : memref<8x18x18xf32, #tpu.memory_space<vmem>>, vector<1x16x16xf32>
    %499 = vector.shape_cast %498 : vector<1x16x16xf32> to vector<16x16xf32>
    %c4_82 = arith.constant 4 : index
    %500 = memref.load %arg5[%c4_82] : memref<288xf32, #tpu.memory_space<smem>>
    %501 = vector.broadcast %500 : f32 to vector<16x16xf32>
    %502 = arith.mulf %501, %499 : vector<16x16xf32>
    %503 = arith.addf %485, %502 : vector<16x16xf32>
    %c76 = arith.constant 76 : index
    %504 = memref.load %arg5[%c76] : memref<288xf32, #tpu.memory_space<smem>>
    %505 = vector.broadcast %504 : f32 to vector<16x16xf32>
    %506 = arith.mulf %505, %499 : vector<16x16xf32>
    %507 = arith.addf %489, %506 : vector<16x16xf32>
    %c148 = arith.constant 148 : index
    %508 = memref.load %arg5[%c148] : memref<288xf32, #tpu.memory_space<smem>>
    %509 = vector.broadcast %508 : f32 to vector<16x16xf32>
    %510 = arith.mulf %509, %499 : vector<16x16xf32>
    %511 = arith.addf %493, %510 : vector<16x16xf32>
    %c220 = arith.constant 220 : index
    %512 = memref.load %arg5[%c220] : memref<288xf32, #tpu.memory_space<smem>>
    %513 = vector.broadcast %512 : f32 to vector<16x16xf32>
    %514 = arith.mulf %513, %499 : vector<16x16xf32>
    %515 = arith.addf %497, %514 : vector<16x16xf32>
    %c0_83 = arith.constant 0 : index
    %c1_84 = arith.constant 1 : index
    %c2_85 = arith.constant 2 : index
    %516 = vector.load %arg10[%c0_83, %c1_84, %c2_85] : memref<8x18x18xf32, #tpu.memory_space<vmem>>, vector<1x16x16xf32>
    %517 = vector.shape_cast %516 : vector<1x16x16xf32> to vector<16x16xf32>
    %c5_86 = arith.constant 5 : index
    %518 = memref.load %arg5[%c5_86] : memref<288xf32, #tpu.memory_space<smem>>
    %519 = vector.broadcast %518 : f32 to vector<16x16xf32>
    %520 = arith.mulf %519, %517 : vector<16x16xf32>
    %521 = arith.addf %503, %520 : vector<16x16xf32>
    %c77 = arith.constant 77 : index
    %522 = memref.load %arg5[%c77] : memref<288xf32, #tpu.memory_space<smem>>
    %523 = vector.broadcast %522 : f32 to vector<16x16xf32>
    %524 = arith.mulf %523, %517 : vector<16x16xf32>
    %525 = arith.addf %507, %524 : vector<16x16xf32>
    %c149 = arith.constant 149 : index
    %526 = memref.load %arg5[%c149] : memref<288xf32, #tpu.memory_space<smem>>
    %527 = vector.broadcast %526 : f32 to vector<16x16xf32>
    %528 = arith.mulf %527, %517 : vector<16x16xf32>
    %529 = arith.addf %511, %528 : vector<16x16xf32>
    %c221 = arith.constant 221 : index
    %530 = memref.load %arg5[%c221] : memref<288xf32, #tpu.memory_space<smem>>
    %531 = vector.broadcast %530 : f32 to vector<16x16xf32>
    %532 = arith.mulf %531, %517 : vector<16x16xf32>
    %533 = arith.addf %515, %532 : vector<16x16xf32>
    %c0_87 = arith.constant 0 : index
    %c2_88 = arith.constant 2 : index
    %c0_89 = arith.constant 0 : index
    %534 = vector.load %arg10[%c0_87, %c2_88, %c0_89] : memref<8x18x18xf32, #tpu.memory_space<vmem>>, vector<1x16x16xf32>
    %535 = vector.shape_cast %534 : vector<1x16x16xf32> to vector<16x16xf32>
    %c6_90 = arith.constant 6 : index
    %536 = memref.load %arg5[%c6_90] : memref<288xf32, #tpu.memory_space<smem>>
    %537 = vector.broadcast %536 : f32 to vector<16x16xf32>
    %538 = arith.mulf %537, %535 : vector<16x16xf32>
    %539 = arith.addf %521, %538 : vector<16x16xf32>
    %c78 = arith.constant 78 : index
    %540 = memref.load %arg5[%c78] : memref<288xf32, #tpu.memory_space<smem>>
    %541 = vector.broadcast %540 : f32 to vector<16x16xf32>
    %542 = arith.mulf %541, %535 : vector<16x16xf32>
    %543 = arith.addf %525, %542 : vector<16x16xf32>
    %c150 = arith.constant 150 : index
    %544 = memref.load %arg5[%c150] : memref<288xf32, #tpu.memory_space<smem>>
    %545 = vector.broadcast %544 : f32 to vector<16x16xf32>
    %546 = arith.mulf %545, %535 : vector<16x16xf32>
    %547 = arith.addf %529, %546 : vector<16x16xf32>
    %c222 = arith.constant 222 : index
    %548 = memref.load %arg5[%c222] : memref<288xf32, #tpu.memory_space<smem>>
    %549 = vector.broadcast %548 : f32 to vector<16x16xf32>
    %550 = arith.mulf %549, %535 : vector<16x16xf32>
    %551 = arith.addf %533, %550 : vector<16x16xf32>
    %c0_91 = arith.constant 0 : index
    %c2_92 = arith.constant 2 : index
    %c1_93 = arith.constant 1 : index
    %552 = vector.load %arg10[%c0_91, %c2_92, %c1_93] : memref<8x18x18xf32, #tpu.memory_space<vmem>>, vector<1x16x16xf32>
    %553 = vector.shape_cast %552 : vector<1x16x16xf32> to vector<16x16xf32>
    %c7_94 = arith.constant 7 : index
    %554 = memref.load %arg5[%c7_94] : memref<288xf32, #tpu.memory_space<smem>>
    %555 = vector.broadcast %554 : f32 to vector<16x16xf32>
    %556 = arith.mulf %555, %553 : vector<16x16xf32>
    %557 = arith.addf %539, %556 : vector<16x16xf32>
    %c79 = arith.constant 79 : index
    %558 = memref.load %arg5[%c79] : memref<288xf32, #tpu.memory_space<smem>>
    %559 = vector.broadcast %558 : f32 to vector<16x16xf32>
    %560 = arith.mulf %559, %553 : vector<16x16xf32>
    %561 = arith.addf %543, %560 : vector<16x16xf32>
    %c151 = arith.constant 151 : index
    %562 = memref.load %arg5[%c151] : memref<288xf32, #tpu.memory_space<smem>>
    %563 = vector.broadcast %562 : f32 to vector<16x16xf32>
    %564 = arith.mulf %563, %553 : vector<16x16xf32>
    %565 = arith.addf %547, %564 : vector<16x16xf32>
    %c223 = arith.constant 223 : index
    %566 = memref.load %arg5[%c223] : memref<288xf32, #tpu.memory_space<smem>>
    %567 = vector.broadcast %566 : f32 to vector<16x16xf32>
    %568 = arith.mulf %567, %553 : vector<16x16xf32>
    %569 = arith.addf %551, %568 : vector<16x16xf32>
    %c0_95 = arith.constant 0 : index
    %c2_96 = arith.constant 2 : index
    %c2_97 = arith.constant 2 : index
    %570 = vector.load %arg10[%c0_95, %c2_96, %c2_97] : memref<8x18x18xf32, #tpu.memory_space<vmem>>, vector<1x16x16xf32>
    %571 = vector.shape_cast %570 : vector<1x16x16xf32> to vector<16x16xf32>
    %c8 = arith.constant 8 : index
    %572 = memref.load %arg5[%c8] : memref<288xf32, #tpu.memory_space<smem>>
    %573 = vector.broadcast %572 : f32 to vector<16x16xf32>
    %574 = arith.mulf %573, %571 : vector<16x16xf32>
    %575 = arith.addf %557, %574 : vector<16x16xf32>
    %c80 = arith.constant 80 : index
    %576 = memref.load %arg5[%c80] : memref<288xf32, #tpu.memory_space<smem>>
    %577 = vector.broadcast %576 : f32 to vector<16x16xf32>
    %578 = arith.mulf %577, %571 : vector<16x16xf32>
    %579 = arith.addf %561, %578 : vector<16x16xf32>
    %c152 = arith.constant 152 : index
    %580 = memref.load %arg5[%c152] : memref<288xf32, #tpu.memory_space<smem>>
    %581 = vector.broadcast %580 : f32 to vector<16x16xf32>
    %582 = arith.mulf %581, %571 : vector<16x16xf32>
    %583 = arith.addf %565, %582 : vector<16x16xf32>
    %c224 = arith.constant 224 : index
    %584 = memref.load %arg5[%c224] : memref<288xf32, #tpu.memory_space<smem>>
    %585 = vector.broadcast %584 : f32 to vector<16x16xf32>
    %586 = arith.mulf %585, %571 : vector<16x16xf32>
    %587 = arith.addf %569, %586 : vector<16x16xf32>
    %c1_98 = arith.constant 1 : index
    %c0_99 = arith.constant 0 : index
    %c0_100 = arith.constant 0 : index
    %588 = vector.load %arg10[%c1_98, %c0_99, %c0_100] : memref<8x18x18xf32, #tpu.memory_space<vmem>>, vector<1x16x16xf32>
    %589 = vector.shape_cast %588 : vector<1x16x16xf32> to vector<16x16xf32>
    %c9 = arith.constant 9 : index
    %590 = memref.load %arg5[%c9] : memref<288xf32, #tpu.memory_space<smem>>
    %591 = vector.broadcast %590 : f32 to vector<16x16xf32>
    %592 = arith.mulf %591, %589 : vector<16x16xf32>
    %593 = arith.addf %575, %592 : vector<16x16xf32>
    %c81 = arith.constant 81 : index
    %594 = memref.load %arg5[%c81] : memref<288xf32, #tpu.memory_space<smem>>
    %595 = vector.broadcast %594 : f32 to vector<16x16xf32>
    %596 = arith.mulf %595, %589 : vector<16x16xf32>
    %597 = arith.addf %579, %596 : vector<16x16xf32>
    %c153 = arith.constant 153 : index
    %598 = memref.load %arg5[%c153] : memref<288xf32, #tpu.memory_space<smem>>
    %599 = vector.broadcast %598 : f32 to vector<16x16xf32>
    %600 = arith.mulf %599, %589 : vector<16x16xf32>
    %601 = arith.addf %583, %600 : vector<16x16xf32>
    %c225 = arith.constant 225 : index
    %602 = memref.load %arg5[%c225] : memref<288xf32, #tpu.memory_space<smem>>
    %603 = vector.broadcast %602 : f32 to vector<16x16xf32>
    %604 = arith.mulf %603, %589 : vector<16x16xf32>
    %605 = arith.addf %587, %604 : vector<16x16xf32>
    %c1_101 = arith.constant 1 : index
    %c0_102 = arith.constant 0 : index
    %c1_103 = arith.constant 1 : index
    %606 = vector.load %arg10[%c1_101, %c0_102, %c1_103] : memref<8x18x18xf32, #tpu.memory_space<vmem>>, vector<1x16x16xf32>
    %607 = vector.shape_cast %606 : vector<1x16x16xf32> to vector<16x16xf32>
    %c10 = arith.constant 10 : index
    %608 = memref.load %arg5[%c10] : memref<288xf32, #tpu.memory_space<smem>>
    %609 = vector.broadcast %608 : f32 to vector<16x16xf32>
    %610 = arith.mulf %609, %607 : vector<16x16xf32>
    %611 = arith.addf %593, %610 : vector<16x16xf32>
    %c82 = arith.constant 82 : index
    %612 = memref.load %arg5[%c82] : memref<288xf32, #tpu.memory_space<smem>>
    %613 = vector.broadcast %612 : f32 to vector<16x16xf32>
    %614 = arith.mulf %613, %607 : vector<16x16xf32>
    %615 = arith.addf %597, %614 : vector<16x16xf32>
    %c154 = arith.constant 154 : index
    %616 = memref.load %arg5[%c154] : memref<288xf32, #tpu.memory_space<smem>>
    %617 = vector.broadcast %616 : f32 to vector<16x16xf32>
    %618 = arith.mulf %617, %607 : vector<16x16xf32>
    %619 = arith.addf %601, %618 : vector<16x16xf32>
    %c226 = arith.constant 226 : index
    %620 = memref.load %arg5[%c226] : memref<288xf32, #tpu.memory_space<smem>>
    %621 = vector.broadcast %620 : f32 to vector<16x16xf32>
    %622 = arith.mulf %621, %607 : vector<16x16xf32>
    %623 = arith.addf %605, %622 : vector<16x16xf32>
    %c1_104 = arith.constant 1 : index
    %c0_105 = arith.constant 0 : index
    %c2_106 = arith.constant 2 : index
    %624 = vector.load %arg10[%c1_104, %c0_105, %c2_106] : memref<8x18x18xf32, #tpu.memory_space<vmem>>, vector<1x16x16xf32>
    %625 = vector.shape_cast %624 : vector<1x16x16xf32> to vector<16x16xf32>
    %c11 = arith.constant 11 : index
    %626 = memref.load %arg5[%c11] : memref<288xf32, #tpu.memory_space<smem>>
    %627 = vector.broadcast %626 : f32 to vector<16x16xf32>
    %628 = arith.mulf %627, %625 : vector<16x16xf32>
    %629 = arith.addf %611, %628 : vector<16x16xf32>
    %c83 = arith.constant 83 : index
    %630 = memref.load %arg5[%c83] : memref<288xf32, #tpu.memory_space<smem>>
    %631 = vector.broadcast %630 : f32 to vector<16x16xf32>
    %632 = arith.mulf %631, %625 : vector<16x16xf32>
    %633 = arith.addf %615, %632 : vector<16x16xf32>
    %c155 = arith.constant 155 : index
    %634 = memref.load %arg5[%c155] : memref<288xf32, #tpu.memory_space<smem>>
    %635 = vector.broadcast %634 : f32 to vector<16x16xf32>
    %636 = arith.mulf %635, %625 : vector<16x16xf32>
    %637 = arith.addf %619, %636 : vector<16x16xf32>
    %c227 = arith.constant 227 : index
    %638 = memref.load %arg5[%c227] : memref<288xf32, #tpu.memory_space<smem>>
    %639 = vector.broadcast %638 : f32 to vector<16x16xf32>
    %640 = arith.mulf %639, %625 : vector<16x16xf32>
    %641 = arith.addf %623, %640 : vector<16x16xf32>
    %c1_107 = arith.constant 1 : index
    %c1_108 = arith.constant 1 : index
    %c0_109 = arith.constant 0 : index
    %642 = vector.load %arg10[%c1_107, %c1_108, %c0_109] : memref<8x18x18xf32, #tpu.memory_space<vmem>>, vector<1x16x16xf32>
    %643 = vector.shape_cast %642 : vector<1x16x16xf32> to vector<16x16xf32>
    %c12 = arith.constant 12 : index
    %644 = memref.load %arg5[%c12] : memref<288xf32, #tpu.memory_space<smem>>
    %645 = vector.broadcast %644 : f32 to vector<16x16xf32>
    %646 = arith.mulf %645, %643 : vector<16x16xf32>
    %647 = arith.addf %629, %646 : vector<16x16xf32>
    %c84 = arith.constant 84 : index
    %648 = memref.load %arg5[%c84] : memref<288xf32, #tpu.memory_space<smem>>
    %649 = vector.broadcast %648 : f32 to vector<16x16xf32>
    %650 = arith.mulf %649, %643 : vector<16x16xf32>
    %651 = arith.addf %633, %650 : vector<16x16xf32>
    %c156 = arith.constant 156 : index
    %652 = memref.load %arg5[%c156] : memref<288xf32, #tpu.memory_space<smem>>
    %653 = vector.broadcast %652 : f32 to vector<16x16xf32>
    %654 = arith.mulf %653, %643 : vector<16x16xf32>
    %655 = arith.addf %637, %654 : vector<16x16xf32>
    %c228 = arith.constant 228 : index
    %656 = memref.load %arg5[%c228] : memref<288xf32, #tpu.memory_space<smem>>
    %657 = vector.broadcast %656 : f32 to vector<16x16xf32>
    %658 = arith.mulf %657, %643 : vector<16x16xf32>
    %659 = arith.addf %641, %658 : vector<16x16xf32>
    %c1_110 = arith.constant 1 : index
    %c1_111 = arith.constant 1 : index
    %c1_112 = arith.constant 1 : index
    %660 = vector.load %arg10[%c1_110, %c1_111, %c1_112] : memref<8x18x18xf32, #tpu.memory_space<vmem>>, vector<1x16x16xf32>
    %661 = vector.shape_cast %660 : vector<1x16x16xf32> to vector<16x16xf32>
    %c13 = arith.constant 13 : index
    %662 = memref.load %arg5[%c13] : memref<288xf32, #tpu.memory_space<smem>>
    %663 = vector.broadcast %662 : f32 to vector<16x16xf32>
    %664 = arith.mulf %663, %661 : vector<16x16xf32>
    %665 = arith.addf %647, %664 : vector<16x16xf32>
    %c85 = arith.constant 85 : index
    %666 = memref.load %arg5[%c85] : memref<288xf32, #tpu.memory_space<smem>>
    %667 = vector.broadcast %666 : f32 to vector<16x16xf32>
    %668 = arith.mulf %667, %661 : vector<16x16xf32>
    %669 = arith.addf %651, %668 : vector<16x16xf32>
    %c157 = arith.constant 157 : index
    %670 = memref.load %arg5[%c157] : memref<288xf32, #tpu.memory_space<smem>>
    %671 = vector.broadcast %670 : f32 to vector<16x16xf32>
    %672 = arith.mulf %671, %661 : vector<16x16xf32>
    %673 = arith.addf %655, %672 : vector<16x16xf32>
    %c229 = arith.constant 229 : index
    %674 = memref.load %arg5[%c229] : memref<288xf32, #tpu.memory_space<smem>>
    %675 = vector.broadcast %674 : f32 to vector<16x16xf32>
    %676 = arith.mulf %675, %661 : vector<16x16xf32>
    %677 = arith.addf %659, %676 : vector<16x16xf32>
    %c1_113 = arith.constant 1 : index
    %c1_114 = arith.constant 1 : index
    %c2_115 = arith.constant 2 : index
    %678 = vector.load %arg10[%c1_113, %c1_114, %c2_115] : memref<8x18x18xf32, #tpu.memory_space<vmem>>, vector<1x16x16xf32>
    %679 = vector.shape_cast %678 : vector<1x16x16xf32> to vector<16x16xf32>
    %c14 = arith.constant 14 : index
    %680 = memref.load %arg5[%c14] : memref<288xf32, #tpu.memory_space<smem>>
    %681 = vector.broadcast %680 : f32 to vector<16x16xf32>
    %682 = arith.mulf %681, %679 : vector<16x16xf32>
    %683 = arith.addf %665, %682 : vector<16x16xf32>
    %c86 = arith.constant 86 : index
    %684 = memref.load %arg5[%c86] : memref<288xf32, #tpu.memory_space<smem>>
    %685 = vector.broadcast %684 : f32 to vector<16x16xf32>
    %686 = arith.mulf %685, %679 : vector<16x16xf32>
    %687 = arith.addf %669, %686 : vector<16x16xf32>
    %c158 = arith.constant 158 : index
    %688 = memref.load %arg5[%c158] : memref<288xf32, #tpu.memory_space<smem>>
    %689 = vector.broadcast %688 : f32 to vector<16x16xf32>
    %690 = arith.mulf %689, %679 : vector<16x16xf32>
    %691 = arith.addf %673, %690 : vector<16x16xf32>
    %c230 = arith.constant 230 : index
    %692 = memref.load %arg5[%c230] : memref<288xf32, #tpu.memory_space<smem>>
    %693 = vector.broadcast %692 : f32 to vector<16x16xf32>
    %694 = arith.mulf %693, %679 : vector<16x16xf32>
    %695 = arith.addf %677, %694 : vector<16x16xf32>
    %c1_116 = arith.constant 1 : index
    %c2_117 = arith.constant 2 : index
    %c0_118 = arith.constant 0 : index
    %696 = vector.load %arg10[%c1_116, %c2_117, %c0_118] : memref<8x18x18xf32, #tpu.memory_space<vmem>>, vector<1x16x16xf32>
    %697 = vector.shape_cast %696 : vector<1x16x16xf32> to vector<16x16xf32>
    %c15 = arith.constant 15 : index
    %698 = memref.load %arg5[%c15] : memref<288xf32, #tpu.memory_space<smem>>
    %699 = vector.broadcast %698 : f32 to vector<16x16xf32>
    %700 = arith.mulf %699, %697 : vector<16x16xf32>
    %701 = arith.addf %683, %700 : vector<16x16xf32>
    %c87 = arith.constant 87 : index
    %702 = memref.load %arg5[%c87] : memref<288xf32, #tpu.memory_space<smem>>
    %703 = vector.broadcast %702 : f32 to vector<16x16xf32>
    %704 = arith.mulf %703, %697 : vector<16x16xf32>
    %705 = arith.addf %687, %704 : vector<16x16xf32>
    %c159 = arith.constant 159 : index
    %706 = memref.load %arg5[%c159] : memref<288xf32, #tpu.memory_space<smem>>
    %707 = vector.broadcast %706 : f32 to vector<16x16xf32>
    %708 = arith.mulf %707, %697 : vector<16x16xf32>
    %709 = arith.addf %691, %708 : vector<16x16xf32>
    %c231 = arith.constant 231 : index
    %710 = memref.load %arg5[%c231] : memref<288xf32, #tpu.memory_space<smem>>
    %711 = vector.broadcast %710 : f32 to vector<16x16xf32>
    %712 = arith.mulf %711, %697 : vector<16x16xf32>
    %713 = arith.addf %695, %712 : vector<16x16xf32>
    %c1_119 = arith.constant 1 : index
    %c2_120 = arith.constant 2 : index
    %c1_121 = arith.constant 1 : index
    %714 = vector.load %arg10[%c1_119, %c2_120, %c1_121] : memref<8x18x18xf32, #tpu.memory_space<vmem>>, vector<1x16x16xf32>
    %715 = vector.shape_cast %714 : vector<1x16x16xf32> to vector<16x16xf32>
    %c16 = arith.constant 16 : index
    %716 = memref.load %arg5[%c16] : memref<288xf32, #tpu.memory_space<smem>>
    %717 = vector.broadcast %716 : f32 to vector<16x16xf32>
    %718 = arith.mulf %717, %715 : vector<16x16xf32>
    %719 = arith.addf %701, %718 : vector<16x16xf32>
    %c88 = arith.constant 88 : index
    %720 = memref.load %arg5[%c88] : memref<288xf32, #tpu.memory_space<smem>>
    %721 = vector.broadcast %720 : f32 to vector<16x16xf32>
    %722 = arith.mulf %721, %715 : vector<16x16xf32>
    %723 = arith.addf %705, %722 : vector<16x16xf32>
    %c160 = arith.constant 160 : index
    %724 = memref.load %arg5[%c160] : memref<288xf32, #tpu.memory_space<smem>>
    %725 = vector.broadcast %724 : f32 to vector<16x16xf32>
    %726 = arith.mulf %725, %715 : vector<16x16xf32>
    %727 = arith.addf %709, %726 : vector<16x16xf32>
    %c232 = arith.constant 232 : index
    %728 = memref.load %arg5[%c232] : memref<288xf32, #tpu.memory_space<smem>>
    %729 = vector.broadcast %728 : f32 to vector<16x16xf32>
    %730 = arith.mulf %729, %715 : vector<16x16xf32>
    %731 = arith.addf %713, %730 : vector<16x16xf32>
    %c1_122 = arith.constant 1 : index
    %c2_123 = arith.constant 2 : index
    %c2_124 = arith.constant 2 : index
    %732 = vector.load %arg10[%c1_122, %c2_123, %c2_124] : memref<8x18x18xf32, #tpu.memory_space<vmem>>, vector<1x16x16xf32>
    %733 = vector.shape_cast %732 : vector<1x16x16xf32> to vector<16x16xf32>
    %c17 = arith.constant 17 : index
    %734 = memref.load %arg5[%c17] : memref<288xf32, #tpu.memory_space<smem>>
    %735 = vector.broadcast %734 : f32 to vector<16x16xf32>
    %736 = arith.mulf %735, %733 : vector<16x16xf32>
    %737 = arith.addf %719, %736 : vector<16x16xf32>
    %c89 = arith.constant 89 : index
    %738 = memref.load %arg5[%c89] : memref<288xf32, #tpu.memory_space<smem>>
    %739 = vector.broadcast %738 : f32 to vector<16x16xf32>
    %740 = arith.mulf %739, %733 : vector<16x16xf32>
    %741 = arith.addf %723, %740 : vector<16x16xf32>
    %c161 = arith.constant 161 : index
    %742 = memref.load %arg5[%c161] : memref<288xf32, #tpu.memory_space<smem>>
    %743 = vector.broadcast %742 : f32 to vector<16x16xf32>
    %744 = arith.mulf %743, %733 : vector<16x16xf32>
    %745 = arith.addf %727, %744 : vector<16x16xf32>
    %c233 = arith.constant 233 : index
    %746 = memref.load %arg5[%c233] : memref<288xf32, #tpu.memory_space<smem>>
    %747 = vector.broadcast %746 : f32 to vector<16x16xf32>
    %748 = arith.mulf %747, %733 : vector<16x16xf32>
    %749 = arith.addf %731, %748 : vector<16x16xf32>
    %c2_125 = arith.constant 2 : index
    %c0_126 = arith.constant 0 : index
    %c0_127 = arith.constant 0 : index
    %750 = vector.load %arg10[%c2_125, %c0_126, %c0_127] : memref<8x18x18xf32, #tpu.memory_space<vmem>>, vector<1x16x16xf32>
    %751 = vector.shape_cast %750 : vector<1x16x16xf32> to vector<16x16xf32>
    %c18 = arith.constant 18 : index
    %752 = memref.load %arg5[%c18] : memref<288xf32, #tpu.memory_space<smem>>
    %753 = vector.broadcast %752 : f32 to vector<16x16xf32>
    %754 = arith.mulf %753, %751 : vector<16x16xf32>
    %755 = arith.addf %737, %754 : vector<16x16xf32>
    %c90 = arith.constant 90 : index
    %756 = memref.load %arg5[%c90] : memref<288xf32, #tpu.memory_space<smem>>
    %757 = vector.broadcast %756 : f32 to vector<16x16xf32>
    %758 = arith.mulf %757, %751 : vector<16x16xf32>
    %759 = arith.addf %741, %758 : vector<16x16xf32>
    %c162 = arith.constant 162 : index
    %760 = memref.load %arg5[%c162] : memref<288xf32, #tpu.memory_space<smem>>
    %761 = vector.broadcast %760 : f32 to vector<16x16xf32>
    %762 = arith.mulf %761, %751 : vector<16x16xf32>
    %763 = arith.addf %745, %762 : vector<16x16xf32>
    %c234 = arith.constant 234 : index
    %764 = memref.load %arg5[%c234] : memref<288xf32, #tpu.memory_space<smem>>
    %765 = vector.broadcast %764 : f32 to vector<16x16xf32>
    %766 = arith.mulf %765, %751 : vector<16x16xf32>
    %767 = arith.addf %749, %766 : vector<16x16xf32>
    %c2_128 = arith.constant 2 : index
    %c0_129 = arith.constant 0 : index
    %c1_130 = arith.constant 1 : index
    %768 = vector.load %arg10[%c2_128, %c0_129, %c1_130] : memref<8x18x18xf32, #tpu.memory_space<vmem>>, vector<1x16x16xf32>
    %769 = vector.shape_cast %768 : vector<1x16x16xf32> to vector<16x16xf32>
    %c19 = arith.constant 19 : index
    %770 = memref.load %arg5[%c19] : memref<288xf32, #tpu.memory_space<smem>>
    %771 = vector.broadcast %770 : f32 to vector<16x16xf32>
    %772 = arith.mulf %771, %769 : vector<16x16xf32>
    %773 = arith.addf %755, %772 : vector<16x16xf32>
    %c91 = arith.constant 91 : index
    %774 = memref.load %arg5[%c91] : memref<288xf32, #tpu.memory_space<smem>>
    %775 = vector.broadcast %774 : f32 to vector<16x16xf32>
    %776 = arith.mulf %775, %769 : vector<16x16xf32>
    %777 = arith.addf %759, %776 : vector<16x16xf32>
    %c163 = arith.constant 163 : index
    %778 = memref.load %arg5[%c163] : memref<288xf32, #tpu.memory_space<smem>>
    %779 = vector.broadcast %778 : f32 to vector<16x16xf32>
    %780 = arith.mulf %779, %769 : vector<16x16xf32>
    %781 = arith.addf %763, %780 : vector<16x16xf32>
    %c235 = arith.constant 235 : index
    %782 = memref.load %arg5[%c235] : memref<288xf32, #tpu.memory_space<smem>>
    %783 = vector.broadcast %782 : f32 to vector<16x16xf32>
    %784 = arith.mulf %783, %769 : vector<16x16xf32>
    %785 = arith.addf %767, %784 : vector<16x16xf32>
    %c2_131 = arith.constant 2 : index
    %c0_132 = arith.constant 0 : index
    %c2_133 = arith.constant 2 : index
    %786 = vector.load %arg10[%c2_131, %c0_132, %c2_133] : memref<8x18x18xf32, #tpu.memory_space<vmem>>, vector<1x16x16xf32>
    %787 = vector.shape_cast %786 : vector<1x16x16xf32> to vector<16x16xf32>
    %c20 = arith.constant 20 : index
    %788 = memref.load %arg5[%c20] : memref<288xf32, #tpu.memory_space<smem>>
    %789 = vector.broadcast %788 : f32 to vector<16x16xf32>
    %790 = arith.mulf %789, %787 : vector<16x16xf32>
    %791 = arith.addf %773, %790 : vector<16x16xf32>
    %c92 = arith.constant 92 : index
    %792 = memref.load %arg5[%c92] : memref<288xf32, #tpu.memory_space<smem>>
    %793 = vector.broadcast %792 : f32 to vector<16x16xf32>
    %794 = arith.mulf %793, %787 : vector<16x16xf32>
    %795 = arith.addf %777, %794 : vector<16x16xf32>
    %c164 = arith.constant 164 : index
    %796 = memref.load %arg5[%c164] : memref<288xf32, #tpu.memory_space<smem>>
    %797 = vector.broadcast %796 : f32 to vector<16x16xf32>
    %798 = arith.mulf %797, %787 : vector<16x16xf32>
    %799 = arith.addf %781, %798 : vector<16x16xf32>
    %c236 = arith.constant 236 : index
    %800 = memref.load %arg5[%c236] : memref<288xf32, #tpu.memory_space<smem>>
    %801 = vector.broadcast %800 : f32 to vector<16x16xf32>
    %802 = arith.mulf %801, %787 : vector<16x16xf32>
    %803 = arith.addf %785, %802 : vector<16x16xf32>
    %c2_134 = arith.constant 2 : index
    %c1_135 = arith.constant 1 : index
    %c0_136 = arith.constant 0 : index
    %804 = vector.load %arg10[%c2_134, %c1_135, %c0_136] : memref<8x18x18xf32, #tpu.memory_space<vmem>>, vector<1x16x16xf32>
    %805 = vector.shape_cast %804 : vector<1x16x16xf32> to vector<16x16xf32>
    %c21 = arith.constant 21 : index
    %806 = memref.load %arg5[%c21] : memref<288xf32, #tpu.memory_space<smem>>
    %807 = vector.broadcast %806 : f32 to vector<16x16xf32>
    %808 = arith.mulf %807, %805 : vector<16x16xf32>
    %809 = arith.addf %791, %808 : vector<16x16xf32>
    %c93 = arith.constant 93 : index
    %810 = memref.load %arg5[%c93] : memref<288xf32, #tpu.memory_space<smem>>
    %811 = vector.broadcast %810 : f32 to vector<16x16xf32>
    %812 = arith.mulf %811, %805 : vector<16x16xf32>
    %813 = arith.addf %795, %812 : vector<16x16xf32>
    %c165 = arith.constant 165 : index
    %814 = memref.load %arg5[%c165] : memref<288xf32, #tpu.memory_space<smem>>
    %815 = vector.broadcast %814 : f32 to vector<16x16xf32>
    %816 = arith.mulf %815, %805 : vector<16x16xf32>
    %817 = arith.addf %799, %816 : vector<16x16xf32>
    %c237 = arith.constant 237 : index
    %818 = memref.load %arg5[%c237] : memref<288xf32, #tpu.memory_space<smem>>
    %819 = vector.broadcast %818 : f32 to vector<16x16xf32>
    %820 = arith.mulf %819, %805 : vector<16x16xf32>
    %821 = arith.addf %803, %820 : vector<16x16xf32>
    %c2_137 = arith.constant 2 : index
    %c1_138 = arith.constant 1 : index
    %c1_139 = arith.constant 1 : index
    %822 = vector.load %arg10[%c2_137, %c1_138, %c1_139] : memref<8x18x18xf32, #tpu.memory_space<vmem>>, vector<1x16x16xf32>
    %823 = vector.shape_cast %822 : vector<1x16x16xf32> to vector<16x16xf32>
    %c22 = arith.constant 22 : index
    %824 = memref.load %arg5[%c22] : memref<288xf32, #tpu.memory_space<smem>>
    %825 = vector.broadcast %824 : f32 to vector<16x16xf32>
    %826 = arith.mulf %825, %823 : vector<16x16xf32>
    %827 = arith.addf %809, %826 : vector<16x16xf32>
    %c94 = arith.constant 94 : index
    %828 = memref.load %arg5[%c94] : memref<288xf32, #tpu.memory_space<smem>>
    %829 = vector.broadcast %828 : f32 to vector<16x16xf32>
    %830 = arith.mulf %829, %823 : vector<16x16xf32>
    %831 = arith.addf %813, %830 : vector<16x16xf32>
    %c166 = arith.constant 166 : index
    %832 = memref.load %arg5[%c166] : memref<288xf32, #tpu.memory_space<smem>>
    %833 = vector.broadcast %832 : f32 to vector<16x16xf32>
    %834 = arith.mulf %833, %823 : vector<16x16xf32>
    %835 = arith.addf %817, %834 : vector<16x16xf32>
    %c238 = arith.constant 238 : index
    %836 = memref.load %arg5[%c238] : memref<288xf32, #tpu.memory_space<smem>>
    %837 = vector.broadcast %836 : f32 to vector<16x16xf32>
    %838 = arith.mulf %837, %823 : vector<16x16xf32>
    %839 = arith.addf %821, %838 : vector<16x16xf32>
    %c2_140 = arith.constant 2 : index
    %c1_141 = arith.constant 1 : index
    %c2_142 = arith.constant 2 : index
    %840 = vector.load %arg10[%c2_140, %c1_141, %c2_142] : memref<8x18x18xf32, #tpu.memory_space<vmem>>, vector<1x16x16xf32>
    %841 = vector.shape_cast %840 : vector<1x16x16xf32> to vector<16x16xf32>
    %c23 = arith.constant 23 : index
    %842 = memref.load %arg5[%c23] : memref<288xf32, #tpu.memory_space<smem>>
    %843 = vector.broadcast %842 : f32 to vector<16x16xf32>
    %844 = arith.mulf %843, %841 : vector<16x16xf32>
    %845 = arith.addf %827, %844 : vector<16x16xf32>
    %c95 = arith.constant 95 : index
    %846 = memref.load %arg5[%c95] : memref<288xf32, #tpu.memory_space<smem>>
    %847 = vector.broadcast %846 : f32 to vector<16x16xf32>
    %848 = arith.mulf %847, %841 : vector<16x16xf32>
    %849 = arith.addf %831, %848 : vector<16x16xf32>
    %c167 = arith.constant 167 : index
    %850 = memref.load %arg5[%c167] : memref<288xf32, #tpu.memory_space<smem>>
    %851 = vector.broadcast %850 : f32 to vector<16x16xf32>
    %852 = arith.mulf %851, %841 : vector<16x16xf32>
    %853 = arith.addf %835, %852 : vector<16x16xf32>
    %c239 = arith.constant 239 : index
    %854 = memref.load %arg5[%c239] : memref<288xf32, #tpu.memory_space<smem>>
    %855 = vector.broadcast %854 : f32 to vector<16x16xf32>
    %856 = arith.mulf %855, %841 : vector<16x16xf32>
    %857 = arith.addf %839, %856 : vector<16x16xf32>
    %c2_143 = arith.constant 2 : index
    %c2_144 = arith.constant 2 : index
    %c0_145 = arith.constant 0 : index
    %858 = vector.load %arg10[%c2_143, %c2_144, %c0_145] : memref<8x18x18xf32, #tpu.memory_space<vmem>>, vector<1x16x16xf32>
    %859 = vector.shape_cast %858 : vector<1x16x16xf32> to vector<16x16xf32>
    %c24 = arith.constant 24 : index
    %860 = memref.load %arg5[%c24] : memref<288xf32, #tpu.memory_space<smem>>
    %861 = vector.broadcast %860 : f32 to vector<16x16xf32>
    %862 = arith.mulf %861, %859 : vector<16x16xf32>
    %863 = arith.addf %845, %862 : vector<16x16xf32>
    %c96 = arith.constant 96 : index
    %864 = memref.load %arg5[%c96] : memref<288xf32, #tpu.memory_space<smem>>
    %865 = vector.broadcast %864 : f32 to vector<16x16xf32>
    %866 = arith.mulf %865, %859 : vector<16x16xf32>
    %867 = arith.addf %849, %866 : vector<16x16xf32>
    %c168 = arith.constant 168 : index
    %868 = memref.load %arg5[%c168] : memref<288xf32, #tpu.memory_space<smem>>
    %869 = vector.broadcast %868 : f32 to vector<16x16xf32>
    %870 = arith.mulf %869, %859 : vector<16x16xf32>
    %871 = arith.addf %853, %870 : vector<16x16xf32>
    %c240 = arith.constant 240 : index
    %872 = memref.load %arg5[%c240] : memref<288xf32, #tpu.memory_space<smem>>
    %873 = vector.broadcast %872 : f32 to vector<16x16xf32>
    %874 = arith.mulf %873, %859 : vector<16x16xf32>
    %875 = arith.addf %857, %874 : vector<16x16xf32>
    %c2_146 = arith.constant 2 : index
    %c2_147 = arith.constant 2 : index
    %c1_148 = arith.constant 1 : index
    %876 = vector.load %arg10[%c2_146, %c2_147, %c1_148] : memref<8x18x18xf32, #tpu.memory_space<vmem>>, vector<1x16x16xf32>
    %877 = vector.shape_cast %876 : vector<1x16x16xf32> to vector<16x16xf32>
    %c25 = arith.constant 25 : index
    %878 = memref.load %arg5[%c25] : memref<288xf32, #tpu.memory_space<smem>>
    %879 = vector.broadcast %878 : f32 to vector<16x16xf32>
    %880 = arith.mulf %879, %877 : vector<16x16xf32>
    %881 = arith.addf %863, %880 : vector<16x16xf32>
    %c97 = arith.constant 97 : index
    %882 = memref.load %arg5[%c97] : memref<288xf32, #tpu.memory_space<smem>>
    %883 = vector.broadcast %882 : f32 to vector<16x16xf32>
    %884 = arith.mulf %883, %877 : vector<16x16xf32>
    %885 = arith.addf %867, %884 : vector<16x16xf32>
    %c169 = arith.constant 169 : index
    %886 = memref.load %arg5[%c169] : memref<288xf32, #tpu.memory_space<smem>>
    %887 = vector.broadcast %886 : f32 to vector<16x16xf32>
    %888 = arith.mulf %887, %877 : vector<16x16xf32>
    %889 = arith.addf %871, %888 : vector<16x16xf32>
    %c241 = arith.constant 241 : index
    %890 = memref.load %arg5[%c241] : memref<288xf32, #tpu.memory_space<smem>>
    %891 = vector.broadcast %890 : f32 to vector<16x16xf32>
    %892 = arith.mulf %891, %877 : vector<16x16xf32>
    %893 = arith.addf %875, %892 : vector<16x16xf32>
    %c2_149 = arith.constant 2 : index
    %c2_150 = arith.constant 2 : index
    %c2_151 = arith.constant 2 : index
    %894 = vector.load %arg10[%c2_149, %c2_150, %c2_151] : memref<8x18x18xf32, #tpu.memory_space<vmem>>, vector<1x16x16xf32>
    %895 = vector.shape_cast %894 : vector<1x16x16xf32> to vector<16x16xf32>
    %c26 = arith.constant 26 : index
    %896 = memref.load %arg5[%c26] : memref<288xf32, #tpu.memory_space<smem>>
    %897 = vector.broadcast %896 : f32 to vector<16x16xf32>
    %898 = arith.mulf %897, %895 : vector<16x16xf32>
    %899 = arith.addf %881, %898 : vector<16x16xf32>
    %c98 = arith.constant 98 : index
    %900 = memref.load %arg5[%c98] : memref<288xf32, #tpu.memory_space<smem>>
    %901 = vector.broadcast %900 : f32 to vector<16x16xf32>
    %902 = arith.mulf %901, %895 : vector<16x16xf32>
    %903 = arith.addf %885, %902 : vector<16x16xf32>
    %c170 = arith.constant 170 : index
    %904 = memref.load %arg5[%c170] : memref<288xf32, #tpu.memory_space<smem>>
    %905 = vector.broadcast %904 : f32 to vector<16x16xf32>
    %906 = arith.mulf %905, %895 : vector<16x16xf32>
    %907 = arith.addf %889, %906 : vector<16x16xf32>
    %c242 = arith.constant 242 : index
    %908 = memref.load %arg5[%c242] : memref<288xf32, #tpu.memory_space<smem>>
    %909 = vector.broadcast %908 : f32 to vector<16x16xf32>
    %910 = arith.mulf %909, %895 : vector<16x16xf32>
    %911 = arith.addf %893, %910 : vector<16x16xf32>
    %c3_152 = arith.constant 3 : index
    %c0_153 = arith.constant 0 : index
    %c0_154 = arith.constant 0 : index
    %912 = vector.load %arg10[%c3_152, %c0_153, %c0_154] : memref<8x18x18xf32, #tpu.memory_space<vmem>>, vector<1x16x16xf32>
    %913 = vector.shape_cast %912 : vector<1x16x16xf32> to vector<16x16xf32>
    %c27 = arith.constant 27 : index
    %914 = memref.load %arg5[%c27] : memref<288xf32, #tpu.memory_space<smem>>
    %915 = vector.broadcast %914 : f32 to vector<16x16xf32>
    %916 = arith.mulf %915, %913 : vector<16x16xf32>
    %917 = arith.addf %899, %916 : vector<16x16xf32>
    %c99 = arith.constant 99 : index
    %918 = memref.load %arg5[%c99] : memref<288xf32, #tpu.memory_space<smem>>
    %919 = vector.broadcast %918 : f32 to vector<16x16xf32>
    %920 = arith.mulf %919, %913 : vector<16x16xf32>
    %921 = arith.addf %903, %920 : vector<16x16xf32>
    %c171 = arith.constant 171 : index
    %922 = memref.load %arg5[%c171] : memref<288xf32, #tpu.memory_space<smem>>
    %923 = vector.broadcast %922 : f32 to vector<16x16xf32>
    %924 = arith.mulf %923, %913 : vector<16x16xf32>
    %925 = arith.addf %907, %924 : vector<16x16xf32>
    %c243 = arith.constant 243 : index
    %926 = memref.load %arg5[%c243] : memref<288xf32, #tpu.memory_space<smem>>
    %927 = vector.broadcast %926 : f32 to vector<16x16xf32>
    %928 = arith.mulf %927, %913 : vector<16x16xf32>
    %929 = arith.addf %911, %928 : vector<16x16xf32>
    %c3_155 = arith.constant 3 : index
    %c0_156 = arith.constant 0 : index
    %c1_157 = arith.constant 1 : index
    %930 = vector.load %arg10[%c3_155, %c0_156, %c1_157] : memref<8x18x18xf32, #tpu.memory_space<vmem>>, vector<1x16x16xf32>
    %931 = vector.shape_cast %930 : vector<1x16x16xf32> to vector<16x16xf32>
    %c28 = arith.constant 28 : index
    %932 = memref.load %arg5[%c28] : memref<288xf32, #tpu.memory_space<smem>>
    %933 = vector.broadcast %932 : f32 to vector<16x16xf32>
    %934 = arith.mulf %933, %931 : vector<16x16xf32>
    %935 = arith.addf %917, %934 : vector<16x16xf32>
    %c100 = arith.constant 100 : index
    %936 = memref.load %arg5[%c100] : memref<288xf32, #tpu.memory_space<smem>>
    %937 = vector.broadcast %936 : f32 to vector<16x16xf32>
    %938 = arith.mulf %937, %931 : vector<16x16xf32>
    %939 = arith.addf %921, %938 : vector<16x16xf32>
    %c172 = arith.constant 172 : index
    %940 = memref.load %arg5[%c172] : memref<288xf32, #tpu.memory_space<smem>>
    %941 = vector.broadcast %940 : f32 to vector<16x16xf32>
    %942 = arith.mulf %941, %931 : vector<16x16xf32>
    %943 = arith.addf %925, %942 : vector<16x16xf32>
    %c244 = arith.constant 244 : index
    %944 = memref.load %arg5[%c244] : memref<288xf32, #tpu.memory_space<smem>>
    %945 = vector.broadcast %944 : f32 to vector<16x16xf32>
    %946 = arith.mulf %945, %931 : vector<16x16xf32>
    %947 = arith.addf %929, %946 : vector<16x16xf32>
    %c3_158 = arith.constant 3 : index
    %c0_159 = arith.constant 0 : index
    %c2_160 = arith.constant 2 : index
    %948 = vector.load %arg10[%c3_158, %c0_159, %c2_160] : memref<8x18x18xf32, #tpu.memory_space<vmem>>, vector<1x16x16xf32>
    %949 = vector.shape_cast %948 : vector<1x16x16xf32> to vector<16x16xf32>
    %c29 = arith.constant 29 : index
    %950 = memref.load %arg5[%c29] : memref<288xf32, #tpu.memory_space<smem>>
    %951 = vector.broadcast %950 : f32 to vector<16x16xf32>
    %952 = arith.mulf %951, %949 : vector<16x16xf32>
    %953 = arith.addf %935, %952 : vector<16x16xf32>
    %c101 = arith.constant 101 : index
    %954 = memref.load %arg5[%c101] : memref<288xf32, #tpu.memory_space<smem>>
    %955 = vector.broadcast %954 : f32 to vector<16x16xf32>
    %956 = arith.mulf %955, %949 : vector<16x16xf32>
    %957 = arith.addf %939, %956 : vector<16x16xf32>
    %c173 = arith.constant 173 : index
    %958 = memref.load %arg5[%c173] : memref<288xf32, #tpu.memory_space<smem>>
    %959 = vector.broadcast %958 : f32 to vector<16x16xf32>
    %960 = arith.mulf %959, %949 : vector<16x16xf32>
    %961 = arith.addf %943, %960 : vector<16x16xf32>
    %c245 = arith.constant 245 : index
    %962 = memref.load %arg5[%c245] : memref<288xf32, #tpu.memory_space<smem>>
    %963 = vector.broadcast %962 : f32 to vector<16x16xf32>
    %964 = arith.mulf %963, %949 : vector<16x16xf32>
    %965 = arith.addf %947, %964 : vector<16x16xf32>
    %c3_161 = arith.constant 3 : index
    %c1_162 = arith.constant 1 : index
    %c0_163 = arith.constant 0 : index
    %966 = vector.load %arg10[%c3_161, %c1_162, %c0_163] : memref<8x18x18xf32, #tpu.memory_space<vmem>>, vector<1x16x16xf32>
    %967 = vector.shape_cast %966 : vector<1x16x16xf32> to vector<16x16xf32>
    %c30 = arith.constant 30 : index
    %968 = memref.load %arg5[%c30] : memref<288xf32, #tpu.memory_space<smem>>
    %969 = vector.broadcast %968 : f32 to vector<16x16xf32>
    %970 = arith.mulf %969, %967 : vector<16x16xf32>
    %971 = arith.addf %953, %970 : vector<16x16xf32>
    %c102 = arith.constant 102 : index
    %972 = memref.load %arg5[%c102] : memref<288xf32, #tpu.memory_space<smem>>
    %973 = vector.broadcast %972 : f32 to vector<16x16xf32>
    %974 = arith.mulf %973, %967 : vector<16x16xf32>
    %975 = arith.addf %957, %974 : vector<16x16xf32>
    %c174 = arith.constant 174 : index
    %976 = memref.load %arg5[%c174] : memref<288xf32, #tpu.memory_space<smem>>
    %977 = vector.broadcast %976 : f32 to vector<16x16xf32>
    %978 = arith.mulf %977, %967 : vector<16x16xf32>
    %979 = arith.addf %961, %978 : vector<16x16xf32>
    %c246 = arith.constant 246 : index
    %980 = memref.load %arg5[%c246] : memref<288xf32, #tpu.memory_space<smem>>
    %981 = vector.broadcast %980 : f32 to vector<16x16xf32>
    %982 = arith.mulf %981, %967 : vector<16x16xf32>
    %983 = arith.addf %965, %982 : vector<16x16xf32>
    %c3_164 = arith.constant 3 : index
    %c1_165 = arith.constant 1 : index
    %c1_166 = arith.constant 1 : index
    %984 = vector.load %arg10[%c3_164, %c1_165, %c1_166] : memref<8x18x18xf32, #tpu.memory_space<vmem>>, vector<1x16x16xf32>
    %985 = vector.shape_cast %984 : vector<1x16x16xf32> to vector<16x16xf32>
    %c31 = arith.constant 31 : index
    %986 = memref.load %arg5[%c31] : memref<288xf32, #tpu.memory_space<smem>>
    %987 = vector.broadcast %986 : f32 to vector<16x16xf32>
    %988 = arith.mulf %987, %985 : vector<16x16xf32>
    %989 = arith.addf %971, %988 : vector<16x16xf32>
    %c103 = arith.constant 103 : index
    %990 = memref.load %arg5[%c103] : memref<288xf32, #tpu.memory_space<smem>>
    %991 = vector.broadcast %990 : f32 to vector<16x16xf32>
    %992 = arith.mulf %991, %985 : vector<16x16xf32>
    %993 = arith.addf %975, %992 : vector<16x16xf32>
    %c175 = arith.constant 175 : index
    %994 = memref.load %arg5[%c175] : memref<288xf32, #tpu.memory_space<smem>>
    %995 = vector.broadcast %994 : f32 to vector<16x16xf32>
    %996 = arith.mulf %995, %985 : vector<16x16xf32>
    %997 = arith.addf %979, %996 : vector<16x16xf32>
    %c247 = arith.constant 247 : index
    %998 = memref.load %arg5[%c247] : memref<288xf32, #tpu.memory_space<smem>>
    %999 = vector.broadcast %998 : f32 to vector<16x16xf32>
    %1000 = arith.mulf %999, %985 : vector<16x16xf32>
    %1001 = arith.addf %983, %1000 : vector<16x16xf32>
    %c3_167 = arith.constant 3 : index
    %c1_168 = arith.constant 1 : index
    %c2_169 = arith.constant 2 : index
    %1002 = vector.load %arg10[%c3_167, %c1_168, %c2_169] : memref<8x18x18xf32, #tpu.memory_space<vmem>>, vector<1x16x16xf32>
    %1003 = vector.shape_cast %1002 : vector<1x16x16xf32> to vector<16x16xf32>
    %c32 = arith.constant 32 : index
    %1004 = memref.load %arg5[%c32] : memref<288xf32, #tpu.memory_space<smem>>
    %1005 = vector.broadcast %1004 : f32 to vector<16x16xf32>
    %1006 = arith.mulf %1005, %1003 : vector<16x16xf32>
    %1007 = arith.addf %989, %1006 : vector<16x16xf32>
    %c104 = arith.constant 104 : index
    %1008 = memref.load %arg5[%c104] : memref<288xf32, #tpu.memory_space<smem>>
    %1009 = vector.broadcast %1008 : f32 to vector<16x16xf32>
    %1010 = arith.mulf %1009, %1003 : vector<16x16xf32>
    %1011 = arith.addf %993, %1010 : vector<16x16xf32>
    %c176 = arith.constant 176 : index
    %1012 = memref.load %arg5[%c176] : memref<288xf32, #tpu.memory_space<smem>>
    %1013 = vector.broadcast %1012 : f32 to vector<16x16xf32>
    %1014 = arith.mulf %1013, %1003 : vector<16x16xf32>
    %1015 = arith.addf %997, %1014 : vector<16x16xf32>
    %c248 = arith.constant 248 : index
    %1016 = memref.load %arg5[%c248] : memref<288xf32, #tpu.memory_space<smem>>
    %1017 = vector.broadcast %1016 : f32 to vector<16x16xf32>
    %1018 = arith.mulf %1017, %1003 : vector<16x16xf32>
    %1019 = arith.addf %1001, %1018 : vector<16x16xf32>
    %c3_170 = arith.constant 3 : index
    %c2_171 = arith.constant 2 : index
    %c0_172 = arith.constant 0 : index
    %1020 = vector.load %arg10[%c3_170, %c2_171, %c0_172] : memref<8x18x18xf32, #tpu.memory_space<vmem>>, vector<1x16x16xf32>
    %1021 = vector.shape_cast %1020 : vector<1x16x16xf32> to vector<16x16xf32>
    %c33 = arith.constant 33 : index
    %1022 = memref.load %arg5[%c33] : memref<288xf32, #tpu.memory_space<smem>>
    %1023 = vector.broadcast %1022 : f32 to vector<16x16xf32>
    %1024 = arith.mulf %1023, %1021 : vector<16x16xf32>
    %1025 = arith.addf %1007, %1024 : vector<16x16xf32>
    %c105 = arith.constant 105 : index
    %1026 = memref.load %arg5[%c105] : memref<288xf32, #tpu.memory_space<smem>>
    %1027 = vector.broadcast %1026 : f32 to vector<16x16xf32>
    %1028 = arith.mulf %1027, %1021 : vector<16x16xf32>
    %1029 = arith.addf %1011, %1028 : vector<16x16xf32>
    %c177 = arith.constant 177 : index
    %1030 = memref.load %arg5[%c177] : memref<288xf32, #tpu.memory_space<smem>>
    %1031 = vector.broadcast %1030 : f32 to vector<16x16xf32>
    %1032 = arith.mulf %1031, %1021 : vector<16x16xf32>
    %1033 = arith.addf %1015, %1032 : vector<16x16xf32>
    %c249 = arith.constant 249 : index
    %1034 = memref.load %arg5[%c249] : memref<288xf32, #tpu.memory_space<smem>>
    %1035 = vector.broadcast %1034 : f32 to vector<16x16xf32>
    %1036 = arith.mulf %1035, %1021 : vector<16x16xf32>
    %1037 = arith.addf %1019, %1036 : vector<16x16xf32>
    %c3_173 = arith.constant 3 : index
    %c2_174 = arith.constant 2 : index
    %c1_175 = arith.constant 1 : index
    %1038 = vector.load %arg10[%c3_173, %c2_174, %c1_175] : memref<8x18x18xf32, #tpu.memory_space<vmem>>, vector<1x16x16xf32>
    %1039 = vector.shape_cast %1038 : vector<1x16x16xf32> to vector<16x16xf32>
    %c34 = arith.constant 34 : index
    %1040 = memref.load %arg5[%c34] : memref<288xf32, #tpu.memory_space<smem>>
    %1041 = vector.broadcast %1040 : f32 to vector<16x16xf32>
    %1042 = arith.mulf %1041, %1039 : vector<16x16xf32>
    %1043 = arith.addf %1025, %1042 : vector<16x16xf32>
    %c106 = arith.constant 106 : index
    %1044 = memref.load %arg5[%c106] : memref<288xf32, #tpu.memory_space<smem>>
    %1045 = vector.broadcast %1044 : f32 to vector<16x16xf32>
    %1046 = arith.mulf %1045, %1039 : vector<16x16xf32>
    %1047 = arith.addf %1029, %1046 : vector<16x16xf32>
    %c178 = arith.constant 178 : index
    %1048 = memref.load %arg5[%c178] : memref<288xf32, #tpu.memory_space<smem>>
    %1049 = vector.broadcast %1048 : f32 to vector<16x16xf32>
    %1050 = arith.mulf %1049, %1039 : vector<16x16xf32>
    %1051 = arith.addf %1033, %1050 : vector<16x16xf32>
    %c250 = arith.constant 250 : index
    %1052 = memref.load %arg5[%c250] : memref<288xf32, #tpu.memory_space<smem>>
    %1053 = vector.broadcast %1052 : f32 to vector<16x16xf32>
    %1054 = arith.mulf %1053, %1039 : vector<16x16xf32>
    %1055 = arith.addf %1037, %1054 : vector<16x16xf32>
    %c3_176 = arith.constant 3 : index
    %c2_177 = arith.constant 2 : index
    %c2_178 = arith.constant 2 : index
    %1056 = vector.load %arg10[%c3_176, %c2_177, %c2_178] : memref<8x18x18xf32, #tpu.memory_space<vmem>>, vector<1x16x16xf32>
    %1057 = vector.shape_cast %1056 : vector<1x16x16xf32> to vector<16x16xf32>
    %c35 = arith.constant 35 : index
    %1058 = memref.load %arg5[%c35] : memref<288xf32, #tpu.memory_space<smem>>
    %1059 = vector.broadcast %1058 : f32 to vector<16x16xf32>
    %1060 = arith.mulf %1059, %1057 : vector<16x16xf32>
    %1061 = arith.addf %1043, %1060 : vector<16x16xf32>
    %c107 = arith.constant 107 : index
    %1062 = memref.load %arg5[%c107] : memref<288xf32, #tpu.memory_space<smem>>
    %1063 = vector.broadcast %1062 : f32 to vector<16x16xf32>
    %1064 = arith.mulf %1063, %1057 : vector<16x16xf32>
    %1065 = arith.addf %1047, %1064 : vector<16x16xf32>
    %c179 = arith.constant 179 : index
    %1066 = memref.load %arg5[%c179] : memref<288xf32, #tpu.memory_space<smem>>
    %1067 = vector.broadcast %1066 : f32 to vector<16x16xf32>
    %1068 = arith.mulf %1067, %1057 : vector<16x16xf32>
    %1069 = arith.addf %1051, %1068 : vector<16x16xf32>
    %c251 = arith.constant 251 : index
    %1070 = memref.load %arg5[%c251] : memref<288xf32, #tpu.memory_space<smem>>
    %1071 = vector.broadcast %1070 : f32 to vector<16x16xf32>
    %1072 = arith.mulf %1071, %1057 : vector<16x16xf32>
    %1073 = arith.addf %1055, %1072 : vector<16x16xf32>
    %c4_179 = arith.constant 4 : index
    %c0_180 = arith.constant 0 : index
    %c0_181 = arith.constant 0 : index
    %1074 = vector.load %arg10[%c4_179, %c0_180, %c0_181] : memref<8x18x18xf32, #tpu.memory_space<vmem>>, vector<1x16x16xf32>
    %1075 = vector.shape_cast %1074 : vector<1x16x16xf32> to vector<16x16xf32>
    %c36 = arith.constant 36 : index
    %1076 = memref.load %arg5[%c36] : memref<288xf32, #tpu.memory_space<smem>>
    %1077 = vector.broadcast %1076 : f32 to vector<16x16xf32>
    %1078 = arith.mulf %1077, %1075 : vector<16x16xf32>
    %1079 = arith.addf %1061, %1078 : vector<16x16xf32>
    %c108 = arith.constant 108 : index
    %1080 = memref.load %arg5[%c108] : memref<288xf32, #tpu.memory_space<smem>>
    %1081 = vector.broadcast %1080 : f32 to vector<16x16xf32>
    %1082 = arith.mulf %1081, %1075 : vector<16x16xf32>
    %1083 = arith.addf %1065, %1082 : vector<16x16xf32>
    %c180 = arith.constant 180 : index
    %1084 = memref.load %arg5[%c180] : memref<288xf32, #tpu.memory_space<smem>>
    %1085 = vector.broadcast %1084 : f32 to vector<16x16xf32>
    %1086 = arith.mulf %1085, %1075 : vector<16x16xf32>
    %1087 = arith.addf %1069, %1086 : vector<16x16xf32>
    %c252 = arith.constant 252 : index
    %1088 = memref.load %arg5[%c252] : memref<288xf32, #tpu.memory_space<smem>>
    %1089 = vector.broadcast %1088 : f32 to vector<16x16xf32>
    %1090 = arith.mulf %1089, %1075 : vector<16x16xf32>
    %1091 = arith.addf %1073, %1090 : vector<16x16xf32>
    %c4_182 = arith.constant 4 : index
    %c0_183 = arith.constant 0 : index
    %c1_184 = arith.constant 1 : index
    %1092 = vector.load %arg10[%c4_182, %c0_183, %c1_184] : memref<8x18x18xf32, #tpu.memory_space<vmem>>, vector<1x16x16xf32>
    %1093 = vector.shape_cast %1092 : vector<1x16x16xf32> to vector<16x16xf32>
    %c37 = arith.constant 37 : index
    %1094 = memref.load %arg5[%c37] : memref<288xf32, #tpu.memory_space<smem>>
    %1095 = vector.broadcast %1094 : f32 to vector<16x16xf32>
    %1096 = arith.mulf %1095, %1093 : vector<16x16xf32>
    %1097 = arith.addf %1079, %1096 : vector<16x16xf32>
    %c109 = arith.constant 109 : index
    %1098 = memref.load %arg5[%c109] : memref<288xf32, #tpu.memory_space<smem>>
    %1099 = vector.broadcast %1098 : f32 to vector<16x16xf32>
    %1100 = arith.mulf %1099, %1093 : vector<16x16xf32>
    %1101 = arith.addf %1083, %1100 : vector<16x16xf32>
    %c181 = arith.constant 181 : index
    %1102 = memref.load %arg5[%c181] : memref<288xf32, #tpu.memory_space<smem>>
    %1103 = vector.broadcast %1102 : f32 to vector<16x16xf32>
    %1104 = arith.mulf %1103, %1093 : vector<16x16xf32>
    %1105 = arith.addf %1087, %1104 : vector<16x16xf32>
    %c253 = arith.constant 253 : index
    %1106 = memref.load %arg5[%c253] : memref<288xf32, #tpu.memory_space<smem>>
    %1107 = vector.broadcast %1106 : f32 to vector<16x16xf32>
    %1108 = arith.mulf %1107, %1093 : vector<16x16xf32>
    %1109 = arith.addf %1091, %1108 : vector<16x16xf32>
    %c4_185 = arith.constant 4 : index
    %c0_186 = arith.constant 0 : index
    %c2_187 = arith.constant 2 : index
    %1110 = vector.load %arg10[%c4_185, %c0_186, %c2_187] : memref<8x18x18xf32, #tpu.memory_space<vmem>>, vector<1x16x16xf32>
    %1111 = vector.shape_cast %1110 : vector<1x16x16xf32> to vector<16x16xf32>
    %c38 = arith.constant 38 : index
    %1112 = memref.load %arg5[%c38] : memref<288xf32, #tpu.memory_space<smem>>
    %1113 = vector.broadcast %1112 : f32 to vector<16x16xf32>
    %1114 = arith.mulf %1113, %1111 : vector<16x16xf32>
    %1115 = arith.addf %1097, %1114 : vector<16x16xf32>
    %c110 = arith.constant 110 : index
    %1116 = memref.load %arg5[%c110] : memref<288xf32, #tpu.memory_space<smem>>
    %1117 = vector.broadcast %1116 : f32 to vector<16x16xf32>
    %1118 = arith.mulf %1117, %1111 : vector<16x16xf32>
    %1119 = arith.addf %1101, %1118 : vector<16x16xf32>
    %c182 = arith.constant 182 : index
    %1120 = memref.load %arg5[%c182] : memref<288xf32, #tpu.memory_space<smem>>
    %1121 = vector.broadcast %1120 : f32 to vector<16x16xf32>
    %1122 = arith.mulf %1121, %1111 : vector<16x16xf32>
    %1123 = arith.addf %1105, %1122 : vector<16x16xf32>
    %c254 = arith.constant 254 : index
    %1124 = memref.load %arg5[%c254] : memref<288xf32, #tpu.memory_space<smem>>
    %1125 = vector.broadcast %1124 : f32 to vector<16x16xf32>
    %1126 = arith.mulf %1125, %1111 : vector<16x16xf32>
    %1127 = arith.addf %1109, %1126 : vector<16x16xf32>
    %c4_188 = arith.constant 4 : index
    %c1_189 = arith.constant 1 : index
    %c0_190 = arith.constant 0 : index
    %1128 = vector.load %arg10[%c4_188, %c1_189, %c0_190] : memref<8x18x18xf32, #tpu.memory_space<vmem>>, vector<1x16x16xf32>
    %1129 = vector.shape_cast %1128 : vector<1x16x16xf32> to vector<16x16xf32>
    %c39 = arith.constant 39 : index
    %1130 = memref.load %arg5[%c39] : memref<288xf32, #tpu.memory_space<smem>>
    %1131 = vector.broadcast %1130 : f32 to vector<16x16xf32>
    %1132 = arith.mulf %1131, %1129 : vector<16x16xf32>
    %1133 = arith.addf %1115, %1132 : vector<16x16xf32>
    %c111 = arith.constant 111 : index
    %1134 = memref.load %arg5[%c111] : memref<288xf32, #tpu.memory_space<smem>>
    %1135 = vector.broadcast %1134 : f32 to vector<16x16xf32>
    %1136 = arith.mulf %1135, %1129 : vector<16x16xf32>
    %1137 = arith.addf %1119, %1136 : vector<16x16xf32>
    %c183 = arith.constant 183 : index
    %1138 = memref.load %arg5[%c183] : memref<288xf32, #tpu.memory_space<smem>>
    %1139 = vector.broadcast %1138 : f32 to vector<16x16xf32>
    %1140 = arith.mulf %1139, %1129 : vector<16x16xf32>
    %1141 = arith.addf %1123, %1140 : vector<16x16xf32>
    %c255 = arith.constant 255 : index
    %1142 = memref.load %arg5[%c255] : memref<288xf32, #tpu.memory_space<smem>>
    %1143 = vector.broadcast %1142 : f32 to vector<16x16xf32>
    %1144 = arith.mulf %1143, %1129 : vector<16x16xf32>
    %1145 = arith.addf %1127, %1144 : vector<16x16xf32>
    %c4_191 = arith.constant 4 : index
    %c1_192 = arith.constant 1 : index
    %c1_193 = arith.constant 1 : index
    %1146 = vector.load %arg10[%c4_191, %c1_192, %c1_193] : memref<8x18x18xf32, #tpu.memory_space<vmem>>, vector<1x16x16xf32>
    %1147 = vector.shape_cast %1146 : vector<1x16x16xf32> to vector<16x16xf32>
    %c40 = arith.constant 40 : index
    %1148 = memref.load %arg5[%c40] : memref<288xf32, #tpu.memory_space<smem>>
    %1149 = vector.broadcast %1148 : f32 to vector<16x16xf32>
    %1150 = arith.mulf %1149, %1147 : vector<16x16xf32>
    %1151 = arith.addf %1133, %1150 : vector<16x16xf32>
    %c112 = arith.constant 112 : index
    %1152 = memref.load %arg5[%c112] : memref<288xf32, #tpu.memory_space<smem>>
    %1153 = vector.broadcast %1152 : f32 to vector<16x16xf32>
    %1154 = arith.mulf %1153, %1147 : vector<16x16xf32>
    %1155 = arith.addf %1137, %1154 : vector<16x16xf32>
    %c184 = arith.constant 184 : index
    %1156 = memref.load %arg5[%c184] : memref<288xf32, #tpu.memory_space<smem>>
    %1157 = vector.broadcast %1156 : f32 to vector<16x16xf32>
    %1158 = arith.mulf %1157, %1147 : vector<16x16xf32>
    %1159 = arith.addf %1141, %1158 : vector<16x16xf32>
    %c256 = arith.constant 256 : index
    %1160 = memref.load %arg5[%c256] : memref<288xf32, #tpu.memory_space<smem>>
    %1161 = vector.broadcast %1160 : f32 to vector<16x16xf32>
    %1162 = arith.mulf %1161, %1147 : vector<16x16xf32>
    %1163 = arith.addf %1145, %1162 : vector<16x16xf32>
    %c4_194 = arith.constant 4 : index
    %c1_195 = arith.constant 1 : index
    %c2_196 = arith.constant 2 : index
    %1164 = vector.load %arg10[%c4_194, %c1_195, %c2_196] : memref<8x18x18xf32, #tpu.memory_space<vmem>>, vector<1x16x16xf32>
    %1165 = vector.shape_cast %1164 : vector<1x16x16xf32> to vector<16x16xf32>
    %c41 = arith.constant 41 : index
    %1166 = memref.load %arg5[%c41] : memref<288xf32, #tpu.memory_space<smem>>
    %1167 = vector.broadcast %1166 : f32 to vector<16x16xf32>
    %1168 = arith.mulf %1167, %1165 : vector<16x16xf32>
    %1169 = arith.addf %1151, %1168 : vector<16x16xf32>
    %c113 = arith.constant 113 : index
    %1170 = memref.load %arg5[%c113] : memref<288xf32, #tpu.memory_space<smem>>
    %1171 = vector.broadcast %1170 : f32 to vector<16x16xf32>
    %1172 = arith.mulf %1171, %1165 : vector<16x16xf32>
    %1173 = arith.addf %1155, %1172 : vector<16x16xf32>
    %c185 = arith.constant 185 : index
    %1174 = memref.load %arg5[%c185] : memref<288xf32, #tpu.memory_space<smem>>
    %1175 = vector.broadcast %1174 : f32 to vector<16x16xf32>
    %1176 = arith.mulf %1175, %1165 : vector<16x16xf32>
    %1177 = arith.addf %1159, %1176 : vector<16x16xf32>
    %c257 = arith.constant 257 : index
    %1178 = memref.load %arg5[%c257] : memref<288xf32, #tpu.memory_space<smem>>
    %1179 = vector.broadcast %1178 : f32 to vector<16x16xf32>
    %1180 = arith.mulf %1179, %1165 : vector<16x16xf32>
    %1181 = arith.addf %1163, %1180 : vector<16x16xf32>
    %c4_197 = arith.constant 4 : index
    %c2_198 = arith.constant 2 : index
    %c0_199 = arith.constant 0 : index
    %1182 = vector.load %arg10[%c4_197, %c2_198, %c0_199] : memref<8x18x18xf32, #tpu.memory_space<vmem>>, vector<1x16x16xf32>
    %1183 = vector.shape_cast %1182 : vector<1x16x16xf32> to vector<16x16xf32>
    %c42 = arith.constant 42 : index
    %1184 = memref.load %arg5[%c42] : memref<288xf32, #tpu.memory_space<smem>>
    %1185 = vector.broadcast %1184 : f32 to vector<16x16xf32>
    %1186 = arith.mulf %1185, %1183 : vector<16x16xf32>
    %1187 = arith.addf %1169, %1186 : vector<16x16xf32>
    %c114 = arith.constant 114 : index
    %1188 = memref.load %arg5[%c114] : memref<288xf32, #tpu.memory_space<smem>>
    %1189 = vector.broadcast %1188 : f32 to vector<16x16xf32>
    %1190 = arith.mulf %1189, %1183 : vector<16x16xf32>
    %1191 = arith.addf %1173, %1190 : vector<16x16xf32>
    %c186 = arith.constant 186 : index
    %1192 = memref.load %arg5[%c186] : memref<288xf32, #tpu.memory_space<smem>>
    %1193 = vector.broadcast %1192 : f32 to vector<16x16xf32>
    %1194 = arith.mulf %1193, %1183 : vector<16x16xf32>
    %1195 = arith.addf %1177, %1194 : vector<16x16xf32>
    %c258 = arith.constant 258 : index
    %1196 = memref.load %arg5[%c258] : memref<288xf32, #tpu.memory_space<smem>>
    %1197 = vector.broadcast %1196 : f32 to vector<16x16xf32>
    %1198 = arith.mulf %1197, %1183 : vector<16x16xf32>
    %1199 = arith.addf %1181, %1198 : vector<16x16xf32>
    %c4_200 = arith.constant 4 : index
    %c2_201 = arith.constant 2 : index
    %c1_202 = arith.constant 1 : index
    %1200 = vector.load %arg10[%c4_200, %c2_201, %c1_202] : memref<8x18x18xf32, #tpu.memory_space<vmem>>, vector<1x16x16xf32>
    %1201 = vector.shape_cast %1200 : vector<1x16x16xf32> to vector<16x16xf32>
    %c43 = arith.constant 43 : index
    %1202 = memref.load %arg5[%c43] : memref<288xf32, #tpu.memory_space<smem>>
    %1203 = vector.broadcast %1202 : f32 to vector<16x16xf32>
    %1204 = arith.mulf %1203, %1201 : vector<16x16xf32>
    %1205 = arith.addf %1187, %1204 : vector<16x16xf32>
    %c115 = arith.constant 115 : index
    %1206 = memref.load %arg5[%c115] : memref<288xf32, #tpu.memory_space<smem>>
    %1207 = vector.broadcast %1206 : f32 to vector<16x16xf32>
    %1208 = arith.mulf %1207, %1201 : vector<16x16xf32>
    %1209 = arith.addf %1191, %1208 : vector<16x16xf32>
    %c187 = arith.constant 187 : index
    %1210 = memref.load %arg5[%c187] : memref<288xf32, #tpu.memory_space<smem>>
    %1211 = vector.broadcast %1210 : f32 to vector<16x16xf32>
    %1212 = arith.mulf %1211, %1201 : vector<16x16xf32>
    %1213 = arith.addf %1195, %1212 : vector<16x16xf32>
    %c259 = arith.constant 259 : index
    %1214 = memref.load %arg5[%c259] : memref<288xf32, #tpu.memory_space<smem>>
    %1215 = vector.broadcast %1214 : f32 to vector<16x16xf32>
    %1216 = arith.mulf %1215, %1201 : vector<16x16xf32>
    %1217 = arith.addf %1199, %1216 : vector<16x16xf32>
    %c4_203 = arith.constant 4 : index
    %c2_204 = arith.constant 2 : index
    %c2_205 = arith.constant 2 : index
    %1218 = vector.load %arg10[%c4_203, %c2_204, %c2_205] : memref<8x18x18xf32, #tpu.memory_space<vmem>>, vector<1x16x16xf32>
    %1219 = vector.shape_cast %1218 : vector<1x16x16xf32> to vector<16x16xf32>
    %c44 = arith.constant 44 : index
    %1220 = memref.load %arg5[%c44] : memref<288xf32, #tpu.memory_space<smem>>
    %1221 = vector.broadcast %1220 : f32 to vector<16x16xf32>
    %1222 = arith.mulf %1221, %1219 : vector<16x16xf32>
    %1223 = arith.addf %1205, %1222 : vector<16x16xf32>
    %c116 = arith.constant 116 : index
    %1224 = memref.load %arg5[%c116] : memref<288xf32, #tpu.memory_space<smem>>
    %1225 = vector.broadcast %1224 : f32 to vector<16x16xf32>
    %1226 = arith.mulf %1225, %1219 : vector<16x16xf32>
    %1227 = arith.addf %1209, %1226 : vector<16x16xf32>
    %c188 = arith.constant 188 : index
    %1228 = memref.load %arg5[%c188] : memref<288xf32, #tpu.memory_space<smem>>
    %1229 = vector.broadcast %1228 : f32 to vector<16x16xf32>
    %1230 = arith.mulf %1229, %1219 : vector<16x16xf32>
    %1231 = arith.addf %1213, %1230 : vector<16x16xf32>
    %c260 = arith.constant 260 : index
    %1232 = memref.load %arg5[%c260] : memref<288xf32, #tpu.memory_space<smem>>
    %1233 = vector.broadcast %1232 : f32 to vector<16x16xf32>
    %1234 = arith.mulf %1233, %1219 : vector<16x16xf32>
    %1235 = arith.addf %1217, %1234 : vector<16x16xf32>
    %c5_206 = arith.constant 5 : index
    %c0_207 = arith.constant 0 : index
    %c0_208 = arith.constant 0 : index
    %1236 = vector.load %arg10[%c5_206, %c0_207, %c0_208] : memref<8x18x18xf32, #tpu.memory_space<vmem>>, vector<1x16x16xf32>
    %1237 = vector.shape_cast %1236 : vector<1x16x16xf32> to vector<16x16xf32>
    %c45 = arith.constant 45 : index
    %1238 = memref.load %arg5[%c45] : memref<288xf32, #tpu.memory_space<smem>>
    %1239 = vector.broadcast %1238 : f32 to vector<16x16xf32>
    %1240 = arith.mulf %1239, %1237 : vector<16x16xf32>
    %1241 = arith.addf %1223, %1240 : vector<16x16xf32>
    %c117 = arith.constant 117 : index
    %1242 = memref.load %arg5[%c117] : memref<288xf32, #tpu.memory_space<smem>>
    %1243 = vector.broadcast %1242 : f32 to vector<16x16xf32>
    %1244 = arith.mulf %1243, %1237 : vector<16x16xf32>
    %1245 = arith.addf %1227, %1244 : vector<16x16xf32>
    %c189 = arith.constant 189 : index
    %1246 = memref.load %arg5[%c189] : memref<288xf32, #tpu.memory_space<smem>>
    %1247 = vector.broadcast %1246 : f32 to vector<16x16xf32>
    %1248 = arith.mulf %1247, %1237 : vector<16x16xf32>
    %1249 = arith.addf %1231, %1248 : vector<16x16xf32>
    %c261 = arith.constant 261 : index
    %1250 = memref.load %arg5[%c261] : memref<288xf32, #tpu.memory_space<smem>>
    %1251 = vector.broadcast %1250 : f32 to vector<16x16xf32>
    %1252 = arith.mulf %1251, %1237 : vector<16x16xf32>
    %1253 = arith.addf %1235, %1252 : vector<16x16xf32>
    %c5_209 = arith.constant 5 : index
    %c0_210 = arith.constant 0 : index
    %c1_211 = arith.constant 1 : index
    %1254 = vector.load %arg10[%c5_209, %c0_210, %c1_211] : memref<8x18x18xf32, #tpu.memory_space<vmem>>, vector<1x16x16xf32>
    %1255 = vector.shape_cast %1254 : vector<1x16x16xf32> to vector<16x16xf32>
    %c46 = arith.constant 46 : index
    %1256 = memref.load %arg5[%c46] : memref<288xf32, #tpu.memory_space<smem>>
    %1257 = vector.broadcast %1256 : f32 to vector<16x16xf32>
    %1258 = arith.mulf %1257, %1255 : vector<16x16xf32>
    %1259 = arith.addf %1241, %1258 : vector<16x16xf32>
    %c118 = arith.constant 118 : index
    %1260 = memref.load %arg5[%c118] : memref<288xf32, #tpu.memory_space<smem>>
    %1261 = vector.broadcast %1260 : f32 to vector<16x16xf32>
    %1262 = arith.mulf %1261, %1255 : vector<16x16xf32>
    %1263 = arith.addf %1245, %1262 : vector<16x16xf32>
    %c190 = arith.constant 190 : index
    %1264 = memref.load %arg5[%c190] : memref<288xf32, #tpu.memory_space<smem>>
    %1265 = vector.broadcast %1264 : f32 to vector<16x16xf32>
    %1266 = arith.mulf %1265, %1255 : vector<16x16xf32>
    %1267 = arith.addf %1249, %1266 : vector<16x16xf32>
    %c262 = arith.constant 262 : index
    %1268 = memref.load %arg5[%c262] : memref<288xf32, #tpu.memory_space<smem>>
    %1269 = vector.broadcast %1268 : f32 to vector<16x16xf32>
    %1270 = arith.mulf %1269, %1255 : vector<16x16xf32>
    %1271 = arith.addf %1253, %1270 : vector<16x16xf32>
    %c5_212 = arith.constant 5 : index
    %c0_213 = arith.constant 0 : index
    %c2_214 = arith.constant 2 : index
    %1272 = vector.load %arg10[%c5_212, %c0_213, %c2_214] : memref<8x18x18xf32, #tpu.memory_space<vmem>>, vector<1x16x16xf32>
    %1273 = vector.shape_cast %1272 : vector<1x16x16xf32> to vector<16x16xf32>
    %c47 = arith.constant 47 : index
    %1274 = memref.load %arg5[%c47] : memref<288xf32, #tpu.memory_space<smem>>
    %1275 = vector.broadcast %1274 : f32 to vector<16x16xf32>
    %1276 = arith.mulf %1275, %1273 : vector<16x16xf32>
    %1277 = arith.addf %1259, %1276 : vector<16x16xf32>
    %c119 = arith.constant 119 : index
    %1278 = memref.load %arg5[%c119] : memref<288xf32, #tpu.memory_space<smem>>
    %1279 = vector.broadcast %1278 : f32 to vector<16x16xf32>
    %1280 = arith.mulf %1279, %1273 : vector<16x16xf32>
    %1281 = arith.addf %1263, %1280 : vector<16x16xf32>
    %c191 = arith.constant 191 : index
    %1282 = memref.load %arg5[%c191] : memref<288xf32, #tpu.memory_space<smem>>
    %1283 = vector.broadcast %1282 : f32 to vector<16x16xf32>
    %1284 = arith.mulf %1283, %1273 : vector<16x16xf32>
    %1285 = arith.addf %1267, %1284 : vector<16x16xf32>
    %c263 = arith.constant 263 : index
    %1286 = memref.load %arg5[%c263] : memref<288xf32, #tpu.memory_space<smem>>
    %1287 = vector.broadcast %1286 : f32 to vector<16x16xf32>
    %1288 = arith.mulf %1287, %1273 : vector<16x16xf32>
    %1289 = arith.addf %1271, %1288 : vector<16x16xf32>
    %c5_215 = arith.constant 5 : index
    %c1_216 = arith.constant 1 : index
    %c0_217 = arith.constant 0 : index
    %1290 = vector.load %arg10[%c5_215, %c1_216, %c0_217] : memref<8x18x18xf32, #tpu.memory_space<vmem>>, vector<1x16x16xf32>
    %1291 = vector.shape_cast %1290 : vector<1x16x16xf32> to vector<16x16xf32>
    %c48 = arith.constant 48 : index
    %1292 = memref.load %arg5[%c48] : memref<288xf32, #tpu.memory_space<smem>>
    %1293 = vector.broadcast %1292 : f32 to vector<16x16xf32>
    %1294 = arith.mulf %1293, %1291 : vector<16x16xf32>
    %1295 = arith.addf %1277, %1294 : vector<16x16xf32>
    %c120 = arith.constant 120 : index
    %1296 = memref.load %arg5[%c120] : memref<288xf32, #tpu.memory_space<smem>>
    %1297 = vector.broadcast %1296 : f32 to vector<16x16xf32>
    %1298 = arith.mulf %1297, %1291 : vector<16x16xf32>
    %1299 = arith.addf %1281, %1298 : vector<16x16xf32>
    %c192 = arith.constant 192 : index
    %1300 = memref.load %arg5[%c192] : memref<288xf32, #tpu.memory_space<smem>>
    %1301 = vector.broadcast %1300 : f32 to vector<16x16xf32>
    %1302 = arith.mulf %1301, %1291 : vector<16x16xf32>
    %1303 = arith.addf %1285, %1302 : vector<16x16xf32>
    %c264 = arith.constant 264 : index
    %1304 = memref.load %arg5[%c264] : memref<288xf32, #tpu.memory_space<smem>>
    %1305 = vector.broadcast %1304 : f32 to vector<16x16xf32>
    %1306 = arith.mulf %1305, %1291 : vector<16x16xf32>
    %1307 = arith.addf %1289, %1306 : vector<16x16xf32>
    %c5_218 = arith.constant 5 : index
    %c1_219 = arith.constant 1 : index
    %c1_220 = arith.constant 1 : index
    %1308 = vector.load %arg10[%c5_218, %c1_219, %c1_220] : memref<8x18x18xf32, #tpu.memory_space<vmem>>, vector<1x16x16xf32>
    %1309 = vector.shape_cast %1308 : vector<1x16x16xf32> to vector<16x16xf32>
    %c49 = arith.constant 49 : index
    %1310 = memref.load %arg5[%c49] : memref<288xf32, #tpu.memory_space<smem>>
    %1311 = vector.broadcast %1310 : f32 to vector<16x16xf32>
    %1312 = arith.mulf %1311, %1309 : vector<16x16xf32>
    %1313 = arith.addf %1295, %1312 : vector<16x16xf32>
    %c121 = arith.constant 121 : index
    %1314 = memref.load %arg5[%c121] : memref<288xf32, #tpu.memory_space<smem>>
    %1315 = vector.broadcast %1314 : f32 to vector<16x16xf32>
    %1316 = arith.mulf %1315, %1309 : vector<16x16xf32>
    %1317 = arith.addf %1299, %1316 : vector<16x16xf32>
    %c193 = arith.constant 193 : index
    %1318 = memref.load %arg5[%c193] : memref<288xf32, #tpu.memory_space<smem>>
    %1319 = vector.broadcast %1318 : f32 to vector<16x16xf32>
    %1320 = arith.mulf %1319, %1309 : vector<16x16xf32>
    %1321 = arith.addf %1303, %1320 : vector<16x16xf32>
    %c265 = arith.constant 265 : index
    %1322 = memref.load %arg5[%c265] : memref<288xf32, #tpu.memory_space<smem>>
    %1323 = vector.broadcast %1322 : f32 to vector<16x16xf32>
    %1324 = arith.mulf %1323, %1309 : vector<16x16xf32>
    %1325 = arith.addf %1307, %1324 : vector<16x16xf32>
    %c5_221 = arith.constant 5 : index
    %c1_222 = arith.constant 1 : index
    %c2_223 = arith.constant 2 : index
    %1326 = vector.load %arg10[%c5_221, %c1_222, %c2_223] : memref<8x18x18xf32, #tpu.memory_space<vmem>>, vector<1x16x16xf32>
    %1327 = vector.shape_cast %1326 : vector<1x16x16xf32> to vector<16x16xf32>
    %c50 = arith.constant 50 : index
    %1328 = memref.load %arg5[%c50] : memref<288xf32, #tpu.memory_space<smem>>
    %1329 = vector.broadcast %1328 : f32 to vector<16x16xf32>
    %1330 = arith.mulf %1329, %1327 : vector<16x16xf32>
    %1331 = arith.addf %1313, %1330 : vector<16x16xf32>
    %c122 = arith.constant 122 : index
    %1332 = memref.load %arg5[%c122] : memref<288xf32, #tpu.memory_space<smem>>
    %1333 = vector.broadcast %1332 : f32 to vector<16x16xf32>
    %1334 = arith.mulf %1333, %1327 : vector<16x16xf32>
    %1335 = arith.addf %1317, %1334 : vector<16x16xf32>
    %c194 = arith.constant 194 : index
    %1336 = memref.load %arg5[%c194] : memref<288xf32, #tpu.memory_space<smem>>
    %1337 = vector.broadcast %1336 : f32 to vector<16x16xf32>
    %1338 = arith.mulf %1337, %1327 : vector<16x16xf32>
    %1339 = arith.addf %1321, %1338 : vector<16x16xf32>
    %c266 = arith.constant 266 : index
    %1340 = memref.load %arg5[%c266] : memref<288xf32, #tpu.memory_space<smem>>
    %1341 = vector.broadcast %1340 : f32 to vector<16x16xf32>
    %1342 = arith.mulf %1341, %1327 : vector<16x16xf32>
    %1343 = arith.addf %1325, %1342 : vector<16x16xf32>
    %c5_224 = arith.constant 5 : index
    %c2_225 = arith.constant 2 : index
    %c0_226 = arith.constant 0 : index
    %1344 = vector.load %arg10[%c5_224, %c2_225, %c0_226] : memref<8x18x18xf32, #tpu.memory_space<vmem>>, vector<1x16x16xf32>
    %1345 = vector.shape_cast %1344 : vector<1x16x16xf32> to vector<16x16xf32>
    %c51 = arith.constant 51 : index
    %1346 = memref.load %arg5[%c51] : memref<288xf32, #tpu.memory_space<smem>>
    %1347 = vector.broadcast %1346 : f32 to vector<16x16xf32>
    %1348 = arith.mulf %1347, %1345 : vector<16x16xf32>
    %1349 = arith.addf %1331, %1348 : vector<16x16xf32>
    %c123 = arith.constant 123 : index
    %1350 = memref.load %arg5[%c123] : memref<288xf32, #tpu.memory_space<smem>>
    %1351 = vector.broadcast %1350 : f32 to vector<16x16xf32>
    %1352 = arith.mulf %1351, %1345 : vector<16x16xf32>
    %1353 = arith.addf %1335, %1352 : vector<16x16xf32>
    %c195 = arith.constant 195 : index
    %1354 = memref.load %arg5[%c195] : memref<288xf32, #tpu.memory_space<smem>>
    %1355 = vector.broadcast %1354 : f32 to vector<16x16xf32>
    %1356 = arith.mulf %1355, %1345 : vector<16x16xf32>
    %1357 = arith.addf %1339, %1356 : vector<16x16xf32>
    %c267 = arith.constant 267 : index
    %1358 = memref.load %arg5[%c267] : memref<288xf32, #tpu.memory_space<smem>>
    %1359 = vector.broadcast %1358 : f32 to vector<16x16xf32>
    %1360 = arith.mulf %1359, %1345 : vector<16x16xf32>
    %1361 = arith.addf %1343, %1360 : vector<16x16xf32>
    %c5_227 = arith.constant 5 : index
    %c2_228 = arith.constant 2 : index
    %c1_229 = arith.constant 1 : index
    %1362 = vector.load %arg10[%c5_227, %c2_228, %c1_229] : memref<8x18x18xf32, #tpu.memory_space<vmem>>, vector<1x16x16xf32>
    %1363 = vector.shape_cast %1362 : vector<1x16x16xf32> to vector<16x16xf32>
    %c52 = arith.constant 52 : index
    %1364 = memref.load %arg5[%c52] : memref<288xf32, #tpu.memory_space<smem>>
    %1365 = vector.broadcast %1364 : f32 to vector<16x16xf32>
    %1366 = arith.mulf %1365, %1363 : vector<16x16xf32>
    %1367 = arith.addf %1349, %1366 : vector<16x16xf32>
    %c124 = arith.constant 124 : index
    %1368 = memref.load %arg5[%c124] : memref<288xf32, #tpu.memory_space<smem>>
    %1369 = vector.broadcast %1368 : f32 to vector<16x16xf32>
    %1370 = arith.mulf %1369, %1363 : vector<16x16xf32>
    %1371 = arith.addf %1353, %1370 : vector<16x16xf32>
    %c196 = arith.constant 196 : index
    %1372 = memref.load %arg5[%c196] : memref<288xf32, #tpu.memory_space<smem>>
    %1373 = vector.broadcast %1372 : f32 to vector<16x16xf32>
    %1374 = arith.mulf %1373, %1363 : vector<16x16xf32>
    %1375 = arith.addf %1357, %1374 : vector<16x16xf32>
    %c268 = arith.constant 268 : index
    %1376 = memref.load %arg5[%c268] : memref<288xf32, #tpu.memory_space<smem>>
    %1377 = vector.broadcast %1376 : f32 to vector<16x16xf32>
    %1378 = arith.mulf %1377, %1363 : vector<16x16xf32>
    %1379 = arith.addf %1361, %1378 : vector<16x16xf32>
    %c5_230 = arith.constant 5 : index
    %c2_231 = arith.constant 2 : index
    %c2_232 = arith.constant 2 : index
    %1380 = vector.load %arg10[%c5_230, %c2_231, %c2_232] : memref<8x18x18xf32, #tpu.memory_space<vmem>>, vector<1x16x16xf32>
    %1381 = vector.shape_cast %1380 : vector<1x16x16xf32> to vector<16x16xf32>
    %c53 = arith.constant 53 : index
    %1382 = memref.load %arg5[%c53] : memref<288xf32, #tpu.memory_space<smem>>
    %1383 = vector.broadcast %1382 : f32 to vector<16x16xf32>
    %1384 = arith.mulf %1383, %1381 : vector<16x16xf32>
    %1385 = arith.addf %1367, %1384 : vector<16x16xf32>
    %c125 = arith.constant 125 : index
    %1386 = memref.load %arg5[%c125] : memref<288xf32, #tpu.memory_space<smem>>
    %1387 = vector.broadcast %1386 : f32 to vector<16x16xf32>
    %1388 = arith.mulf %1387, %1381 : vector<16x16xf32>
    %1389 = arith.addf %1371, %1388 : vector<16x16xf32>
    %c197 = arith.constant 197 : index
    %1390 = memref.load %arg5[%c197] : memref<288xf32, #tpu.memory_space<smem>>
    %1391 = vector.broadcast %1390 : f32 to vector<16x16xf32>
    %1392 = arith.mulf %1391, %1381 : vector<16x16xf32>
    %1393 = arith.addf %1375, %1392 : vector<16x16xf32>
    %c269 = arith.constant 269 : index
    %1394 = memref.load %arg5[%c269] : memref<288xf32, #tpu.memory_space<smem>>
    %1395 = vector.broadcast %1394 : f32 to vector<16x16xf32>
    %1396 = arith.mulf %1395, %1381 : vector<16x16xf32>
    %1397 = arith.addf %1379, %1396 : vector<16x16xf32>
    %c6_233 = arith.constant 6 : index
    %c0_234 = arith.constant 0 : index
    %c0_235 = arith.constant 0 : index
    %1398 = vector.load %arg10[%c6_233, %c0_234, %c0_235] : memref<8x18x18xf32, #tpu.memory_space<vmem>>, vector<1x16x16xf32>
    %1399 = vector.shape_cast %1398 : vector<1x16x16xf32> to vector<16x16xf32>
    %c54 = arith.constant 54 : index
    %1400 = memref.load %arg5[%c54] : memref<288xf32, #tpu.memory_space<smem>>
    %1401 = vector.broadcast %1400 : f32 to vector<16x16xf32>
    %1402 = arith.mulf %1401, %1399 : vector<16x16xf32>
    %1403 = arith.addf %1385, %1402 : vector<16x16xf32>
    %c126 = arith.constant 126 : index
    %1404 = memref.load %arg5[%c126] : memref<288xf32, #tpu.memory_space<smem>>
    %1405 = vector.broadcast %1404 : f32 to vector<16x16xf32>
    %1406 = arith.mulf %1405, %1399 : vector<16x16xf32>
    %1407 = arith.addf %1389, %1406 : vector<16x16xf32>
    %c198 = arith.constant 198 : index
    %1408 = memref.load %arg5[%c198] : memref<288xf32, #tpu.memory_space<smem>>
    %1409 = vector.broadcast %1408 : f32 to vector<16x16xf32>
    %1410 = arith.mulf %1409, %1399 : vector<16x16xf32>
    %1411 = arith.addf %1393, %1410 : vector<16x16xf32>
    %c270 = arith.constant 270 : index
    %1412 = memref.load %arg5[%c270] : memref<288xf32, #tpu.memory_space<smem>>
    %1413 = vector.broadcast %1412 : f32 to vector<16x16xf32>
    %1414 = arith.mulf %1413, %1399 : vector<16x16xf32>
    %1415 = arith.addf %1397, %1414 : vector<16x16xf32>
    %c6_236 = arith.constant 6 : index
    %c0_237 = arith.constant 0 : index
    %c1_238 = arith.constant 1 : index
    %1416 = vector.load %arg10[%c6_236, %c0_237, %c1_238] : memref<8x18x18xf32, #tpu.memory_space<vmem>>, vector<1x16x16xf32>
    %1417 = vector.shape_cast %1416 : vector<1x16x16xf32> to vector<16x16xf32>
    %c55 = arith.constant 55 : index
    %1418 = memref.load %arg5[%c55] : memref<288xf32, #tpu.memory_space<smem>>
    %1419 = vector.broadcast %1418 : f32 to vector<16x16xf32>
    %1420 = arith.mulf %1419, %1417 : vector<16x16xf32>
    %1421 = arith.addf %1403, %1420 : vector<16x16xf32>
    %c127 = arith.constant 127 : index
    %1422 = memref.load %arg5[%c127] : memref<288xf32, #tpu.memory_space<smem>>
    %1423 = vector.broadcast %1422 : f32 to vector<16x16xf32>
    %1424 = arith.mulf %1423, %1417 : vector<16x16xf32>
    %1425 = arith.addf %1407, %1424 : vector<16x16xf32>
    %c199 = arith.constant 199 : index
    %1426 = memref.load %arg5[%c199] : memref<288xf32, #tpu.memory_space<smem>>
    %1427 = vector.broadcast %1426 : f32 to vector<16x16xf32>
    %1428 = arith.mulf %1427, %1417 : vector<16x16xf32>
    %1429 = arith.addf %1411, %1428 : vector<16x16xf32>
    %c271 = arith.constant 271 : index
    %1430 = memref.load %arg5[%c271] : memref<288xf32, #tpu.memory_space<smem>>
    %1431 = vector.broadcast %1430 : f32 to vector<16x16xf32>
    %1432 = arith.mulf %1431, %1417 : vector<16x16xf32>
    %1433 = arith.addf %1415, %1432 : vector<16x16xf32>
    %c6_239 = arith.constant 6 : index
    %c0_240 = arith.constant 0 : index
    %c2_241 = arith.constant 2 : index
    %1434 = vector.load %arg10[%c6_239, %c0_240, %c2_241] : memref<8x18x18xf32, #tpu.memory_space<vmem>>, vector<1x16x16xf32>
    %1435 = vector.shape_cast %1434 : vector<1x16x16xf32> to vector<16x16xf32>
    %c56 = arith.constant 56 : index
    %1436 = memref.load %arg5[%c56] : memref<288xf32, #tpu.memory_space<smem>>
    %1437 = vector.broadcast %1436 : f32 to vector<16x16xf32>
    %1438 = arith.mulf %1437, %1435 : vector<16x16xf32>
    %1439 = arith.addf %1421, %1438 : vector<16x16xf32>
    %c128 = arith.constant 128 : index
    %1440 = memref.load %arg5[%c128] : memref<288xf32, #tpu.memory_space<smem>>
    %1441 = vector.broadcast %1440 : f32 to vector<16x16xf32>
    %1442 = arith.mulf %1441, %1435 : vector<16x16xf32>
    %1443 = arith.addf %1425, %1442 : vector<16x16xf32>
    %c200 = arith.constant 200 : index
    %1444 = memref.load %arg5[%c200] : memref<288xf32, #tpu.memory_space<smem>>
    %1445 = vector.broadcast %1444 : f32 to vector<16x16xf32>
    %1446 = arith.mulf %1445, %1435 : vector<16x16xf32>
    %1447 = arith.addf %1429, %1446 : vector<16x16xf32>
    %c272 = arith.constant 272 : index
    %1448 = memref.load %arg5[%c272] : memref<288xf32, #tpu.memory_space<smem>>
    %1449 = vector.broadcast %1448 : f32 to vector<16x16xf32>
    %1450 = arith.mulf %1449, %1435 : vector<16x16xf32>
    %1451 = arith.addf %1433, %1450 : vector<16x16xf32>
    %c6_242 = arith.constant 6 : index
    %c1_243 = arith.constant 1 : index
    %c0_244 = arith.constant 0 : index
    %1452 = vector.load %arg10[%c6_242, %c1_243, %c0_244] : memref<8x18x18xf32, #tpu.memory_space<vmem>>, vector<1x16x16xf32>
    %1453 = vector.shape_cast %1452 : vector<1x16x16xf32> to vector<16x16xf32>
    %c57 = arith.constant 57 : index
    %1454 = memref.load %arg5[%c57] : memref<288xf32, #tpu.memory_space<smem>>
    %1455 = vector.broadcast %1454 : f32 to vector<16x16xf32>
    %1456 = arith.mulf %1455, %1453 : vector<16x16xf32>
    %1457 = arith.addf %1439, %1456 : vector<16x16xf32>
    %c129 = arith.constant 129 : index
    %1458 = memref.load %arg5[%c129] : memref<288xf32, #tpu.memory_space<smem>>
    %1459 = vector.broadcast %1458 : f32 to vector<16x16xf32>
    %1460 = arith.mulf %1459, %1453 : vector<16x16xf32>
    %1461 = arith.addf %1443, %1460 : vector<16x16xf32>
    %c201 = arith.constant 201 : index
    %1462 = memref.load %arg5[%c201] : memref<288xf32, #tpu.memory_space<smem>>
    %1463 = vector.broadcast %1462 : f32 to vector<16x16xf32>
    %1464 = arith.mulf %1463, %1453 : vector<16x16xf32>
    %1465 = arith.addf %1447, %1464 : vector<16x16xf32>
    %c273 = arith.constant 273 : index
    %1466 = memref.load %arg5[%c273] : memref<288xf32, #tpu.memory_space<smem>>
    %1467 = vector.broadcast %1466 : f32 to vector<16x16xf32>
    %1468 = arith.mulf %1467, %1453 : vector<16x16xf32>
    %1469 = arith.addf %1451, %1468 : vector<16x16xf32>
    %c6_245 = arith.constant 6 : index
    %c1_246 = arith.constant 1 : index
    %c1_247 = arith.constant 1 : index
    %1470 = vector.load %arg10[%c6_245, %c1_246, %c1_247] : memref<8x18x18xf32, #tpu.memory_space<vmem>>, vector<1x16x16xf32>
    %1471 = vector.shape_cast %1470 : vector<1x16x16xf32> to vector<16x16xf32>
    %c58 = arith.constant 58 : index
    %1472 = memref.load %arg5[%c58] : memref<288xf32, #tpu.memory_space<smem>>
    %1473 = vector.broadcast %1472 : f32 to vector<16x16xf32>
    %1474 = arith.mulf %1473, %1471 : vector<16x16xf32>
    %1475 = arith.addf %1457, %1474 : vector<16x16xf32>
    %c130 = arith.constant 130 : index
    %1476 = memref.load %arg5[%c130] : memref<288xf32, #tpu.memory_space<smem>>
    %1477 = vector.broadcast %1476 : f32 to vector<16x16xf32>
    %1478 = arith.mulf %1477, %1471 : vector<16x16xf32>
    %1479 = arith.addf %1461, %1478 : vector<16x16xf32>
    %c202 = arith.constant 202 : index
    %1480 = memref.load %arg5[%c202] : memref<288xf32, #tpu.memory_space<smem>>
    %1481 = vector.broadcast %1480 : f32 to vector<16x16xf32>
    %1482 = arith.mulf %1481, %1471 : vector<16x16xf32>
    %1483 = arith.addf %1465, %1482 : vector<16x16xf32>
    %c274 = arith.constant 274 : index
    %1484 = memref.load %arg5[%c274] : memref<288xf32, #tpu.memory_space<smem>>
    %1485 = vector.broadcast %1484 : f32 to vector<16x16xf32>
    %1486 = arith.mulf %1485, %1471 : vector<16x16xf32>
    %1487 = arith.addf %1469, %1486 : vector<16x16xf32>
    %c6_248 = arith.constant 6 : index
    %c1_249 = arith.constant 1 : index
    %c2_250 = arith.constant 2 : index
    %1488 = vector.load %arg10[%c6_248, %c1_249, %c2_250] : memref<8x18x18xf32, #tpu.memory_space<vmem>>, vector<1x16x16xf32>
    %1489 = vector.shape_cast %1488 : vector<1x16x16xf32> to vector<16x16xf32>
    %c59 = arith.constant 59 : index
    %1490 = memref.load %arg5[%c59] : memref<288xf32, #tpu.memory_space<smem>>
    %1491 = vector.broadcast %1490 : f32 to vector<16x16xf32>
    %1492 = arith.mulf %1491, %1489 : vector<16x16xf32>
    %1493 = arith.addf %1475, %1492 : vector<16x16xf32>
    %c131 = arith.constant 131 : index
    %1494 = memref.load %arg5[%c131] : memref<288xf32, #tpu.memory_space<smem>>
    %1495 = vector.broadcast %1494 : f32 to vector<16x16xf32>
    %1496 = arith.mulf %1495, %1489 : vector<16x16xf32>
    %1497 = arith.addf %1479, %1496 : vector<16x16xf32>
    %c203 = arith.constant 203 : index
    %1498 = memref.load %arg5[%c203] : memref<288xf32, #tpu.memory_space<smem>>
    %1499 = vector.broadcast %1498 : f32 to vector<16x16xf32>
    %1500 = arith.mulf %1499, %1489 : vector<16x16xf32>
    %1501 = arith.addf %1483, %1500 : vector<16x16xf32>
    %c275 = arith.constant 275 : index
    %1502 = memref.load %arg5[%c275] : memref<288xf32, #tpu.memory_space<smem>>
    %1503 = vector.broadcast %1502 : f32 to vector<16x16xf32>
    %1504 = arith.mulf %1503, %1489 : vector<16x16xf32>
    %1505 = arith.addf %1487, %1504 : vector<16x16xf32>
    %c6_251 = arith.constant 6 : index
    %c2_252 = arith.constant 2 : index
    %c0_253 = arith.constant 0 : index
    %1506 = vector.load %arg10[%c6_251, %c2_252, %c0_253] : memref<8x18x18xf32, #tpu.memory_space<vmem>>, vector<1x16x16xf32>
    %1507 = vector.shape_cast %1506 : vector<1x16x16xf32> to vector<16x16xf32>
    %c60 = arith.constant 60 : index
    %1508 = memref.load %arg5[%c60] : memref<288xf32, #tpu.memory_space<smem>>
    %1509 = vector.broadcast %1508 : f32 to vector<16x16xf32>
    %1510 = arith.mulf %1509, %1507 : vector<16x16xf32>
    %1511 = arith.addf %1493, %1510 : vector<16x16xf32>
    %c132 = arith.constant 132 : index
    %1512 = memref.load %arg5[%c132] : memref<288xf32, #tpu.memory_space<smem>>
    %1513 = vector.broadcast %1512 : f32 to vector<16x16xf32>
    %1514 = arith.mulf %1513, %1507 : vector<16x16xf32>
    %1515 = arith.addf %1497, %1514 : vector<16x16xf32>
    %c204 = arith.constant 204 : index
    %1516 = memref.load %arg5[%c204] : memref<288xf32, #tpu.memory_space<smem>>
    %1517 = vector.broadcast %1516 : f32 to vector<16x16xf32>
    %1518 = arith.mulf %1517, %1507 : vector<16x16xf32>
    %1519 = arith.addf %1501, %1518 : vector<16x16xf32>
    %c276 = arith.constant 276 : index
    %1520 = memref.load %arg5[%c276] : memref<288xf32, #tpu.memory_space<smem>>
    %1521 = vector.broadcast %1520 : f32 to vector<16x16xf32>
    %1522 = arith.mulf %1521, %1507 : vector<16x16xf32>
    %1523 = arith.addf %1505, %1522 : vector<16x16xf32>
    %c6_254 = arith.constant 6 : index
    %c2_255 = arith.constant 2 : index
    %c1_256 = arith.constant 1 : index
    %1524 = vector.load %arg10[%c6_254, %c2_255, %c1_256] : memref<8x18x18xf32, #tpu.memory_space<vmem>>, vector<1x16x16xf32>
    %1525 = vector.shape_cast %1524 : vector<1x16x16xf32> to vector<16x16xf32>
    %c61 = arith.constant 61 : index
    %1526 = memref.load %arg5[%c61] : memref<288xf32, #tpu.memory_space<smem>>
    %1527 = vector.broadcast %1526 : f32 to vector<16x16xf32>
    %1528 = arith.mulf %1527, %1525 : vector<16x16xf32>
    %1529 = arith.addf %1511, %1528 : vector<16x16xf32>
    %c133 = arith.constant 133 : index
    %1530 = memref.load %arg5[%c133] : memref<288xf32, #tpu.memory_space<smem>>
    %1531 = vector.broadcast %1530 : f32 to vector<16x16xf32>
    %1532 = arith.mulf %1531, %1525 : vector<16x16xf32>
    %1533 = arith.addf %1515, %1532 : vector<16x16xf32>
    %c205 = arith.constant 205 : index
    %1534 = memref.load %arg5[%c205] : memref<288xf32, #tpu.memory_space<smem>>
    %1535 = vector.broadcast %1534 : f32 to vector<16x16xf32>
    %1536 = arith.mulf %1535, %1525 : vector<16x16xf32>
    %1537 = arith.addf %1519, %1536 : vector<16x16xf32>
    %c277 = arith.constant 277 : index
    %1538 = memref.load %arg5[%c277] : memref<288xf32, #tpu.memory_space<smem>>
    %1539 = vector.broadcast %1538 : f32 to vector<16x16xf32>
    %1540 = arith.mulf %1539, %1525 : vector<16x16xf32>
    %1541 = arith.addf %1523, %1540 : vector<16x16xf32>
    %c6_257 = arith.constant 6 : index
    %c2_258 = arith.constant 2 : index
    %c2_259 = arith.constant 2 : index
    %1542 = vector.load %arg10[%c6_257, %c2_258, %c2_259] : memref<8x18x18xf32, #tpu.memory_space<vmem>>, vector<1x16x16xf32>
    %1543 = vector.shape_cast %1542 : vector<1x16x16xf32> to vector<16x16xf32>
    %c62 = arith.constant 62 : index
    %1544 = memref.load %arg5[%c62] : memref<288xf32, #tpu.memory_space<smem>>
    %1545 = vector.broadcast %1544 : f32 to vector<16x16xf32>
    %1546 = arith.mulf %1545, %1543 : vector<16x16xf32>
    %1547 = arith.addf %1529, %1546 : vector<16x16xf32>
    %c134 = arith.constant 134 : index
    %1548 = memref.load %arg5[%c134] : memref<288xf32, #tpu.memory_space<smem>>
    %1549 = vector.broadcast %1548 : f32 to vector<16x16xf32>
    %1550 = arith.mulf %1549, %1543 : vector<16x16xf32>
    %1551 = arith.addf %1533, %1550 : vector<16x16xf32>
    %c206 = arith.constant 206 : index
    %1552 = memref.load %arg5[%c206] : memref<288xf32, #tpu.memory_space<smem>>
    %1553 = vector.broadcast %1552 : f32 to vector<16x16xf32>
    %1554 = arith.mulf %1553, %1543 : vector<16x16xf32>
    %1555 = arith.addf %1537, %1554 : vector<16x16xf32>
    %c278 = arith.constant 278 : index
    %1556 = memref.load %arg5[%c278] : memref<288xf32, #tpu.memory_space<smem>>
    %1557 = vector.broadcast %1556 : f32 to vector<16x16xf32>
    %1558 = arith.mulf %1557, %1543 : vector<16x16xf32>
    %1559 = arith.addf %1541, %1558 : vector<16x16xf32>
    %c7_260 = arith.constant 7 : index
    %c0_261 = arith.constant 0 : index
    %c0_262 = arith.constant 0 : index
    %1560 = vector.load %arg10[%c7_260, %c0_261, %c0_262] : memref<8x18x18xf32, #tpu.memory_space<vmem>>, vector<1x16x16xf32>
    %1561 = vector.shape_cast %1560 : vector<1x16x16xf32> to vector<16x16xf32>
    %c63 = arith.constant 63 : index
    %1562 = memref.load %arg5[%c63] : memref<288xf32, #tpu.memory_space<smem>>
    %1563 = vector.broadcast %1562 : f32 to vector<16x16xf32>
    %1564 = arith.mulf %1563, %1561 : vector<16x16xf32>
    %1565 = arith.addf %1547, %1564 : vector<16x16xf32>
    %c135 = arith.constant 135 : index
    %1566 = memref.load %arg5[%c135] : memref<288xf32, #tpu.memory_space<smem>>
    %1567 = vector.broadcast %1566 : f32 to vector<16x16xf32>
    %1568 = arith.mulf %1567, %1561 : vector<16x16xf32>
    %1569 = arith.addf %1551, %1568 : vector<16x16xf32>
    %c207 = arith.constant 207 : index
    %1570 = memref.load %arg5[%c207] : memref<288xf32, #tpu.memory_space<smem>>
    %1571 = vector.broadcast %1570 : f32 to vector<16x16xf32>
    %1572 = arith.mulf %1571, %1561 : vector<16x16xf32>
    %1573 = arith.addf %1555, %1572 : vector<16x16xf32>
    %c279 = arith.constant 279 : index
    %1574 = memref.load %arg5[%c279] : memref<288xf32, #tpu.memory_space<smem>>
    %1575 = vector.broadcast %1574 : f32 to vector<16x16xf32>
    %1576 = arith.mulf %1575, %1561 : vector<16x16xf32>
    %1577 = arith.addf %1559, %1576 : vector<16x16xf32>
    %c7_263 = arith.constant 7 : index
    %c0_264 = arith.constant 0 : index
    %c1_265 = arith.constant 1 : index
    %1578 = vector.load %arg10[%c7_263, %c0_264, %c1_265] : memref<8x18x18xf32, #tpu.memory_space<vmem>>, vector<1x16x16xf32>
    %1579 = vector.shape_cast %1578 : vector<1x16x16xf32> to vector<16x16xf32>
    %c64 = arith.constant 64 : index
    %1580 = memref.load %arg5[%c64] : memref<288xf32, #tpu.memory_space<smem>>
    %1581 = vector.broadcast %1580 : f32 to vector<16x16xf32>
    %1582 = arith.mulf %1581, %1579 : vector<16x16xf32>
    %1583 = arith.addf %1565, %1582 : vector<16x16xf32>
    %c136 = arith.constant 136 : index
    %1584 = memref.load %arg5[%c136] : memref<288xf32, #tpu.memory_space<smem>>
    %1585 = vector.broadcast %1584 : f32 to vector<16x16xf32>
    %1586 = arith.mulf %1585, %1579 : vector<16x16xf32>
    %1587 = arith.addf %1569, %1586 : vector<16x16xf32>
    %c208 = arith.constant 208 : index
    %1588 = memref.load %arg5[%c208] : memref<288xf32, #tpu.memory_space<smem>>
    %1589 = vector.broadcast %1588 : f32 to vector<16x16xf32>
    %1590 = arith.mulf %1589, %1579 : vector<16x16xf32>
    %1591 = arith.addf %1573, %1590 : vector<16x16xf32>
    %c280 = arith.constant 280 : index
    %1592 = memref.load %arg5[%c280] : memref<288xf32, #tpu.memory_space<smem>>
    %1593 = vector.broadcast %1592 : f32 to vector<16x16xf32>
    %1594 = arith.mulf %1593, %1579 : vector<16x16xf32>
    %1595 = arith.addf %1577, %1594 : vector<16x16xf32>
    %c7_266 = arith.constant 7 : index
    %c0_267 = arith.constant 0 : index
    %c2_268 = arith.constant 2 : index
    %1596 = vector.load %arg10[%c7_266, %c0_267, %c2_268] : memref<8x18x18xf32, #tpu.memory_space<vmem>>, vector<1x16x16xf32>
    %1597 = vector.shape_cast %1596 : vector<1x16x16xf32> to vector<16x16xf32>
    %c65 = arith.constant 65 : index
    %1598 = memref.load %arg5[%c65] : memref<288xf32, #tpu.memory_space<smem>>
    %1599 = vector.broadcast %1598 : f32 to vector<16x16xf32>
    %1600 = arith.mulf %1599, %1597 : vector<16x16xf32>
    %1601 = arith.addf %1583, %1600 : vector<16x16xf32>
    %c137 = arith.constant 137 : index
    %1602 = memref.load %arg5[%c137] : memref<288xf32, #tpu.memory_space<smem>>
    %1603 = vector.broadcast %1602 : f32 to vector<16x16xf32>
    %1604 = arith.mulf %1603, %1597 : vector<16x16xf32>
    %1605 = arith.addf %1587, %1604 : vector<16x16xf32>
    %c209 = arith.constant 209 : index
    %1606 = memref.load %arg5[%c209] : memref<288xf32, #tpu.memory_space<smem>>
    %1607 = vector.broadcast %1606 : f32 to vector<16x16xf32>
    %1608 = arith.mulf %1607, %1597 : vector<16x16xf32>
    %1609 = arith.addf %1591, %1608 : vector<16x16xf32>
    %c281 = arith.constant 281 : index
    %1610 = memref.load %arg5[%c281] : memref<288xf32, #tpu.memory_space<smem>>
    %1611 = vector.broadcast %1610 : f32 to vector<16x16xf32>
    %1612 = arith.mulf %1611, %1597 : vector<16x16xf32>
    %1613 = arith.addf %1595, %1612 : vector<16x16xf32>
    %c7_269 = arith.constant 7 : index
    %c1_270 = arith.constant 1 : index
    %c0_271 = arith.constant 0 : index
    %1614 = vector.load %arg10[%c7_269, %c1_270, %c0_271] : memref<8x18x18xf32, #tpu.memory_space<vmem>>, vector<1x16x16xf32>
    %1615 = vector.shape_cast %1614 : vector<1x16x16xf32> to vector<16x16xf32>
    %c66 = arith.constant 66 : index
    %1616 = memref.load %arg5[%c66] : memref<288xf32, #tpu.memory_space<smem>>
    %1617 = vector.broadcast %1616 : f32 to vector<16x16xf32>
    %1618 = arith.mulf %1617, %1615 : vector<16x16xf32>
    %1619 = arith.addf %1601, %1618 : vector<16x16xf32>
    %c138 = arith.constant 138 : index
    %1620 = memref.load %arg5[%c138] : memref<288xf32, #tpu.memory_space<smem>>
    %1621 = vector.broadcast %1620 : f32 to vector<16x16xf32>
    %1622 = arith.mulf %1621, %1615 : vector<16x16xf32>
    %1623 = arith.addf %1605, %1622 : vector<16x16xf32>
    %c210 = arith.constant 210 : index
    %1624 = memref.load %arg5[%c210] : memref<288xf32, #tpu.memory_space<smem>>
    %1625 = vector.broadcast %1624 : f32 to vector<16x16xf32>
    %1626 = arith.mulf %1625, %1615 : vector<16x16xf32>
    %1627 = arith.addf %1609, %1626 : vector<16x16xf32>
    %c282 = arith.constant 282 : index
    %1628 = memref.load %arg5[%c282] : memref<288xf32, #tpu.memory_space<smem>>
    %1629 = vector.broadcast %1628 : f32 to vector<16x16xf32>
    %1630 = arith.mulf %1629, %1615 : vector<16x16xf32>
    %1631 = arith.addf %1613, %1630 : vector<16x16xf32>
    %c7_272 = arith.constant 7 : index
    %c1_273 = arith.constant 1 : index
    %c1_274 = arith.constant 1 : index
    %1632 = vector.load %arg10[%c7_272, %c1_273, %c1_274] : memref<8x18x18xf32, #tpu.memory_space<vmem>>, vector<1x16x16xf32>
    %1633 = vector.shape_cast %1632 : vector<1x16x16xf32> to vector<16x16xf32>
    %c67 = arith.constant 67 : index
    %1634 = memref.load %arg5[%c67] : memref<288xf32, #tpu.memory_space<smem>>
    %1635 = vector.broadcast %1634 : f32 to vector<16x16xf32>
    %1636 = arith.mulf %1635, %1633 : vector<16x16xf32>
    %1637 = arith.addf %1619, %1636 : vector<16x16xf32>
    %c139 = arith.constant 139 : index
    %1638 = memref.load %arg5[%c139] : memref<288xf32, #tpu.memory_space<smem>>
    %1639 = vector.broadcast %1638 : f32 to vector<16x16xf32>
    %1640 = arith.mulf %1639, %1633 : vector<16x16xf32>
    %1641 = arith.addf %1623, %1640 : vector<16x16xf32>
    %c211 = arith.constant 211 : index
    %1642 = memref.load %arg5[%c211] : memref<288xf32, #tpu.memory_space<smem>>
    %1643 = vector.broadcast %1642 : f32 to vector<16x16xf32>
    %1644 = arith.mulf %1643, %1633 : vector<16x16xf32>
    %1645 = arith.addf %1627, %1644 : vector<16x16xf32>
    %c283 = arith.constant 283 : index
    %1646 = memref.load %arg5[%c283] : memref<288xf32, #tpu.memory_space<smem>>
    %1647 = vector.broadcast %1646 : f32 to vector<16x16xf32>
    %1648 = arith.mulf %1647, %1633 : vector<16x16xf32>
    %1649 = arith.addf %1631, %1648 : vector<16x16xf32>
    %c7_275 = arith.constant 7 : index
    %c1_276 = arith.constant 1 : index
    %c2_277 = arith.constant 2 : index
    %1650 = vector.load %arg10[%c7_275, %c1_276, %c2_277] : memref<8x18x18xf32, #tpu.memory_space<vmem>>, vector<1x16x16xf32>
    %1651 = vector.shape_cast %1650 : vector<1x16x16xf32> to vector<16x16xf32>
    %c68 = arith.constant 68 : index
    %1652 = memref.load %arg5[%c68] : memref<288xf32, #tpu.memory_space<smem>>
    %1653 = vector.broadcast %1652 : f32 to vector<16x16xf32>
    %1654 = arith.mulf %1653, %1651 : vector<16x16xf32>
    %1655 = arith.addf %1637, %1654 : vector<16x16xf32>
    %c140 = arith.constant 140 : index
    %1656 = memref.load %arg5[%c140] : memref<288xf32, #tpu.memory_space<smem>>
    %1657 = vector.broadcast %1656 : f32 to vector<16x16xf32>
    %1658 = arith.mulf %1657, %1651 : vector<16x16xf32>
    %1659 = arith.addf %1641, %1658 : vector<16x16xf32>
    %c212 = arith.constant 212 : index
    %1660 = memref.load %arg5[%c212] : memref<288xf32, #tpu.memory_space<smem>>
    %1661 = vector.broadcast %1660 : f32 to vector<16x16xf32>
    %1662 = arith.mulf %1661, %1651 : vector<16x16xf32>
    %1663 = arith.addf %1645, %1662 : vector<16x16xf32>
    %c284 = arith.constant 284 : index
    %1664 = memref.load %arg5[%c284] : memref<288xf32, #tpu.memory_space<smem>>
    %1665 = vector.broadcast %1664 : f32 to vector<16x16xf32>
    %1666 = arith.mulf %1665, %1651 : vector<16x16xf32>
    %1667 = arith.addf %1649, %1666 : vector<16x16xf32>
    %c7_278 = arith.constant 7 : index
    %c2_279 = arith.constant 2 : index
    %c0_280 = arith.constant 0 : index
    %1668 = vector.load %arg10[%c7_278, %c2_279, %c0_280] : memref<8x18x18xf32, #tpu.memory_space<vmem>>, vector<1x16x16xf32>
    %1669 = vector.shape_cast %1668 : vector<1x16x16xf32> to vector<16x16xf32>
    %c69 = arith.constant 69 : index
    %1670 = memref.load %arg5[%c69] : memref<288xf32, #tpu.memory_space<smem>>
    %1671 = vector.broadcast %1670 : f32 to vector<16x16xf32>
    %1672 = arith.mulf %1671, %1669 : vector<16x16xf32>
    %1673 = arith.addf %1655, %1672 : vector<16x16xf32>
    %c141 = arith.constant 141 : index
    %1674 = memref.load %arg5[%c141] : memref<288xf32, #tpu.memory_space<smem>>
    %1675 = vector.broadcast %1674 : f32 to vector<16x16xf32>
    %1676 = arith.mulf %1675, %1669 : vector<16x16xf32>
    %1677 = arith.addf %1659, %1676 : vector<16x16xf32>
    %c213 = arith.constant 213 : index
    %1678 = memref.load %arg5[%c213] : memref<288xf32, #tpu.memory_space<smem>>
    %1679 = vector.broadcast %1678 : f32 to vector<16x16xf32>
    %1680 = arith.mulf %1679, %1669 : vector<16x16xf32>
    %1681 = arith.addf %1663, %1680 : vector<16x16xf32>
    %c285 = arith.constant 285 : index
    %1682 = memref.load %arg5[%c285] : memref<288xf32, #tpu.memory_space<smem>>
    %1683 = vector.broadcast %1682 : f32 to vector<16x16xf32>
    %1684 = arith.mulf %1683, %1669 : vector<16x16xf32>
    %1685 = arith.addf %1667, %1684 : vector<16x16xf32>
    %c7_281 = arith.constant 7 : index
    %c2_282 = arith.constant 2 : index
    %c1_283 = arith.constant 1 : index
    %1686 = vector.load %arg10[%c7_281, %c2_282, %c1_283] : memref<8x18x18xf32, #tpu.memory_space<vmem>>, vector<1x16x16xf32>
    %1687 = vector.shape_cast %1686 : vector<1x16x16xf32> to vector<16x16xf32>
    %c70 = arith.constant 70 : index
    %1688 = memref.load %arg5[%c70] : memref<288xf32, #tpu.memory_space<smem>>
    %1689 = vector.broadcast %1688 : f32 to vector<16x16xf32>
    %1690 = arith.mulf %1689, %1687 : vector<16x16xf32>
    %1691 = arith.addf %1673, %1690 : vector<16x16xf32>
    %c142 = arith.constant 142 : index
    %1692 = memref.load %arg5[%c142] : memref<288xf32, #tpu.memory_space<smem>>
    %1693 = vector.broadcast %1692 : f32 to vector<16x16xf32>
    %1694 = arith.mulf %1693, %1687 : vector<16x16xf32>
    %1695 = arith.addf %1677, %1694 : vector<16x16xf32>
    %c214 = arith.constant 214 : index
    %1696 = memref.load %arg5[%c214] : memref<288xf32, #tpu.memory_space<smem>>
    %1697 = vector.broadcast %1696 : f32 to vector<16x16xf32>
    %1698 = arith.mulf %1697, %1687 : vector<16x16xf32>
    %1699 = arith.addf %1681, %1698 : vector<16x16xf32>
    %c286 = arith.constant 286 : index
    %1700 = memref.load %arg5[%c286] : memref<288xf32, #tpu.memory_space<smem>>
    %1701 = vector.broadcast %1700 : f32 to vector<16x16xf32>
    %1702 = arith.mulf %1701, %1687 : vector<16x16xf32>
    %1703 = arith.addf %1685, %1702 : vector<16x16xf32>
    %c7_284 = arith.constant 7 : index
    %c2_285 = arith.constant 2 : index
    %c2_286 = arith.constant 2 : index
    %1704 = vector.load %arg10[%c7_284, %c2_285, %c2_286] : memref<8x18x18xf32, #tpu.memory_space<vmem>>, vector<1x16x16xf32>
    %1705 = vector.shape_cast %1704 : vector<1x16x16xf32> to vector<16x16xf32>
    %c71 = arith.constant 71 : index
    %1706 = memref.load %arg5[%c71] : memref<288xf32, #tpu.memory_space<smem>>
    %1707 = vector.broadcast %1706 : f32 to vector<16x16xf32>
    %1708 = arith.mulf %1707, %1705 : vector<16x16xf32>
    %1709 = arith.addf %1691, %1708 : vector<16x16xf32>
    %c143 = arith.constant 143 : index
    %1710 = memref.load %arg5[%c143] : memref<288xf32, #tpu.memory_space<smem>>
    %1711 = vector.broadcast %1710 : f32 to vector<16x16xf32>
    %1712 = arith.mulf %1711, %1705 : vector<16x16xf32>
    %1713 = arith.addf %1695, %1712 : vector<16x16xf32>
    %c215 = arith.constant 215 : index
    %1714 = memref.load %arg5[%c215] : memref<288xf32, #tpu.memory_space<smem>>
    %1715 = vector.broadcast %1714 : f32 to vector<16x16xf32>
    %1716 = arith.mulf %1715, %1705 : vector<16x16xf32>
    %1717 = arith.addf %1699, %1716 : vector<16x16xf32>
    %c287 = arith.constant 287 : index
    %1718 = memref.load %arg5[%c287] : memref<288xf32, #tpu.memory_space<smem>>
    %1719 = vector.broadcast %1718 : f32 to vector<16x16xf32>
    %1720 = arith.mulf %1719, %1705 : vector<16x16xf32>
    %1721 = arith.addf %1703, %1720 : vector<16x16xf32>
    %c0_287 = arith.constant 0 : index
    %1722 = memref.load %arg6[%c0_287] : memref<4xf32, #tpu.memory_space<smem>>
    %1723 = vector.broadcast %1722 : f32 to vector<16x16xf32>
    %1724 = arith.addf %1709, %1723 : vector<16x16xf32>
    %cst_288 = arith.constant 0.000000e+00 : f32
    %1725 = vector.broadcast %cst_288 : f32 to vector<16x16xf32>
    %1726 = arith.maximumf %1724, %1725 : vector<16x16xf32>
    %c0_289 = arith.constant 0 : index
    %c1_290 = arith.constant 1 : index
    %c1_291 = arith.constant 1 : index
    %1727 = vector.load %arg11[%c0_289, %c1_290, %c1_291] : memref<4x18x18xf32, #tpu.memory_space<vmem>>, vector<1x16x16xf32>
    %1728 = vector.shape_cast %1727 : vector<1x16x16xf32> to vector<16x16xf32>
    %1729 = vector.shape_cast %1726 : vector<16x16xf32> to vector<1x16x16xf32>
    tpu.vector_store %arg11[%c0_289, %c1_290, %c1_291], %1729 {strides = array<i32>} : memref<4x18x18xf32, #tpu.memory_space<vmem>>, vector<1x16x16xf32>,
    %c1_292 = arith.constant 1 : index
    %1730 = memref.load %arg6[%c1_292] : memref<4xf32, #tpu.memory_space<smem>>
    %1731 = vector.broadcast %1730 : f32 to vector<16x16xf32>
    %1732 = arith.addf %1713, %1731 : vector<16x16xf32>
    %cst_293 = arith.constant 0.000000e+00 : f32
    %1733 = vector.broadcast %cst_293 : f32 to vector<16x16xf32>
    %1734 = arith.maximumf %1732, %1733 : vector<16x16xf32>
    %c1_294 = arith.constant 1 : index
    %c1_295 = arith.constant 1 : index
    %c1_296 = arith.constant 1 : index
    %1735 = vector.load %arg11[%c1_294, %c1_295, %c1_296] : memref<4x18x18xf32, #tpu.memory_space<vmem>>, vector<1x16x16xf32>
    %1736 = vector.shape_cast %1735 : vector<1x16x16xf32> to vector<16x16xf32>
    %1737 = vector.shape_cast %1734 : vector<16x16xf32> to vector<1x16x16xf32>
    tpu.vector_store %arg11[%c1_294, %c1_295, %c1_296], %1737 {strides = array<i32>} : memref<4x18x18xf32, #tpu.memory_space<vmem>>, vector<1x16x16xf32>,
    %c2_297 = arith.constant 2 : index
    %1738 = memref.load %arg6[%c2_297] : memref<4xf32, #tpu.memory_space<smem>>
    %1739 = vector.broadcast %1738 : f32 to vector<16x16xf32>
    %1740 = arith.addf %1717, %1739 : vector<16x16xf32>
    %cst_298 = arith.constant 0.000000e+00 : f32
    %1741 = vector.broadcast %cst_298 : f32 to vector<16x16xf32>
    %1742 = arith.maximumf %1740, %1741 : vector<16x16xf32>
    %c2_299 = arith.constant 2 : index
    %c1_300 = arith.constant 1 : index
    %c1_301 = arith.constant 1 : index
    %1743 = vector.load %arg11[%c2_299, %c1_300, %c1_301] : memref<4x18x18xf32, #tpu.memory_space<vmem>>, vector<1x16x16xf32>
    %1744 = vector.shape_cast %1743 : vector<1x16x16xf32> to vector<16x16xf32>
    %1745 = vector.shape_cast %1742 : vector<16x16xf32> to vector<1x16x16xf32>
    tpu.vector_store %arg11[%c2_299, %c1_300, %c1_301], %1745 {strides = array<i32>} : memref<4x18x18xf32, #tpu.memory_space<vmem>>, vector<1x16x16xf32>,
    %c3_302 = arith.constant 3 : index
    %1746 = memref.load %arg6[%c3_302] : memref<4xf32, #tpu.memory_space<smem>>
    %1747 = vector.broadcast %1746 : f32 to vector<16x16xf32>
    %1748 = arith.addf %1721, %1747 : vector<16x16xf32>
    %cst_303 = arith.constant 0.000000e+00 : f32
    %1749 = vector.broadcast %cst_303 : f32 to vector<16x16xf32>
    %1750 = arith.maximumf %1748, %1749 : vector<16x16xf32>
    %c3_304 = arith.constant 3 : index
    %c1_305 = arith.constant 1 : index
    %c1_306 = arith.constant 1 : index
    %1751 = vector.load %arg11[%c3_304, %c1_305, %c1_306] : memref<4x18x18xf32, #tpu.memory_space<vmem>>, vector<1x16x16xf32>
    %1752 = vector.shape_cast %1751 : vector<1x16x16xf32> to vector<16x16xf32>
    %1753 = vector.shape_cast %1750 : vector<16x16xf32> to vector<1x16x16xf32>
    tpu.vector_store %arg11[%c3_304, %c1_305, %c1_306], %1753 {strides = array<i32>} : memref<4x18x18xf32, #tpu.memory_space<vmem>>, vector<1x16x16xf32>,
    %cst_307 = arith.constant 0.000000e+00 : f32
    %1754 = vector.broadcast %cst_307 : f32 to vector<16x16xf32>
    %cst_308 = arith.constant 0.000000e+00 : f32
    %1755 = vector.broadcast %cst_308 : f32 to vector<16x16xf32>
    %cst_309 = arith.constant 0.000000e+00 : f32
    %1756 = vector.broadcast %cst_309 : f32 to vector<16x16xf32>
    %cst_310 = arith.constant 0.000000e+00 : f32
    %1757 = vector.broadcast %cst_310 : f32 to vector<16x16xf32>
    %c0_311 = arith.constant 0 : index
    %c0_312 = arith.constant 0 : index
    %c0_313 = arith.constant 0 : index
    %1758 = vector.load %arg11[%c0_311, %c0_312, %c0_313] : memref<4x18x18xf32, #tpu.memory_space<vmem>>, vector<1x16x16xf32>
    %1759 = vector.shape_cast %1758 : vector<1x16x16xf32> to vector<16x16xf32>
    %c0_314 = arith.constant 0 : index
    %1760 = memref.load %arg7[%c0_314] : memref<144xf32, #tpu.memory_space<smem>>
    %1761 = vector.broadcast %1760 : f32 to vector<16x16xf32>
    %1762 = arith.mulf %1761, %1759 : vector<16x16xf32>
    %1763 = arith.addf %1754, %1762 : vector<16x16xf32>
    %c36_315 = arith.constant 36 : index
    %1764 = memref.load %arg7[%c36_315] : memref<144xf32, #tpu.memory_space<smem>>
    %1765 = vector.broadcast %1764 : f32 to vector<16x16xf32>
    %1766 = arith.mulf %1765, %1759 : vector<16x16xf32>
    %1767 = arith.addf %1755, %1766 : vector<16x16xf32>
    %c72_316 = arith.constant 72 : index
    %1768 = memref.load %arg7[%c72_316] : memref<144xf32, #tpu.memory_space<smem>>
    %1769 = vector.broadcast %1768 : f32 to vector<16x16xf32>
    %1770 = arith.mulf %1769, %1759 : vector<16x16xf32>
    %1771 = arith.addf %1756, %1770 : vector<16x16xf32>
    %c108_317 = arith.constant 108 : index
    %1772 = memref.load %arg7[%c108_317] : memref<144xf32, #tpu.memory_space<smem>>
    %1773 = vector.broadcast %1772 : f32 to vector<16x16xf32>
    %1774 = arith.mulf %1773, %1759 : vector<16x16xf32>
    %1775 = arith.addf %1757, %1774 : vector<16x16xf32>
    %c0_318 = arith.constant 0 : index
    %c0_319 = arith.constant 0 : index
    %c1_320 = arith.constant 1 : index
    %1776 = vector.load %arg11[%c0_318, %c0_319, %c1_320] : memref<4x18x18xf32, #tpu.memory_space<vmem>>, vector<1x16x16xf32>
    %1777 = vector.shape_cast %1776 : vector<1x16x16xf32> to vector<16x16xf32>
    %c1_321 = arith.constant 1 : index
    %1778 = memref.load %arg7[%c1_321] : memref<144xf32, #tpu.memory_space<smem>>
    %1779 = vector.broadcast %1778 : f32 to vector<16x16xf32>
    %1780 = arith.mulf %1779, %1777 : vector<16x16xf32>
    %1781 = arith.addf %1763, %1780 : vector<16x16xf32>
    %c37_322 = arith.constant 37 : index
    %1782 = memref.load %arg7[%c37_322] : memref<144xf32, #tpu.memory_space<smem>>
    %1783 = vector.broadcast %1782 : f32 to vector<16x16xf32>
    %1784 = arith.mulf %1783, %1777 : vector<16x16xf32>
    %1785 = arith.addf %1767, %1784 : vector<16x16xf32>
    %c73_323 = arith.constant 73 : index
    %1786 = memref.load %arg7[%c73_323] : memref<144xf32, #tpu.memory_space<smem>>
    %1787 = vector.broadcast %1786 : f32 to vector<16x16xf32>
    %1788 = arith.mulf %1787, %1777 : vector<16x16xf32>
    %1789 = arith.addf %1771, %1788 : vector<16x16xf32>
    %c109_324 = arith.constant 109 : index
    %1790 = memref.load %arg7[%c109_324] : memref<144xf32, #tpu.memory_space<smem>>
    %1791 = vector.broadcast %1790 : f32 to vector<16x16xf32>
    %1792 = arith.mulf %1791, %1777 : vector<16x16xf32>
    %1793 = arith.addf %1775, %1792 : vector<16x16xf32>
    %c0_325 = arith.constant 0 : index
    %c0_326 = arith.constant 0 : index
    %c2_327 = arith.constant 2 : index
    %1794 = vector.load %arg11[%c0_325, %c0_326, %c2_327] : memref<4x18x18xf32, #tpu.memory_space<vmem>>, vector<1x16x16xf32>
    %1795 = vector.shape_cast %1794 : vector<1x16x16xf32> to vector<16x16xf32>
    %c2_328 = arith.constant 2 : index
    %1796 = memref.load %arg7[%c2_328] : memref<144xf32, #tpu.memory_space<smem>>
    %1797 = vector.broadcast %1796 : f32 to vector<16x16xf32>
    %1798 = arith.mulf %1797, %1795 : vector<16x16xf32>
    %1799 = arith.addf %1781, %1798 : vector<16x16xf32>
    %c38_329 = arith.constant 38 : index
    %1800 = memref.load %arg7[%c38_329] : memref<144xf32, #tpu.memory_space<smem>>
    %1801 = vector.broadcast %1800 : f32 to vector<16x16xf32>
    %1802 = arith.mulf %1801, %1795 : vector<16x16xf32>
    %1803 = arith.addf %1785, %1802 : vector<16x16xf32>
    %c74_330 = arith.constant 74 : index
    %1804 = memref.load %arg7[%c74_330] : memref<144xf32, #tpu.memory_space<smem>>
    %1805 = vector.broadcast %1804 : f32 to vector<16x16xf32>
    %1806 = arith.mulf %1805, %1795 : vector<16x16xf32>
    %1807 = arith.addf %1789, %1806 : vector<16x16xf32>
    %c110_331 = arith.constant 110 : index
    %1808 = memref.load %arg7[%c110_331] : memref<144xf32, #tpu.memory_space<smem>>
    %1809 = vector.broadcast %1808 : f32 to vector<16x16xf32>
    %1810 = arith.mulf %1809, %1795 : vector<16x16xf32>
    %1811 = arith.addf %1793, %1810 : vector<16x16xf32>
    %c0_332 = arith.constant 0 : index
    %c1_333 = arith.constant 1 : index
    %c0_334 = arith.constant 0 : index
    %1812 = vector.load %arg11[%c0_332, %c1_333, %c0_334] : memref<4x18x18xf32, #tpu.memory_space<vmem>>, vector<1x16x16xf32>
    %1813 = vector.shape_cast %1812 : vector<1x16x16xf32> to vector<16x16xf32>
    %c3_335 = arith.constant 3 : index
    %1814 = memref.load %arg7[%c3_335] : memref<144xf32, #tpu.memory_space<smem>>
    %1815 = vector.broadcast %1814 : f32 to vector<16x16xf32>
    %1816 = arith.mulf %1815, %1813 : vector<16x16xf32>
    %1817 = arith.addf %1799, %1816 : vector<16x16xf32>
    %c39_336 = arith.constant 39 : index
    %1818 = memref.load %arg7[%c39_336] : memref<144xf32, #tpu.memory_space<smem>>
    %1819 = vector.broadcast %1818 : f32 to vector<16x16xf32>
    %1820 = arith.mulf %1819, %1813 : vector<16x16xf32>
    %1821 = arith.addf %1803, %1820 : vector<16x16xf32>
    %c75_337 = arith.constant 75 : index
    %1822 = memref.load %arg7[%c75_337] : memref<144xf32, #tpu.memory_space<smem>>
    %1823 = vector.broadcast %1822 : f32 to vector<16x16xf32>
    %1824 = arith.mulf %1823, %1813 : vector<16x16xf32>
    %1825 = arith.addf %1807, %1824 : vector<16x16xf32>
    %c111_338 = arith.constant 111 : index
    %1826 = memref.load %arg7[%c111_338] : memref<144xf32, #tpu.memory_space<smem>>
    %1827 = vector.broadcast %1826 : f32 to vector<16x16xf32>
    %1828 = arith.mulf %1827, %1813 : vector<16x16xf32>
    %1829 = arith.addf %1811, %1828 : vector<16x16xf32>
    %c0_339 = arith.constant 0 : index
    %c1_340 = arith.constant 1 : index
    %c1_341 = arith.constant 1 : index
    %1830 = vector.load %arg11[%c0_339, %c1_340, %c1_341] : memref<4x18x18xf32, #tpu.memory_space<vmem>>, vector<1x16x16xf32>
    %1831 = vector.shape_cast %1830 : vector<1x16x16xf32> to vector<16x16xf32>
    %c4_342 = arith.constant 4 : index
    %1832 = memref.load %arg7[%c4_342] : memref<144xf32, #tpu.memory_space<smem>>
    %1833 = vector.broadcast %1832 : f32 to vector<16x16xf32>
    %1834 = arith.mulf %1833, %1831 : vector<16x16xf32>
    %1835 = arith.addf %1817, %1834 : vector<16x16xf32>
    %c40_343 = arith.constant 40 : index
    %1836 = memref.load %arg7[%c40_343] : memref<144xf32, #tpu.memory_space<smem>>
    %1837 = vector.broadcast %1836 : f32 to vector<16x16xf32>
    %1838 = arith.mulf %1837, %1831 : vector<16x16xf32>
    %1839 = arith.addf %1821, %1838 : vector<16x16xf32>
    %c76_344 = arith.constant 76 : index
    %1840 = memref.load %arg7[%c76_344] : memref<144xf32, #tpu.memory_space<smem>>
    %1841 = vector.broadcast %1840 : f32 to vector<16x16xf32>
    %1842 = arith.mulf %1841, %1831 : vector<16x16xf32>
    %1843 = arith.addf %1825, %1842 : vector<16x16xf32>
    %c112_345 = arith.constant 112 : index
    %1844 = memref.load %arg7[%c112_345] : memref<144xf32, #tpu.memory_space<smem>>
    %1845 = vector.broadcast %1844 : f32 to vector<16x16xf32>
    %1846 = arith.mulf %1845, %1831 : vector<16x16xf32>
    %1847 = arith.addf %1829, %1846 : vector<16x16xf32>
    %c0_346 = arith.constant 0 : index
    %c1_347 = arith.constant 1 : index
    %c2_348 = arith.constant 2 : index
    %1848 = vector.load %arg11[%c0_346, %c1_347, %c2_348] : memref<4x18x18xf32, #tpu.memory_space<vmem>>, vector<1x16x16xf32>
    %1849 = vector.shape_cast %1848 : vector<1x16x16xf32> to vector<16x16xf32>
    %c5_349 = arith.constant 5 : index
    %1850 = memref.load %arg7[%c5_349] : memref<144xf32, #tpu.memory_space<smem>>
    %1851 = vector.broadcast %1850 : f32 to vector<16x16xf32>
    %1852 = arith.mulf %1851, %1849 : vector<16x16xf32>
    %1853 = arith.addf %1835, %1852 : vector<16x16xf32>
    %c41_350 = arith.constant 41 : index
    %1854 = memref.load %arg7[%c41_350] : memref<144xf32, #tpu.memory_space<smem>>
    %1855 = vector.broadcast %1854 : f32 to vector<16x16xf32>
    %1856 = arith.mulf %1855, %1849 : vector<16x16xf32>
    %1857 = arith.addf %1839, %1856 : vector<16x16xf32>
    %c77_351 = arith.constant 77 : index
    %1858 = memref.load %arg7[%c77_351] : memref<144xf32, #tpu.memory_space<smem>>
    %1859 = vector.broadcast %1858 : f32 to vector<16x16xf32>
    %1860 = arith.mulf %1859, %1849 : vector<16x16xf32>
    %1861 = arith.addf %1843, %1860 : vector<16x16xf32>
    %c113_352 = arith.constant 113 : index
    %1862 = memref.load %arg7[%c113_352] : memref<144xf32, #tpu.memory_space<smem>>
    %1863 = vector.broadcast %1862 : f32 to vector<16x16xf32>
    %1864 = arith.mulf %1863, %1849 : vector<16x16xf32>
    %1865 = arith.addf %1847, %1864 : vector<16x16xf32>
    %c0_353 = arith.constant 0 : index
    %c2_354 = arith.constant 2 : index
    %c0_355 = arith.constant 0 : index
    %1866 = vector.load %arg11[%c0_353, %c2_354, %c0_355] : memref<4x18x18xf32, #tpu.memory_space<vmem>>, vector<1x16x16xf32>
    %1867 = vector.shape_cast %1866 : vector<1x16x16xf32> to vector<16x16xf32>
    %c6_356 = arith.constant 6 : index
    %1868 = memref.load %arg7[%c6_356] : memref<144xf32, #tpu.memory_space<smem>>
    %1869 = vector.broadcast %1868 : f32 to vector<16x16xf32>
    %1870 = arith.mulf %1869, %1867 : vector<16x16xf32>
    %1871 = arith.addf %1853, %1870 : vector<16x16xf32>
    %c42_357 = arith.constant 42 : index
    %1872 = memref.load %arg7[%c42_357] : memref<144xf32, #tpu.memory_space<smem>>
    %1873 = vector.broadcast %1872 : f32 to vector<16x16xf32>
    %1874 = arith.mulf %1873, %1867 : vector<16x16xf32>
    %1875 = arith.addf %1857, %1874 : vector<16x16xf32>
    %c78_358 = arith.constant 78 : index
    %1876 = memref.load %arg7[%c78_358] : memref<144xf32, #tpu.memory_space<smem>>
    %1877 = vector.broadcast %1876 : f32 to vector<16x16xf32>
    %1878 = arith.mulf %1877, %1867 : vector<16x16xf32>
    %1879 = arith.addf %1861, %1878 : vector<16x16xf32>
    %c114_359 = arith.constant 114 : index
    %1880 = memref.load %arg7[%c114_359] : memref<144xf32, #tpu.memory_space<smem>>
    %1881 = vector.broadcast %1880 : f32 to vector<16x16xf32>
    %1882 = arith.mulf %1881, %1867 : vector<16x16xf32>
    %1883 = arith.addf %1865, %1882 : vector<16x16xf32>
    %c0_360 = arith.constant 0 : index
    %c2_361 = arith.constant 2 : index
    %c1_362 = arith.constant 1 : index
    %1884 = vector.load %arg11[%c0_360, %c2_361, %c1_362] : memref<4x18x18xf32, #tpu.memory_space<vmem>>, vector<1x16x16xf32>
    %1885 = vector.shape_cast %1884 : vector<1x16x16xf32> to vector<16x16xf32>
    %c7_363 = arith.constant 7 : index
    %1886 = memref.load %arg7[%c7_363] : memref<144xf32, #tpu.memory_space<smem>>
    %1887 = vector.broadcast %1886 : f32 to vector<16x16xf32>
    %1888 = arith.mulf %1887, %1885 : vector<16x16xf32>
    %1889 = arith.addf %1871, %1888 : vector<16x16xf32>
    %c43_364 = arith.constant 43 : index
    %1890 = memref.load %arg7[%c43_364] : memref<144xf32, #tpu.memory_space<smem>>
    %1891 = vector.broadcast %1890 : f32 to vector<16x16xf32>
    %1892 = arith.mulf %1891, %1885 : vector<16x16xf32>
    %1893 = arith.addf %1875, %1892 : vector<16x16xf32>
    %c79_365 = arith.constant 79 : index
    %1894 = memref.load %arg7[%c79_365] : memref<144xf32, #tpu.memory_space<smem>>
    %1895 = vector.broadcast %1894 : f32 to vector<16x16xf32>
    %1896 = arith.mulf %1895, %1885 : vector<16x16xf32>
    %1897 = arith.addf %1879, %1896 : vector<16x16xf32>
    %c115_366 = arith.constant 115 : index
    %1898 = memref.load %arg7[%c115_366] : memref<144xf32, #tpu.memory_space<smem>>
    %1899 = vector.broadcast %1898 : f32 to vector<16x16xf32>
    %1900 = arith.mulf %1899, %1885 : vector<16x16xf32>
    %1901 = arith.addf %1883, %1900 : vector<16x16xf32>
    %c0_367 = arith.constant 0 : index
    %c2_368 = arith.constant 2 : index
    %c2_369 = arith.constant 2 : index
    %1902 = vector.load %arg11[%c0_367, %c2_368, %c2_369] : memref<4x18x18xf32, #tpu.memory_space<vmem>>, vector<1x16x16xf32>
    %1903 = vector.shape_cast %1902 : vector<1x16x16xf32> to vector<16x16xf32>
    %c8_370 = arith.constant 8 : index
    %1904 = memref.load %arg7[%c8_370] : memref<144xf32, #tpu.memory_space<smem>>
    %1905 = vector.broadcast %1904 : f32 to vector<16x16xf32>
    %1906 = arith.mulf %1905, %1903 : vector<16x16xf32>
    %1907 = arith.addf %1889, %1906 : vector<16x16xf32>
    %c44_371 = arith.constant 44 : index
    %1908 = memref.load %arg7[%c44_371] : memref<144xf32, #tpu.memory_space<smem>>
    %1909 = vector.broadcast %1908 : f32 to vector<16x16xf32>
    %1910 = arith.mulf %1909, %1903 : vector<16x16xf32>
    %1911 = arith.addf %1893, %1910 : vector<16x16xf32>
    %c80_372 = arith.constant 80 : index
    %1912 = memref.load %arg7[%c80_372] : memref<144xf32, #tpu.memory_space<smem>>
    %1913 = vector.broadcast %1912 : f32 to vector<16x16xf32>
    %1914 = arith.mulf %1913, %1903 : vector<16x16xf32>
    %1915 = arith.addf %1897, %1914 : vector<16x16xf32>
    %c116_373 = arith.constant 116 : index
    %1916 = memref.load %arg7[%c116_373] : memref<144xf32, #tpu.memory_space<smem>>
    %1917 = vector.broadcast %1916 : f32 to vector<16x16xf32>
    %1918 = arith.mulf %1917, %1903 : vector<16x16xf32>
    %1919 = arith.addf %1901, %1918 : vector<16x16xf32>
    %c1_374 = arith.constant 1 : index
    %c0_375 = arith.constant 0 : index
    %c0_376 = arith.constant 0 : index
    %1920 = vector.load %arg11[%c1_374, %c0_375, %c0_376] : memref<4x18x18xf32, #tpu.memory_space<vmem>>, vector<1x16x16xf32>
    %1921 = vector.shape_cast %1920 : vector<1x16x16xf32> to vector<16x16xf32>
    %c9_377 = arith.constant 9 : index
    %1922 = memref.load %arg7[%c9_377] : memref<144xf32, #tpu.memory_space<smem>>
    %1923 = vector.broadcast %1922 : f32 to vector<16x16xf32>
    %1924 = arith.mulf %1923, %1921 : vector<16x16xf32>
    %1925 = arith.addf %1907, %1924 : vector<16x16xf32>
    %c45_378 = arith.constant 45 : index
    %1926 = memref.load %arg7[%c45_378] : memref<144xf32, #tpu.memory_space<smem>>
    %1927 = vector.broadcast %1926 : f32 to vector<16x16xf32>
    %1928 = arith.mulf %1927, %1921 : vector<16x16xf32>
    %1929 = arith.addf %1911, %1928 : vector<16x16xf32>
    %c81_379 = arith.constant 81 : index
    %1930 = memref.load %arg7[%c81_379] : memref<144xf32, #tpu.memory_space<smem>>
    %1931 = vector.broadcast %1930 : f32 to vector<16x16xf32>
    %1932 = arith.mulf %1931, %1921 : vector<16x16xf32>
    %1933 = arith.addf %1915, %1932 : vector<16x16xf32>
    %c117_380 = arith.constant 117 : index
    %1934 = memref.load %arg7[%c117_380] : memref<144xf32, #tpu.memory_space<smem>>
    %1935 = vector.broadcast %1934 : f32 to vector<16x16xf32>
    %1936 = arith.mulf %1935, %1921 : vector<16x16xf32>
    %1937 = arith.addf %1919, %1936 : vector<16x16xf32>
    %c1_381 = arith.constant 1 : index
    %c0_382 = arith.constant 0 : index
    %c1_383 = arith.constant 1 : index
    %1938 = vector.load %arg11[%c1_381, %c0_382, %c1_383] : memref<4x18x18xf32, #tpu.memory_space<vmem>>, vector<1x16x16xf32>
    %1939 = vector.shape_cast %1938 : vector<1x16x16xf32> to vector<16x16xf32>
    %c10_384 = arith.constant 10 : index
    %1940 = memref.load %arg7[%c10_384] : memref<144xf32, #tpu.memory_space<smem>>
    %1941 = vector.broadcast %1940 : f32 to vector<16x16xf32>
    %1942 = arith.mulf %1941, %1939 : vector<16x16xf32>
    %1943 = arith.addf %1925, %1942 : vector<16x16xf32>
    %c46_385 = arith.constant 46 : index
    %1944 = memref.load %arg7[%c46_385] : memref<144xf32, #tpu.memory_space<smem>>
    %1945 = vector.broadcast %1944 : f32 to vector<16x16xf32>
    %1946 = arith.mulf %1945, %1939 : vector<16x16xf32>
    %1947 = arith.addf %1929, %1946 : vector<16x16xf32>
    %c82_386 = arith.constant 82 : index
    %1948 = memref.load %arg7[%c82_386] : memref<144xf32, #tpu.memory_space<smem>>
    %1949 = vector.broadcast %1948 : f32 to vector<16x16xf32>
    %1950 = arith.mulf %1949, %1939 : vector<16x16xf32>
    %1951 = arith.addf %1933, %1950 : vector<16x16xf32>
    %c118_387 = arith.constant 118 : index
    %1952 = memref.load %arg7[%c118_387] : memref<144xf32, #tpu.memory_space<smem>>
    %1953 = vector.broadcast %1952 : f32 to vector<16x16xf32>
    %1954 = arith.mulf %1953, %1939 : vector<16x16xf32>
    %1955 = arith.addf %1937, %1954 : vector<16x16xf32>
    %c1_388 = arith.constant 1 : index
    %c0_389 = arith.constant 0 : index
    %c2_390 = arith.constant 2 : index
    %1956 = vector.load %arg11[%c1_388, %c0_389, %c2_390] : memref<4x18x18xf32, #tpu.memory_space<vmem>>, vector<1x16x16xf32>
    %1957 = vector.shape_cast %1956 : vector<1x16x16xf32> to vector<16x16xf32>
    %c11_391 = arith.constant 11 : index
    %1958 = memref.load %arg7[%c11_391] : memref<144xf32, #tpu.memory_space<smem>>
    %1959 = vector.broadcast %1958 : f32 to vector<16x16xf32>
    %1960 = arith.mulf %1959, %1957 : vector<16x16xf32>
    %1961 = arith.addf %1943, %1960 : vector<16x16xf32>
    %c47_392 = arith.constant 47 : index
    %1962 = memref.load %arg7[%c47_392] : memref<144xf32, #tpu.memory_space<smem>>
    %1963 = vector.broadcast %1962 : f32 to vector<16x16xf32>
    %1964 = arith.mulf %1963, %1957 : vector<16x16xf32>
    %1965 = arith.addf %1947, %1964 : vector<16x16xf32>
    %c83_393 = arith.constant 83 : index
    %1966 = memref.load %arg7[%c83_393] : memref<144xf32, #tpu.memory_space<smem>>
    %1967 = vector.broadcast %1966 : f32 to vector<16x16xf32>
    %1968 = arith.mulf %1967, %1957 : vector<16x16xf32>
    %1969 = arith.addf %1951, %1968 : vector<16x16xf32>
    %c119_394 = arith.constant 119 : index
    %1970 = memref.load %arg7[%c119_394] : memref<144xf32, #tpu.memory_space<smem>>
    %1971 = vector.broadcast %1970 : f32 to vector<16x16xf32>
    %1972 = arith.mulf %1971, %1957 : vector<16x16xf32>
    %1973 = arith.addf %1955, %1972 : vector<16x16xf32>
    %c1_395 = arith.constant 1 : index
    %c1_396 = arith.constant 1 : index
    %c0_397 = arith.constant 0 : index
    %1974 = vector.load %arg11[%c1_395, %c1_396, %c0_397] : memref<4x18x18xf32, #tpu.memory_space<vmem>>, vector<1x16x16xf32>
    %1975 = vector.shape_cast %1974 : vector<1x16x16xf32> to vector<16x16xf32>
    %c12_398 = arith.constant 12 : index
    %1976 = memref.load %arg7[%c12_398] : memref<144xf32, #tpu.memory_space<smem>>
    %1977 = vector.broadcast %1976 : f32 to vector<16x16xf32>
    %1978 = arith.mulf %1977, %1975 : vector<16x16xf32>
    %1979 = arith.addf %1961, %1978 : vector<16x16xf32>
    %c48_399 = arith.constant 48 : index
    %1980 = memref.load %arg7[%c48_399] : memref<144xf32, #tpu.memory_space<smem>>
    %1981 = vector.broadcast %1980 : f32 to vector<16x16xf32>
    %1982 = arith.mulf %1981, %1975 : vector<16x16xf32>
    %1983 = arith.addf %1965, %1982 : vector<16x16xf32>
    %c84_400 = arith.constant 84 : index
    %1984 = memref.load %arg7[%c84_400] : memref<144xf32, #tpu.memory_space<smem>>
    %1985 = vector.broadcast %1984 : f32 to vector<16x16xf32>
    %1986 = arith.mulf %1985, %1975 : vector<16x16xf32>
    %1987 = arith.addf %1969, %1986 : vector<16x16xf32>
    %c120_401 = arith.constant 120 : index
    %1988 = memref.load %arg7[%c120_401] : memref<144xf32, #tpu.memory_space<smem>>
    %1989 = vector.broadcast %1988 : f32 to vector<16x16xf32>
    %1990 = arith.mulf %1989, %1975 : vector<16x16xf32>
    %1991 = arith.addf %1973, %1990 : vector<16x16xf32>
    %c1_402 = arith.constant 1 : index
    %c1_403 = arith.constant 1 : index
    %c1_404 = arith.constant 1 : index
    %1992 = vector.load %arg11[%c1_402, %c1_403, %c1_404] : memref<4x18x18xf32, #tpu.memory_space<vmem>>, vector<1x16x16xf32>
    %1993 = vector.shape_cast %1992 : vector<1x16x16xf32> to vector<16x16xf32>
    %c13_405 = arith.constant 13 : index
    %1994 = memref.load %arg7[%c13_405] : memref<144xf32, #tpu.memory_space<smem>>
    %1995 = vector.broadcast %1994 : f32 to vector<16x16xf32>
    %1996 = arith.mulf %1995, %1993 : vector<16x16xf32>
    %1997 = arith.addf %1979, %1996 : vector<16x16xf32>
    %c49_406 = arith.constant 49 : index
    %1998 = memref.load %arg7[%c49_406] : memref<144xf32, #tpu.memory_space<smem>>
    %1999 = vector.broadcast %1998 : f32 to vector<16x16xf32>
    %2000 = arith.mulf %1999, %1993 : vector<16x16xf32>
    %2001 = arith.addf %1983, %2000 : vector<16x16xf32>
    %c85_407 = arith.constant 85 : index
    %2002 = memref.load %arg7[%c85_407] : memref<144xf32, #tpu.memory_space<smem>>
    %2003 = vector.broadcast %2002 : f32 to vector<16x16xf32>
    %2004 = arith.mulf %2003, %1993 : vector<16x16xf32>
    %2005 = arith.addf %1987, %2004 : vector<16x16xf32>
    %c121_408 = arith.constant 121 : index
    %2006 = memref.load %arg7[%c121_408] : memref<144xf32, #tpu.memory_space<smem>>
    %2007 = vector.broadcast %2006 : f32 to vector<16x16xf32>
    %2008 = arith.mulf %2007, %1993 : vector<16x16xf32>
    %2009 = arith.addf %1991, %2008 : vector<16x16xf32>
    %c1_409 = arith.constant 1 : index
    %c1_410 = arith.constant 1 : index
    %c2_411 = arith.constant 2 : index
    %2010 = vector.load %arg11[%c1_409, %c1_410, %c2_411] : memref<4x18x18xf32, #tpu.memory_space<vmem>>, vector<1x16x16xf32>
    %2011 = vector.shape_cast %2010 : vector<1x16x16xf32> to vector<16x16xf32>
    %c14_412 = arith.constant 14 : index
    %2012 = memref.load %arg7[%c14_412] : memref<144xf32, #tpu.memory_space<smem>>
    %2013 = vector.broadcast %2012 : f32 to vector<16x16xf32>
    %2014 = arith.mulf %2013, %2011 : vector<16x16xf32>
    %2015 = arith.addf %1997, %2014 : vector<16x16xf32>
    %c50_413 = arith.constant 50 : index
    %2016 = memref.load %arg7[%c50_413] : memref<144xf32, #tpu.memory_space<smem>>
    %2017 = vector.broadcast %2016 : f32 to vector<16x16xf32>
    %2018 = arith.mulf %2017, %2011 : vector<16x16xf32>
    %2019 = arith.addf %2001, %2018 : vector<16x16xf32>
    %c86_414 = arith.constant 86 : index
    %2020 = memref.load %arg7[%c86_414] : memref<144xf32, #tpu.memory_space<smem>>
    %2021 = vector.broadcast %2020 : f32 to vector<16x16xf32>
    %2022 = arith.mulf %2021, %2011 : vector<16x16xf32>
    %2023 = arith.addf %2005, %2022 : vector<16x16xf32>
    %c122_415 = arith.constant 122 : index
    %2024 = memref.load %arg7[%c122_415] : memref<144xf32, #tpu.memory_space<smem>>
    %2025 = vector.broadcast %2024 : f32 to vector<16x16xf32>
    %2026 = arith.mulf %2025, %2011 : vector<16x16xf32>
    %2027 = arith.addf %2009, %2026 : vector<16x16xf32>
    %c1_416 = arith.constant 1 : index
    %c2_417 = arith.constant 2 : index
    %c0_418 = arith.constant 0 : index
    %2028 = vector.load %arg11[%c1_416, %c2_417, %c0_418] : memref<4x18x18xf32, #tpu.memory_space<vmem>>, vector<1x16x16xf32>
    %2029 = vector.shape_cast %2028 : vector<1x16x16xf32> to vector<16x16xf32>
    %c15_419 = arith.constant 15 : index
    %2030 = memref.load %arg7[%c15_419] : memref<144xf32, #tpu.memory_space<smem>>
    %2031 = vector.broadcast %2030 : f32 to vector<16x16xf32>
    %2032 = arith.mulf %2031, %2029 : vector<16x16xf32>
    %2033 = arith.addf %2015, %2032 : vector<16x16xf32>
    %c51_420 = arith.constant 51 : index
    %2034 = memref.load %arg7[%c51_420] : memref<144xf32, #tpu.memory_space<smem>>
    %2035 = vector.broadcast %2034 : f32 to vector<16x16xf32>
    %2036 = arith.mulf %2035, %2029 : vector<16x16xf32>
    %2037 = arith.addf %2019, %2036 : vector<16x16xf32>
    %c87_421 = arith.constant 87 : index
    %2038 = memref.load %arg7[%c87_421] : memref<144xf32, #tpu.memory_space<smem>>
    %2039 = vector.broadcast %2038 : f32 to vector<16x16xf32>
    %2040 = arith.mulf %2039, %2029 : vector<16x16xf32>
    %2041 = arith.addf %2023, %2040 : vector<16x16xf32>
    %c123_422 = arith.constant 123 : index
    %2042 = memref.load %arg7[%c123_422] : memref<144xf32, #tpu.memory_space<smem>>
    %2043 = vector.broadcast %2042 : f32 to vector<16x16xf32>
    %2044 = arith.mulf %2043, %2029 : vector<16x16xf32>
    %2045 = arith.addf %2027, %2044 : vector<16x16xf32>
    %c1_423 = arith.constant 1 : index
    %c2_424 = arith.constant 2 : index
    %c1_425 = arith.constant 1 : index
    %2046 = vector.load %arg11[%c1_423, %c2_424, %c1_425] : memref<4x18x18xf32, #tpu.memory_space<vmem>>, vector<1x16x16xf32>
    %2047 = vector.shape_cast %2046 : vector<1x16x16xf32> to vector<16x16xf32>
    %c16_426 = arith.constant 16 : index
    %2048 = memref.load %arg7[%c16_426] : memref<144xf32, #tpu.memory_space<smem>>
    %2049 = vector.broadcast %2048 : f32 to vector<16x16xf32>
    %2050 = arith.mulf %2049, %2047 : vector<16x16xf32>
    %2051 = arith.addf %2033, %2050 : vector<16x16xf32>
    %c52_427 = arith.constant 52 : index
    %2052 = memref.load %arg7[%c52_427] : memref<144xf32, #tpu.memory_space<smem>>
    %2053 = vector.broadcast %2052 : f32 to vector<16x16xf32>
    %2054 = arith.mulf %2053, %2047 : vector<16x16xf32>
    %2055 = arith.addf %2037, %2054 : vector<16x16xf32>
    %c88_428 = arith.constant 88 : index
    %2056 = memref.load %arg7[%c88_428] : memref<144xf32, #tpu.memory_space<smem>>
    %2057 = vector.broadcast %2056 : f32 to vector<16x16xf32>
    %2058 = arith.mulf %2057, %2047 : vector<16x16xf32>
    %2059 = arith.addf %2041, %2058 : vector<16x16xf32>
    %c124_429 = arith.constant 124 : index
    %2060 = memref.load %arg7[%c124_429] : memref<144xf32, #tpu.memory_space<smem>>
    %2061 = vector.broadcast %2060 : f32 to vector<16x16xf32>
    %2062 = arith.mulf %2061, %2047 : vector<16x16xf32>
    %2063 = arith.addf %2045, %2062 : vector<16x16xf32>
    %c1_430 = arith.constant 1 : index
    %c2_431 = arith.constant 2 : index
    %c2_432 = arith.constant 2 : index
    %2064 = vector.load %arg11[%c1_430, %c2_431, %c2_432] : memref<4x18x18xf32, #tpu.memory_space<vmem>>, vector<1x16x16xf32>
    %2065 = vector.shape_cast %2064 : vector<1x16x16xf32> to vector<16x16xf32>
    %c17_433 = arith.constant 17 : index
    %2066 = memref.load %arg7[%c17_433] : memref<144xf32, #tpu.memory_space<smem>>
    %2067 = vector.broadcast %2066 : f32 to vector<16x16xf32>
    %2068 = arith.mulf %2067, %2065 : vector<16x16xf32>
    %2069 = arith.addf %2051, %2068 : vector<16x16xf32>
    %c53_434 = arith.constant 53 : index
    %2070 = memref.load %arg7[%c53_434] : memref<144xf32, #tpu.memory_space<smem>>
    %2071 = vector.broadcast %2070 : f32 to vector<16x16xf32>
    %2072 = arith.mulf %2071, %2065 : vector<16x16xf32>
    %2073 = arith.addf %2055, %2072 : vector<16x16xf32>
    %c89_435 = arith.constant 89 : index
    %2074 = memref.load %arg7[%c89_435] : memref<144xf32, #tpu.memory_space<smem>>
    %2075 = vector.broadcast %2074 : f32 to vector<16x16xf32>
    %2076 = arith.mulf %2075, %2065 : vector<16x16xf32>
    %2077 = arith.addf %2059, %2076 : vector<16x16xf32>
    %c125_436 = arith.constant 125 : index
    %2078 = memref.load %arg7[%c125_436] : memref<144xf32, #tpu.memory_space<smem>>
    %2079 = vector.broadcast %2078 : f32 to vector<16x16xf32>
    %2080 = arith.mulf %2079, %2065 : vector<16x16xf32>
    %2081 = arith.addf %2063, %2080 : vector<16x16xf32>
    %c2_437 = arith.constant 2 : index
    %c0_438 = arith.constant 0 : index
    %c0_439 = arith.constant 0 : index
    %2082 = vector.load %arg11[%c2_437, %c0_438, %c0_439] : memref<4x18x18xf32, #tpu.memory_space<vmem>>, vector<1x16x16xf32>
    %2083 = vector.shape_cast %2082 : vector<1x16x16xf32> to vector<16x16xf32>
    %c18_440 = arith.constant 18 : index
    %2084 = memref.load %arg7[%c18_440] : memref<144xf32, #tpu.memory_space<smem>>
    %2085 = vector.broadcast %2084 : f32 to vector<16x16xf32>
    %2086 = arith.mulf %2085, %2083 : vector<16x16xf32>
    %2087 = arith.addf %2069, %2086 : vector<16x16xf32>
    %c54_441 = arith.constant 54 : index
    %2088 = memref.load %arg7[%c54_441] : memref<144xf32, #tpu.memory_space<smem>>
    %2089 = vector.broadcast %2088 : f32 to vector<16x16xf32>
    %2090 = arith.mulf %2089, %2083 : vector<16x16xf32>
    %2091 = arith.addf %2073, %2090 : vector<16x16xf32>
    %c90_442 = arith.constant 90 : index
    %2092 = memref.load %arg7[%c90_442] : memref<144xf32, #tpu.memory_space<smem>>
    %2093 = vector.broadcast %2092 : f32 to vector<16x16xf32>
    %2094 = arith.mulf %2093, %2083 : vector<16x16xf32>
    %2095 = arith.addf %2077, %2094 : vector<16x16xf32>
    %c126_443 = arith.constant 126 : index
    %2096 = memref.load %arg7[%c126_443] : memref<144xf32, #tpu.memory_space<smem>>
    %2097 = vector.broadcast %2096 : f32 to vector<16x16xf32>
    %2098 = arith.mulf %2097, %2083 : vector<16x16xf32>
    %2099 = arith.addf %2081, %2098 : vector<16x16xf32>
    %c2_444 = arith.constant 2 : index
    %c0_445 = arith.constant 0 : index
    %c1_446 = arith.constant 1 : index
    %2100 = vector.load %arg11[%c2_444, %c0_445, %c1_446] : memref<4x18x18xf32, #tpu.memory_space<vmem>>, vector<1x16x16xf32>
    %2101 = vector.shape_cast %2100 : vector<1x16x16xf32> to vector<16x16xf32>
    %c19_447 = arith.constant 19 : index
    %2102 = memref.load %arg7[%c19_447] : memref<144xf32, #tpu.memory_space<smem>>
    %2103 = vector.broadcast %2102 : f32 to vector<16x16xf32>
    %2104 = arith.mulf %2103, %2101 : vector<16x16xf32>
    %2105 = arith.addf %2087, %2104 : vector<16x16xf32>
    %c55_448 = arith.constant 55 : index
    %2106 = memref.load %arg7[%c55_448] : memref<144xf32, #tpu.memory_space<smem>>
    %2107 = vector.broadcast %2106 : f32 to vector<16x16xf32>
    %2108 = arith.mulf %2107, %2101 : vector<16x16xf32>
    %2109 = arith.addf %2091, %2108 : vector<16x16xf32>
    %c91_449 = arith.constant 91 : index
    %2110 = memref.load %arg7[%c91_449] : memref<144xf32, #tpu.memory_space<smem>>
    %2111 = vector.broadcast %2110 : f32 to vector<16x16xf32>
    %2112 = arith.mulf %2111, %2101 : vector<16x16xf32>
    %2113 = arith.addf %2095, %2112 : vector<16x16xf32>
    %c127_450 = arith.constant 127 : index
    %2114 = memref.load %arg7[%c127_450] : memref<144xf32, #tpu.memory_space<smem>>
    %2115 = vector.broadcast %2114 : f32 to vector<16x16xf32>
    %2116 = arith.mulf %2115, %2101 : vector<16x16xf32>
    %2117 = arith.addf %2099, %2116 : vector<16x16xf32>
    %c2_451 = arith.constant 2 : index
    %c0_452 = arith.constant 0 : index
    %c2_453 = arith.constant 2 : index
    %2118 = vector.load %arg11[%c2_451, %c0_452, %c2_453] : memref<4x18x18xf32, #tpu.memory_space<vmem>>, vector<1x16x16xf32>
    %2119 = vector.shape_cast %2118 : vector<1x16x16xf32> to vector<16x16xf32>
    %c20_454 = arith.constant 20 : index
    %2120 = memref.load %arg7[%c20_454] : memref<144xf32, #tpu.memory_space<smem>>
    %2121 = vector.broadcast %2120 : f32 to vector<16x16xf32>
    %2122 = arith.mulf %2121, %2119 : vector<16x16xf32>
    %2123 = arith.addf %2105, %2122 : vector<16x16xf32>
    %c56_455 = arith.constant 56 : index
    %2124 = memref.load %arg7[%c56_455] : memref<144xf32, #tpu.memory_space<smem>>
    %2125 = vector.broadcast %2124 : f32 to vector<16x16xf32>
    %2126 = arith.mulf %2125, %2119 : vector<16x16xf32>
    %2127 = arith.addf %2109, %2126 : vector<16x16xf32>
    %c92_456 = arith.constant 92 : index
    %2128 = memref.load %arg7[%c92_456] : memref<144xf32, #tpu.memory_space<smem>>
    %2129 = vector.broadcast %2128 : f32 to vector<16x16xf32>
    %2130 = arith.mulf %2129, %2119 : vector<16x16xf32>
    %2131 = arith.addf %2113, %2130 : vector<16x16xf32>
    %c128_457 = arith.constant 128 : index
    %2132 = memref.load %arg7[%c128_457] : memref<144xf32, #tpu.memory_space<smem>>
    %2133 = vector.broadcast %2132 : f32 to vector<16x16xf32>
    %2134 = arith.mulf %2133, %2119 : vector<16x16xf32>
    %2135 = arith.addf %2117, %2134 : vector<16x16xf32>
    %c2_458 = arith.constant 2 : index
    %c1_459 = arith.constant 1 : index
    %c0_460 = arith.constant 0 : index
    %2136 = vector.load %arg11[%c2_458, %c1_459, %c0_460] : memref<4x18x18xf32, #tpu.memory_space<vmem>>, vector<1x16x16xf32>
    %2137 = vector.shape_cast %2136 : vector<1x16x16xf32> to vector<16x16xf32>
    %c21_461 = arith.constant 21 : index
    %2138 = memref.load %arg7[%c21_461] : memref<144xf32, #tpu.memory_space<smem>>
    %2139 = vector.broadcast %2138 : f32 to vector<16x16xf32>
    %2140 = arith.mulf %2139, %2137 : vector<16x16xf32>
    %2141 = arith.addf %2123, %2140 : vector<16x16xf32>
    %c57_462 = arith.constant 57 : index
    %2142 = memref.load %arg7[%c57_462] : memref<144xf32, #tpu.memory_space<smem>>
    %2143 = vector.broadcast %2142 : f32 to vector<16x16xf32>
    %2144 = arith.mulf %2143, %2137 : vector<16x16xf32>
    %2145 = arith.addf %2127, %2144 : vector<16x16xf32>
    %c93_463 = arith.constant 93 : index
    %2146 = memref.load %arg7[%c93_463] : memref<144xf32, #tpu.memory_space<smem>>
    %2147 = vector.broadcast %2146 : f32 to vector<16x16xf32>
    %2148 = arith.mulf %2147, %2137 : vector<16x16xf32>
    %2149 = arith.addf %2131, %2148 : vector<16x16xf32>
    %c129_464 = arith.constant 129 : index
    %2150 = memref.load %arg7[%c129_464] : memref<144xf32, #tpu.memory_space<smem>>
    %2151 = vector.broadcast %2150 : f32 to vector<16x16xf32>
    %2152 = arith.mulf %2151, %2137 : vector<16x16xf32>
    %2153 = arith.addf %2135, %2152 : vector<16x16xf32>
    %c2_465 = arith.constant 2 : index
    %c1_466 = arith.constant 1 : index
    %c1_467 = arith.constant 1 : index
    %2154 = vector.load %arg11[%c2_465, %c1_466, %c1_467] : memref<4x18x18xf32, #tpu.memory_space<vmem>>, vector<1x16x16xf32>
    %2155 = vector.shape_cast %2154 : vector<1x16x16xf32> to vector<16x16xf32>
    %c22_468 = arith.constant 22 : index
    %2156 = memref.load %arg7[%c22_468] : memref<144xf32, #tpu.memory_space<smem>>
    %2157 = vector.broadcast %2156 : f32 to vector<16x16xf32>
    %2158 = arith.mulf %2157, %2155 : vector<16x16xf32>
    %2159 = arith.addf %2141, %2158 : vector<16x16xf32>
    %c58_469 = arith.constant 58 : index
    %2160 = memref.load %arg7[%c58_469] : memref<144xf32, #tpu.memory_space<smem>>
    %2161 = vector.broadcast %2160 : f32 to vector<16x16xf32>
    %2162 = arith.mulf %2161, %2155 : vector<16x16xf32>
    %2163 = arith.addf %2145, %2162 : vector<16x16xf32>
    %c94_470 = arith.constant 94 : index
    %2164 = memref.load %arg7[%c94_470] : memref<144xf32, #tpu.memory_space<smem>>
    %2165 = vector.broadcast %2164 : f32 to vector<16x16xf32>
    %2166 = arith.mulf %2165, %2155 : vector<16x16xf32>
    %2167 = arith.addf %2149, %2166 : vector<16x16xf32>
    %c130_471 = arith.constant 130 : index
    %2168 = memref.load %arg7[%c130_471] : memref<144xf32, #tpu.memory_space<smem>>
    %2169 = vector.broadcast %2168 : f32 to vector<16x16xf32>
    %2170 = arith.mulf %2169, %2155 : vector<16x16xf32>
    %2171 = arith.addf %2153, %2170 : vector<16x16xf32>
    %c2_472 = arith.constant 2 : index
    %c1_473 = arith.constant 1 : index
    %c2_474 = arith.constant 2 : index
    %2172 = vector.load %arg11[%c2_472, %c1_473, %c2_474] : memref<4x18x18xf32, #tpu.memory_space<vmem>>, vector<1x16x16xf32>
    %2173 = vector.shape_cast %2172 : vector<1x16x16xf32> to vector<16x16xf32>
    %c23_475 = arith.constant 23 : index
    %2174 = memref.load %arg7[%c23_475] : memref<144xf32, #tpu.memory_space<smem>>
    %2175 = vector.broadcast %2174 : f32 to vector<16x16xf32>
    %2176 = arith.mulf %2175, %2173 : vector<16x16xf32>
    %2177 = arith.addf %2159, %2176 : vector<16x16xf32>
    %c59_476 = arith.constant 59 : index
    %2178 = memref.load %arg7[%c59_476] : memref<144xf32, #tpu.memory_space<smem>>
    %2179 = vector.broadcast %2178 : f32 to vector<16x16xf32>
    %2180 = arith.mulf %2179, %2173 : vector<16x16xf32>
    %2181 = arith.addf %2163, %2180 : vector<16x16xf32>
    %c95_477 = arith.constant 95 : index
    %2182 = memref.load %arg7[%c95_477] : memref<144xf32, #tpu.memory_space<smem>>
    %2183 = vector.broadcast %2182 : f32 to vector<16x16xf32>
    %2184 = arith.mulf %2183, %2173 : vector<16x16xf32>
    %2185 = arith.addf %2167, %2184 : vector<16x16xf32>
    %c131_478 = arith.constant 131 : index
    %2186 = memref.load %arg7[%c131_478] : memref<144xf32, #tpu.memory_space<smem>>
    %2187 = vector.broadcast %2186 : f32 to vector<16x16xf32>
    %2188 = arith.mulf %2187, %2173 : vector<16x16xf32>
    %2189 = arith.addf %2171, %2188 : vector<16x16xf32>
    %c2_479 = arith.constant 2 : index
    %c2_480 = arith.constant 2 : index
    %c0_481 = arith.constant 0 : index
    %2190 = vector.load %arg11[%c2_479, %c2_480, %c0_481] : memref<4x18x18xf32, #tpu.memory_space<vmem>>, vector<1x16x16xf32>
    %2191 = vector.shape_cast %2190 : vector<1x16x16xf32> to vector<16x16xf32>
    %c24_482 = arith.constant 24 : index
    %2192 = memref.load %arg7[%c24_482] : memref<144xf32, #tpu.memory_space<smem>>
    %2193 = vector.broadcast %2192 : f32 to vector<16x16xf32>
    %2194 = arith.mulf %2193, %2191 : vector<16x16xf32>
    %2195 = arith.addf %2177, %2194 : vector<16x16xf32>
    %c60_483 = arith.constant 60 : index
    %2196 = memref.load %arg7[%c60_483] : memref<144xf32, #tpu.memory_space<smem>>
    %2197 = vector.broadcast %2196 : f32 to vector<16x16xf32>
    %2198 = arith.mulf %2197, %2191 : vector<16x16xf32>
    %2199 = arith.addf %2181, %2198 : vector<16x16xf32>
    %c96_484 = arith.constant 96 : index
    %2200 = memref.load %arg7[%c96_484] : memref<144xf32, #tpu.memory_space<smem>>
    %2201 = vector.broadcast %2200 : f32 to vector<16x16xf32>
    %2202 = arith.mulf %2201, %2191 : vector<16x16xf32>
    %2203 = arith.addf %2185, %2202 : vector<16x16xf32>
    %c132_485 = arith.constant 132 : index
    %2204 = memref.load %arg7[%c132_485] : memref<144xf32, #tpu.memory_space<smem>>
    %2205 = vector.broadcast %2204 : f32 to vector<16x16xf32>
    %2206 = arith.mulf %2205, %2191 : vector<16x16xf32>
    %2207 = arith.addf %2189, %2206 : vector<16x16xf32>
    %c2_486 = arith.constant 2 : index
    %c2_487 = arith.constant 2 : index
    %c1_488 = arith.constant 1 : index
    %2208 = vector.load %arg11[%c2_486, %c2_487, %c1_488] : memref<4x18x18xf32, #tpu.memory_space<vmem>>, vector<1x16x16xf32>
    %2209 = vector.shape_cast %2208 : vector<1x16x16xf32> to vector<16x16xf32>
    %c25_489 = arith.constant 25 : index
    %2210 = memref.load %arg7[%c25_489] : memref<144xf32, #tpu.memory_space<smem>>
    %2211 = vector.broadcast %2210 : f32 to vector<16x16xf32>
    %2212 = arith.mulf %2211, %2209 : vector<16x16xf32>
    %2213 = arith.addf %2195, %2212 : vector<16x16xf32>
    %c61_490 = arith.constant 61 : index
    %2214 = memref.load %arg7[%c61_490] : memref<144xf32, #tpu.memory_space<smem>>
    %2215 = vector.broadcast %2214 : f32 to vector<16x16xf32>
    %2216 = arith.mulf %2215, %2209 : vector<16x16xf32>
    %2217 = arith.addf %2199, %2216 : vector<16x16xf32>
    %c97_491 = arith.constant 97 : index
    %2218 = memref.load %arg7[%c97_491] : memref<144xf32, #tpu.memory_space<smem>>
    %2219 = vector.broadcast %2218 : f32 to vector<16x16xf32>
    %2220 = arith.mulf %2219, %2209 : vector<16x16xf32>
    %2221 = arith.addf %2203, %2220 : vector<16x16xf32>
    %c133_492 = arith.constant 133 : index
    %2222 = memref.load %arg7[%c133_492] : memref<144xf32, #tpu.memory_space<smem>>
    %2223 = vector.broadcast %2222 : f32 to vector<16x16xf32>
    %2224 = arith.mulf %2223, %2209 : vector<16x16xf32>
    %2225 = arith.addf %2207, %2224 : vector<16x16xf32>
    %c2_493 = arith.constant 2 : index
    %c2_494 = arith.constant 2 : index
    %c2_495 = arith.constant 2 : index
    %2226 = vector.load %arg11[%c2_493, %c2_494, %c2_495] : memref<4x18x18xf32, #tpu.memory_space<vmem>>, vector<1x16x16xf32>
    %2227 = vector.shape_cast %2226 : vector<1x16x16xf32> to vector<16x16xf32>
    %c26_496 = arith.constant 26 : index
    %2228 = memref.load %arg7[%c26_496] : memref<144xf32, #tpu.memory_space<smem>>
    %2229 = vector.broadcast %2228 : f32 to vector<16x16xf32>
    %2230 = arith.mulf %2229, %2227 : vector<16x16xf32>
    %2231 = arith.addf %2213, %2230 : vector<16x16xf32>
    %c62_497 = arith.constant 62 : index
    %2232 = memref.load %arg7[%c62_497] : memref<144xf32, #tpu.memory_space<smem>>
    %2233 = vector.broadcast %2232 : f32 to vector<16x16xf32>
    %2234 = arith.mulf %2233, %2227 : vector<16x16xf32>
    %2235 = arith.addf %2217, %2234 : vector<16x16xf32>
    %c98_498 = arith.constant 98 : index
    %2236 = memref.load %arg7[%c98_498] : memref<144xf32, #tpu.memory_space<smem>>
    %2237 = vector.broadcast %2236 : f32 to vector<16x16xf32>
    %2238 = arith.mulf %2237, %2227 : vector<16x16xf32>
    %2239 = arith.addf %2221, %2238 : vector<16x16xf32>
    %c134_499 = arith.constant 134 : index
    %2240 = memref.load %arg7[%c134_499] : memref<144xf32, #tpu.memory_space<smem>>
    %2241 = vector.broadcast %2240 : f32 to vector<16x16xf32>
    %2242 = arith.mulf %2241, %2227 : vector<16x16xf32>
    %2243 = arith.addf %2225, %2242 : vector<16x16xf32>
    %c3_500 = arith.constant 3 : index
    %c0_501 = arith.constant 0 : index
    %c0_502 = arith.constant 0 : index
    %2244 = vector.load %arg11[%c3_500, %c0_501, %c0_502] : memref<4x18x18xf32, #tpu.memory_space<vmem>>, vector<1x16x16xf32>
    %2245 = vector.shape_cast %2244 : vector<1x16x16xf32> to vector<16x16xf32>
    %c27_503 = arith.constant 27 : index
    %2246 = memref.load %arg7[%c27_503] : memref<144xf32, #tpu.memory_space<smem>>
    %2247 = vector.broadcast %2246 : f32 to vector<16x16xf32>
    %2248 = arith.mulf %2247, %2245 : vector<16x16xf32>
    %2249 = arith.addf %2231, %2248 : vector<16x16xf32>
    %c63_504 = arith.constant 63 : index
    %2250 = memref.load %arg7[%c63_504] : memref<144xf32, #tpu.memory_space<smem>>
    %2251 = vector.broadcast %2250 : f32 to vector<16x16xf32>
    %2252 = arith.mulf %2251, %2245 : vector<16x16xf32>
    %2253 = arith.addf %2235, %2252 : vector<16x16xf32>
    %c99_505 = arith.constant 99 : index
    %2254 = memref.load %arg7[%c99_505] : memref<144xf32, #tpu.memory_space<smem>>
    %2255 = vector.broadcast %2254 : f32 to vector<16x16xf32>
    %2256 = arith.mulf %2255, %2245 : vector<16x16xf32>
    %2257 = arith.addf %2239, %2256 : vector<16x16xf32>
    %c135_506 = arith.constant 135 : index
    %2258 = memref.load %arg7[%c135_506] : memref<144xf32, #tpu.memory_space<smem>>
    %2259 = vector.broadcast %2258 : f32 to vector<16x16xf32>
    %2260 = arith.mulf %2259, %2245 : vector<16x16xf32>
    %2261 = arith.addf %2243, %2260 : vector<16x16xf32>
    %c3_507 = arith.constant 3 : index
    %c0_508 = arith.constant 0 : index
    %c1_509 = arith.constant 1 : index
    %2262 = vector.load %arg11[%c3_507, %c0_508, %c1_509] : memref<4x18x18xf32, #tpu.memory_space<vmem>>, vector<1x16x16xf32>
    %2263 = vector.shape_cast %2262 : vector<1x16x16xf32> to vector<16x16xf32>
    %c28_510 = arith.constant 28 : index
    %2264 = memref.load %arg7[%c28_510] : memref<144xf32, #tpu.memory_space<smem>>
    %2265 = vector.broadcast %2264 : f32 to vector<16x16xf32>
    %2266 = arith.mulf %2265, %2263 : vector<16x16xf32>
    %2267 = arith.addf %2249, %2266 : vector<16x16xf32>
    %c64_511 = arith.constant 64 : index
    %2268 = memref.load %arg7[%c64_511] : memref<144xf32, #tpu.memory_space<smem>>
    %2269 = vector.broadcast %2268 : f32 to vector<16x16xf32>
    %2270 = arith.mulf %2269, %2263 : vector<16x16xf32>
    %2271 = arith.addf %2253, %2270 : vector<16x16xf32>
    %c100_512 = arith.constant 100 : index
    %2272 = memref.load %arg7[%c100_512] : memref<144xf32, #tpu.memory_space<smem>>
    %2273 = vector.broadcast %2272 : f32 to vector<16x16xf32>
    %2274 = arith.mulf %2273, %2263 : vector<16x16xf32>
    %2275 = arith.addf %2257, %2274 : vector<16x16xf32>
    %c136_513 = arith.constant 136 : index
    %2276 = memref.load %arg7[%c136_513] : memref<144xf32, #tpu.memory_space<smem>>
    %2277 = vector.broadcast %2276 : f32 to vector<16x16xf32>
    %2278 = arith.mulf %2277, %2263 : vector<16x16xf32>
    %2279 = arith.addf %2261, %2278 : vector<16x16xf32>
    %c3_514 = arith.constant 3 : index
    %c0_515 = arith.constant 0 : index
    %c2_516 = arith.constant 2 : index
    %2280 = vector.load %arg11[%c3_514, %c0_515, %c2_516] : memref<4x18x18xf32, #tpu.memory_space<vmem>>, vector<1x16x16xf32>
    %2281 = vector.shape_cast %2280 : vector<1x16x16xf32> to vector<16x16xf32>
    %c29_517 = arith.constant 29 : index
    %2282 = memref.load %arg7[%c29_517] : memref<144xf32, #tpu.memory_space<smem>>
    %2283 = vector.broadcast %2282 : f32 to vector<16x16xf32>
    %2284 = arith.mulf %2283, %2281 : vector<16x16xf32>
    %2285 = arith.addf %2267, %2284 : vector<16x16xf32>
    %c65_518 = arith.constant 65 : index
    %2286 = memref.load %arg7[%c65_518] : memref<144xf32, #tpu.memory_space<smem>>
    %2287 = vector.broadcast %2286 : f32 to vector<16x16xf32>
    %2288 = arith.mulf %2287, %2281 : vector<16x16xf32>
    %2289 = arith.addf %2271, %2288 : vector<16x16xf32>
    %c101_519 = arith.constant 101 : index
    %2290 = memref.load %arg7[%c101_519] : memref<144xf32, #tpu.memory_space<smem>>
    %2291 = vector.broadcast %2290 : f32 to vector<16x16xf32>
    %2292 = arith.mulf %2291, %2281 : vector<16x16xf32>
    %2293 = arith.addf %2275, %2292 : vector<16x16xf32>
    %c137_520 = arith.constant 137 : index
    %2294 = memref.load %arg7[%c137_520] : memref<144xf32, #tpu.memory_space<smem>>
    %2295 = vector.broadcast %2294 : f32 to vector<16x16xf32>
    %2296 = arith.mulf %2295, %2281 : vector<16x16xf32>
    %2297 = arith.addf %2279, %2296 : vector<16x16xf32>
    %c3_521 = arith.constant 3 : index
    %c1_522 = arith.constant 1 : index
    %c0_523 = arith.constant 0 : index
    %2298 = vector.load %arg11[%c3_521, %c1_522, %c0_523] : memref<4x18x18xf32, #tpu.memory_space<vmem>>, vector<1x16x16xf32>
    %2299 = vector.shape_cast %2298 : vector<1x16x16xf32> to vector<16x16xf32>
    %c30_524 = arith.constant 30 : index
    %2300 = memref.load %arg7[%c30_524] : memref<144xf32, #tpu.memory_space<smem>>
    %2301 = vector.broadcast %2300 : f32 to vector<16x16xf32>
    %2302 = arith.mulf %2301, %2299 : vector<16x16xf32>
    %2303 = arith.addf %2285, %2302 : vector<16x16xf32>
    %c66_525 = arith.constant 66 : index
    %2304 = memref.load %arg7[%c66_525] : memref<144xf32, #tpu.memory_space<smem>>
    %2305 = vector.broadcast %2304 : f32 to vector<16x16xf32>
    %2306 = arith.mulf %2305, %2299 : vector<16x16xf32>
    %2307 = arith.addf %2289, %2306 : vector<16x16xf32>
    %c102_526 = arith.constant 102 : index
    %2308 = memref.load %arg7[%c102_526] : memref<144xf32, #tpu.memory_space<smem>>
    %2309 = vector.broadcast %2308 : f32 to vector<16x16xf32>
    %2310 = arith.mulf %2309, %2299 : vector<16x16xf32>
    %2311 = arith.addf %2293, %2310 : vector<16x16xf32>
    %c138_527 = arith.constant 138 : index
    %2312 = memref.load %arg7[%c138_527] : memref<144xf32, #tpu.memory_space<smem>>
    %2313 = vector.broadcast %2312 : f32 to vector<16x16xf32>
    %2314 = arith.mulf %2313, %2299 : vector<16x16xf32>
    %2315 = arith.addf %2297, %2314 : vector<16x16xf32>
    %c3_528 = arith.constant 3 : index
    %c1_529 = arith.constant 1 : index
    %c1_530 = arith.constant 1 : index
    %2316 = vector.load %arg11[%c3_528, %c1_529, %c1_530] : memref<4x18x18xf32, #tpu.memory_space<vmem>>, vector<1x16x16xf32>
    %2317 = vector.shape_cast %2316 : vector<1x16x16xf32> to vector<16x16xf32>
    %c31_531 = arith.constant 31 : index
    %2318 = memref.load %arg7[%c31_531] : memref<144xf32, #tpu.memory_space<smem>>
    %2319 = vector.broadcast %2318 : f32 to vector<16x16xf32>
    %2320 = arith.mulf %2319, %2317 : vector<16x16xf32>
    %2321 = arith.addf %2303, %2320 : vector<16x16xf32>
    %c67_532 = arith.constant 67 : index
    %2322 = memref.load %arg7[%c67_532] : memref<144xf32, #tpu.memory_space<smem>>
    %2323 = vector.broadcast %2322 : f32 to vector<16x16xf32>
    %2324 = arith.mulf %2323, %2317 : vector<16x16xf32>
    %2325 = arith.addf %2307, %2324 : vector<16x16xf32>
    %c103_533 = arith.constant 103 : index
    %2326 = memref.load %arg7[%c103_533] : memref<144xf32, #tpu.memory_space<smem>>
    %2327 = vector.broadcast %2326 : f32 to vector<16x16xf32>
    %2328 = arith.mulf %2327, %2317 : vector<16x16xf32>
    %2329 = arith.addf %2311, %2328 : vector<16x16xf32>
    %c139_534 = arith.constant 139 : index
    %2330 = memref.load %arg7[%c139_534] : memref<144xf32, #tpu.memory_space<smem>>
    %2331 = vector.broadcast %2330 : f32 to vector<16x16xf32>
    %2332 = arith.mulf %2331, %2317 : vector<16x16xf32>
    %2333 = arith.addf %2315, %2332 : vector<16x16xf32>
    %c3_535 = arith.constant 3 : index
    %c1_536 = arith.constant 1 : index
    %c2_537 = arith.constant 2 : index
    %2334 = vector.load %arg11[%c3_535, %c1_536, %c2_537] : memref<4x18x18xf32, #tpu.memory_space<vmem>>, vector<1x16x16xf32>
    %2335 = vector.shape_cast %2334 : vector<1x16x16xf32> to vector<16x16xf32>
    %c32_538 = arith.constant 32 : index
    %2336 = memref.load %arg7[%c32_538] : memref<144xf32, #tpu.memory_space<smem>>
    %2337 = vector.broadcast %2336 : f32 to vector<16x16xf32>
    %2338 = arith.mulf %2337, %2335 : vector<16x16xf32>
    %2339 = arith.addf %2321, %2338 : vector<16x16xf32>
    %c68_539 = arith.constant 68 : index
    %2340 = memref.load %arg7[%c68_539] : memref<144xf32, #tpu.memory_space<smem>>
    %2341 = vector.broadcast %2340 : f32 to vector<16x16xf32>
    %2342 = arith.mulf %2341, %2335 : vector<16x16xf32>
    %2343 = arith.addf %2325, %2342 : vector<16x16xf32>
    %c104_540 = arith.constant 104 : index
    %2344 = memref.load %arg7[%c104_540] : memref<144xf32, #tpu.memory_space<smem>>
    %2345 = vector.broadcast %2344 : f32 to vector<16x16xf32>
    %2346 = arith.mulf %2345, %2335 : vector<16x16xf32>
    %2347 = arith.addf %2329, %2346 : vector<16x16xf32>
    %c140_541 = arith.constant 140 : index
    %2348 = memref.load %arg7[%c140_541] : memref<144xf32, #tpu.memory_space<smem>>
    %2349 = vector.broadcast %2348 : f32 to vector<16x16xf32>
    %2350 = arith.mulf %2349, %2335 : vector<16x16xf32>
    %2351 = arith.addf %2333, %2350 : vector<16x16xf32>
    %c3_542 = arith.constant 3 : index
    %c2_543 = arith.constant 2 : index
    %c0_544 = arith.constant 0 : index
    %2352 = vector.load %arg11[%c3_542, %c2_543, %c0_544] : memref<4x18x18xf32, #tpu.memory_space<vmem>>, vector<1x16x16xf32>
    %2353 = vector.shape_cast %2352 : vector<1x16x16xf32> to vector<16x16xf32>
    %c33_545 = arith.constant 33 : index
    %2354 = memref.load %arg7[%c33_545] : memref<144xf32, #tpu.memory_space<smem>>
    %2355 = vector.broadcast %2354 : f32 to vector<16x16xf32>
    %2356 = arith.mulf %2355, %2353 : vector<16x16xf32>
    %2357 = arith.addf %2339, %2356 : vector<16x16xf32>
    %c69_546 = arith.constant 69 : index
    %2358 = memref.load %arg7[%c69_546] : memref<144xf32, #tpu.memory_space<smem>>
    %2359 = vector.broadcast %2358 : f32 to vector<16x16xf32>
    %2360 = arith.mulf %2359, %2353 : vector<16x16xf32>
    %2361 = arith.addf %2343, %2360 : vector<16x16xf32>
    %c105_547 = arith.constant 105 : index
    %2362 = memref.load %arg7[%c105_547] : memref<144xf32, #tpu.memory_space<smem>>
    %2363 = vector.broadcast %2362 : f32 to vector<16x16xf32>
    %2364 = arith.mulf %2363, %2353 : vector<16x16xf32>
    %2365 = arith.addf %2347, %2364 : vector<16x16xf32>
    %c141_548 = arith.constant 141 : index
    %2366 = memref.load %arg7[%c141_548] : memref<144xf32, #tpu.memory_space<smem>>
    %2367 = vector.broadcast %2366 : f32 to vector<16x16xf32>
    %2368 = arith.mulf %2367, %2353 : vector<16x16xf32>
    %2369 = arith.addf %2351, %2368 : vector<16x16xf32>
    %c3_549 = arith.constant 3 : index
    %c2_550 = arith.constant 2 : index
    %c1_551 = arith.constant 1 : index
    %2370 = vector.load %arg11[%c3_549, %c2_550, %c1_551] : memref<4x18x18xf32, #tpu.memory_space<vmem>>, vector<1x16x16xf32>
    %2371 = vector.shape_cast %2370 : vector<1x16x16xf32> to vector<16x16xf32>
    %c34_552 = arith.constant 34 : index
    %2372 = memref.load %arg7[%c34_552] : memref<144xf32, #tpu.memory_space<smem>>
    %2373 = vector.broadcast %2372 : f32 to vector<16x16xf32>
    %2374 = arith.mulf %2373, %2371 : vector<16x16xf32>
    %2375 = arith.addf %2357, %2374 : vector<16x16xf32>
    %c70_553 = arith.constant 70 : index
    %2376 = memref.load %arg7[%c70_553] : memref<144xf32, #tpu.memory_space<smem>>
    %2377 = vector.broadcast %2376 : f32 to vector<16x16xf32>
    %2378 = arith.mulf %2377, %2371 : vector<16x16xf32>
    %2379 = arith.addf %2361, %2378 : vector<16x16xf32>
    %c106_554 = arith.constant 106 : index
    %2380 = memref.load %arg7[%c106_554] : memref<144xf32, #tpu.memory_space<smem>>
    %2381 = vector.broadcast %2380 : f32 to vector<16x16xf32>
    %2382 = arith.mulf %2381, %2371 : vector<16x16xf32>
    %2383 = arith.addf %2365, %2382 : vector<16x16xf32>
    %c142_555 = arith.constant 142 : index
    %2384 = memref.load %arg7[%c142_555] : memref<144xf32, #tpu.memory_space<smem>>
    %2385 = vector.broadcast %2384 : f32 to vector<16x16xf32>
    %2386 = arith.mulf %2385, %2371 : vector<16x16xf32>
    %2387 = arith.addf %2369, %2386 : vector<16x16xf32>
    %c3_556 = arith.constant 3 : index
    %c2_557 = arith.constant 2 : index
    %c2_558 = arith.constant 2 : index
    %2388 = vector.load %arg11[%c3_556, %c2_557, %c2_558] : memref<4x18x18xf32, #tpu.memory_space<vmem>>, vector<1x16x16xf32>
    %2389 = vector.shape_cast %2388 : vector<1x16x16xf32> to vector<16x16xf32>
    %c35_559 = arith.constant 35 : index
    %2390 = memref.load %arg7[%c35_559] : memref<144xf32, #tpu.memory_space<smem>>
    %2391 = vector.broadcast %2390 : f32 to vector<16x16xf32>
    %2392 = arith.mulf %2391, %2389 : vector<16x16xf32>
    %2393 = arith.addf %2375, %2392 : vector<16x16xf32>
    %c71_560 = arith.constant 71 : index
    %2394 = memref.load %arg7[%c71_560] : memref<144xf32, #tpu.memory_space<smem>>
    %2395 = vector.broadcast %2394 : f32 to vector<16x16xf32>
    %2396 = arith.mulf %2395, %2389 : vector<16x16xf32>
    %2397 = arith.addf %2379, %2396 : vector<16x16xf32>
    %c107_561 = arith.constant 107 : index
    %2398 = memref.load %arg7[%c107_561] : memref<144xf32, #tpu.memory_space<smem>>
    %2399 = vector.broadcast %2398 : f32 to vector<16x16xf32>
    %2400 = arith.mulf %2399, %2389 : vector<16x16xf32>
    %2401 = arith.addf %2383, %2400 : vector<16x16xf32>
    %c143_562 = arith.constant 143 : index
    %2402 = memref.load %arg7[%c143_562] : memref<144xf32, #tpu.memory_space<smem>>
    %2403 = vector.broadcast %2402 : f32 to vector<16x16xf32>
    %2404 = arith.mulf %2403, %2389 : vector<16x16xf32>
    %2405 = arith.addf %2387, %2404 : vector<16x16xf32>
    %c0_563 = arith.constant 0 : index
    %2406 = memref.load %arg8[%c0_563] : memref<4xf32, #tpu.memory_space<smem>>
    %2407 = vector.broadcast %2406 : f32 to vector<16x16xf32>
    %2408 = arith.addf %2393, %2407 : vector<16x16xf32>
    %cst_564 = arith.constant 0.000000e+00 : f32
    %2409 = vector.broadcast %cst_564 : f32 to vector<16x16xf32>
    %2410 = arith.maximumf %2408, %2409 : vector<16x16xf32>
    %c0_565 = arith.constant 0 : index
    %c0_566 = arith.constant 0 : index
    %c0_567 = arith.constant 0 : index
    %c0_568 = arith.constant 0 : index
    %2411 = vector.load %arg9[%c0_565, %c0_566, %c0_567, %c0_568] : memref<1x4x16x16xf32, #tpu.memory_space<vmem>>, vector<1x1x16x16xf32>
    %2412 = vector.shape_cast %2411 : vector<1x1x16x16xf32> to vector<16x16xf32>
    %2413 = vector.shape_cast %2410 : vector<16x16xf32> to vector<1x1x16x16xf32>
    tpu.vector_store %arg9[%c0_565, %c0_566, %c0_567, %c0_568], %2413 {strides = array<i32>} : memref<1x4x16x16xf32, #tpu.memory_space<vmem>>, vector<1x1x16x16xf32>,
    %c1_569 = arith.constant 1 : index
    %2414 = memref.load %arg8[%c1_569] : memref<4xf32, #tpu.memory_space<smem>>
    %2415 = vector.broadcast %2414 : f32 to vector<16x16xf32>
    %2416 = arith.addf %2397, %2415 : vector<16x16xf32>
    %cst_570 = arith.constant 0.000000e+00 : f32
    %2417 = vector.broadcast %cst_570 : f32 to vector<16x16xf32>
    %2418 = arith.maximumf %2416, %2417 : vector<16x16xf32>
    %c0_571 = arith.constant 0 : index
    %c1_572 = arith.constant 1 : index
    %c0_573 = arith.constant 0 : index
    %c0_574 = arith.constant 0 : index
    %2419 = vector.load %arg9[%c0_571, %c1_572, %c0_573, %c0_574] : memref<1x4x16x16xf32, #tpu.memory_space<vmem>>, vector<1x1x16x16xf32>
    %2420 = vector.shape_cast %2419 : vector<1x1x16x16xf32> to vector<16x16xf32>
    %2421 = vector.shape_cast %2418 : vector<16x16xf32> to vector<1x1x16x16xf32>
    tpu.vector_store %arg9[%c0_571, %c1_572, %c0_573, %c0_574], %2421 {strides = array<i32>} : memref<1x4x16x16xf32, #tpu.memory_space<vmem>>, vector<1x1x16x16xf32>,
    %c2_575 = arith.constant 2 : index
    %2422 = memref.load %arg8[%c2_575] : memref<4xf32, #tpu.memory_space<smem>>
    %2423 = vector.broadcast %2422 : f32 to vector<16x16xf32>
    %2424 = arith.addf %2401, %2423 : vector<16x16xf32>
    %cst_576 = arith.constant 0.000000e+00 : f32
    %2425 = vector.broadcast %cst_576 : f32 to vector<16x16xf32>
    %2426 = arith.maximumf %2424, %2425 : vector<16x16xf32>
    %c0_577 = arith.constant 0 : index
    %c2_578 = arith.constant 2 : index
    %c0_579 = arith.constant 0 : index
    %c0_580 = arith.constant 0 : index
    %2427 = vector.load %arg9[%c0_577, %c2_578, %c0_579, %c0_580] : memref<1x4x16x16xf32, #tpu.memory_space<vmem>>, vector<1x1x16x16xf32>
    %2428 = vector.shape_cast %2427 : vector<1x1x16x16xf32> to vector<16x16xf32>
    %2429 = vector.shape_cast %2426 : vector<16x16xf32> to vector<1x1x16x16xf32>
    tpu.vector_store %arg9[%c0_577, %c2_578, %c0_579, %c0_580], %2429 {strides = array<i32>} : memref<1x4x16x16xf32, #tpu.memory_space<vmem>>, vector<1x1x16x16xf32>,
    %c3_581 = arith.constant 3 : index
    %2430 = memref.load %arg8[%c3_581] : memref<4xf32, #tpu.memory_space<smem>>
    %2431 = vector.broadcast %2430 : f32 to vector<16x16xf32>
    %2432 = arith.addf %2405, %2431 : vector<16x16xf32>
    %cst_582 = arith.constant 0.000000e+00 : f32
    %2433 = vector.broadcast %cst_582 : f32 to vector<16x16xf32>
    %2434 = arith.maximumf %2432, %2433 : vector<16x16xf32>
    %c0_583 = arith.constant 0 : index
    %c3_584 = arith.constant 3 : index
    %c0_585 = arith.constant 0 : index
    %c0_586 = arith.constant 0 : index
    %2435 = vector.load %arg9[%c0_583, %c3_584, %c0_585, %c0_586] : memref<1x4x16x16xf32, #tpu.memory_space<vmem>>, vector<1x1x16x16xf32>
    %2436 = vector.shape_cast %2435 : vector<1x1x16x16xf32> to vector<16x16xf32>
    %2437 = vector.shape_cast %2434 : vector<16x16xf32> to vector<1x1x16x16xf32>
    tpu.vector_store %arg9[%c0_583, %c3_584, %c0_585, %c0_586], %2437 {strides = array<i32>} : memref<1x4x16x16xf32, #tpu.memory_space<vmem>>, vector<1x1x16x16xf32>,
    return
  }
  func.func @transform_0(%arg0: i32) -> (i32, i32, i32, i32) {
    %c0_i32 = arith.constant 0 : i32
    %c0_i32_0 = arith.constant 0 : i32
    %c0_i32_1 = arith.constant 0 : i32
    %c0_i32_2 = arith.constant 0 : i32
    return %arg0, %c0_i32, %c0_i32_0, %c0_i32_1 : i32, i32, i32, i32
  }
  func.func @transform_1(%arg0: i32) -> (i32, i32, i32, i32) {
    %c0_i32 = arith.constant 0 : i32
    %c0_i32_0 = arith.constant 0 : i32
    %c0_i32_1 = arith.constant 0 : i32
    %c0_i32_2 = arith.constant 0 : i32
    return %arg0, %c0_i32, %c0_i32_0, %c0_i32_1 : i32, i32, i32, i32
  }
  func.func @transform_2(%arg0: i32) -> (i32, i32) {
    %c0_i32 = arith.constant 0 : i32
    %c0_i32_0 = arith.constant 0 : i32
    %c0_i32_1 = arith.constant 0 : i32
    return %c0_i32, %c0_i32_0 : i32, i32
  }
  func.func @transform_3(%arg0: i32) -> (i32, i32) {
    %c0_i32 = arith.constant 0 : i32
    %c0_i32_0 = arith.constant 0 : i32
    %c0_i32_1 = arith.constant 0 : i32
    return %c0_i32, %c0_i32_0 : i32, i32
  }
  func.func @transform_4(%arg0: i32) -> i32 {
    %c0_i32 = arith.constant 0 : i32
    %c0_i32_0 = arith.constant 0 : i32
    return %c0_i32 : i32
  }
  func.func @transform_5(%arg0: i32) -> i32 {
    %c0_i32 = arith.constant 0 : i32
    %c0_i32_0 = arith.constant 0 : i32
    return %c0_i32 : i32
  }
  func.func @transform_6(%arg0: i32) -> i32 {
    %c0_i32 = arith.constant 0 : i32
    %c0_i32_0 = arith.constant 0 : i32
    return %c0_i32 : i32
  }
  func.func @transform_7(%arg0: i32) -> i32 {
    %c0_i32 = arith.constant 0 : i32
    %c0_i32_0 = arith.constant 0 : i32
    return %c0_i32 : i32
  }
  func.func @transform_8(%arg0: i32) -> (i32, i32, i32, i32) {
    %c0_i32 = arith.constant 0 : i32
    %c0_i32_0 = arith.constant 0 : i32
    %c0_i32_1 = arith.constant 0 : i32
    %c0_i32_2 = arith.constant 0 : i32
    return %arg0, %c0_i32, %c0_i32_0, %c0_i32_1 : i32, i32, i32, i32
  }
}

</mosaic_0001>

<llo_original>
// kernel: up_forward.1
$region0: #{up_forward.1}
  #allocation0 [shape = 'u32[]', space=smem, size = 0x4, offset = 0x4, fixed_abs, tag = 'smem constant byte address 0x4 - core index']
  #allocation1 [shape = 'u32[144,128]{1,0:T(1,128)}', space=vmem, size = 0x12000, scoped, tag = 'internal scratch']
  #allocation2 [shape = 'f32[8,18,18]{2,1,0:T(8,128)}', space=vmem, size = 0x18000, scoped, tag = 'scratch operand']
  #allocation3 [shape = 'f32[4,18,18]{2,1,0:T(8,128)}', space=vmem, size = 0xc000, scoped, tag = 'scratch operand']
  %s0 = inlined_call_operand.vmem [shape: f32[2,4,8,8], index: 0, kind: input, shape index: {}]
  %s1 = inlined_call_operand.vmem [shape: f32[2,4,16,16], index: 1, kind: input, shape index: {}]
  %s2 = inlined_call_operand.vmem [shape: f32[16,8], index: 2, kind: input, shape index: {}]
  %s3 = inlined_call_operand.vmem [shape: f32[8,16], index: 3, kind: input, shape index: {}]
  %s4 = inlined_call_operand.vmem [shape: f32[288], index: 4, kind: input, shape index: {}]
  %s5 = inlined_call_operand.vmem [shape: f32[4], index: 5, kind: input, shape index: {}]
  %s6 = inlined_call_operand.vmem [shape: f32[144], index: 6, kind: input, shape index: {}]
  %s7 = inlined_call_operand.vmem [shape: f32[4], index: 7, kind: input, shape index: {}]
  %s8 = inlined_call_operand.hbm [shape: f32[2,4,16,16], index: 8, kind: output, shape index: {}]
  %s9 = sld [smem:[#allocation0]]
  $region81: #{up_forward.1} parent=0
    _
  %s11 = ssub.s32 1, %s9
  %s12 = scalar_select 0, %s11, %s9
  $region1: #{up_forward.1} parent=0
    #allocation4 [shape = 'u8[1536]{0}', space=smem, size = 0x600, scoped, tag = 'input window, operand 4, single buffered']
    #allocation5 [shape = 's32[2]{0}', space=sflag, size = 0x8, scoped, tag = 'scoped memory for up_forward.1']
    #allocation6 [shape = 's32[2]{0}', space=sflag, size = 0x8, scoped, tag = 'scoped memory for up_forward.1']
    #allocation7 [shape = 'u8[512]{0}', space=smem, size = 0x200, scoped, tag = 'input window, operand 5, single buffered']
    #allocation8 [shape = 's32[1]{0}', space=sflag, size = 0x4, scoped, tag = 'scoped memory for up_forward.1']
    #allocation9 [shape = 'u8[1024]{0}', space=smem, size = 0x400, scoped, tag = 'input window, operand 6, single buffered']
    #allocation10 [shape = 'u8[512]{0}', space=smem, size = 0x200, scoped, tag = 'input window, operand 7, single buffered']
    #allocation11 [shape = 's32[1]{0}', space=sflag, size = 0x4, scoped, tag = 'scoped memory for up_forward.1']
    #allocation12 [shape = 'u8[65536]{0}', space=vmem, size = 0x10000, scoped, tag = 'output window, operand 0']
    %13 = vsyncpa [#allocation6], 0
    %14 = vsyncpa [#allocation8], 0
    %15 = vsyncpa [#allocation11], 0
    %16 = vsyncpa [#allocation5], 0
    %s17 = scalar_lea.sflag [#allocation5], 1
    %18 = vsyncpa %s17, 0
    loop: start=0, step=1, limit=4
    $region2: #{up_forward.1} parent=1 // loop_pre_header
      _
    $region3: #{up_forward.1} parent=1 // loop_header
      %s20 = sphi 0, %s24
      %p21 = scmp.ge.s32.totalorder %s20, 4
      %s30 = sphi 0, %s32
      %s33 = sphi 0, %s30
      %s34 = sphi 0, %s33
      %s50 = sphi 0, %s34
      %s56 = sphi 0, %s58
      %s59 = sphi 0, %s56
      %s60 = sphi 0, %s59
      %s76 = sphi 0, %s60
      %s80 = sphi 0, %s80
      %s82 = sphi 0, %s80
      %s83 = sphi 0, %s82
      %s97 = sphi 0, %s83
      %s101 = sphi 0, %s101
      %s103 = sphi 0, %s101
      %s104 = sphi 0, %s103
      %s118 = sphi 0, %s104
      %s122 = sphi 0, %s122
      %s124 = sphi 0, %s122
      %s125 = sphi 0, %s124
      %s139 = sphi 0, %s125
      %s143 = sphi 0, %s143
      %s145 = sphi 0, %s143
      %s146 = sphi 0, %s145
      %s160 = sphi 0, %s146
      %s164 = sphi 0, %s164
      %s166 = sphi 0, %s164
      %s167 = sphi 0, %s166
      %s181 = sphi 0, %s167
      %s185 = sphi 0, %s185
      %s187 = sphi 0, %s185
      %s188 = sphi 0, %s187
      %s202 = sphi 0, %s188
      %s208 = sphi 0, %s210
      %s211 = sphi 0, %s208
      %s212 = sphi 0, %s211
      %s228 = sphi 0, %s212
    $region4: #{up_forward.1} parent=1 // loop_header_branch
      %23 = sbr.rel (%p21) target = $region8
    $region5: #{up_forward.1} parent=1 // loop_body
      %s25 = ssub.s32 %s20, 1
      %s26 = ssub.s32 %s20, 2
      %s27 = sadd.s32 %s20, 1
      %s28 = ssub.s32 %s20, %s27
      %p29 = scmp.eq.s32.totalorder %s28, 0
      %s31 = sadd.s32 %s30, 1
      %s32 = scalar_select %p29, %s30, %s31
      %p35 = pneg %p29
      %p36 = scmp.eq.s32.totalorder %s20, 1
      %p37 = por %p35, %p36
      %p38 = scmp.ne.s32.totalorder %s30, %s33
      %p39 = scmp.eq.s32.totalorder %s20, 0
      %p40 = por %p38, %p39
      %p41 = scmp.ne.s32.totalorder %s30, %s33
      %p42 = scmp.eq.s32.totalorder %s25, 1
      %p43 = por %p41, %p42
      %p44 = scmp.ne.s32.totalorder %s33, %s34
      %p45 = scmp.eq.s32.totalorder %s25, 0
      %p46 = por %p44, %p45
      %p47 = scmp.ne.s32.totalorder %s33, %s34
      %p48 = scmp.eq.s32.totalorder %s26, 1
      %p49 = por %p47, %p48
      %p51 = scmp.ne.s32.totalorder %s34, %s50
      %p52 = scmp.eq.s32.totalorder %s26, 0
      %p53 = por %p51, %p52
      %s54 = ssub.s32 %s20, %s27
      %p55 = scmp.eq.s32.totalorder %s54, 0
      %s57 = sadd.s32 %s56, 1
      %s58 = scalar_select %p55, %s56, %s57
      %p61 = pneg %p55
      %p62 = scmp.eq.s32.totalorder %s20, 1
      %p63 = por %p61, %p62
      %p64 = scmp.ne.s32.totalorder %s56, %s59
      %p65 = scmp.eq.s32.totalorder %s20, 0
      %p66 = por %p64, %p65
      %p67 = scmp.ne.s32.totalorder %s56, %s59
      %p68 = scmp.eq.s32.totalorder %s25, 1
      %p69 = por %p67, %p68
      %p70 = scmp.ne.s32.totalorder %s59, %s60
      %p71 = scmp.eq.s32.totalorder %s25, 0
      %p72 = por %p70, %p71
      %p73 = scmp.ne.s32.totalorder %s59, %s60
      %p74 = scmp.eq.s32.totalorder %s26, 1
      %p75 = por %p73, %p74
      %p77 = scmp.ne.s32.totalorder %s60, %s76
      %p78 = scmp.eq.s32.totalorder %s26, 0
      %p79 = por %p77, %p78
      %s81 = sadd.s32 %s80, 1
      %p84 = scmp.eq.s32.totalorder %s20, 1
      %p85 = scmp.ne.s32.totalorder %s80, %s82
      %p86 = scmp.eq.s32.totalorder %s20, 0
      %p87 = por %p85, %p86
      %p88 = scmp.ne.s32.totalorder %s80, %s82
      %p89 = scmp.eq.s32.totalorder %s25, 1
      %p90 = por %p88, %p89
      %p91 = scmp.ne.s32.totalorder %s82, %s83
      %p92 = scmp.eq.s32.totalorder %s25, 0
      %p93 = por %p91, %p92
      %p94 = scmp.ne.s32.totalorder %s82, %s83
      %p95 = scmp.eq.s32.totalorder %s26, 1
      %p96 = por %p94, %p95
      %p98 = scmp.ne.s32.totalorder %s83, %s97
      %p99 = scmp.eq.s32.totalorder %s26, 0
      %p100 = por %p98, %p99
      %s102 = sadd.s32 %s101, 1
      %p105 = scmp.eq.s32.totalorder %s20, 1
      %p106 = scmp.ne.s32.totalorder %s101, %s103
      %p107 = scmp.eq.s32.totalorder %s20, 0
      %p108 = por %p106, %p107
      %p109 = scmp.ne.s32.totalorder %s101, %s103
      %p110 = scmp.eq.s32.totalorder %s25, 1
      %p111 = por %p109, %p110
      %p112 = scmp.ne.s32.totalorder %s103, %s104
      %p113 = scmp.eq.s32.totalorder %s25, 0
      %p114 = por %p112, %p113
      %p115 = scmp.ne.s32.totalorder %s103, %s104
      %p116 = scmp.eq.s32.totalorder %s26, 1
      %p117 = por %p115, %p116
      %p119 = scmp.ne.s32.totalorder %s104, %s118
      %p120 = scmp.eq.s32.totalorder %s26, 0
      %p121 = por %p119, %p120
      %s123 = sadd.s32 %s122, 1
      %p126 = scmp.eq.s32.totalorder %s20, 1
      %p127 = scmp.ne.s32.totalorder %s122, %s124
      %p128 = scmp.eq.s32.totalorder %s20, 0
      %p129 = por %p127, %p128
      %p130 = scmp.ne.s32.totalorder %s122, %s124
      %p131 = scmp.eq.s32.totalorder %s25, 1
      %p132 = por %p130, %p131
      %p133 = scmp.ne.s32.totalorder %s124, %s125
      %p134 = scmp.eq.s32.totalorder %s25, 0
      %p135 = por %p133, %p134
      %p136 = scmp.ne.s32.totalorder %s124, %s125
      %p137 = scmp.eq.s32.totalorder %s26, 1
      %p138 = por %p136, %p137
      %p140 = scmp.ne.s32.totalorder %s125, %s139
      %p141 = scmp.eq.s32.totalorder %s26, 0
      %p142 = por %p140, %p141
      %s144 = sadd.s32 %s143, 1
      %p147 = scmp.eq.s32.totalorder %s20, 1
      %p148 = scmp.ne.s32.totalorder %s143, %s145
      %p149 = scmp.eq.s32.totalorder %s20, 0
      %p150 = por %p148, %p149
      %p151 = scmp.ne.s32.totalorder %s143, %s145
      %p152 = scmp.eq.s32.totalorder %s25, 1
      %p153 = por %p151, %p152
      %p154 = scmp.ne.s32.totalorder %s145, %s146
      %p155 = scmp.eq.s32.totalorder %s25, 0
      %p156 = por %p154, %p155
      %p157 = scmp.ne.s32.totalorder %s145, %s146
      %p158 = scmp.eq.s32.totalorder %s26, 1
      %p159 = por %p157, %p158
      %p161 = scmp.ne.s32.totalorder %s146, %s160
      %p162 = scmp.eq.s32.totalorder %s26, 0
      %p163 = por %p161, %p162
      %s165 = sadd.s32 %s164, 1
      %p168 = scmp.eq.s32.totalorder %s20, 1
      %p169 = scmp.ne.s32.totalorder %s164, %s166
      %p170 = scmp.eq.s32.totalorder %s20, 0
      %p171 = por %p169, %p170
      %p172 = scmp.ne.s32.totalorder %s164, %s166
      %p173 = scmp.eq.s32.totalorder %s25, 1
      %p174 = por %p172, %p173
      %p175 = scmp.ne.s32.totalorder %s166, %s167
      %p176 = scmp.eq.s32.totalorder %s25, 0
      %p177 = por %p175, %p176
      %p178 = scmp.ne.s32.totalorder %s166, %s167
      %p179 = scmp.eq.s32.totalorder %s26, 1
      %p180 = por %p178, %p179
      %p182 = scmp.ne.s32.totalorder %s167, %s181
      %p183 = scmp.eq.s32.totalorder %s26, 0
      %p184 = por %p182, %p183
      %s186 = sadd.s32 %s185, 1
      %p189 = scmp.eq.s32.totalorder %s20, 1
      %p190 = scmp.ne.s32.totalorder %s185, %s187
      %p191 = scmp.eq.s32.totalorder %s20, 0
      %p192 = por %p190, %p191
      %p193 = scmp.ne.s32.totalorder %s185, %s187
      %p194 = scmp.eq.s32.totalorder %s25, 1
      %p195 = por %p193, %p194
      %p196 = scmp.ne.s32.totalorder %s187, %s188
      %p197 = scmp.eq.s32.totalorder %s25, 0
      %p198 = por %p196, %p197
      %p199 = scmp.ne.s32.totalorder %s187, %s188
      %p200 = scmp.eq.s32.totalorder %s26, 1
      %p201 = por %p199, %p200
      %p203 = scmp.ne.s32.totalorder %s188, %s202
      %p204 = scmp.eq.s32.totalorder %s26, 0
      %p205 = por %p203, %p204
      %s206 = ssub.s32 %s20, %s27
      %p207 = scmp.eq.s32.totalorder %s206, 0
      %s209 = sadd.s32 %s208, 1
      %s210 = scalar_select %p207, %s208, %s209
      %p213 = pneg %p207
      %p214 = scmp.eq.s32.totalorder %s20, 1
      %p215 = por %p213, %p214
      %p216 = scmp.ne.s32.totalorder %s208, %s211
      %p217 = scmp.eq.s32.totalorder %s20, 0
      %p218 = por %p216, %p217
      %p219 = scmp.ne.s32.totalorder %s208, %s211
      %p220 = scmp.eq.s32.totalorder %s25, 1
      %p221 = por %p219, %p220
      %p222 = scmp.ne.s32.totalorder %s211, %s212
      %p223 = scmp.eq.s32.totalorder %s25, 0
      %p224 = por %p222, %p223
      %p225 = scmp.ne.s32.totalorder %s211, %s212
      %p226 = scmp.eq.s32.totalorder %s26, 1
      %p227 = por %p225, %p226
      %p229 = scmp.ne.s32.totalorder %s212, %s228
      %p230 = scmp.eq.s32.totalorder %s26, 0
      %p231 = por %p229, %p230
      %p232 = scmp.le.s32.totalorder 1, %s20
      %p233 = scmp.lt.s32.totalorder %s20, 3
      %p234 = pnand %p232, %p233
      %p235 = pneg %p234
      // Predicated region
      $region9: #{up_forward.1} parent=5 // pred_check
        _
      $region10: #{up_forward.1} parent=5 // pred_check_branch
        %237 = sbr.rel (%p234) target = $region12
      $region11: #{up_forward.1} parent=5 // pred_region
        %s238 = ssub.s32 %s20, 1
        // Predicated region
        $region13: #{up_forward.1} parent=11 // pred_check
          %p239 = pneg %p93
        $region14: #{up_forward.1} parent=11 // pred_check_branch
          %241 = sbr.rel (%p239) target = $region16
        $region15: #{up_forward.1} parent=11 // pred_region
          _
        $region16: #{up_forward.1} parent=11 // pred_fallthru
          _
        // Predicated region
        $region17: #{up_forward.1} parent=11 // pred_check
          %p242 = pneg %p114
        $region18: #{up_forward.1} parent=11 // pred_check_branch
          %244 = sbr.rel (%p242) target = $region20
        $region19: #{up_forward.1} parent=11 // pred_region
          _
        $region20: #{up_forward.1} parent=11 // pred_fallthru
          _
        // Predicated region
        $region21: #{up_forward.1} parent=11 // pred_check
          %p245 = pneg %p135
        $region22: #{up_forward.1} parent=11 // pred_check_branch
          %247 = sbr.rel (%p245) target = $region24
        $region23: #{up_forward.1} parent=11 // pred_region
          %s249 = ssub.s32 48, 48
          %250 = vsyncadd [#allocation6], %s249
          %s252 = sshll.u32 %s4, 4
          %s253 = int_to_ptr.vmem [resolvable:$true] %s252
          %255 = dma.vmem_to_smem %s253, 48, [#allocation4], [#allocation6]
        $region24: #{up_forward.1} parent=11 // pred_fallthru
          _
        // Predicated region
        $region25: #{up_forward.1} parent=11 // pred_check
          %p256 = pneg %p156
        $region26: #{up_forward.1} parent=11 // pred_check_branch
          %258 = sbr.rel (%p256) target = $region28
        $region27: #{up_forward.1} parent=11 // pred_region
          %s260 = ssub.s32 16, 16
          %261 = vsyncadd [#allocation8], %s260
          %s263 = sshll.u32 %s5, 4
          %s264 = int_to_ptr.vmem [resolvable:$true] %s263
          %266 = dma.vmem_to_smem %s264, 16, [#allocation7], [#allocation8]
        $region28: #{up_forward.1} parent=11 // pred_fallthru
          _
        // Predicated region
        $region29: #{up_forward.1} parent=11 // pred_check
          %p267 = pneg %p177
        $region30: #{up_forward.1} parent=11 // pred_check_branch
          %269 = sbr.rel (%p267) target = $region32
        $region31: #{up_forward.1} parent=11 // pred_region
          %s271 = ssub.s32 32, 32
          %272 = vsyncadd [#allocation8], %s271
          %s274 = sshll.u32 %s6, 4
          %s275 = int_to_ptr.vmem [resolvable:$true] %s274
          %277 = dma.vmem_to_smem %s275, 32, [#allocation9], [#allocation8]
        $region32: #{up_forward.1} parent=11 // pred_fallthru
          _
        // Predicated region
        $region33: #{up_forward.1} parent=11 // pred_check
          %p278 = pneg %p198
        $region34: #{up_forward.1} parent=11 // pred_check_branch
          %280 = sbr.rel (%p278) target = $region36
        $region35: #{up_forward.1} parent=11 // pred_region
          %s282 = ssub.s32 16, 16
          %283 = vsyncadd [#allocation11], %s282
          %s285 = sshll.u32 %s7, 4
          %s286 = int_to_ptr.vmem [resolvable:$true] %s285
          %288 = dma.vmem_to_smem %s286, 16, [#allocation10], [#allocation11]
        $region36: #{up_forward.1} parent=11 // pred_fallthru
          _
      $region12: #{up_forward.1} parent=5 // pred_fallthru
        _
      %p289 = scmp.lt.s32.totalorder %s20, 2
      // Predicated region
      $region37: #{up_forward.1} parent=5 // pred_check
        %p290 = pneg %p289
      $region38: #{up_forward.1} parent=5 // pred_check_branch
        %292 = sbr.rel (%p290) target = $region40
      $region39: #{up_forward.1} parent=5 // pred_region
        // Predicated region
        $region41: #{up_forward.1} parent=39 // pred_check
          %p293 = pneg %p40
        $region42: #{up_forward.1} parent=39 // pred_check_branch
          %295 = sbr.rel (%p293) target = $region44
        $region43: #{up_forward.1} parent=39 // pred_region
          %p296 = scmp.lt.s32.totalorder %s20, 1
          %s297 = scalar_select %p296, %s20, 1
          %s298 = smul.addr %s297, 4
          %s299 = smul.addr %s298, 8
          %s300 = scalar_lea.vmem %s0, %s299
        $region44: #{up_forward.1} parent=39 // pred_fallthru
          _
        // Predicated region
        $region45: #{up_forward.1} parent=39 // pred_check
          %p301 = pneg %p66
        $region46: #{up_forward.1} parent=39 // pred_check_branch
          %303 = sbr.rel (%p301) target = $region48
        $region47: #{up_forward.1} parent=39 // pred_region
          %p304 = scmp.lt.s32.totalorder %s20, 1
          %s305 = scalar_select %p304, %s20, 1
          %s306 = smul.addr %s305, 8
          %s307 = smul.addr %s306, 8
          %s308 = scalar_lea.vmem %s1, %s307
        $region48: #{up_forward.1} parent=39 // pred_fallthru
          _
      $region40: #{up_forward.1} parent=5 // pred_fallthru
        _
      %p309 = scmp.le.s32.totalorder 1, %s20
      %p310 = scmp.lt.s32.totalorder %s20, 3
      %p311 = pnand %p309, %p310
      %p312 = pneg %p311
      // Predicated region
      $region49: #{up_forward.1} parent=5 // pred_check
        _
      $region50: #{up_forward.1} parent=5 // pred_check_branch
        %314 = sbr.rel (%p311) target = $region52
      $region51: #{up_forward.1} parent=5 // pred_region
        %s315 = ssub.s32 %s20, 1
        // Predicated region
        $region53: #{up_forward.1} parent=51 // pred_check
          %p316 = pneg %p135
        $region54: #{up_forward.1} parent=51 // pred_check_branch
          %318 = sbr.rel (%p316) target = $region56
        $region55: #{up_forward.1} parent=51 // pred_region
          %319 = dma.done [#allocation6], 48
        $region56: #{up_forward.1} parent=51 // pred_fallthru
          _
        // Predicated region
        $region57: #{up_forward.1} parent=51 // pred_check
          %p320 = pneg %p156
        $region58: #{up_forward.1} parent=51 // pred_check_branch
          %322 = sbr.rel (%p320) target = $region60
        $region59: #{up_forward.1} parent=51 // pred_region
          %323 = dma.done [#allocation8], 16
        $region60: #{up_forward.1} parent=51 // pred_fallthru
          _
        // Predicated region
        $region61: #{up_forward.1} parent=51 // pred_check
          %p324 = pneg %p177
        $region62: #{up_forward.1} parent=51 // pred_check_branch
          %326 = sbr.rel (%p324) target = $region64
        $region63: #{up_forward.1} parent=51 // pred_region
          %327 = dma.done [#allocation8], 32
        $region64: #{up_forward.1} parent=51 // pred_fallthru
          _
        // Predicated region
        $region65: #{up_forward.1} parent=51 // pred_check
          %p328 = pneg %p198
        $region66: #{up_forward.1} parent=51 // pred_check_branch
          %330 = sbr.rel (%p328) target = $region68
        $region67: #{up_forward.1} parent=51 // pred_region
          %331 = dma.done [#allocation11], 16
        $region68: #{up_forward.1} parent=51 // pred_fallthru
          _
        %332 = sfence
        %p333 = scmp.lt.s32.totalorder %s25, 1
        %s334 = scalar_select %p333, %s25, 1
        %s335 = smul.addr %s334, 4
        %s336 = smul.addr %s335, 8
        %s337 = scalar_lea.vmem %s0, %s336
        %p338 = pneg %p46
        %p339 = pneg %p43
        %p340 = scmp.lt.s32.totalorder %s25, 1
        %s341 = scalar_select %p340, %s25, 1
        %s342 = smul.addr %s341, 8
        %s343 = smul.addr %s342, 8
        %s344 = scalar_lea.vmem %s1, %s343
        %p345 = pneg %p72
        %p346 = pneg %p69
        %p347 = pneg %p93
        %p348 = pneg %p90
        %p349 = pneg %p114
        %p350 = pneg %p111
        %p351 = pneg %p135
        %p352 = pneg %p132
        %p353 = pneg %p156
        %p354 = pneg %p153
        %p355 = pneg %p177
        %p356 = pneg %p174
        %p357 = pneg %p198
        %p358 = pneg %p195
        %p359 = pneg %p224
        %p360 = pneg %p221
        %s361 = sand.u32 %s211, 1
        %s362 = scalar_lea.sflag [#allocation5], %s361
        %s363 = sand.u32 %s211, 1
        %s364 = smul.addr %s363, 64
        %s365 = scalar_lea.vmem [#allocation12], %s364
        %p366 = scmp.lt.s32.totalorder %s25, 1
        %s367 = scalar_select %p366, %s25, 1
        %s368 = smul.addr %s367, 4
        %s369 = smul.addr %s368, 8
        %s370 = scalar_lea.vmem %s0, %s369
        %p371 = scmp.lt.s32.totalorder %s25, 1
        %s372 = scalar_select %p371, %s25, 1
        %s373 = smul.addr %s372, 8
        %s374 = smul.addr %s373, 8
        %s375 = scalar_lea.vmem %s1, %s374
        %vm376 = vcmask 146432
        %377 = vst.msk [vmem:[#allocation2] sm:$0xff] %vm376, 0.0
        %378 = vst.msk [vmem:[#allocation2 + $0x8] sm:$0xff] %vm376, 0.0
        %vm379 = vcmask 140288
        %380 = vst.msk [vmem:[#allocation2 + $0x10] sm:$0x3] %vm379, 0.0
        %381 = vst.msk [vmem:[#allocation2 + $0x18] sm:$0xff] %vm376, 0.0
        %382 = vst.msk [vmem:[#allocation2 + $0x20] sm:$0xff] %vm376, 0.0
        %383 = vst.msk [vmem:[#allocation2 + $0x28] sm:$0x3] %vm379, 0.0
        %384 = vst.msk [vmem:[#allocation2 + $0x30] sm:$0xff] %vm376, 0.0
        %385 = vst.msk [vmem:[#allocation2 + $0x38] sm:$0xff] %vm376, 0.0
        %386 = vst.msk [vmem:[#allocation2 + $0x40] sm:$0x3] %vm379, 0.0
        %387 = vst.msk [vmem:[#allocation2 + $0x48] sm:$0xff] %vm376, 0.0
        %388 = vst.msk [vmem:[#allocation2 + $0x50] sm:$0xff] %vm376, 0.0
        %389 = vst.msk [vmem:[#allocation2 + $0x58] sm:$0x3] %vm379, 0.0
        %390 = vst.msk [vmem:[#allocation2 + $0x60] sm:$0xff] %vm376, 0.0
        %391 = vst.msk [vmem:[#allocation2 + $0x68] sm:$0xff] %vm376, 0.0
        %392 = vst.msk [vmem:[#allocation2 + $0x70] sm:$0x3] %vm379, 0.0
        %393 = vst.msk [vmem:[#allocation2 + $0x78] sm:$0xff] %vm376, 0.0
        %394 = vst.msk [vmem:[#allocation2 + $0x80] sm:$0xff] %vm376, 0.0
        %395 = vst.msk [vmem:[#allocation2 + $0x88] sm:$0x3] %vm379, 0.0
        %396 = vst.msk [vmem:[#allocation2 + $0x90] sm:$0xff] %vm376, 0.0
        %397 = vst.msk [vmem:[#allocation2 + $0x98] sm:$0xff] %vm376, 0.0
        %398 = vst.msk [vmem:[#allocation2 + $0xa0] sm:$0x3] %vm379, 0.0
        %399 = vst.msk [vmem:[#allocation2 + $0xa8] sm:$0xff] %vm376, 0.0
        %400 = vst.msk [vmem:[#allocation2 + $0xb0] sm:$0xff] %vm376, 0.0
        %401 = vst.msk [vmem:[#allocation2 + $0xb8] sm:$0x3] %vm379, 0.0
        %402 = vst.msk [vmem:[#allocation3] sm:$0xff] %vm376, 0.0
        %403 = vst.msk [vmem:[#allocation3 + $0x8] sm:$0xff] %vm376, 0.0
        %404 = vst.msk [vmem:[#allocation3 + $0x10] sm:$0x3] %vm379, 0.0
        %405 = vst.msk [vmem:[#allocation3 + $0x18] sm:$0xff] %vm376, 0.0
        %406 = vst.msk [vmem:[#allocation3 + $0x20] sm:$0xff] %vm376, 0.0
        %407 = vst.msk [vmem:[#allocation3 + $0x28] sm:$0x3] %vm379, 0.0
        %408 = vst.msk [vmem:[#allocation3 + $0x30] sm:$0xff] %vm376, 0.0
        %409 = vst.msk [vmem:[#allocation3 + $0x38] sm:$0xff] %vm376, 0.0
        %410 = vst.msk [vmem:[#allocation3 + $0x40] sm:$0x3] %vm379, 0.0
        %411 = vst.msk [vmem:[#allocation3 + $0x48] sm:$0xff] %vm376, 0.0
        %412 = vst.msk [vmem:[#allocation3 + $0x50] sm:$0xff] %vm376, 0.0
        %413 = vst.msk [vmem:[#allocation3 + $0x58] sm:$0x3] %vm379, 0.0
        %v414 = vld [vmem:[%s375] sm:$0xff]
        %v415 = vld [vmem:[%s375 + $0x8] sm:$0xff]
        %418 = vrot.lane.b32.xlu0 %v414, 1
        %v419 = vpop.permute.xlu0 %418
        %420 = vrot.lane.b32.xlu0 %v415, 1
        %v421 = vpop.permute.xlu0 %420
        %vm424 = vcmask 138248
        %425 = vst.msk [vmem:[#allocation2 + $0x1] sm:$0xff] %vm424, %v419
        %426 = vst.msk [vmem:[#allocation2 + $0x9] sm:$0xff] %vm424, %v421
        %s427 = scalar_lea.vmem %s375, 16
        %v428 = vld [vmem:[%s427] sm:$0xff]
        %v429 = vld [vmem:[%s427 + $0x8] sm:$0xff]
        %432 = vrot.lane.b32.xlu0 %v428, 1
        %v433 = vpop.permute.xlu0 %432
        %434 = vrot.lane.b32.xlu0 %v429, 1
        %v435 = vpop.permute.xlu0 %434
        %s438 = scalar_lea.vmem [#allocation2], 24
        %439 = vst.msk [vmem:[%s438 + $0x1] sm:$0xff] %vm424, %v433
        %440 = vst.msk [vmem:[%s438 + $0x9] sm:$0xff] %vm424, %v435
        %s441 = scalar_lea.vmem %s375, 32
        %v442 = vld [vmem:[%s441] sm:$0xff]
        %v443 = vld [vmem:[%s441 + $0x8] sm:$0xff]
        %446 = vrot.lane.b32.xlu0 %v442, 1
        %v447 = vpop.permute.xlu0 %446
        %448 = vrot.lane.b32.xlu0 %v443, 1
        %v449 = vpop.permute.xlu0 %448
        %s452 = scalar_lea.vmem [#allocation2], 48
        %453 = vst.msk [vmem:[%s452 + $0x1] sm:$0xff] %vm424, %v447
        %454 = vst.msk [vmem:[%s452 + $0x9] sm:$0xff] %vm424, %v449
        %s455 = scalar_lea.vmem %s375, 48
        %v456 = vld [vmem:[%s455] sm:$0xff]
        %v457 = vld [vmem:[%s455 + $0x8] sm:$0xff]
        %460 = vrot.lane.b32.xlu0 %v456, 1
        %v461 = vpop.permute.xlu0 %460
        %462 = vrot.lane.b32.xlu0 %v457, 1
        %v463 = vpop.permute.xlu0 %462
        %s466 = scalar_lea.vmem [#allocation2], 72
        %467 = vst.msk [vmem:[%s466 + $0x1] sm:$0xff] %vm424, %v461
        %468 = vst.msk [vmem:[%s466 + $0x9] sm:$0xff] %vm424, %v463
        %v469 = vld [vmem:[%s2] sm:$0xff]
        %v470 = vld [vmem:[%s2 + $0x8] sm:$0xff]
        %v471 = vld [vmem:[%s3] sm:$0xff]
        %v472 = vld [vmem:[%s370] sm:$0xff]
        %474 = vset.pattern.permute.xlu0 0
        %475 = vperm.xlu0 %474, %v469
        %v476 = vpop.permute.xlu0 %475
        %479 = vset.pattern.permute.xlu0 0
        %480 = vperm.xlu0 %479, %v470
        %v481 = vpop.permute.xlu0 %480
        %v483 = vlaneseq
        %v484 = vshrl.u32 %v483, 7
        %v485 = vsub.s32 0, %v484
        %v486 = vrot.slane %v472, %v485
        %v487 = vmul.f32 %v476, %v486
        %v488 = vmul.f32 %v481, %v486
        %489 = vset.pattern.permute.xlu0 1
        %490 = vperm.xlu0 %489, %v469
        %v491 = vpop.permute.xlu0 %490
        %493 = vset.pattern.permute.xlu0 1
        %494 = vperm.xlu0 %493, %v470
        %v495 = vpop.permute.xlu0 %494
        %v497 = vlaneseq
        %v498 = vshrl.u32 %v497, 7
        %v499 = vsub.s32 1, %v498
        %v500 = vrot.slane %v472, %v499
        %v501 = vmul.f32 %v491, %v500
        %v502 = vmul.f32 %v495, %v500
        %v503 = vadd.f32 %v487, %v501
        %v504 = vadd.f32 %v488, %v502
        %505 = vset.pattern.permute.xlu0 2
        %506 = vperm.xlu0 %505, %v469
        %v507 = vpop.permute.xlu0 %506
        %509 = vset.pattern.permute.xlu0 2
        %510 = vperm.xlu0 %509, %v470
        %v511 = vpop.permute.xlu0 %510
        %v513 = vlaneseq
        %v514 = vshrl.u32 %v513, 7
        %v515 = vsub.s32 2, %v514
        %v516 = vrot.slane %v472, %v515
        %v517 = vmul.f32 %v507, %v516
        %v518 = vmul.f32 %v511, %v516
        %v519 = vadd.f32 %v503, %v517
        %v520 = vadd.f32 %v504, %v518
        %521 = vset.pattern.permute.xlu0 3
        %522 = vperm.xlu0 %521, %v469
        %v523 = vpop.permute.xlu0 %522
        %525 = vset.pattern.permute.xlu0 3
        %526 = vperm.xlu0 %525, %v470
        %v527 = vpop.permute.xlu0 %526
        %v529 = vlaneseq
        %v530 = vshrl.u32 %v529, 7
        %v531 = vsub.s32 3, %v530
        %v532 = vrot.slane %v472, %v531
        %v533 = vmul.f32 %v523, %v532
        %v534 = vmul.f32 %v527, %v532
        %v535 = vadd.f32 %v519, %v533
        %v536 = vadd.f32 %v520, %v534
        %537 = vset.pattern.permute.xlu0 4
        %538 = vperm.xlu0 %537, %v469
        %v539 = vpop.permute.xlu0 %538
        %541 = vset.pattern.permute.xlu0 4
        %542 = vperm.xlu0 %541, %v470
        %v543 = vpop.permute.xlu0 %542
        %v545 = vlaneseq
        %v546 = vshrl.u32 %v545, 7
        %v547 = vsub.s32 4, %v546
        %v548 = vrot.slane %v472, %v547
        %v549 = vmul.f32 %v539, %v548
        %v550 = vmul.f32 %v543, %v548
        %v551 = vadd.f32 %v535, %v549
        %v552 = vadd.f32 %v536, %v550
        %553 = vset.pattern.permute.xlu0 5
        %554 = vperm.xlu0 %553, %v469
        %v555 = vpop.permute.xlu0 %554
        %557 = vset.pattern.permute.xlu0 5
        %558 = vperm.xlu0 %557, %v470
        %v559 = vpop.permute.xlu0 %558
        %v561 = vlaneseq
        %v562 = vshrl.u32 %v561, 7
        %v563 = vsub.s32 5, %v562
        %v564 = vrot.slane %v472, %v563
        %v565 = vmul.f32 %v555, %v564
        %v566 = vmul.f32 %v559, %v564
        %v567 = vadd.f32 %v551, %v565
        %v568 = vadd.f32 %v552, %v566
        %569 = vset.pattern.permute.xlu0 6
        %570 = vperm.xlu0 %569, %v469
        %v571 = vpop.permute.xlu0 %570
        %573 = vset.pattern.permute.xlu0 6
        %574 = vperm.xlu0 %573, %v470
        %v575 = vpop.permute.xlu0 %574
        %v577 = vlaneseq
        %v578 = vshrl.u32 %v577, 7
        %v579 = vsub.s32 6, %v578
        %v580 = vrot.slane %v472, %v579
        %v581 = vmul.f32 %v571, %v580
        %v582 = vmul.f32 %v575, %v580
        %v583 = vadd.f32 %v567, %v581
        %v584 = vadd.f32 %v568, %v582
        %585 = vset.pattern.permute.xlu0 7
        %586 = vperm.xlu0 %585, %v469
        %v587 = vpop.permute.xlu0 %586
        %589 = vset.pattern.permute.xlu0 7
        %590 = vperm.xlu0 %589, %v470
        %v591 = vpop.permute.xlu0 %590
        %v593 = vlaneseq
        %v594 = vshrl.u32 %v593, 7
        %v595 = vsub.s32 7, %v594
        %v596 = vrot.slane %v472, %v595
        %v597 = vmul.f32 %v587, %v596
        %v598 = vmul.f32 %v591, %v596
        %v599 = vadd.f32 %v583, %v597
        %v600 = vadd.f32 %v584, %v598
        %602 = vset.pattern.permute.xlu0 0
        %603 = vperm.xlu0 %602, %v599
        %v604 = vpop.permute.xlu0 %603
        %607 = vset.pattern.permute.xlu0 0
        %608 = vperm.xlu0 %607, %v600
        %v609 = vpop.permute.xlu0 %608
        %v611 = vlaneseq
        %v612 = vshrl.u32 %v611, 7
        %v613 = vsub.s32 0, %v612
        %v614 = vrot.slane %v471, %v613
        %v615 = vmul.f32 %v604, %v614
        %v616 = vmul.f32 %v609, %v614
        %617 = vset.pattern.permute.xlu0 1
        %618 = vperm.xlu0 %617, %v599
        %v619 = vpop.permute.xlu0 %618
        %621 = vset.pattern.permute.xlu0 1
        %622 = vperm.xlu0 %621, %v600
        %v623 = vpop.permute.xlu0 %622
        %v625 = vlaneseq
        %v626 = vshrl.u32 %v625, 7
        %v627 = vsub.s32 1, %v626
        %v628 = vrot.slane %v471, %v627
        %v629 = vmul.f32 %v619, %v628
        %v630 = vmul.f32 %v623, %v628
        %v631 = vadd.f32 %v615, %v629
        %v632 = vadd.f32 %v616, %v630
        %633 = vset.pattern.permute.xlu0 2
        %634 = vperm.xlu0 %633, %v599
        %v635 = vpop.permute.xlu0 %634
        %637 = vset.pattern.permute.xlu0 2
        %638 = vperm.xlu0 %637, %v600
        %v639 = vpop.permute.xlu0 %638
        %v641 = vlaneseq
        %v642 = vshrl.u32 %v641, 7
        %v643 = vsub.s32 2, %v642
        %v644 = vrot.slane %v471, %v643
        %v645 = vmul.f32 %v635, %v644
        %v646 = vmul.f32 %v639, %v644
        %v647 = vadd.f32 %v631, %v645
        %v648 = vadd.f32 %v632, %v646
        %649 = vset.pattern.permute.xlu0 3
        %650 = vperm.xlu0 %649, %v599
        %v651 = vpop.permute.xlu0 %650
        %653 = vset.pattern.permute.xlu0 3
        %654 = vperm.xlu0 %653, %v600
        %v655 = vpop.permute.xlu0 %654
        %v657 = vlaneseq
        %v658 = vshrl.u32 %v657, 7
        %v659 = vsub.s32 3, %v658
        %v660 = vrot.slane %v471, %v659
        %v661 = vmul.f32 %v651, %v660
        %v662 = vmul.f32 %v655, %v660
        %v663 = vadd.f32 %v647, %v661
        %v664 = vadd.f32 %v648, %v662
        %665 = vset.pattern.permute.xlu0 4
        %666 = vperm.xlu0 %665, %v599
        %v667 = vpop.permute.xlu0 %666
        %669 = vset.pattern.permute.xlu0 4
        %670 = vperm.xlu0 %669, %v600
        %v671 = vpop.permute.xlu0 %670
        %v673 = vlaneseq
        %v674 = vshrl.u32 %v673, 7
        %v675 = vsub.s32 4, %v674
        %v676 = vrot.slane %v471, %v675
        %v677 = vmul.f32 %v667, %v676
        %v678 = vmul.f32 %v671, %v676
        %v679 = vadd.f32 %v663, %v677
        %v680 = vadd.f32 %v664, %v678
        %681 = vset.pattern.permute.xlu0 5
        %682 = vperm.xlu0 %681, %v599
        %v683 = vpop.permute.xlu0 %682
        %685 = vset.pattern.permute.xlu0 5
        %686 = vperm.xlu0 %685, %v600
        %v687 = vpop.permute.xlu0 %686
        %v689 = vlaneseq
        %v690 = vshrl.u32 %v689, 7
        %v691 = vsub.s32 5, %v690
        %v692 = vrot.slane %v471, %v691
        %v693 = vmul.f32 %v683, %v692
        %v694 = vmul.f32 %v687, %v692
        %v695 = vadd.f32 %v679, %v693
        %v696 = vadd.f32 %v680, %v694
        %697 = vset.pattern.permute.xlu0 6
        %698 = vperm.xlu0 %697, %v599
        %v699 = vpop.permute.xlu0 %698
        %701 = vset.pattern.permute.xlu0 6
        %702 = vperm.xlu0 %701, %v600
        %v703 = vpop.permute.xlu0 %702
        %v705 = vlaneseq
        %v706 = vshrl.u32 %v705, 7
        %v707 = vsub.s32 6, %v706
        %v708 = vrot.slane %v471, %v707
        %v709 = vmul.f32 %v699, %v708
        %v710 = vmul.f32 %v703, %v708
        %v711 = vadd.f32 %v695, %v709
        %v712 = vadd.f32 %v696, %v710
        %713 = vset.pattern.permute.xlu0 7
        %714 = vperm.xlu0 %713, %v599
        %v715 = vpop.permute.xlu0 %714
        %717 = vset.pattern.permute.xlu0 7
        %718 = vperm.xlu0 %717, %v600
        %v719 = vpop.permute.xlu0 %718
        %v721 = vlaneseq
        %v722 = vshrl.u32 %v721, 7
        %v723 = vsub.s32 7, %v722
        %v724 = vrot.slane %v471, %v723
        %v725 = vmul.f32 %v715, %v724
        %v726 = vmul.f32 %v719, %v724
        %v727 = vadd.f32 %v711, %v725
        %v728 = vadd.f32 %v712, %v726
        %731 = vrot.lane.b32.xlu0 %v727, 1
        %v732 = vpop.permute.xlu0 %731
        %733 = vrot.lane.b32.xlu0 %v728, 1
        %v734 = vpop.permute.xlu0 %733
        %s737 = scalar_lea.vmem [#allocation2], 96
        %738 = vst.msk [vmem:[%s737 + $0x1] sm:$0xff] %vm424, %v732
        %739 = vst.msk [vmem:[%s737 + $0x9] sm:$0xff] %vm424, %v734
        %s740 = scalar_lea.vmem %s370, 8
        %v741 = vld [vmem:[%s740] sm:$0xff]
        %v742 = vlaneseq
        %v743 = vshrl.u32 %v742, 7
        %v744 = vsub.s32 0, %v743
        %v745 = vrot.slane %v741, %v744
        %v746 = vmul.f32 %v476, %v745
        %v747 = vmul.f32 %v481, %v745
        %v748 = vlaneseq
        %v749 = vshrl.u32 %v748, 7
        %v750 = vsub.s32 1, %v749
        %v751 = vrot.slane %v741, %v750
        %v752 = vmul.f32 %v491, %v751
        %v753 = vmul.f32 %v495, %v751
        %v754 = vadd.f32 %v746, %v752
        %v755 = vadd.f32 %v747, %v753
        %v756 = vlaneseq
        %v757 = vshrl.u32 %v756, 7
        %v758 = vsub.s32 2, %v757
        %v759 = vrot.slane %v741, %v758
        %v760 = vmul.f32 %v507, %v759
        %v761 = vmul.f32 %v511, %v759
        %v762 = vadd.f32 %v754, %v760
        %v763 = vadd.f32 %v755, %v761
        %v764 = vlaneseq
        %v765 = vshrl.u32 %v764, 7
        %v766 = vsub.s32 3, %v765
        %v767 = vrot.slane %v741, %v766
        %v768 = vmul.f32 %v523, %v767
        %v769 = vmul.f32 %v527, %v767
        %v770 = vadd.f32 %v762, %v768
        %v771 = vadd.f32 %v763, %v769
        %v772 = vlaneseq
        %v773 = vshrl.u32 %v772, 7
        %v774 = vsub.s32 4, %v773
        %v775 = vrot.slane %v741, %v774
        %v776 = vmul.f32 %v539, %v775
        %v777 = vmul.f32 %v543, %v775
        %v778 = vadd.f32 %v770, %v776
        %v779 = vadd.f32 %v771, %v777
        %v780 = vlaneseq
        %v781 = vshrl.u32 %v780, 7
        %v782 = vsub.s32 5, %v781
        %v783 = vrot.slane %v741, %v782
        %v784 = vmul.f32 %v555, %v783
        %v785 = vmul.f32 %v559, %v783
        %v786 = vadd.f32 %v778, %v784
        %v787 = vadd.f32 %v779, %v785
        %v788 = vlaneseq
        %v789 = vshrl.u32 %v788, 7
        %v790 = vsub.s32 6, %v789
        %v791 = vrot.slane %v741, %v790
        %v792 = vmul.f32 %v571, %v791
        %v793 = vmul.f32 %v575, %v791
        %v794 = vadd.f32 %v786, %v792
        %v795 = vadd.f32 %v787, %v793
        %v796 = vlaneseq
        %v797 = vshrl.u32 %v796, 7
        %v798 = vsub.s32 7, %v797
        %v799 = vrot.slane %v741, %v798
        %v800 = vmul.f32 %v587, %v799
        %v801 = vmul.f32 %v591, %v799
        %v802 = vadd.f32 %v794, %v800
        %v803 = vadd.f32 %v795, %v801
        %805 = vset.pattern.permute.xlu0 0
        %806 = vperm.xlu0 %805, %v802
        %v807 = vpop.permute.xlu0 %806
        %810 = vset.pattern.permute.xlu0 0
        %811 = vperm.xlu0 %810, %v803
        %v812 = vpop.permute.xlu0 %811
        %v814 = vmul.f32 %v807, %v614
        %v815 = vmul.f32 %v812, %v614
        %816 = vset.pattern.permute.xlu0 1
        %817 = vperm.xlu0 %816, %v802
        %v818 = vpop.permute.xlu0 %817
        %820 = vset.pattern.permute.xlu0 1
        %821 = vperm.xlu0 %820, %v803
        %v822 = vpop.permute.xlu0 %821
        %v824 = vmul.f32 %v818, %v628
        %v825 = vmul.f32 %v822, %v628
        %v826 = vadd.f32 %v814, %v824
        %v827 = vadd.f32 %v815, %v825
        %828 = vset.pattern.permute.xlu0 2
        %829 = vperm.xlu0 %828, %v802
        %v830 = vpop.permute.xlu0 %829
        %832 = vset.pattern.permute.xlu0 2
        %833 = vperm.xlu0 %832, %v803
        %v834 = vpop.permute.xlu0 %833
        %v836 = vmul.f32 %v830, %v644
        %v837 = vmul.f32 %v834, %v644
        %v838 = vadd.f32 %v826, %v836
        %v839 = vadd.f32 %v827, %v837
        %840 = vset.pattern.permute.xlu0 3
        %841 = vperm.xlu0 %840, %v802
        %v842 = vpop.permute.xlu0 %841
        %844 = vset.pattern.permute.xlu0 3
        %845 = vperm.xlu0 %844, %v803
        %v846 = vpop.permute.xlu0 %845
        %v848 = vmul.f32 %v842, %v660
        %v849 = vmul.f32 %v846, %v660
        %v850 = vadd.f32 %v838, %v848
        %v851 = vadd.f32 %v839, %v849
        %852 = vset.pattern.permute.xlu0 4
        %853 = vperm.xlu0 %852, %v802
        %v854 = vpop.permute.xlu0 %853
        %856 = vset.pattern.permute.xlu0 4
        %857 = vperm.xlu0 %856, %v803
        %v858 = vpop.permute.xlu0 %857
        %v860 = vmul.f32 %v854, %v676
        %v861 = vmul.f32 %v858, %v676
        %v862 = vadd.f32 %v850, %v860
        %v863 = vadd.f32 %v851, %v861
        %864 = vset.pattern.permute.xlu0 5
        %865 = vperm.xlu0 %864, %v802
        %v866 = vpop.permute.xlu0 %865
        %868 = vset.pattern.permute.xlu0 5
        %869 = vperm.xlu0 %868, %v803
        %v870 = vpop.permute.xlu0 %869
        %v872 = vmul.f32 %v866, %v692
        %v873 = vmul.f32 %v870, %v692
        %v874 = vadd.f32 %v862, %v872
        %v875 = vadd.f32 %v863, %v873
        %876 = vset.pattern.permute.xlu0 6
        %877 = vperm.xlu0 %876, %v802
        %v878 = vpop.permute.xlu0 %877
        %880 = vset.pattern.permute.xlu0 6
        %881 = vperm.xlu0 %880, %v803
        %v882 = vpop.permute.xlu0 %881
        %v884 = vmul.f32 %v878, %v708
        %v885 = vmul.f32 %v882, %v708
        %v886 = vadd.f32 %v874, %v884
        %v887 = vadd.f32 %v875, %v885
        %888 = vset.pattern.permute.xlu0 7
        %889 = vperm.xlu0 %888, %v802
        %v890 = vpop.permute.xlu0 %889
        %892 = vset.pattern.permute.xlu0 7
        %893 = vperm.xlu0 %892, %v803
        %v894 = vpop.permute.xlu0 %893
        %v896 = vmul.f32 %v890, %v724
        %v897 = vmul.f32 %v894, %v724
        %v898 = vadd.f32 %v886, %v896
        %v899 = vadd.f32 %v887, %v897
        %902 = vrot.lane.b32.xlu0 %v898, 1
        %v903 = vpop.permute.xlu0 %902
        %904 = vrot.lane.b32.xlu0 %v899, 1
        %v905 = vpop.permute.xlu0 %904
        %s908 = scalar_lea.vmem [#allocation2], 120
        %909 = vst.msk [vmem:[%s908 + $0x1] sm:$0xff] %vm424, %v903
        %910 = vst.msk [vmem:[%s908 + $0x9] sm:$0xff] %vm424, %v905
        %s911 = scalar_lea.vmem %s370, 16
        %v912 = vld [vmem:[%s911] sm:$0xff]
        %v913 = vlaneseq
        %v914 = vshrl.u32 %v913, 7
        %v915 = vsub.s32 0, %v914
        %v916 = vrot.slane %v912, %v915
        %v917 = vmul.f32 %v476, %v916
        %v918 = vmul.f32 %v481, %v916
        %v919 = vlaneseq
        %v920 = vshrl.u32 %v919, 7
        %v921 = vsub.s32 1, %v920
        %v922 = vrot.slane %v912, %v921
        %v923 = vmul.f32 %v491, %v922
        %v924 = vmul.f32 %v495, %v922
        %v925 = vadd.f32 %v917, %v923
        %v926 = vadd.f32 %v918, %v924
        %v927 = vlaneseq
        %v928 = vshrl.u32 %v927, 7
        %v929 = vsub.s32 2, %v928
        %v930 = vrot.slane %v912, %v929
        %v931 = vmul.f32 %v507, %v930
        %v932 = vmul.f32 %v511, %v930
        %v933 = vadd.f32 %v925, %v931
        %v934 = vadd.f32 %v926, %v932
        %v935 = vlaneseq
        %v936 = vshrl.u32 %v935, 7
        %v937 = vsub.s32 3, %v936
        %v938 = vrot.slane %v912, %v937
        %v939 = vmul.f32 %v523, %v938
        %v940 = vmul.f32 %v527, %v938
        %v941 = vadd.f32 %v933, %v939
        %v942 = vadd.f32 %v934, %v940
        %v943 = vlaneseq
        %v944 = vshrl.u32 %v943, 7
        %v945 = vsub.s32 4, %v944
        %v946 = vrot.slane %v912, %v945
        %v947 = vmul.f32 %v539, %v946
        %v948 = vmul.f32 %v543, %v946
        %v949 = vadd.f32 %v941, %v947
        %v950 = vadd.f32 %v942, %v948
        %v951 = vlaneseq
        %v952 = vshrl.u32 %v951, 7
        %v953 = vsub.s32 5, %v952
        %v954 = vrot.slane %v912, %v953
        %v955 = vmul.f32 %v555, %v954
        %v956 = vmul.f32 %v559, %v954
        %v957 = vadd.f32 %v949, %v955
        %v958 = vadd.f32 %v950, %v956
        %v959 = vlaneseq
        %v960 = vshrl.u32 %v959, 7
        %v961 = vsub.s32 6, %v960
        %v962 = vrot.slane %v912, %v961
        %v963 = vmul.f32 %v571, %v962
        %v964 = vmul.f32 %v575, %v962
        %v965 = vadd.f32 %v957, %v963
        %v966 = vadd.f32 %v958, %v964
        %v967 = vlaneseq
        %v968 = vshrl.u32 %v967, 7
        %v969 = vsub.s32 7, %v968
        %v970 = vrot.slane %v912, %v969
        %v971 = vmul.f32 %v587, %v970
        %v972 = vmul.f32 %v591, %v970
        %v973 = vadd.f32 %v965, %v971
        %v974 = vadd.f32 %v966, %v972
        %976 = vset.pattern.permute.xlu0 0
        %977 = vperm.xlu0 %976, %v973
        %v978 = vpop.permute.xlu0 %977
        %981 = vset.pattern.permute.xlu0 0
        %982 = vperm.xlu0 %981, %v974
        %v983 = vpop.permute.xlu0 %982
        %v985 = vmul.f32 %v978, %v614
        %v986 = vmul.f32 %v983, %v614
        %987 = vset.pattern.permute.xlu0 1
        %988 = vperm.xlu0 %987, %v973
        %v989 = vpop.permute.xlu0 %988
        %991 = vset.pattern.permute.xlu0 1
        %992 = vperm.xlu0 %991, %v974
        %v993 = vpop.permute.xlu0 %992
        %v995 = vmul.f32 %v989, %v628
        %v996 = vmul.f32 %v993, %v628
        %v997 = vadd.f32 %v985, %v995
        %v998 = vadd.f32 %v986, %v996
        %999 = vset.pattern.permute.xlu0 2
        %1000 = vperm.xlu0 %999, %v973
        %v1001 = vpop.permute.xlu0 %1000
        %1003 = vset.pattern.permute.xlu0 2
        %1004 = vperm.xlu0 %1003, %v974
        %v1005 = vpop.permute.xlu0 %1004
        %v1007 = vmul.f32 %v1001, %v644
        %v1008 = vmul.f32 %v1005, %v644
        %v1009 = vadd.f32 %v997, %v1007
        %v1010 = vadd.f32 %v998, %v1008
        %1011 = vset.pattern.permute.xlu0 3
        %1012 = vperm.xlu0 %1011, %v973
        %v1013 = vpop.permute.xlu0 %1012
        %1015 = vset.pattern.permute.xlu0 3
        %1016 = vperm.xlu0 %1015, %v974
        %v1017 = vpop.permute.xlu0 %1016
        %v1019 = vmul.f32 %v1013, %v660
        %v1020 = vmul.f32 %v1017, %v660
        %v1021 = vadd.f32 %v1009, %v1019
        %v1022 = vadd.f32 %v1010, %v1020
        %1023 = vset.pattern.permute.xlu0 4
        %1024 = vperm.xlu0 %1023, %v973
        %v1025 = vpop.permute.xlu0 %1024
        %1027 = vset.pattern.permute.xlu0 4
        %1028 = vperm.xlu0 %1027, %v974
        %v1029 = vpop.permute.xlu0 %1028
        %v1031 = vmul.f32 %v1025, %v676
        %v1032 = vmul.f32 %v1029, %v676
        %v1033 = vadd.f32 %v1021, %v1031
        %v1034 = vadd.f32 %v1022, %v1032
        %1035 = vset.pattern.permute.xlu0 5
        %1036 = vperm.xlu0 %1035, %v973
        %v1037 = vpop.permute.xlu0 %1036
        %1039 = vset.pattern.permute.xlu0 5
        %1040 = vperm.xlu0 %1039, %v974
        %v1041 = vpop.permute.xlu0 %1040
        %v1043 = vmul.f32 %v1037, %v692
        %v1044 = vmul.f32 %v1041, %v692
        %v1045 = vadd.f32 %v1033, %v1043
        %v1046 = vadd.f32 %v1034, %v1044
        %1047 = vset.pattern.permute.xlu0 6
        %1048 = vperm.xlu0 %1047, %v973
        %v1049 = vpop.permute.xlu0 %1048
        %1051 = vset.pattern.permute.xlu0 6
        %1052 = vperm.xlu0 %1051, %v974
        %v1053 = vpop.permute.xlu0 %1052
        %v1055 = vmul.f32 %v1049, %v708
        %v1056 = vmul.f32 %v1053, %v708
        %v1057 = vadd.f32 %v1045, %v1055
        %v1058 = vadd.f32 %v1046, %v1056
        %1059 = vset.pattern.permute.xlu0 7
        %1060 = vperm.xlu0 %1059, %v973
        %v1061 = vpop.permute.xlu0 %1060
        %1063 = vset.pattern.permute.xlu0 7
        %1064 = vperm.xlu0 %1063, %v974
        %v1065 = vpop.permute.xlu0 %1064
        %v1067 = vmul.f32 %v1061, %v724
        %v1068 = vmul.f32 %v1065, %v724
        %v1069 = vadd.f32 %v1057, %v1067
        %v1070 = vadd.f32 %v1058, %v1068
        %1073 = vrot.lane.b32.xlu0 %v1069, 1
        %v1074 = vpop.permute.xlu0 %1073
        %1075 = vrot.lane.b32.xlu0 %v1070, 1
        %v1076 = vpop.permute.xlu0 %1075
        %s1079 = scalar_lea.vmem [#allocation2], 144
        %1080 = vst.msk [vmem:[%s1079 + $0x1] sm:$0xff] %vm424, %v1074
        %1081 = vst.msk [vmem:[%s1079 + $0x9] sm:$0xff] %vm424, %v1076
        %s1082 = scalar_lea.vmem %s370, 24
        %v1083 = vld [vmem:[%s1082] sm:$0xff]
        %v1084 = vlaneseq
        %v1085 = vshrl.u32 %v1084, 7
        %v1086 = vsub.s32 0, %v1085
        %v1087 = vrot.slane %v1083, %v1086
        %v1088 = vmul.f32 %v476, %v1087
        %v1089 = vmul.f32 %v481, %v1087
        %v1090 = vlaneseq
        %v1091 = vshrl.u32 %v1090, 7
        %v1092 = vsub.s32 1, %v1091
        %v1093 = vrot.slane %v1083, %v1092
        %v1094 = vmul.f32 %v491, %v1093
        %v1095 = vmul.f32 %v495, %v1093
        %v1096 = vadd.f32 %v1088, %v1094
        %v1097 = vadd.f32 %v1089, %v1095
        %v1098 = vlaneseq
        %v1099 = vshrl.u32 %v1098, 7
        %v1100 = vsub.s32 2, %v1099
        %v1101 = vrot.slane %v1083, %v1100
        %v1102 = vmul.f32 %v507, %v1101
        %v1103 = vmul.f32 %v511, %v1101
        %v1104 = vadd.f32 %v1096, %v1102
        %v1105 = vadd.f32 %v1097, %v1103
        %v1106 = vlaneseq
        %v1107 = vshrl.u32 %v1106, 7
        %v1108 = vsub.s32 3, %v1107
        %v1109 = vrot.slane %v1083, %v1108
        %v1110 = vmul.f32 %v523, %v1109
        %v1111 = vmul.f32 %v527, %v1109
        %v1112 = vadd.f32 %v1104, %v1110
        %v1113 = vadd.f32 %v1105, %v1111
        %v1114 = vlaneseq
        %v1115 = vshrl.u32 %v1114, 7
        %v1116 = vsub.s32 4, %v1115
        %v1117 = vrot.slane %v1083, %v1116
        %v1118 = vmul.f32 %v539, %v1117
        %v1119 = vmul.f32 %v543, %v1117
        %v1120 = vadd.f32 %v1112, %v1118
        %v1121 = vadd.f32 %v1113, %v1119
        %v1122 = vlaneseq
        %v1123 = vshrl.u32 %v1122, 7
        %v1124 = vsub.s32 5, %v1123
        %v1125 = vrot.slane %v1083, %v1124
        %v1126 = vmul.f32 %v555, %v1125
        %v1127 = vmul.f32 %v559, %v1125
        %v1128 = vadd.f32 %v1120, %v1126
        %v1129 = vadd.f32 %v1121, %v1127
        %v1130 = vlaneseq
        %v1131 = vshrl.u32 %v1130, 7
        %v1132 = vsub.s32 6, %v1131
        %v1133 = vrot.slane %v1083, %v1132
        %v1134 = vmul.f32 %v571, %v1133
        %v1135 = vmul.f32 %v575, %v1133
        %v1136 = vadd.f32 %v1128, %v1134
        %v1137 = vadd.f32 %v1129, %v1135
        %v1138 = vlaneseq
        %v1139 = vshrl.u32 %v1138, 7
        %v1140 = vsub.s32 7, %v1139
        %v1141 = vrot.slane %v1083, %v1140
        %v1142 = vmul.f32 %v587, %v1141
        %v1143 = vmul.f32 %v591, %v1141
        %v1144 = vadd.f32 %v1136, %v1142
        %v1145 = vadd.f32 %v1137, %v1143
        %1147 = vset.pattern.permute.xlu0 0
        %1148 = vperm.xlu0 %1147, %v1144
        %v1149 = vpop.permute.xlu0 %1148
        %1152 = vset.pattern.permute.xlu0 0
        %1153 = vperm.xlu0 %1152, %v1145
        %v1154 = vpop.permute.xlu0 %1153
        %v1156 = vmul.f32 %v1149, %v614
        %v1157 = vmul.f32 %v1154, %v614
        %1158 = vset.pattern.permute.xlu0 1
        %1159 = vperm.xlu0 %1158, %v1144
        %v1160 = vpop.permute.xlu0 %1159
        %1162 = vset.pattern.permute.xlu0 1
        %1163 = vperm.xlu0 %1162, %v1145
        %v1164 = vpop.permute.xlu0 %1163
        %v1166 = vmul.f32 %v1160, %v628
        %v1167 = vmul.f32 %v1164, %v628
        %v1168 = vadd.f32 %v1156, %v1166
        %v1169 = vadd.f32 %v1157, %v1167
        %1170 = vset.pattern.permute.xlu0 2
        %1171 = vperm.xlu0 %1170, %v1144
        %v1172 = vpop.permute.xlu0 %1171
        %1174 = vset.pattern.permute.xlu0 2
        %1175 = vperm.xlu0 %1174, %v1145
        %v1176 = vpop.permute.xlu0 %1175
        %v1178 = vmul.f32 %v1172, %v644
        %v1179 = vmul.f32 %v1176, %v644
        %v1180 = vadd.f32 %v1168, %v1178
        %v1181 = vadd.f32 %v1169, %v1179
        %1182 = vset.pattern.permute.xlu0 3
        %1183 = vperm.xlu0 %1182, %v1144
        %v1184 = vpop.permute.xlu0 %1183
        %1186 = vset.pattern.permute.xlu0 3
        %1187 = vperm.xlu0 %1186, %v1145
        %v1188 = vpop.permute.xlu0 %1187
        %v1190 = vmul.f32 %v1184, %v660
        %v1191 = vmul.f32 %v1188, %v660
        %v1192 = vadd.f32 %v1180, %v1190
        %v1193 = vadd.f32 %v1181, %v1191
        %1194 = vset.pattern.permute.xlu0 4
        %1195 = vperm.xlu0 %1194, %v1144
        %v1196 = vpop.permute.xlu0 %1195
        %1198 = vset.pattern.permute.xlu0 4
        %1199 = vperm.xlu0 %1198, %v1145
        %v1200 = vpop.permute.xlu0 %1199
        %v1202 = vmul.f32 %v1196, %v676
        %v1203 = vmul.f32 %v1200, %v676
        %v1204 = vadd.f32 %v1192, %v1202
        %v1205 = vadd.f32 %v1193, %v1203
        %1206 = vset.pattern.permute.xlu0 5
        %1207 = vperm.xlu0 %1206, %v1144
        %v1208 = vpop.permute.xlu0 %1207
        %1210 = vset.pattern.permute.xlu0 5
        %1211 = vperm.xlu0 %1210, %v1145
        %v1212 = vpop.permute.xlu0 %1211
        %v1214 = vmul.f32 %v1208, %v692
        %v1215 = vmul.f32 %v1212, %v692
        %v1216 = vadd.f32 %v1204, %v1214
        %v1217 = vadd.f32 %v1205, %v1215
        %1218 = vset.pattern.permute.xlu0 6
        %1219 = vperm.xlu0 %1218, %v1144
        %v1220 = vpop.permute.xlu0 %1219
        %1222 = vset.pattern.permute.xlu0 6
        %1223 = vperm.xlu0 %1222, %v1145
        %v1224 = vpop.permute.xlu0 %1223
        %v1226 = vmul.f32 %v1220, %v708
        %v1227 = vmul.f32 %v1224, %v708
        %v1228 = vadd.f32 %v1216, %v1226
        %v1229 = vadd.f32 %v1217, %v1227
        %1230 = vset.pattern.permute.xlu0 7
        %1231 = vperm.xlu0 %1230, %v1144
        %v1232 = vpop.permute.xlu0 %1231
        %1234 = vset.pattern.permute.xlu0 7
        %1235 = vperm.xlu0 %1234, %v1145
        %v1236 = vpop.permute.xlu0 %1235
        %v1238 = vmul.f32 %v1232, %v724
        %v1239 = vmul.f32 %v1236, %v724
        %v1240 = vadd.f32 %v1228, %v1238
        %v1241 = vadd.f32 %v1229, %v1239
        %1244 = vrot.lane.b32.xlu0 %v1240, 1
        %v1245 = vpop.permute.xlu0 %1244
        %1246 = vrot.lane.b32.xlu0 %v1241, 1
        %v1247 = vpop.permute.xlu0 %1246
        %s1250 = scalar_lea.vmem [#allocation2], 168
        %1251 = vst.msk [vmem:[%s1250 + $0x1] sm:$0xff] %vm424, %v1245
        %1252 = vst.msk [vmem:[%s1250 + $0x9] sm:$0xff] %vm424, %v1247
        %v1253 = vld [vmem:[#allocation2] sm:$0xff]
        %v1254 = vld [vmem:[#allocation2 + $0x8] sm:$0xff]
        %s1255 = sld [smem:[#allocation4]]
        %v1256 = vstv %s1255
        %v1257 = vmul.f32 %v1256, %v1253
        %v1258 = vmul.f32 %v1256, %v1254
        %v1259 = vadd.f32 %v1257, 0.0
        %v1260 = vadd.f32 %v1258, 0.0
        %s1261 = sld [smem:[#allocation4 + $0x48]]
        %v1262 = vstv %s1261
        %v1263 = vmul.f32 %v1262, %v1253
        %v1264 = vmul.f32 %v1262, %v1254
        %v1265 = vadd.f32 %v1263, 0.0
        %v1266 = vadd.f32 %v1264, 0.0
        %s1267 = sld [smem:[#allocation4 + $0x90]]
        %v1268 = vstv %s1267
        %v1269 = vmul.f32 %v1268, %v1253
        %v1270 = vmul.f32 %v1268, %v1254
        %v1271 = vadd.f32 %v1269, 0.0
        %v1272 = vadd.f32 %v1270, 0.0
        %s1273 = sld [smem:[#allocation4 + $0xd8]]
        %v1274 = vstv %s1273
        %v1275 = vmul.f32 %v1274, %v1253
        %v1276 = vmul.f32 %v1274, %v1254
        %v1277 = vadd.f32 %v1275, 0.0
        %v1278 = vadd.f32 %v1276, 0.0
        %s1279 = sld [smem:[#allocation4 + $0x1]]
        %v1280 = vstv %s1279
        %v1281 = vmul.f32 %v1280, %v1253
        %v1282 = vmul.f32 %v1280, %v1254
        %1285 = vrot.lane.b32.xlu0 %v1281, 127
        %v1286 = vpop.permute.xlu0 %1285
        %1287 = vrot.lane.b32.xlu0 %v1282, 127
        %v1288 = vpop.permute.xlu0 %1287
        %v1291 = vadd.f32 %v1259, %v1286
        %v1292 = vadd.f32 %v1260, %v1288
        %s1293 = sld [smem:[#allocation4 + $0x49]]
        %v1294 = vstv %s1293
        %v1295 = vmul.f32 %v1294, %v1253
        %v1296 = vmul.f32 %v1294, %v1254
        %1299 = vrot.lane.b32.xlu0 %v1295, 127
        %v1300 = vpop.permute.xlu0 %1299
        %1301 = vrot.lane.b32.xlu0 %v1296, 127
        %v1302 = vpop.permute.xlu0 %1301
        %v1305 = vadd.f32 %v1265, %v1300
        %v1306 = vadd.f32 %v1266, %v1302
        %s1307 = sld [smem:[#allocation4 + $0x91]]
        %v1308 = vstv %s1307
        %v1309 = vmul.f32 %v1308, %v1253
        %v1310 = vmul.f32 %v1308, %v1254
        %1313 = vrot.lane.b32.xlu0 %v1309, 127
        %v1314 = vpop.permute.xlu0 %1313
        %1315 = vrot.lane.b32.xlu0 %v1310, 127
        %v1316 = vpop.permute.xlu0 %1315
        %v1319 = vadd.f32 %v1271, %v1314
        %v1320 = vadd.f32 %v1272, %v1316
        %s1321 = sld [smem:[#allocation4 + $0xd9]]
        %v1322 = vstv %s1321
        %v1323 = vmul.f32 %v1322, %v1253
        %v1324 = vmul.f32 %v1322, %v1254
        %1327 = vrot.lane.b32.xlu0 %v1323, 127
        %v1328 = vpop.permute.xlu0 %1327
        %1329 = vrot.lane.b32.xlu0 %v1324, 127
        %v1330 = vpop.permute.xlu0 %1329
        %v1333 = vadd.f32 %v1277, %v1328
        %v1334 = vadd.f32 %v1278, %v1330
        %s1335 = sld [smem:[#allocation4 + $0x2]]
        %v1336 = vstv %s1335
        %v1337 = vmul.f32 %v1336, %v1253
        %v1338 = vmul.f32 %v1336, %v1254
        %1341 = vrot.lane.b32.xlu0 %v1337, 126
        %v1342 = vpop.permute.xlu0 %1341
        %1343 = vrot.lane.b32.xlu0 %v1338, 126
        %v1344 = vpop.permute.xlu0 %1343
        %v1347 = vadd.f32 %v1291, %v1342
        %v1348 = vadd.f32 %v1292, %v1344
        %s1349 = sld [smem:[#allocation4 + $0x4a]]
        %v1350 = vstv %s1349
        %v1351 = vmul.f32 %v1350, %v1253
        %v1352 = vmul.f32 %v1350, %v1254
        %1355 = vrot.lane.b32.xlu0 %v1351, 126
        %v1356 = vpop.permute.xlu0 %1355
        %1357 = vrot.lane.b32.xlu0 %v1352, 126
        %v1358 = vpop.permute.xlu0 %1357
        %v1361 = vadd.f32 %v1305, %v1356
        %v1362 = vadd.f32 %v1306, %v1358
        %s1363 = sld [smem:[#allocation4 + $0x92]]
        %v1364 = vstv %s1363
        %v1365 = vmul.f32 %v1364, %v1253
        %v1366 = vmul.f32 %v1364, %v1254
        %1369 = vrot.lane.b32.xlu0 %v1365, 126
        %v1370 = vpop.permute.xlu0 %1369
        %1371 = vrot.lane.b32.xlu0 %v1366, 126
        %v1372 = vpop.permute.xlu0 %1371
        %v1375 = vadd.f32 %v1319, %v1370
        %v1376 = vadd.f32 %v1320, %v1372
        %s1377 = sld [smem:[#allocation4 + $0xda]]
        %v1378 = vstv %s1377
        %v1379 = vmul.f32 %v1378, %v1253
        %v1380 = vmul.f32 %v1378, %v1254
        %1383 = vrot.lane.b32.xlu0 %v1379, 126
        %v1384 = vpop.permute.xlu0 %1383
        %1385 = vrot.lane.b32.xlu0 %v1380, 126
        %v1386 = vpop.permute.xlu0 %1385
        %v1389 = vadd.f32 %v1333, %v1384
        %v1390 = vadd.f32 %v1334, %v1386
        %v1391 = vld [vmem:[#allocation2 + $0x1] sm:$0xff]
        %v1392 = vld [vmem:[#allocation2 + $0x9] sm:$0xff]
        %s1393 = sld [smem:[#allocation4 + $0x3]]
        %v1394 = vstv %s1393
        %v1395 = vmul.f32 %v1394, %v1391
        %v1396 = vmul.f32 %v1394, %v1392
        %v1397 = vadd.f32 %v1347, %v1395
        %v1398 = vadd.f32 %v1348, %v1396
        %s1399 = sld [smem:[#allocation4 + $0x4b]]
        %v1400 = vstv %s1399
        %v1401 = vmul.f32 %v1400, %v1391
        %v1402 = vmul.f32 %v1400, %v1392
        %v1403 = vadd.f32 %v1361, %v1401
        %v1404 = vadd.f32 %v1362, %v1402
        %s1405 = sld [smem:[#allocation4 + $0x93]]
        %v1406 = vstv %s1405
        %v1407 = vmul.f32 %v1406, %v1391
        %v1408 = vmul.f32 %v1406, %v1392
        %v1409 = vadd.f32 %v1375, %v1407
        %v1410 = vadd.f32 %v1376, %v1408
        %s1411 = sld [smem:[#allocation4 + $0xdb]]
        %v1412 = vstv %s1411
        %v1413 = vmul.f32 %v1412, %v1391
        %v1414 = vmul.f32 %v1412, %v1392
        %v1415 = vadd.f32 %v1389, %v1413
        %v1416 = vadd.f32 %v1390, %v1414
        %s1417 = sld [smem:[#allocation4 + $0x4]]
        %v1418 = vstv %s1417
        %v1419 = vmul.f32 %v1418, %v1391
        %v1420 = vmul.f32 %v1418, %v1392
        %1423 = vrot.lane.b32.xlu0 %v1419, 127
        %v1424 = vpop.permute.xlu0 %1423
        %1425 = vrot.lane.b32.xlu0 %v1420, 127
        %v1426 = vpop.permute.xlu0 %1425
        %v1429 = vadd.f32 %v1397, %v1424
        %v1430 = vadd.f32 %v1398, %v1426
        %s1431 = sld [smem:[#allocation4 + $0x4c]]
        %v1432 = vstv %s1431
        %v1433 = vmul.f32 %v1432, %v1391
        %v1434 = vmul.f32 %v1432, %v1392
        %1437 = vrot.lane.b32.xlu0 %v1433, 127
        %v1438 = vpop.permute.xlu0 %1437
        %1439 = vrot.lane.b32.xlu0 %v1434, 127
        %v1440 = vpop.permute.xlu0 %1439
        %v1443 = vadd.f32 %v1403, %v1438
        %v1444 = vadd.f32 %v1404, %v1440
        %s1445 = sld [smem:[#allocation4 + $0x94]]
        %v1446 = vstv %s1445
        %v1447 = vmul.f32 %v1446, %v1391
        %v1448 = vmul.f32 %v1446, %v1392
        %1451 = vrot.lane.b32.xlu0 %v1447, 127
        %v1452 = vpop.permute.xlu0 %1451
        %1453 = vrot.lane.b32.xlu0 %v1448, 127
        %v1454 = vpop.permute.xlu0 %1453
        %v1457 = vadd.f32 %v1409, %v1452
        %v1458 = vadd.f32 %v1410, %v1454
        %s1459 = sld [smem:[#allocation4 + $0xdc]]
        %v1460 = vstv %s1459
        %v1461 = vmul.f32 %v1460, %v1391
        %v1462 = vmul.f32 %v1460, %v1392
        %1465 = vrot.lane.b32.xlu0 %v1461, 127
        %v1466 = vpop.permute.xlu0 %1465
        %1467 = vrot.lane.b32.xlu0 %v1462, 127
        %v1468 = vpop.permute.xlu0 %1467
        %v1471 = vadd.f32 %v1415, %v1466
        %v1472 = vadd.f32 %v1416, %v1468
        %s1473 = sld [smem:[#allocation4 + $0x5]]
        %v1474 = vstv %s1473
        %v1475 = vmul.f32 %v1474, %v1391
        %v1476 = vmul.f32 %v1474, %v1392
        %1479 = vrot.lane.b32.xlu0 %v1475, 126
        %v1480 = vpop.permute.xlu0 %1479
        %1481 = vrot.lane.b32.xlu0 %v1476, 126
        %v1482 = vpop.permute.xlu0 %1481
        %v1485 = vadd.f32 %v1429, %v1480
        %v1486 = vadd.f32 %v1430, %v1482
        %s1487 = sld [smem:[#allocation4 + $0x4d]]
        %v1488 = vstv %s1487
        %v1489 = vmul.f32 %v1488, %v1391
        %v1490 = vmul.f32 %v1488, %v1392
        %1493 = vrot.lane.b32.xlu0 %v1489, 126
        %v1494 = vpop.permute.xlu0 %1493
        %1495 = vrot.lane.b32.xlu0 %v1490, 126
        %v1496 = vpop.permute.xlu0 %1495
        %v1499 = vadd.f32 %v1443, %v1494
        %v1500 = vadd.f32 %v1444, %v1496
        %s1501 = sld [smem:[#allocation4 + $0x95]]
        %v1502 = vstv %s1501
        %v1503 = vmul.f32 %v1502, %v1391
        %v1504 = vmul.f32 %v1502, %v1392
        %1507 = vrot.lane.b32.xlu0 %v1503, 126
        %v1508 = vpop.permute.xlu0 %1507
        %1509 = vrot.lane.b32.xlu0 %v1504, 126
        %v1510 = vpop.permute.xlu0 %1509
        %v1513 = vadd.f32 %v1457, %v1508
        %v1514 = vadd.f32 %v1458, %v1510
        %s1515 = sld [smem:[#allocation4 + $0xdd]]
        %v1516 = vstv %s1515
        %v1517 = vmul.f32 %v1516, %v1391
        %v1518 = vmul.f32 %v1516, %v1392
        %1521 = vrot.lane.b32.xlu0 %v1517, 126
        %v1522 = vpop.permute.xlu0 %1521
        %1523 = vrot.lane.b32.xlu0 %v1518, 126
        %v1524 = vpop.permute.xlu0 %1523
        %v1527 = vadd.f32 %v1471, %v1522
        %v1528 = vadd.f32 %v1472, %v1524
        %v1529 = vld [vmem:[#allocation2 + $0x2] sm:$0xff]
        %v1530 = vld [vmem:[#allocation2 + $0xa] sm:$0xff]
        %s1531 = sld [smem:[#allocation4 + $0x6]]
        %v1532 = vstv %s1531
        %v1533 = vmul.f32 %v1532, %v1529
        %v1534 = vmul.f32 %v1532, %v1530
        %v1535 = vadd.f32 %v1485, %v1533
        %v1536 = vadd.f32 %v1486, %v1534
        %s1537 = sld [smem:[#allocation4 + $0x4e]]
        %v1538 = vstv %s1537
        %v1539 = vmul.f32 %v1538, %v1529
        %v1540 = vmul.f32 %v1538, %v1530
        %v1541 = vadd.f32 %v1499, %v1539
        %v1542 = vadd.f32 %v1500, %v1540
        %s1543 = sld [smem:[#allocation4 + $0x96]]
        %v1544 = vstv %s1543
        %v1545 = vmul.f32 %v1544, %v1529
        %v1546 = vmul.f32 %v1544, %v1530
        %v1547 = vadd.f32 %v1513, %v1545
        %v1548 = vadd.f32 %v1514, %v1546
        %s1549 = sld [smem:[#allocation4 + $0xde]]
        %v1550 = vstv %s1549
        %v1551 = vmul.f32 %v1550, %v1529
        %v1552 = vmul.f32 %v1550, %v1530
        %v1553 = vadd.f32 %v1527, %v1551
        %v1554 = vadd.f32 %v1528, %v1552
        %s1555 = sld [smem:[#allocation4 + $0x7]]
        %v1556 = vstv %s1555
        %v1557 = vmul.f32 %v1556, %v1529
        %v1558 = vmul.f32 %v1556, %v1530
        %1561 = vrot.lane.b32.xlu0 %v1557, 127
        %v1562 = vpop.permute.xlu0 %1561
        %1563 = vrot.lane.b32.xlu0 %v1558, 127
        %v1564 = vpop.permute.xlu0 %1563
        %v1567 = vadd.f32 %v1535, %v1562
        %v1568 = vadd.f32 %v1536, %v1564
        %s1569 = sld [smem:[#allocation4 + $0x4f]]
        %v1570 = vstv %s1569
        %v1571 = vmul.f32 %v1570, %v1529
        %v1572 = vmul.f32 %v1570, %v1530
        %1575 = vrot.lane.b32.xlu0 %v1571, 127
        %v1576 = vpop.permute.xlu0 %1575
        %1577 = vrot.lane.b32.xlu0 %v1572, 127
        %v1578 = vpop.permute.xlu0 %1577
        %v1581 = vadd.f32 %v1541, %v1576
        %v1582 = vadd.f32 %v1542, %v1578
        %s1583 = sld [smem:[#allocation4 + $0x97]]
        %v1584 = vstv %s1583
        %v1585 = vmul.f32 %v1584, %v1529
        %v1586 = vmul.f32 %v1584, %v1530
        %1589 = vrot.lane.b32.xlu0 %v1585, 127
        %v1590 = vpop.permute.xlu0 %1589
        %1591 = vrot.lane.b32.xlu0 %v1586, 127
        %v1592 = vpop.permute.xlu0 %1591
        %v1595 = vadd.f32 %v1547, %v1590
        %v1596 = vadd.f32 %v1548, %v1592
        %s1597 = sld [smem:[#allocation4 + $0xdf]]
        %v1598 = vstv %s1597
        %v1599 = vmul.f32 %v1598, %v1529
        %v1600 = vmul.f32 %v1598, %v1530
        %1603 = vrot.lane.b32.xlu0 %v1599, 127
        %v1604 = vpop.permute.xlu0 %1603
        %1605 = vrot.lane.b32.xlu0 %v1600, 127
        %v1606 = vpop.permute.xlu0 %1605
        %v1609 = vadd.f32 %v1553, %v1604
        %v1610 = vadd.f32 %v1554, %v1606
        %s1611 = sld [smem:[#allocation4 + $0x8]]
        %v1612 = vstv %s1611
        %v1613 = vmul.f32 %v1612, %v1529
        %v1614 = vmul.f32 %v1612, %v1530
        %1617 = vrot.lane.b32.xlu0 %v1613, 126
        %v1618 = vpop.permute.xlu0 %1617
        %1619 = vrot.lane.b32.xlu0 %v1614, 126
        %v1620 = vpop.permute.xlu0 %1619
        %v1623 = vadd.f32 %v1567, %v1618
        %v1624 = vadd.f32 %v1568, %v1620
        %s1625 = sld [smem:[#allocation4 + $0x50]]
        %v1626 = vstv %s1625
        %v1627 = vmul.f32 %v1626, %v1529
        %v1628 = vmul.f32 %v1626, %v1530
        %1631 = vrot.lane.b32.xlu0 %v1627, 126
        %v1632 = vpop.permute.xlu0 %1631
        %1633 = vrot.lane.b32.xlu0 %v1628, 126
        %v1634 = vpop.permute.xlu0 %1633
        %v1637 = vadd.f32 %v1581, %v1632
        %v1638 = vadd.f32 %v1582, %v1634
        %s1639 = sld [smem:[#allocation4 + $0x98]]
        %v1640 = vstv %s1639
        %v1641 = vmul.f32 %v1640, %v1529
        %v1642 = vmul.f32 %v1640, %v1530
        %1645 = vrot.lane.b32.xlu0 %v1641, 126
        %v1646 = vpop.permute.xlu0 %1645
        %1647 = vrot.lane.b32.xlu0 %v1642, 126
        %v1648 = vpop.permute.xlu0 %1647
        %v1651 = vadd.f32 %v1595, %v1646
        %v1652 = vadd.f32 %v1596, %v1648
        %s1653 = sld [smem:[#allocation4 + $0xe0]]
        %v1654 = vstv %s1653
        %v1655 = vmul.f32 %v1654, %v1529
        %v1656 = vmul.f32 %v1654, %v1530
        %1659 = vrot.lane.b32.xlu0 %v1655, 126
        %v1660 = vpop.permute.xlu0 %1659
        %1661 = vrot.lane.b32.xlu0 %v1656, 126
        %v1662 = vpop.permute.xlu0 %1661
        %v1665 = vadd.f32 %v1609, %v1660
        %v1666 = vadd.f32 %v1610, %v1662
        %v1667 = vld [vmem:[%s438] sm:$0xff]
        %v1668 = vld [vmem:[%s438 + $0x8] sm:$0xff]
        %s1669 = sld [smem:[#allocation4 + $0x9]]
        %v1670 = vstv %s1669
        %v1671 = vmul.f32 %v1670, %v1667
        %v1672 = vmul.f32 %v1670, %v1668
        %v1673 = vadd.f32 %v1623, %v1671
        %v1674 = vadd.f32 %v1624, %v1672
        %s1675 = sld [smem:[#allocation4 + $0x51]]
        %v1676 = vstv %s1675
        %v1677 = vmul.f32 %v1676, %v1667
        %v1678 = vmul.f32 %v1676, %v1668
        %v1679 = vadd.f32 %v1637, %v1677
        %v1680 = vadd.f32 %v1638, %v1678
        %s1681 = sld [smem:[#allocation4 + $0x99]]
        %v1682 = vstv %s1681
        %v1683 = vmul.f32 %v1682, %v1667
        %v1684 = vmul.f32 %v1682, %v1668
        %v1685 = vadd.f32 %v1651, %v1683
        %v1686 = vadd.f32 %v1652, %v1684
        %s1687 = sld [smem:[#allocation4 + $0xe1]]
        %v1688 = vstv %s1687
        %v1689 = vmul.f32 %v1688, %v1667
        %v1690 = vmul.f32 %v1688, %v1668
        %v1691 = vadd.f32 %v1665, %v1689
        %v1692 = vadd.f32 %v1666, %v1690
        %s1693 = sld [smem:[#allocation4 + $0xa]]
        %v1694 = vstv %s1693
        %v1695 = vmul.f32 %v1694, %v1667
        %v1696 = vmul.f32 %v1694, %v1668
        %1699 = vrot.lane.b32.xlu0 %v1695, 127
        %v1700 = vpop.permute.xlu0 %1699
        %1701 = vrot.lane.b32.xlu0 %v1696, 127
        %v1702 = vpop.permute.xlu0 %1701
        %v1705 = vadd.f32 %v1673, %v1700
        %v1706 = vadd.f32 %v1674, %v1702
        %s1707 = sld [smem:[#allocation4 + $0x52]]
        %v1708 = vstv %s1707
        %v1709 = vmul.f32 %v1708, %v1667
        %v1710 = vmul.f32 %v1708, %v1668
        %1713 = vrot.lane.b32.xlu0 %v1709, 127
        %v1714 = vpop.permute.xlu0 %1713
        %1715 = vrot.lane.b32.xlu0 %v1710, 127
        %v1716 = vpop.permute.xlu0 %1715
        %v1719 = vadd.f32 %v1679, %v1714
        %v1720 = vadd.f32 %v1680, %v1716
        %s1721 = sld [smem:[#allocation4 + $0x9a]]
        %v1722 = vstv %s1721
        %v1723 = vmul.f32 %v1722, %v1667
        %v1724 = vmul.f32 %v1722, %v1668
        %1727 = vrot.lane.b32.xlu0 %v1723, 127
        %v1728 = vpop.permute.xlu0 %1727
        %1729 = vrot.lane.b32.xlu0 %v1724, 127
        %v1730 = vpop.permute.xlu0 %1729
        %v1733 = vadd.f32 %v1685, %v1728
        %v1734 = vadd.f32 %v1686, %v1730
        %s1735 = sld [smem:[#allocation4 + $0xe2]]
        %v1736 = vstv %s1735
        %v1737 = vmul.f32 %v1736, %v1667
        %v1738 = vmul.f32 %v1736, %v1668
        %1741 = vrot.lane.b32.xlu0 %v1737, 127
        %v1742 = vpop.permute.xlu0 %1741
        %1743 = vrot.lane.b32.xlu0 %v1738, 127
        %v1744 = vpop.permute.xlu0 %1743
        %v1747 = vadd.f32 %v1691, %v1742
        %v1748 = vadd.f32 %v1692, %v1744
        %s1749 = sld [smem:[#allocation4 + $0xb]]
        %v1750 = vstv %s1749
        %v1751 = vmul.f32 %v1750, %v1667
        %v1752 = vmul.f32 %v1750, %v1668
        %1755 = vrot.lane.b32.xlu0 %v1751, 126
        %v1756 = vpop.permute.xlu0 %1755
        %1757 = vrot.lane.b32.xlu0 %v1752, 126
        %v1758 = vpop.permute.xlu0 %1757
        %v1761 = vadd.f32 %v1705, %v1756
        %v1762 = vadd.f32 %v1706, %v1758
        %s1763 = sld [smem:[#allocation4 + $0x53]]
        %v1764 = vstv %s1763
        %v1765 = vmul.f32 %v1764, %v1667
        %v1766 = vmul.f32 %v1764, %v1668
        %1769 = vrot.lane.b32.xlu0 %v1765, 126
        %v1770 = vpop.permute.xlu0 %1769
        %1771 = vrot.lane.b32.xlu0 %v1766, 126
        %v1772 = vpop.permute.xlu0 %1771
        %v1775 = vadd.f32 %v1719, %v1770
        %v1776 = vadd.f32 %v1720, %v1772
        %s1777 = sld [smem:[#allocation4 + $0x9b]]
        %v1778 = vstv %s1777
        %v1779 = vmul.f32 %v1778, %v1667
        %v1780 = vmul.f32 %v1778, %v1668
        %1783 = vrot.lane.b32.xlu0 %v1779, 126
        %v1784 = vpop.permute.xlu0 %1783
        %1785 = vrot.lane.b32.xlu0 %v1780, 126
        %v1786 = vpop.permute.xlu0 %1785
        %v1789 = vadd.f32 %v1733, %v1784
        %v1790 = vadd.f32 %v1734, %v1786
        %s1791 = sld [smem:[#allocation4 + $0xe3]]
        %v1792 = vstv %s1791
        %v1793 = vmul.f32 %v1792, %v1667
        %v1794 = vmul.f32 %v1792, %v1668
        %1797 = vrot.lane.b32.xlu0 %v1793, 126
        %v1798 = vpop.permute.xlu0 %1797
        %1799 = vrot.lane.b32.xlu0 %v1794, 126
        %v1800 = vpop.permute.xlu0 %1799
        %v1803 = vadd.f32 %v1747, %v1798
        %v1804 = vadd.f32 %v1748, %v1800
        %v1805 = vld [vmem:[%s438 + $0x1] sm:$0xff]
        %v1806 = vld [vmem:[%s438 + $0x9] sm:$0xff]
        %s1807 = sld [smem:[#allocation4 + $0xc]]
        %v1808 = vstv %s1807
        %v1809 = vmul.f32 %v1808, %v1805
        %v1810 = vmul.f32 %v1808, %v1806
        %v1811 = vadd.f32 %v1761, %v1809
        %v1812 = vadd.f32 %v1762, %v1810
        %s1813 = sld [smem:[#allocation4 + $0x54]]
        %v1814 = vstv %s1813
        %v1815 = vmul.f32 %v1814, %v1805
        %v1816 = vmul.f32 %v1814, %v1806
        %v1817 = vadd.f32 %v1775, %v1815
        %v1818 = vadd.f32 %v1776, %v1816
        %s1819 = sld [smem:[#allocation4 + $0x9c]]
        %v1820 = vstv %s1819
        %v1821 = vmul.f32 %v1820, %v1805
        %v1822 = vmul.f32 %v1820, %v1806
        %v1823 = vadd.f32 %v1789, %v1821
        %v1824 = vadd.f32 %v1790, %v1822
        %s1825 = sld [smem:[#allocation4 + $0xe4]]
        %v1826 = vstv %s1825
        %v1827 = vmul.f32 %v1826, %v1805
        %v1828 = vmul.f32 %v1826, %v1806
        %v1829 = vadd.f32 %v1803, %v1827
        %v1830 = vadd.f32 %v1804, %v1828
        %s1831 = sld [smem:[#allocation4 + $0xd]]
        %v1832 = vstv %s1831
        %v1833 = vmul.f32 %v1832, %v1805
        %v1834 = vmul.f32 %v1832, %v1806
        %1837 = vrot.lane.b32.xlu0 %v1833, 127
        %v1838 = vpop.permute.xlu0 %1837
        %1839 = vrot.lane.b32.xlu0 %v1834, 127
        %v1840 = vpop.permute.xlu0 %1839
        %v1843 = vadd.f32 %v1811, %v1838
        %v1844 = vadd.f32 %v1812, %v1840
        %s1845 = sld [smem:[#allocation4 + $0x55]]
        %v1846 = vstv %s1845
        %v1847 = vmul.f32 %v1846, %v1805
        %v1848 = vmul.f32 %v1846, %v1806
        %1851 = vrot.lane.b32.xlu0 %v1847, 127
        %v1852 = vpop.permute.xlu0 %1851
        %1853 = vrot.lane.b32.xlu0 %v1848, 127
        %v1854 = vpop.permute.xlu0 %1853
        %v1857 = vadd.f32 %v1817, %v1852
        %v1858 = vadd.f32 %v1818, %v1854
        %s1859 = sld [smem:[#allocation4 + $0x9d]]
        %v1860 = vstv %s1859
        %v1861 = vmul.f32 %v1860, %v1805
        %v1862 = vmul.f32 %v1860, %v1806
        %1865 = vrot.lane.b32.xlu0 %v1861, 127
        %v1866 = vpop.permute.xlu0 %1865
        %1867 = vrot.lane.b32.xlu0 %v1862, 127
        %v1868 = vpop.permute.xlu0 %1867
        %v1871 = vadd.f32 %v1823, %v1866
        %v1872 = vadd.f32 %v1824, %v1868
        %s1873 = sld [smem:[#allocation4 + $0xe5]]
        %v1874 = vstv %s1873
        %v1875 = vmul.f32 %v1874, %v1805
        %v1876 = vmul.f32 %v1874, %v1806
        %1879 = vrot.lane.b32.xlu0 %v1875, 127
        %v1880 = vpop.permute.xlu0 %1879
        %1881 = vrot.lane.b32.xlu0 %v1876, 127
        %v1882 = vpop.permute.xlu0 %1881
        %v1885 = vadd.f32 %v1829, %v1880
        %v1886 = vadd.f32 %v1830, %v1882
        %s1887 = sld [smem:[#allocation4 + $0xe]]
        %v1888 = vstv %s1887
        %v1889 = vmul.f32 %v1888, %v1805
        %v1890 = vmul.f32 %v1888, %v1806
        %1893 = vrot.lane.b32.xlu0 %v1889, 126
        %v1894 = vpop.permute.xlu0 %1893
        %1895 = vrot.lane.b32.xlu0 %v1890, 126
        %v1896 = vpop.permute.xlu0 %1895
        %v1899 = vadd.f32 %v1843, %v1894
        %v1900 = vadd.f32 %v1844, %v1896
        %s1901 = sld [smem:[#allocation4 + $0x56]]
        %v1902 = vstv %s1901
        %v1903 = vmul.f32 %v1902, %v1805
        %v1904 = vmul.f32 %v1902, %v1806
        %1907 = vrot.lane.b32.xlu0 %v1903, 126
        %v1908 = vpop.permute.xlu0 %1907
        %1909 = vrot.lane.b32.xlu0 %v1904, 126
        %v1910 = vpop.permute.xlu0 %1909
        %v1913 = vadd.f32 %v1857, %v1908
        %v1914 = vadd.f32 %v1858, %v1910
        %s1915 = sld [smem:[#allocation4 + $0x9e]]
        %v1916 = vstv %s1915
        %v1917 = vmul.f32 %v1916, %v1805
        %v1918 = vmul.f32 %v1916, %v1806
        %1921 = vrot.lane.b32.xlu0 %v1917, 126
        %v1922 = vpop.permute.xlu0 %1921
        %1923 = vrot.lane.b32.xlu0 %v1918, 126
        %v1924 = vpop.permute.xlu0 %1923
        %v1927 = vadd.f32 %v1871, %v1922
        %v1928 = vadd.f32 %v1872, %v1924
        %s1929 = sld [smem:[#allocation4 + $0xe6]]
        %v1930 = vstv %s1929
        %v1931 = vmul.f32 %v1930, %v1805
        %v1932 = vmul.f32 %v1930, %v1806
        %1935 = vrot.lane.b32.xlu0 %v1931, 126
        %v1936 = vpop.permute.xlu0 %1935
        %1937 = vrot.lane.b32.xlu0 %v1932, 126
        %v1938 = vpop.permute.xlu0 %1937
        %v1941 = vadd.f32 %v1885, %v1936
        %v1942 = vadd.f32 %v1886, %v1938
        %v1943 = vld [vmem:[%s438 + $0x2] sm:$0xff]
        %v1944 = vld [vmem:[%s438 + $0xa] sm:$0xff]
        %s1945 = sld [smem:[#allocation4 + $0xf]]
        %v1946 = vstv %s1945
        %v1947 = vmul.f32 %v1946, %v1943
        %v1948 = vmul.f32 %v1946, %v1944
        %v1949 = vadd.f32 %v1899, %v1947
        %v1950 = vadd.f32 %v1900, %v1948
        %s1951 = sld [smem:[#allocation4 + $0x57]]
        %v1952 = vstv %s1951
        %v1953 = vmul.f32 %v1952, %v1943
        %v1954 = vmul.f32 %v1952, %v1944
        %v1955 = vadd.f32 %v1913, %v1953
        %v1956 = vadd.f32 %v1914, %v1954
        %s1957 = sld [smem:[#allocation4 + $0x9f]]
        %v1958 = vstv %s1957
        %v1959 = vmul.f32 %v1958, %v1943
        %v1960 = vmul.f32 %v1958, %v1944
        %v1961 = vadd.f32 %v1927, %v1959
        %v1962 = vadd.f32 %v1928, %v1960
        %s1963 = sld [smem:[#allocation4 + $0xe7]]
        %v1964 = vstv %s1963
        %v1965 = vmul.f32 %v1964, %v1943
        %v1966 = vmul.f32 %v1964, %v1944
        %v1967 = vadd.f32 %v1941, %v1965
        %v1968 = vadd.f32 %v1942, %v1966
        %s1969 = sld [smem:[#allocation4 + $0x10]]
        %v1970 = vstv %s1969
        %v1971 = vmul.f32 %v1970, %v1943
        %v1972 = vmul.f32 %v1970, %v1944
        %1975 = vrot.lane.b32.xlu0 %v1971, 127
        %v1976 = vpop.permute.xlu0 %1975
        %1977 = vrot.lane.b32.xlu0 %v1972, 127
        %v1978 = vpop.permute.xlu0 %1977
        %v1981 = vadd.f32 %v1949, %v1976
        %v1982 = vadd.f32 %v1950, %v1978
        %s1983 = sld [smem:[#allocation4 + $0x58]]
        %v1984 = vstv %s1983
        %v1985 = vmul.f32 %v1984, %v1943
        %v1986 = vmul.f32 %v1984, %v1944
        %1989 = vrot.lane.b32.xlu0 %v1985, 127
        %v1990 = vpop.permute.xlu0 %1989
        %1991 = vrot.lane.b32.xlu0 %v1986, 127
        %v1992 = vpop.permute.xlu0 %1991
        %v1995 = vadd.f32 %v1955, %v1990
        %v1996 = vadd.f32 %v1956, %v1992
        %s1997 = sld [smem:[#allocation4 + $0xa0]]
        %v1998 = vstv %s1997
        %v1999 = vmul.f32 %v1998, %v1943
        %v2000 = vmul.f32 %v1998, %v1944
        %2003 = vrot.lane.b32.xlu0 %v1999, 127
        %v2004 = vpop.permute.xlu0 %2003
        %2005 = vrot.lane.b32.xlu0 %v2000, 127
        %v2006 = vpop.permute.xlu0 %2005
        %v2009 = vadd.f32 %v1961, %v2004
        %v2010 = vadd.f32 %v1962, %v2006
        %s2011 = sld [smem:[#allocation4 + $0xe8]]
        %v2012 = vstv %s2011
        %v2013 = vmul.f32 %v2012, %v1943
        %v2014 = vmul.f32 %v2012, %v1944
        %2017 = vrot.lane.b32.xlu0 %v2013, 127
        %v2018 = vpop.permute.xlu0 %2017
        %2019 = vrot.lane.b32.xlu0 %v2014, 127
        %v2020 = vpop.permute.xlu0 %2019
        %v2023 = vadd.f32 %v1967, %v2018
        %v2024 = vadd.f32 %v1968, %v2020
        %s2025 = sld [smem:[#allocation4 + $0x11]]
        %v2026 = vstv %s2025
        %v2027 = vmul.f32 %v2026, %v1943
        %v2028 = vmul.f32 %v2026, %v1944
        %2031 = vrot.lane.b32.xlu0 %v2027, 126
        %v2032 = vpop.permute.xlu0 %2031
        %2033 = vrot.lane.b32.xlu0 %v2028, 126
        %v2034 = vpop.permute.xlu0 %2033
        %v2037 = vadd.f32 %v1981, %v2032
        %v2038 = vadd.f32 %v1982, %v2034
        %s2039 = sld [smem:[#allocation4 + $0x59]]
        %v2040 = vstv %s2039
        %v2041 = vmul.f32 %v2040, %v1943
        %v2042 = vmul.f32 %v2040, %v1944
        %2045 = vrot.lane.b32.xlu0 %v2041, 126
        %v2046 = vpop.permute.xlu0 %2045
        %2047 = vrot.lane.b32.xlu0 %v2042, 126
        %v2048 = vpop.permute.xlu0 %2047
        %v2051 = vadd.f32 %v1995, %v2046
        %v2052 = vadd.f32 %v1996, %v2048
        %s2053 = sld [smem:[#allocation4 + $0xa1]]
        %v2054 = vstv %s2053
        %v2055 = vmul.f32 %v2054, %v1943
        %v2056 = vmul.f32 %v2054, %v1944
        %2059 = vrot.lane.b32.xlu0 %v2055, 126
        %v2060 = vpop.permute.xlu0 %2059
        %2061 = vrot.lane.b32.xlu0 %v2056, 126
        %v2062 = vpop.permute.xlu0 %2061
        %v2065 = vadd.f32 %v2009, %v2060
        %v2066 = vadd.f32 %v2010, %v2062
        %s2067 = sld [smem:[#allocation4 + $0xe9]]
        %v2068 = vstv %s2067
        %v2069 = vmul.f32 %v2068, %v1943
        %v2070 = vmul.f32 %v2068, %v1944
        %2073 = vrot.lane.b32.xlu0 %v2069, 126
        %v2074 = vpop.permute.xlu0 %2073
        %2075 = vrot.lane.b32.xlu0 %v2070, 126
        %v2076 = vpop.permute.xlu0 %2075
        %v2079 = vadd.f32 %v2023, %v2074
        %v2080 = vadd.f32 %v2024, %v2076
        %v2081 = vld [vmem:[%s452] sm:$0xff]
        %v2082 = vld [vmem:[%s452 + $0x8] sm:$0xff]
        %s2083 = sld [smem:[#allocation4 + $0x12]]
        %v2084 = vstv %s2083
        %v2085 = vmul.f32 %v2084, %v2081
        %v2086 = vmul.f32 %v2084, %v2082
        %v2087 = vadd.f32 %v2037, %v2085
        %v2088 = vadd.f32 %v2038, %v2086
        %s2089 = sld [smem:[#allocation4 + $0x5a]]
        %v2090 = vstv %s2089
        %v2091 = vmul.f32 %v2090, %v2081
        %v2092 = vmul.f32 %v2090, %v2082
        %v2093 = vadd.f32 %v2051, %v2091
        %v2094 = vadd.f32 %v2052, %v2092
        %s2095 = sld [smem:[#allocation4 + $0xa2]]
        %v2096 = vstv %s2095
        %v2097 = vmul.f32 %v2096, %v2081
        %v2098 = vmul.f32 %v2096, %v2082
        %v2099 = vadd.f32 %v2065, %v2097
        %v2100 = vadd.f32 %v2066, %v2098
        %s2101 = sld [smem:[#allocation4 + $0xea]]
        %v2102 = vstv %s2101
        %v2103 = vmul.f32 %v2102, %v2081
        %v2104 = vmul.f32 %v2102, %v2082
        %v2105 = vadd.f32 %v2079, %v2103
        %v2106 = vadd.f32 %v2080, %v2104
        %s2107 = sld [smem:[#allocation4 + $0x13]]
        %v2108 = vstv %s2107
        %v2109 = vmul.f32 %v2108, %v2081
        %v2110 = vmul.f32 %v2108, %v2082
        %2113 = vrot.lane.b32.xlu0 %v2109, 127
        %v2114 = vpop.permute.xlu0 %2113
        %2115 = vrot.lane.b32.xlu0 %v2110, 127
        %v2116 = vpop.permute.xlu0 %2115
        %v2119 = vadd.f32 %v2087, %v2114
        %v2120 = vadd.f32 %v2088, %v2116
        %s2121 = sld [smem:[#allocation4 + $0x5b]]
        %v2122 = vstv %s2121
        %v2123 = vmul.f32 %v2122, %v2081
        %v2124 = vmul.f32 %v2122, %v2082
        %2127 = vrot.lane.b32.xlu0 %v2123, 127
        %v2128 = vpop.permute.xlu0 %2127
        %2129 = vrot.lane.b32.xlu0 %v2124, 127
        %v2130 = vpop.permute.xlu0 %2129
        %v2133 = vadd.f32 %v2093, %v2128
        %v2134 = vadd.f32 %v2094, %v2130
        %s2135 = sld [smem:[#allocation4 + $0xa3]]
        %v2136 = vstv %s2135
        %v2137 = vmul.f32 %v2136, %v2081
        %v2138 = vmul.f32 %v2136, %v2082
        %2141 = vrot.lane.b32.xlu0 %v2137, 127
        %v2142 = vpop.permute.xlu0 %2141
        %2143 = vrot.lane.b32.xlu0 %v2138, 127
        %v2144 = vpop.permute.xlu0 %2143
        %v2147 = vadd.f32 %v2099, %v2142
        %v2148 = vadd.f32 %v2100, %v2144
        %s2149 = sld [smem:[#allocation4 + $0xeb]]
        %v2150 = vstv %s2149
        %v2151 = vmul.f32 %v2150, %v2081
        %v2152 = vmul.f32 %v2150, %v2082
        %2155 = vrot.lane.b32.xlu0 %v2151, 127
        %v2156 = vpop.permute.xlu0 %2155
        %2157 = vrot.lane.b32.xlu0 %v2152, 127
        %v2158 = vpop.permute.xlu0 %2157
        %v2161 = vadd.f32 %v2105, %v2156
        %v2162 = vadd.f32 %v2106, %v2158
        %s2163 = sld [smem:[#allocation4 + $0x14]]
        %v2164 = vstv %s2163
        %v2165 = vmul.f32 %v2164, %v2081
        %v2166 = vmul.f32 %v2164, %v2082
        %2169 = vrot.lane.b32.xlu0 %v2165, 126
        %v2170 = vpop.permute.xlu0 %2169
        %2171 = vrot.lane.b32.xlu0 %v2166, 126
        %v2172 = vpop.permute.xlu0 %2171
        %v2175 = vadd.f32 %v2119, %v2170
        %v2176 = vadd.f32 %v2120, %v2172
        %s2177 = sld [smem:[#allocation4 + $0x5c]]
        %v2178 = vstv %s2177
        %v2179 = vmul.f32 %v2178, %v2081
        %v2180 = vmul.f32 %v2178, %v2082
        %2183 = vrot.lane.b32.xlu0 %v2179, 126
        %v2184 = vpop.permute.xlu0 %2183
        %2185 = vrot.lane.b32.xlu0 %v2180, 126
        %v2186 = vpop.permute.xlu0 %2185
        %v2189 = vadd.f32 %v2133, %v2184
        %v2190 = vadd.f32 %v2134, %v2186
        %s2191 = sld [smem:[#allocation4 + $0xa4]]
        %v2192 = vstv %s2191
        %v2193 = vmul.f32 %v2192, %v2081
        %v2194 = vmul.f32 %v2192, %v2082
        %2197 = vrot.lane.b32.xlu0 %v2193, 126
        %v2198 = vpop.permute.xlu0 %2197
        %2199 = vrot.lane.b32.xlu0 %v2194, 126
        %v2200 = vpop.permute.xlu0 %2199
        %v2203 = vadd.f32 %v2147, %v2198
        %v2204 = vadd.f32 %v2148, %v2200
        %s2205 = sld [smem:[#allocation4 + $0xec]]
        %v2206 = vstv %s2205
        %v2207 = vmul.f32 %v2206, %v2081
        %v2208 = vmul.f32 %v2206, %v2082
        %2211 = vrot.lane.b32.xlu0 %v2207, 126
        %v2212 = vpop.permute.xlu0 %2211
        %2213 = vrot.lane.b32.xlu0 %v2208, 126
        %v2214 = vpop.permute.xlu0 %2213
        %v2217 = vadd.f32 %v2161, %v2212
        %v2218 = vadd.f32 %v2162, %v2214
        %v2219 = vld [vmem:[%s452 + $0x1] sm:$0xff]
        %v2220 = vld [vmem:[%s452 + $0x9] sm:$0xff]
        %s2221 = sld [smem:[#allocation4 + $0x15]]
        %v2222 = vstv %s2221
        %v2223 = vmul.f32 %v2222, %v2219
        %v2224 = vmul.f32 %v2222, %v2220
        %v2225 = vadd.f32 %v2175, %v2223
        %v2226 = vadd.f32 %v2176, %v2224
        %s2227 = sld [smem:[#allocation4 + $0x5d]]
        %v2228 = vstv %s2227
        %v2229 = vmul.f32 %v2228, %v2219
        %v2230 = vmul.f32 %v2228, %v2220
        %v2231 = vadd.f32 %v2189, %v2229
        %v2232 = vadd.f32 %v2190, %v2230
        %s2233 = sld [smem:[#allocation4 + $0xa5]]
        %v2234 = vstv %s2233
        %v2235 = vmul.f32 %v2234, %v2219
        %v2236 = vmul.f32 %v2234, %v2220
        %v2237 = vadd.f32 %v2203, %v2235
        %v2238 = vadd.f32 %v2204, %v2236
        %s2239 = sld [smem:[#allocation4 + $0xed]]
        %v2240 = vstv %s2239
        %v2241 = vmul.f32 %v2240, %v2219
        %v2242 = vmul.f32 %v2240, %v2220
        %v2243 = vadd.f32 %v2217, %v2241
        %v2244 = vadd.f32 %v2218, %v2242
        %s2245 = sld [smem:[#allocation4 + $0x16]]
        %v2246 = vstv %s2245
        %v2247 = vmul.f32 %v2246, %v2219
        %v2248 = vmul.f32 %v2246, %v2220
        %2251 = vrot.lane.b32.xlu0 %v2247, 127
        %v2252 = vpop.permute.xlu0 %2251
        %2253 = vrot.lane.b32.xlu0 %v2248, 127
        %v2254 = vpop.permute.xlu0 %2253
        %v2257 = vadd.f32 %v2225, %v2252
        %v2258 = vadd.f32 %v2226, %v2254
        %s2259 = sld [smem:[#allocation4 + $0x5e]]
        %v2260 = vstv %s2259
        %v2261 = vmul.f32 %v2260, %v2219
        %v2262 = vmul.f32 %v2260, %v2220
        %2265 = vrot.lane.b32.xlu0 %v2261, 127
        %v2266 = vpop.permute.xlu0 %2265
        %2267 = vrot.lane.b32.xlu0 %v2262, 127
        %v2268 = vpop.permute.xlu0 %2267
        %v2271 = vadd.f32 %v2231, %v2266
        %v2272 = vadd.f32 %v2232, %v2268
        %s2273 = sld [smem:[#allocation4 + $0xa6]]
        %v2274 = vstv %s2273
        %v2275 = vmul.f32 %v2274, %v2219
        %v2276 = vmul.f32 %v2274, %v2220
        %2279 = vrot.lane.b32.xlu0 %v2275, 127
        %v2280 = vpop.permute.xlu0 %2279
        %2281 = vrot.lane.b32.xlu0 %v2276, 127
        %v2282 = vpop.permute.xlu0 %2281
        %v2285 = vadd.f32 %v2237, %v2280
        %v2286 = vadd.f32 %v2238, %v2282
        %s2287 = sld [smem:[#allocation4 + $0xee]]
        %v2288 = vstv %s2287
        %v2289 = vmul.f32 %v2288, %v2219
        %v2290 = vmul.f32 %v2288, %v2220
        %2293 = vrot.lane.b32.xlu0 %v2289, 127
        %v2294 = vpop.permute.xlu0 %2293
        %2295 = vrot.lane.b32.xlu0 %v2290, 127
        %v2296 = vpop.permute.xlu0 %2295
        %v2299 = vadd.f32 %v2243, %v2294
        %v2300 = vadd.f32 %v2244, %v2296
        %s2301 = sld [smem:[#allocation4 + $0x17]]
        %v2302 = vstv %s2301
        %v2303 = vmul.f32 %v2302, %v2219
        %v2304 = vmul.f32 %v2302, %v2220
        %2307 = vrot.lane.b32.xlu0 %v2303, 126
        %v2308 = vpop.permute.xlu0 %2307
        %2309 = vrot.lane.b32.xlu0 %v2304, 126
        %v2310 = vpop.permute.xlu0 %2309
        %v2313 = vadd.f32 %v2257, %v2308
        %v2314 = vadd.f32 %v2258, %v2310
        %s2315 = sld [smem:[#allocation4 + $0x5f]]
        %v2316 = vstv %s2315
        %v2317 = vmul.f32 %v2316, %v2219
        %v2318 = vmul.f32 %v2316, %v2220
        %2321 = vrot.lane.b32.xlu0 %v2317, 126
        %v2322 = vpop.permute.xlu0 %2321
        %2323 = vrot.lane.b32.xlu0 %v2318, 126
        %v2324 = vpop.permute.xlu0 %2323
        %v2327 = vadd.f32 %v2271, %v2322
        %v2328 = vadd.f32 %v2272, %v2324
        %s2329 = sld [smem:[#allocation4 + $0xa7]]
        %v2330 = vstv %s2329
        %v2331 = vmul.f32 %v2330, %v2219
        %v2332 = vmul.f32 %v2330, %v2220
        %2335 = vrot.lane.b32.xlu0 %v2331, 126
        %v2336 = vpop.permute.xlu0 %2335
        %2337 = vrot.lane.b32.xlu0 %v2332, 126
        %v2338 = vpop.permute.xlu0 %2337
        %v2341 = vadd.f32 %v2285, %v2336
        %v2342 = vadd.f32 %v2286, %v2338
        %s2343 = sld [smem:[#allocation4 + $0xef]]
        %v2344 = vstv %s2343
        %v2345 = vmul.f32 %v2344, %v2219
        %v2346 = vmul.f32 %v2344, %v2220
        %2349 = vrot.lane.b32.xlu0 %v2345, 126
        %v2350 = vpop.permute.xlu0 %2349
        %2351 = vrot.lane.b32.xlu0 %v2346, 126
        %v2352 = vpop.permute.xlu0 %2351
        %v2355 = vadd.f32 %v2299, %v2350
        %v2356 = vadd.f32 %v2300, %v2352
        %v2357 = vld [vmem:[%s452 + $0x2] sm:$0xff]
        %v2358 = vld [vmem:[%s452 + $0xa] sm:$0xff]
        %s2359 = sld [smem:[#allocation4 + $0x18]]
        %v2360 = vstv %s2359
        %v2361 = vmul.f32 %v2360, %v2357
        %v2362 = vmul.f32 %v2360, %v2358
        %v2363 = vadd.f32 %v2313, %v2361
        %v2364 = vadd.f32 %v2314, %v2362
        %s2365 = sld [smem:[#allocation4 + $0x60]]
        %v2366 = vstv %s2365
        %v2367 = vmul.f32 %v2366, %v2357
        %v2368 = vmul.f32 %v2366, %v2358
        %v2369 = vadd.f32 %v2327, %v2367
        %v2370 = vadd.f32 %v2328, %v2368
        %s2371 = sld [smem:[#allocation4 + $0xa8]]
        %v2372 = vstv %s2371
        %v2373 = vmul.f32 %v2372, %v2357
        %v2374 = vmul.f32 %v2372, %v2358
        %v2375 = vadd.f32 %v2341, %v2373
        %v2376 = vadd.f32 %v2342, %v2374
        %s2377 = sld [smem:[#allocation4 + $0xf0]]
        %v2378 = vstv %s2377
        %v2379 = vmul.f32 %v2378, %v2357
        %v2380 = vmul.f32 %v2378, %v2358
        %v2381 = vadd.f32 %v2355, %v2379
        %v2382 = vadd.f32 %v2356, %v2380
        %s2383 = sld [smem:[#allocation4 + $0x19]]
        %v2384 = vstv %s2383
        %v2385 = vmul.f32 %v2384, %v2357
        %v2386 = vmul.f32 %v2384, %v2358
        %2389 = vrot.lane.b32.xlu0 %v2385, 127
        %v2390 = vpop.permute.xlu0 %2389
        %2391 = vrot.lane.b32.xlu0 %v2386, 127
        %v2392 = vpop.permute.xlu0 %2391
        %v2395 = vadd.f32 %v2363, %v2390
        %v2396 = vadd.f32 %v2364, %v2392
        %s2397 = sld [smem:[#allocation4 + $0x61]]
        %v2398 = vstv %s2397
        %v2399 = vmul.f32 %v2398, %v2357
        %v2400 = vmul.f32 %v2398, %v2358
        %2403 = vrot.lane.b32.xlu0 %v2399, 127
        %v2404 = vpop.permute.xlu0 %2403
        %2405 = vrot.lane.b32.xlu0 %v2400, 127
        %v2406 = vpop.permute.xlu0 %2405
        %v2409 = vadd.f32 %v2369, %v2404
        %v2410 = vadd.f32 %v2370, %v2406
        %s2411 = sld [smem:[#allocation4 + $0xa9]]
        %v2412 = vstv %s2411
        %v2413 = vmul.f32 %v2412, %v2357
        %v2414 = vmul.f32 %v2412, %v2358
        %2417 = vrot.lane.b32.xlu0 %v2413, 127
        %v2418 = vpop.permute.xlu0 %2417
        %2419 = vrot.lane.b32.xlu0 %v2414, 127
        %v2420 = vpop.permute.xlu0 %2419
        %v2423 = vadd.f32 %v2375, %v2418
        %v2424 = vadd.f32 %v2376, %v2420
        %s2425 = sld [smem:[#allocation4 + $0xf1]]
        %v2426 = vstv %s2425
        %v2427 = vmul.f32 %v2426, %v2357
        %v2428 = vmul.f32 %v2426, %v2358
        %2431 = vrot.lane.b32.xlu0 %v2427, 127
        %v2432 = vpop.permute.xlu0 %2431
        %2433 = vrot.lane.b32.xlu0 %v2428, 127
        %v2434 = vpop.permute.xlu0 %2433
        %v2437 = vadd.f32 %v2381, %v2432
        %v2438 = vadd.f32 %v2382, %v2434
        %s2439 = sld [smem:[#allocation4 + $0x1a]]
        %v2440 = vstv %s2439
        %v2441 = vmul.f32 %v2440, %v2357
        %v2442 = vmul.f32 %v2440, %v2358
        %2445 = vrot.lane.b32.xlu0 %v2441, 126
        %v2446 = vpop.permute.xlu0 %2445
        %2447 = vrot.lane.b32.xlu0 %v2442, 126
        %v2448 = vpop.permute.xlu0 %2447
        %v2451 = vadd.f32 %v2395, %v2446
        %v2452 = vadd.f32 %v2396, %v2448
        %s2453 = sld [smem:[#allocation4 + $0x62]]
        %v2454 = vstv %s2453
        %v2455 = vmul.f32 %v2454, %v2357
        %v2456 = vmul.f32 %v2454, %v2358
        %2459 = vrot.lane.b32.xlu0 %v2455, 126
        %v2460 = vpop.permute.xlu0 %2459
        %2461 = vrot.lane.b32.xlu0 %v2456, 126
        %v2462 = vpop.permute.xlu0 %2461
        %v2465 = vadd.f32 %v2409, %v2460
        %v2466 = vadd.f32 %v2410, %v2462
        %s2467 = sld [smem:[#allocation4 + $0xaa]]
        %v2468 = vstv %s2467
        %v2469 = vmul.f32 %v2468, %v2357
        %v2470 = vmul.f32 %v2468, %v2358
        %2473 = vrot.lane.b32.xlu0 %v2469, 126
        %v2474 = vpop.permute.xlu0 %2473
        %2475 = vrot.lane.b32.xlu0 %v2470, 126
        %v2476 = vpop.permute.xlu0 %2475
        %v2479 = vadd.f32 %v2423, %v2474
        %v2480 = vadd.f32 %v2424, %v2476
        %s2481 = sld [smem:[#allocation4 + $0xf2]]
        %v2482 = vstv %s2481
        %v2483 = vmul.f32 %v2482, %v2357
        %v2484 = vmul.f32 %v2482, %v2358
        %2487 = vrot.lane.b32.xlu0 %v2483, 126
        %v2488 = vpop.permute.xlu0 %2487
        %2489 = vrot.lane.b32.xlu0 %v2484, 126
        %v2490 = vpop.permute.xlu0 %2489
        %v2493 = vadd.f32 %v2437, %v2488
        %v2494 = vadd.f32 %v2438, %v2490
        %v2495 = vld [vmem:[%s466] sm:$0xff]
        %v2496 = vld [vmem:[%s466 + $0x8] sm:$0xff]
        %s2497 = sld [smem:[#allocation4 + $0x1b]]
        %v2498 = vstv %s2497
        %v2499 = vmul.f32 %v2498, %v2495
        %v2500 = vmul.f32 %v2498, %v2496
        %v2501 = vadd.f32 %v2451, %v2499
        %v2502 = vadd.f32 %v2452, %v2500
        %s2503 = sld [smem:[#allocation4 + $0x63]]
        %v2504 = vstv %s2503
        %v2505 = vmul.f32 %v2504, %v2495
        %v2506 = vmul.f32 %v2504, %v2496
        %v2507 = vadd.f32 %v2465, %v2505
        %v2508 = vadd.f32 %v2466, %v2506
        %s2509 = sld [smem:[#allocation4 + $0xab]]
        %v2510 = vstv %s2509
        %v2511 = vmul.f32 %v2510, %v2495
        %v2512 = vmul.f32 %v2510, %v2496
        %v2513 = vadd.f32 %v2479, %v2511
        %v2514 = vadd.f32 %v2480, %v2512
        %s2515 = sld [smem:[#allocation4 + $0xf3]]
        %v2516 = vstv %s2515
        %v2517 = vmul.f32 %v2516, %v2495
        %v2518 = vmul.f32 %v2516, %v2496
        %v2519 = vadd.f32 %v2493, %v2517
        %v2520 = vadd.f32 %v2494, %v2518
        %s2521 = sld [smem:[#allocation4 + $0x1c]]
        %v2522 = vstv %s2521
        %v2523 = vmul.f32 %v2522, %v2495
        %v2524 = vmul.f32 %v2522, %v2496
        %2527 = vrot.lane.b32.xlu0 %v2523, 127
        %v2528 = vpop.permute.xlu0 %2527
        %2529 = vrot.lane.b32.xlu0 %v2524, 127
        %v2530 = vpop.permute.xlu0 %2529
        %v2533 = vadd.f32 %v2501, %v2528
        %v2534 = vadd.f32 %v2502, %v2530
        %s2535 = sld [smem:[#allocation4 + $0x64]]
        %v2536 = vstv %s2535
        %v2537 = vmul.f32 %v2536, %v2495
        %v2538 = vmul.f32 %v2536, %v2496
        %2541 = vrot.lane.b32.xlu0 %v2537, 127
        %v2542 = vpop.permute.xlu0 %2541
        %2543 = vrot.lane.b32.xlu0 %v2538, 127
        %v2544 = vpop.permute.xlu0 %2543
        %v2547 = vadd.f32 %v2507, %v2542
        %v2548 = vadd.f32 %v2508, %v2544
        %s2549 = sld [smem:[#allocation4 + $0xac]]
        %v2550 = vstv %s2549
        %v2551 = vmul.f32 %v2550, %v2495
        %v2552 = vmul.f32 %v2550, %v2496
        %2555 = vrot.lane.b32.xlu0 %v2551, 127
        %v2556 = vpop.permute.xlu0 %2555
        %2557 = vrot.lane.b32.xlu0 %v2552, 127
        %v2558 = vpop.permute.xlu0 %2557
        %v2561 = vadd.f32 %v2513, %v2556
        %v2562 = vadd.f32 %v2514, %v2558
        %s2563 = sld [smem:[#allocation4 + $0xf4]]
        %v2564 = vstv %s2563
        %v2565 = vmul.f32 %v2564, %v2495
        %v2566 = vmul.f32 %v2564, %v2496
        %2569 = vrot.lane.b32.xlu0 %v2565, 127
        %v2570 = vpop.permute.xlu0 %2569
        %2571 = vrot.lane.b32.xlu0 %v2566, 127
        %v2572 = vpop.permute.xlu0 %2571
        %v2575 = vadd.f32 %v2519, %v2570
        %v2576 = vadd.f32 %v2520, %v2572
        %s2577 = sld [smem:[#allocation4 + $0x1d]]
        %v2578 = vstv %s2577
        %v2579 = vmul.f32 %v2578, %v2495
        %v2580 = vmul.f32 %v2578, %v2496
        %2583 = vrot.lane.b32.xlu0 %v2579, 126
        %v2584 = vpop.permute.xlu0 %2583
        %2585 = vrot.lane.b32.xlu0 %v2580, 126
        %v2586 = vpop.permute.xlu0 %2585
        %v2589 = vadd.f32 %v2533, %v2584
        %v2590 = vadd.f32 %v2534, %v2586
        %s2591 = sld [smem:[#allocation4 + $0x65]]
        %v2592 = vstv %s2591
        %v2593 = vmul.f32 %v2592, %v2495
        %v2594 = vmul.f32 %v2592, %v2496
        %2597 = vrot.lane.b32.xlu0 %v2593, 126
        %v2598 = vpop.permute.xlu0 %2597
        %2599 = vrot.lane.b32.xlu0 %v2594, 126
        %v2600 = vpop.permute.xlu0 %2599
        %v2603 = vadd.f32 %v2547, %v2598
        %v2604 = vadd.f32 %v2548, %v2600
        %s2605 = sld [smem:[#allocation4 + $0xad]]
        %v2606 = vstv %s2605
        %v2607 = vmul.f32 %v2606, %v2495
        %v2608 = vmul.f32 %v2606, %v2496
        %2611 = vrot.lane.b32.xlu0 %v2607, 126
        %v2612 = vpop.permute.xlu0 %2611
        %2613 = vrot.lane.b32.xlu0 %v2608, 126
        %v2614 = vpop.permute.xlu0 %2613
        %v2617 = vadd.f32 %v2561, %v2612
        %v2618 = vadd.f32 %v2562, %v2614
        %s2619 = sld [smem:[#allocation4 + $0xf5]]
        %v2620 = vstv %s2619
        %v2621 = vmul.f32 %v2620, %v2495
        %v2622 = vmul.f32 %v2620, %v2496
        %2625 = vrot.lane.b32.xlu0 %v2621, 126
        %v2626 = vpop.permute.xlu0 %2625
        %2627 = vrot.lane.b32.xlu0 %v2622, 126
        %v2628 = vpop.permute.xlu0 %2627
        %v2631 = vadd.f32 %v2575, %v2626
        %v2632 = vadd.f32 %v2576, %v2628
        %v2633 = vld [vmem:[%s466 + $0x1] sm:$0xff]
        %v2634 = vld [vmem:[%s466 + $0x9] sm:$0xff]
        %s2635 = sld [smem:[#allocation4 + $0x1e]]
        %v2636 = vstv %s2635
        %v2637 = vmul.f32 %v2636, %v2633
        %v2638 = vmul.f32 %v2636, %v2634
        %v2639 = vadd.f32 %v2589, %v2637
        %v2640 = vadd.f32 %v2590, %v2638
        %s2641 = sld [smem:[#allocation4 + $0x66]]
        %v2642 = vstv %s2641
        %v2643 = vmul.f32 %v2642, %v2633
        %v2644 = vmul.f32 %v2642, %v2634
        %v2645 = vadd.f32 %v2603, %v2643
        %v2646 = vadd.f32 %v2604, %v2644
        %s2647 = sld [smem:[#allocation4 + $0xae]]
        %v2648 = vstv %s2647
        %v2649 = vmul.f32 %v2648, %v2633
        %v2650 = vmul.f32 %v2648, %v2634
        %v2651 = vadd.f32 %v2617, %v2649
        %v2652 = vadd.f32 %v2618, %v2650
        %s2653 = sld [smem:[#allocation4 + $0xf6]]
        %v2654 = vstv %s2653
        %v2655 = vmul.f32 %v2654, %v2633
        %v2656 = vmul.f32 %v2654, %v2634
        %v2657 = vadd.f32 %v2631, %v2655
        %v2658 = vadd.f32 %v2632, %v2656
        %s2659 = sld [smem:[#allocation4 + $0x1f]]
        %v2660 = vstv %s2659
        %v2661 = vmul.f32 %v2660, %v2633
        %v2662 = vmul.f32 %v2660, %v2634
        %2665 = vrot.lane.b32.xlu0 %v2661, 127
        %v2666 = vpop.permute.xlu0 %2665
        %2667 = vrot.lane.b32.xlu0 %v2662, 127
        %v2668 = vpop.permute.xlu0 %2667
        %v2671 = vadd.f32 %v2639, %v2666
        %v2672 = vadd.f32 %v2640, %v2668
        %s2673 = sld [smem:[#allocation4 + $0x67]]
        %v2674 = vstv %s2673
        %v2675 = vmul.f32 %v2674, %v2633
        %v2676 = vmul.f32 %v2674, %v2634
        %2679 = vrot.lane.b32.xlu0 %v2675, 127
        %v2680 = vpop.permute.xlu0 %2679
        %2681 = vrot.lane.b32.xlu0 %v2676, 127
        %v2682 = vpop.permute.xlu0 %2681
        %v2685 = vadd.f32 %v2645, %v2680
        %v2686 = vadd.f32 %v2646, %v2682
        %s2687 = sld [smem:[#allocation4 + $0xaf]]
        %v2688 = vstv %s2687
        %v2689 = vmul.f32 %v2688, %v2633
        %v2690 = vmul.f32 %v2688, %v2634
        %2693 = vrot.lane.b32.xlu0 %v2689, 127
        %v2694 = vpop.permute.xlu0 %2693
        %2695 = vrot.lane.b32.xlu0 %v2690, 127
        %v2696 = vpop.permute.xlu0 %2695
        %v2699 = vadd.f32 %v2651, %v2694
        %v2700 = vadd.f32 %v2652, %v2696
        %s2701 = sld [smem:[#allocation4 + $0xf7]]
        %v2702 = vstv %s2701
        %v2703 = vmul.f32 %v2702, %v2633
        %v2704 = vmul.f32 %v2702, %v2634
        %2707 = vrot.lane.b32.xlu0 %v2703, 127
        %v2708 = vpop.permute.xlu0 %2707
        %2709 = vrot.lane.b32.xlu0 %v2704, 127
        %v2710 = vpop.permute.xlu0 %2709
        %v2713 = vadd.f32 %v2657, %v2708
        %v2714 = vadd.f32 %v2658, %v2710
        %s2715 = sld [smem:[#allocation4 + $0x20]]
        %v2716 = vstv %s2715
        %v2717 = vmul.f32 %v2716, %v2633
        %v2718 = vmul.f32 %v2716, %v2634
        %2721 = vrot.lane.b32.xlu0 %v2717, 126
        %v2722 = vpop.permute.xlu0 %2721
        %2723 = vrot.lane.b32.xlu0 %v2718, 126
        %v2724 = vpop.permute.xlu0 %2723
        %v2727 = vadd.f32 %v2671, %v2722
        %v2728 = vadd.f32 %v2672, %v2724
        %s2729 = sld [smem:[#allocation4 + $0x68]]
        %v2730 = vstv %s2729
        %v2731 = vmul.f32 %v2730, %v2633
        %v2732 = vmul.f32 %v2730, %v2634
        %2735 = vrot.lane.b32.xlu0 %v2731, 126
        %v2736 = vpop.permute.xlu0 %2735
        %2737 = vrot.lane.b32.xlu0 %v2732, 126
        %v2738 = vpop.permute.xlu0 %2737
        %v2741 = vadd.f32 %v2685, %v2736
        %v2742 = vadd.f32 %v2686, %v2738
        %s2743 = sld [smem:[#allocation4 + $0xb0]]
        %v2744 = vstv %s2743
        %v2745 = vmul.f32 %v2744, %v2633
        %v2746 = vmul.f32 %v2744, %v2634
        %2749 = vrot.lane.b32.xlu0 %v2745, 126
        %v2750 = vpop.permute.xlu0 %2749
        %2751 = vrot.lane.b32.xlu0 %v2746, 126
        %v2752 = vpop.permute.xlu0 %2751
        %v2755 = vadd.f32 %v2699, %v2750
        %v2756 = vadd.f32 %v2700, %v2752
        %s2757 = sld [smem:[#allocation4 + $0xf8]]
        %v2758 = vstv %s2757
        %v2759 = vmul.f32 %v2758, %v2633
        %v2760 = vmul.f32 %v2758, %v2634
        %2763 = vrot.lane.b32.xlu0 %v2759, 126
        %v2764 = vpop.permute.xlu0 %2763
        %2765 = vrot.lane.b32.xlu0 %v2760, 126
        %v2766 = vpop.permute.xlu0 %2765
        %v2769 = vadd.f32 %v2713, %v2764
        %v2770 = vadd.f32 %v2714, %v2766
        %v2771 = vld [vmem:[%s466 + $0x2] sm:$0xff]
        %v2772 = vld [vmem:[%s466 + $0xa] sm:$0xff]
        %s2773 = sld [smem:[#allocation4 + $0x21]]
        %v2774 = vstv %s2773
        %v2775 = vmul.f32 %v2774, %v2771
        %v2776 = vmul.f32 %v2774, %v2772
        %v2777 = vadd.f32 %v2727, %v2775
        %v2778 = vadd.f32 %v2728, %v2776
        %s2779 = sld [smem:[#allocation4 + $0x69]]
        %v2780 = vstv %s2779
        %v2781 = vmul.f32 %v2780, %v2771
        %v2782 = vmul.f32 %v2780, %v2772
        %v2783 = vadd.f32 %v2741, %v2781
        %v2784 = vadd.f32 %v2742, %v2782
        %s2785 = sld [smem:[#allocation4 + $0xb1]]
        %v2786 = vstv %s2785
        %v2787 = vmul.f32 %v2786, %v2771
        %v2788 = vmul.f32 %v2786, %v2772
        %v2789 = vadd.f32 %v2755, %v2787
        %v2790 = vadd.f32 %v2756, %v2788
        %s2791 = sld [smem:[#allocation4 + $0xf9]]
        %v2792 = vstv %s2791
        %v2793 = vmul.f32 %v2792, %v2771
        %v2794 = vmul.f32 %v2792, %v2772
        %v2795 = vadd.f32 %v2769, %v2793
        %v2796 = vadd.f32 %v2770, %v2794
        %s2797 = sld [smem:[#allocation4 + $0x22]]
        %v2798 = vstv %s2797
        %v2799 = vmul.f32 %v2798, %v2771
        %v2800 = vmul.f32 %v2798, %v2772
        %2803 = vrot.lane.b32.xlu0 %v2799, 127
        %v2804 = vpop.permute.xlu0 %2803
        %2805 = vrot.lane.b32.xlu0 %v2800, 127
        %v2806 = vpop.permute.xlu0 %2805
        %v2809 = vadd.f32 %v2777, %v2804
        %v2810 = vadd.f32 %v2778, %v2806
        %s2811 = sld [smem:[#allocation4 + $0x6a]]
        %v2812 = vstv %s2811
        %v2813 = vmul.f32 %v2812, %v2771
        %v2814 = vmul.f32 %v2812, %v2772
        %2817 = vrot.lane.b32.xlu0 %v2813, 127
        %v2818 = vpop.permute.xlu0 %2817
        %2819 = vrot.lane.b32.xlu0 %v2814, 127
        %v2820 = vpop.permute.xlu0 %2819
        %v2823 = vadd.f32 %v2783, %v2818
        %v2824 = vadd.f32 %v2784, %v2820
        %s2825 = sld [smem:[#allocation4 + $0xb2]]
        %v2826 = vstv %s2825
        %v2827 = vmul.f32 %v2826, %v2771
        %v2828 = vmul.f32 %v2826, %v2772
        %2831 = vrot.lane.b32.xlu0 %v2827, 127
        %v2832 = vpop.permute.xlu0 %2831
        %2833 = vrot.lane.b32.xlu0 %v2828, 127
        %v2834 = vpop.permute.xlu0 %2833
        %v2837 = vadd.f32 %v2789, %v2832
        %v2838 = vadd.f32 %v2790, %v2834
        %s2839 = sld [smem:[#allocation4 + $0xfa]]
        %v2840 = vstv %s2839
        %v2841 = vmul.f32 %v2840, %v2771
        %v2842 = vmul.f32 %v2840, %v2772
        %2845 = vrot.lane.b32.xlu0 %v2841, 127
        %v2846 = vpop.permute.xlu0 %2845
        %2847 = vrot.lane.b32.xlu0 %v2842, 127
        %v2848 = vpop.permute.xlu0 %2847
        %v2851 = vadd.f32 %v2795, %v2846
        %v2852 = vadd.f32 %v2796, %v2848
        %s2853 = sld [smem:[#allocation4 + $0x23]]
        %v2854 = vstv %s2853
        %v2855 = vmul.f32 %v2854, %v2771
        %v2856 = vmul.f32 %v2854, %v2772
        %2859 = vrot.lane.b32.xlu0 %v2855, 126
        %v2860 = vpop.permute.xlu0 %2859
        %2861 = vrot.lane.b32.xlu0 %v2856, 126
        %v2862 = vpop.permute.xlu0 %2861
        %v2865 = vadd.f32 %v2809, %v2860
        %v2866 = vadd.f32 %v2810, %v2862
        %s2867 = sld [smem:[#allocation4 + $0x6b]]
        %v2868 = vstv %s2867
        %v2869 = vmul.f32 %v2868, %v2771
        %v2870 = vmul.f32 %v2868, %v2772
        %2873 = vrot.lane.b32.xlu0 %v2869, 126
        %v2874 = vpop.permute.xlu0 %2873
        %2875 = vrot.lane.b32.xlu0 %v2870, 126
        %v2876 = vpop.permute.xlu0 %2875
        %v2879 = vadd.f32 %v2823, %v2874
        %v2880 = vadd.f32 %v2824, %v2876
        %s2881 = sld [smem:[#allocation4 + $0xb3]]
        %v2882 = vstv %s2881
        %v2883 = vmul.f32 %v2882, %v2771
        %v2884 = vmul.f32 %v2882, %v2772
        %2887 = vrot.lane.b32.xlu0 %v2883, 126
        %v2888 = vpop.permute.xlu0 %2887
        %2889 = vrot.lane.b32.xlu0 %v2884, 126
        %v2890 = vpop.permute.xlu0 %2889
        %v2893 = vadd.f32 %v2837, %v2888
        %v2894 = vadd.f32 %v2838, %v2890
        %s2895 = sld [smem:[#allocation4 + $0xfb]]
        %v2896 = vstv %s2895
        %v2897 = vmul.f32 %v2896, %v2771
        %v2898 = vmul.f32 %v2896, %v2772
        %2901 = vrot.lane.b32.xlu0 %v2897, 126
        %v2902 = vpop.permute.xlu0 %2901
        %2903 = vrot.lane.b32.xlu0 %v2898, 126
        %v2904 = vpop.permute.xlu0 %2903
        %v2907 = vadd.f32 %v2851, %v2902
        %v2908 = vadd.f32 %v2852, %v2904
        %v2909 = vld [vmem:[%s737] sm:$0xff]
        %v2910 = vld [vmem:[%s737 + $0x8] sm:$0xff]
        %s2911 = sld [smem:[#allocation4 + $0x24]]
        %v2912 = vstv %s2911
        %v2913 = vmul.f32 %v2912, %v2909
        %v2914 = vmul.f32 %v2912, %v2910
        %v2915 = vadd.f32 %v2865, %v2913
        %v2916 = vadd.f32 %v2866, %v2914
        %s2917 = sld [smem:[#allocation4 + $0x6c]]
        %v2918 = vstv %s2917
        %v2919 = vmul.f32 %v2918, %v2909
        %v2920 = vmul.f32 %v2918, %v2910
        %v2921 = vadd.f32 %v2879, %v2919
        %v2922 = vadd.f32 %v2880, %v2920
        %s2923 = sld [smem:[#allocation4 + $0xb4]]
        %v2924 = vstv %s2923
        %v2925 = vmul.f32 %v2924, %v2909
        %v2926 = vmul.f32 %v2924, %v2910
        %v2927 = vadd.f32 %v2893, %v2925
        %v2928 = vadd.f32 %v2894, %v2926
        %s2929 = sld [smem:[#allocation4 + $0xfc]]
        %v2930 = vstv %s2929
        %v2931 = vmul.f32 %v2930, %v2909
        %v2932 = vmul.f32 %v2930, %v2910
        %v2933 = vadd.f32 %v2907, %v2931
        %v2934 = vadd.f32 %v2908, %v2932
        %s2935 = sld [smem:[#allocation4 + $0x25]]
        %v2936 = vstv %s2935
        %v2937 = vmul.f32 %v2936, %v2909
        %v2938 = vmul.f32 %v2936, %v2910
        %2941 = vrot.lane.b32.xlu0 %v2937, 127
        %v2942 = vpop.permute.xlu0 %2941
        %2943 = vrot.lane.b32.xlu0 %v2938, 127
        %v2944 = vpop.permute.xlu0 %2943
        %v2947 = vadd.f32 %v2915, %v2942
        %v2948 = vadd.f32 %v2916, %v2944
        %s2949 = sld [smem:[#allocation4 + $0x6d]]
        %v2950 = vstv %s2949
        %v2951 = vmul.f32 %v2950, %v2909
        %v2952 = vmul.f32 %v2950, %v2910
        %2955 = vrot.lane.b32.xlu0 %v2951, 127
        %v2956 = vpop.permute.xlu0 %2955
        %2957 = vrot.lane.b32.xlu0 %v2952, 127
        %v2958 = vpop.permute.xlu0 %2957
        %v2961 = vadd.f32 %v2921, %v2956
        %v2962 = vadd.f32 %v2922, %v2958
        %s2963 = sld [smem:[#allocation4 + $0xb5]]
        %v2964 = vstv %s2963
        %v2965 = vmul.f32 %v2964, %v2909
        %v2966 = vmul.f32 %v2964, %v2910
        %2969 = vrot.lane.b32.xlu0 %v2965, 127
        %v2970 = vpop.permute.xlu0 %2969
        %2971 = vrot.lane.b32.xlu0 %v2966, 127
        %v2972 = vpop.permute.xlu0 %2971
        %v2975 = vadd.f32 %v2927, %v2970
        %v2976 = vadd.f32 %v2928, %v2972
        %s2977 = sld [smem:[#allocation4 + $0xfd]]
        %v2978 = vstv %s2977
        %v2979 = vmul.f32 %v2978, %v2909
        %v2980 = vmul.f32 %v2978, %v2910
        %2983 = vrot.lane.b32.xlu0 %v2979, 127
        %v2984 = vpop.permute.xlu0 %2983
        %2985 = vrot.lane.b32.xlu0 %v2980, 127
        %v2986 = vpop.permute.xlu0 %2985
        %v2989 = vadd.f32 %v2933, %v2984
        %v2990 = vadd.f32 %v2934, %v2986
        %s2991 = sld [smem:[#allocation4 + $0x26]]
        %v2992 = vstv %s2991
        %v2993 = vmul.f32 %v2992, %v2909
        %v2994 = vmul.f32 %v2992, %v2910
        %2997 = vrot.lane.b32.xlu0 %v2993, 126
        %v2998 = vpop.permute.xlu0 %2997
        %2999 = vrot.lane.b32.xlu0 %v2994, 126
        %v3000 = vpop.permute.xlu0 %2999
        %v3003 = vadd.f32 %v2947, %v2998
        %v3004 = vadd.f32 %v2948, %v3000
        %s3005 = sld [smem:[#allocation4 + $0x6e]]
        %v3006 = vstv %s3005
        %v3007 = vmul.f32 %v3006, %v2909
        %v3008 = vmul.f32 %v3006, %v2910
        %3011 = vrot.lane.b32.xlu0 %v3007, 126
        %v3012 = vpop.permute.xlu0 %3011
        %3013 = vrot.lane.b32.xlu0 %v3008, 126
        %v3014 = vpop.permute.xlu0 %3013
        %v3017 = vadd.f32 %v2961, %v3012
        %v3018 = vadd.f32 %v2962, %v3014
        %s3019 = sld [smem:[#allocation4 + $0xb6]]
        %v3020 = vstv %s3019
        %v3021 = vmul.f32 %v3020, %v2909
        %v3022 = vmul.f32 %v3020, %v2910
        %3025 = vrot.lane.b32.xlu0 %v3021, 126
        %v3026 = vpop.permute.xlu0 %3025
        %3027 = vrot.lane.b32.xlu0 %v3022, 126
        %v3028 = vpop.permute.xlu0 %3027
        %v3031 = vadd.f32 %v2975, %v3026
        %v3032 = vadd.f32 %v2976, %v3028
        %s3033 = sld [smem:[#allocation4 + $0xfe]]
        %v3034 = vstv %s3033
        %v3035 = vmul.f32 %v3034, %v2909
        %v3036 = vmul.f32 %v3034, %v2910
        %3039 = vrot.lane.b32.xlu0 %v3035, 126
        %v3040 = vpop.permute.xlu0 %3039
        %3041 = vrot.lane.b32.xlu0 %v3036, 126
        %v3042 = vpop.permute.xlu0 %3041
        %v3045 = vadd.f32 %v2989, %v3040
        %v3046 = vadd.f32 %v2990, %v3042
        %v3047 = vld [vmem:[%s737 + $0x1] sm:$0xff]
        %v3048 = vld [vmem:[%s737 + $0x9] sm:$0xff]
        %s3049 = sld [smem:[#allocation4 + $0x27]]
        %v3050 = vstv %s3049
        %v3051 = vmul.f32 %v3050, %v3047
        %v3052 = vmul.f32 %v3050, %v3048
        %v3053 = vadd.f32 %v3003, %v3051
        %v3054 = vadd.f32 %v3004, %v3052
        %s3055 = sld [smem:[#allocation4 + $0x6f]]
        %v3056 = vstv %s3055
        %v3057 = vmul.f32 %v3056, %v3047
        %v3058 = vmul.f32 %v3056, %v3048
        %v3059 = vadd.f32 %v3017, %v3057
        %v3060 = vadd.f32 %v3018, %v3058
        %s3061 = sld [smem:[#allocation4 + $0xb7]]
        %v3062 = vstv %s3061
        %v3063 = vmul.f32 %v3062, %v3047
        %v3064 = vmul.f32 %v3062, %v3048
        %v3065 = vadd.f32 %v3031, %v3063
        %v3066 = vadd.f32 %v3032, %v3064
        %s3067 = sld [smem:[#allocation4 + $0xff]]
        %v3068 = vstv %s3067
        %v3069 = vmul.f32 %v3068, %v3047
        %v3070 = vmul.f32 %v3068, %v3048
        %v3071 = vadd.f32 %v3045, %v3069
        %v3072 = vadd.f32 %v3046, %v3070
        %s3073 = sld [smem:[#allocation4 + $0x28]]
        %v3074 = vstv %s3073
        %v3075 = vmul.f32 %v3074, %v3047
        %v3076 = vmul.f32 %v3074, %v3048
        %3079 = vrot.lane.b32.xlu0 %v3075, 127
        %v3080 = vpop.permute.xlu0 %3079
        %3081 = vrot.lane.b32.xlu0 %v3076, 127
        %v3082 = vpop.permute.xlu0 %3081
        %v3085 = vadd.f32 %v3053, %v3080
        %v3086 = vadd.f32 %v3054, %v3082
        %s3087 = sld [smem:[#allocation4 + $0x70]]
        %v3088 = vstv %s3087
        %v3089 = vmul.f32 %v3088, %v3047
        %v3090 = vmul.f32 %v3088, %v3048
        %3093 = vrot.lane.b32.xlu0 %v3089, 127
        %v3094 = vpop.permute.xlu0 %3093
        %3095 = vrot.lane.b32.xlu0 %v3090, 127
        %v3096 = vpop.permute.xlu0 %3095
        %v3099 = vadd.f32 %v3059, %v3094
        %v3100 = vadd.f32 %v3060, %v3096
        %s3101 = sld [smem:[#allocation4 + $0xb8]]
        %v3102 = vstv %s3101
        %v3103 = vmul.f32 %v3102, %v3047
        %v3104 = vmul.f32 %v3102, %v3048
        %3107 = vrot.lane.b32.xlu0 %v3103, 127
        %v3108 = vpop.permute.xlu0 %3107
        %3109 = vrot.lane.b32.xlu0 %v3104, 127
        %v3110 = vpop.permute.xlu0 %3109
        %v3113 = vadd.f32 %v3065, %v3108
        %v3114 = vadd.f32 %v3066, %v3110
        %s3115 = sld [smem:[#allocation4 + $0x100]]
        %v3116 = vstv %s3115
        %v3117 = vmul.f32 %v3116, %v3047
        %v3118 = vmul.f32 %v3116, %v3048
        %3121 = vrot.lane.b32.xlu0 %v3117, 127
        %v3122 = vpop.permute.xlu0 %3121
        %3123 = vrot.lane.b32.xlu0 %v3118, 127
        %v3124 = vpop.permute.xlu0 %3123
        %v3127 = vadd.f32 %v3071, %v3122
        %v3128 = vadd.f32 %v3072, %v3124
        %s3129 = sld [smem:[#allocation4 + $0x29]]
        %v3130 = vstv %s3129
        %v3131 = vmul.f32 %v3130, %v3047
        %v3132 = vmul.f32 %v3130, %v3048
        %3135 = vrot.lane.b32.xlu0 %v3131, 126
        %v3136 = vpop.permute.xlu0 %3135
        %3137 = vrot.lane.b32.xlu0 %v3132, 126
        %v3138 = vpop.permute.xlu0 %3137
        %v3141 = vadd.f32 %v3085, %v3136
        %v3142 = vadd.f32 %v3086, %v3138
        %s3143 = sld [smem:[#allocation4 + $0x71]]
        %v3144 = vstv %s3143
        %v3145 = vmul.f32 %v3144, %v3047
        %v3146 = vmul.f32 %v3144, %v3048
        %3149 = vrot.lane.b32.xlu0 %v3145, 126
        %v3150 = vpop.permute.xlu0 %3149
        %3151 = vrot.lane.b32.xlu0 %v3146, 126
        %v3152 = vpop.permute.xlu0 %3151
        %v3155 = vadd.f32 %v3099, %v3150
        %v3156 = vadd.f32 %v3100, %v3152
        %s3157 = sld [smem:[#allocation4 + $0xb9]]
        %v3158 = vstv %s3157
        %v3159 = vmul.f32 %v3158, %v3047
        %v3160 = vmul.f32 %v3158, %v3048
        %3163 = vrot.lane.b32.xlu0 %v3159, 126
        %v3164 = vpop.permute.xlu0 %3163
        %3165 = vrot.lane.b32.xlu0 %v3160, 126
        %v3166 = vpop.permute.xlu0 %3165
        %v3169 = vadd.f32 %v3113, %v3164
        %v3170 = vadd.f32 %v3114, %v3166
        %s3171 = sld [smem:[#allocation4 + $0x101]]
        %v3172 = vstv %s3171
        %v3173 = vmul.f32 %v3172, %v3047
        %v3174 = vmul.f32 %v3172, %v3048
        %3177 = vrot.lane.b32.xlu0 %v3173, 126
        %v3178 = vpop.permute.xlu0 %3177
        %3179 = vrot.lane.b32.xlu0 %v3174, 126
        %v3180 = vpop.permute.xlu0 %3179
        %v3183 = vadd.f32 %v3127, %v3178
        %v3184 = vadd.f32 %v3128, %v3180
        %v3185 = vld [vmem:[%s737 + $0x2] sm:$0xff]
        %v3186 = vld [vmem:[%s737 + $0xa] sm:$0xff]
        %s3187 = sld [smem:[#allocation4 + $0x2a]]
        %v3188 = vstv %s3187
        %v3189 = vmul.f32 %v3188, %v3185
        %v3190 = vmul.f32 %v3188, %v3186
        %v3191 = vadd.f32 %v3141, %v3189
        %v3192 = vadd.f32 %v3142, %v3190
        %s3193 = sld [smem:[#allocation4 + $0x72]]
        %v3194 = vstv %s3193
        %v3195 = vmul.f32 %v3194, %v3185
        %v3196 = vmul.f32 %v3194, %v3186
        %v3197 = vadd.f32 %v3155, %v3195
        %v3198 = vadd.f32 %v3156, %v3196
        %s3199 = sld [smem:[#allocation4 + $0xba]]
        %v3200 = vstv %s3199
        %v3201 = vmul.f32 %v3200, %v3185
        %v3202 = vmul.f32 %v3200, %v3186
        %v3203 = vadd.f32 %v3169, %v3201
        %v3204 = vadd.f32 %v3170, %v3202
        %s3205 = sld [smem:[#allocation4 + $0x102]]
        %v3206 = vstv %s3205
        %v3207 = vmul.f32 %v3206, %v3185
        %v3208 = vmul.f32 %v3206, %v3186
        %v3209 = vadd.f32 %v3183, %v3207
        %v3210 = vadd.f32 %v3184, %v3208
        %s3211 = sld [smem:[#allocation4 + $0x2b]]
        %v3212 = vstv %s3211
        %v3213 = vmul.f32 %v3212, %v3185
        %v3214 = vmul.f32 %v3212, %v3186
        %3217 = vrot.lane.b32.xlu0 %v3213, 127
        %v3218 = vpop.permute.xlu0 %3217
        %3219 = vrot.lane.b32.xlu0 %v3214, 127
        %v3220 = vpop.permute.xlu0 %3219
        %v3223 = vadd.f32 %v3191, %v3218
        %v3224 = vadd.f32 %v3192, %v3220
        %s3225 = sld [smem:[#allocation4 + $0x73]]
        %v3226 = vstv %s3225
        %v3227 = vmul.f32 %v3226, %v3185
        %v3228 = vmul.f32 %v3226, %v3186
        %3231 = vrot.lane.b32.xlu0 %v3227, 127
        %v3232 = vpop.permute.xlu0 %3231
        %3233 = vrot.lane.b32.xlu0 %v3228, 127
        %v3234 = vpop.permute.xlu0 %3233
        %v3237 = vadd.f32 %v3197, %v3232
        %v3238 = vadd.f32 %v3198, %v3234
        %s3239 = sld [smem:[#allocation4 + $0xbb]]
        %v3240 = vstv %s3239
        %v3241 = vmul.f32 %v3240, %v3185
        %v3242 = vmul.f32 %v3240, %v3186
        %3245 = vrot.lane.b32.xlu0 %v3241, 127
        %v3246 = vpop.permute.xlu0 %3245
        %3247 = vrot.lane.b32.xlu0 %v3242, 127
        %v3248 = vpop.permute.xlu0 %3247
        %v3251 = vadd.f32 %v3203, %v3246
        %v3252 = vadd.f32 %v3204, %v3248
        %s3253 = sld [smem:[#allocation4 + $0x103]]
        %v3254 = vstv %s3253
        %v3255 = vmul.f32 %v3254, %v3185
        %v3256 = vmul.f32 %v3254, %v3186
        %3259 = vrot.lane.b32.xlu0 %v3255, 127
        %v3260 = vpop.permute.xlu0 %3259
        %3261 = vrot.lane.b32.xlu0 %v3256, 127
        %v3262 = vpop.permute.xlu0 %3261
        %v3265 = vadd.f32 %v3209, %v3260
        %v3266 = vadd.f32 %v3210, %v3262
        %s3267 = sld [smem:[#allocation4 + $0x2c]]
        %v3268 = vstv %s3267
        %v3269 = vmul.f32 %v3268, %v3185
        %v3270 = vmul.f32 %v3268, %v3186
        %3273 = vrot.lane.b32.xlu0 %v3269, 126
        %v3274 = vpop.permute.xlu0 %3273
        %3275 = vrot.lane.b32.xlu0 %v3270, 126
        %v3276 = vpop.permute.xlu0 %3275
        %v3279 = vadd.f32 %v3223, %v3274
        %v3280 = vadd.f32 %v3224, %v3276
        %s3281 = sld [smem:[#allocation4 + $0x74]]
        %v3282 = vstv %s3281
        %v3283 = vmul.f32 %v3282, %v3185
        %v3284 = vmul.f32 %v3282, %v3186
        %3287 = vrot.lane.b32.xlu0 %v3283, 126
        %v3288 = vpop.permute.xlu0 %3287
        %3289 = vrot.lane.b32.xlu0 %v3284, 126
        %v3290 = vpop.permute.xlu0 %3289
        %v3293 = vadd.f32 %v3237, %v3288
        %v3294 = vadd.f32 %v3238, %v3290
        %s3295 = sld [smem:[#allocation4 + $0xbc]]
        %v3296 = vstv %s3295
        %v3297 = vmul.f32 %v3296, %v3185
        %v3298 = vmul.f32 %v3296, %v3186
        %3301 = vrot.lane.b32.xlu0 %v3297, 126
        %v3302 = vpop.permute.xlu0 %3301
        %3303 = vrot.lane.b32.xlu0 %v3298, 126
        %v3304 = vpop.permute.xlu0 %3303
        %v3307 = vadd.f32 %v3251, %v3302
        %v3308 = vadd.f32 %v3252, %v3304
        %s3309 = sld [smem:[#allocation4 + $0x104]]
        %v3310 = vstv %s3309
        %v3311 = vmul.f32 %v3310, %v3185
        %v3312 = vmul.f32 %v3310, %v3186
        %3315 = vrot.lane.b32.xlu0 %v3311, 126
        %v3316 = vpop.permute.xlu0 %3315
        %3317 = vrot.lane.b32.xlu0 %v3312, 126
        %v3318 = vpop.permute.xlu0 %3317
        %v3321 = vadd.f32 %v3265, %v3316
        %v3322 = vadd.f32 %v3266, %v3318
        %v3323 = vld [vmem:[%s908] sm:$0xff]
        %v3324 = vld [vmem:[%s908 + $0x8] sm:$0xff]
        %s3325 = sld [smem:[#allocation4 + $0x2d]]
        %v3326 = vstv %s3325
        %v3327 = vmul.f32 %v3326, %v3323
        %v3328 = vmul.f32 %v3326, %v3324
        %v3329 = vadd.f32 %v3279, %v3327
        %v3330 = vadd.f32 %v3280, %v3328
        %s3331 = sld [smem:[#allocation4 + $0x75]]
        %v3332 = vstv %s3331
        %v3333 = vmul.f32 %v3332, %v3323
        %v3334 = vmul.f32 %v3332, %v3324
        %v3335 = vadd.f32 %v3293, %v3333
        %v3336 = vadd.f32 %v3294, %v3334
        %s3337 = sld [smem:[#allocation4 + $0xbd]]
        %v3338 = vstv %s3337
        %v3339 = vmul.f32 %v3338, %v3323
        %v3340 = vmul.f32 %v3338, %v3324
        %v3341 = vadd.f32 %v3307, %v3339
        %v3342 = vadd.f32 %v3308, %v3340
        %s3343 = sld [smem:[#allocation4 + $0x105]]
        %v3344 = vstv %s3343
        %v3345 = vmul.f32 %v3344, %v3323
        %v3346 = vmul.f32 %v3344, %v3324
        %v3347 = vadd.f32 %v3321, %v3345
        %v3348 = vadd.f32 %v3322, %v3346
        %s3349 = sld [smem:[#allocation4 + $0x2e]]
        %v3350 = vstv %s3349
        %v3351 = vmul.f32 %v3350, %v3323
        %v3352 = vmul.f32 %v3350, %v3324
        %3355 = vrot.lane.b32.xlu0 %v3351, 127
        %v3356 = vpop.permute.xlu0 %3355
        %3357 = vrot.lane.b32.xlu0 %v3352, 127
        %v3358 = vpop.permute.xlu0 %3357
        %v3361 = vadd.f32 %v3329, %v3356
        %v3362 = vadd.f32 %v3330, %v3358
        %s3363 = sld [smem:[#allocation4 + $0x76]]
        %v3364 = vstv %s3363
        %v3365 = vmul.f32 %v3364, %v3323
        %v3366 = vmul.f32 %v3364, %v3324
        %3369 = vrot.lane.b32.xlu0 %v3365, 127
        %v3370 = vpop.permute.xlu0 %3369
        %3371 = vrot.lane.b32.xlu0 %v3366, 127
        %v3372 = vpop.permute.xlu0 %3371
        %v3375 = vadd.f32 %v3335, %v3370
        %v3376 = vadd.f32 %v3336, %v3372
        %s3377 = sld [smem:[#allocation4 + $0xbe]]
        %v3378 = vstv %s3377
        %v3379 = vmul.f32 %v3378, %v3323
        %v3380 = vmul.f32 %v3378, %v3324
        %3383 = vrot.lane.b32.xlu0 %v3379, 127
        %v3384 = vpop.permute.xlu0 %3383
        %3385 = vrot.lane.b32.xlu0 %v3380, 127
        %v3386 = vpop.permute.xlu0 %3385
        %v3389 = vadd.f32 %v3341, %v3384
        %v3390 = vadd.f32 %v3342, %v3386
        %s3391 = sld [smem:[#allocation4 + $0x106]]
        %v3392 = vstv %s3391
        %v3393 = vmul.f32 %v3392, %v3323
        %v3394 = vmul.f32 %v3392, %v3324
        %3397 = vrot.lane.b32.xlu0 %v3393, 127
        %v3398 = vpop.permute.xlu0 %3397
        %3399 = vrot.lane.b32.xlu0 %v3394, 127
        %v3400 = vpop.permute.xlu0 %3399
        %v3403 = vadd.f32 %v3347, %v3398
        %v3404 = vadd.f32 %v3348, %v3400
        %s3405 = sld [smem:[#allocation4 + $0x2f]]
        %v3406 = vstv %s3405
        %v3407 = vmul.f32 %v3406, %v3323
        %v3408 = vmul.f32 %v3406, %v3324
        %3411 = vrot.lane.b32.xlu0 %v3407, 126
        %v3412 = vpop.permute.xlu0 %3411
        %3413 = vrot.lane.b32.xlu0 %v3408, 126
        %v3414 = vpop.permute.xlu0 %3413
        %v3417 = vadd.f32 %v3361, %v3412
        %v3418 = vadd.f32 %v3362, %v3414
        %s3419 = sld [smem:[#allocation4 + $0x77]]
        %v3420 = vstv %s3419
        %v3421 = vmul.f32 %v3420, %v3323
        %v3422 = vmul.f32 %v3420, %v3324
        %3425 = vrot.lane.b32.xlu0 %v3421, 126
        %v3426 = vpop.permute.xlu0 %3425
        %3427 = vrot.lane.b32.xlu0 %v3422, 126
        %v3428 = vpop.permute.xlu0 %3427
        %v3431 = vadd.f32 %v3375, %v3426
        %v3432 = vadd.f32 %v3376, %v3428
        %s3433 = sld [smem:[#allocation4 + $0xbf]]
        %v3434 = vstv %s3433
        %v3435 = vmul.f32 %v3434, %v3323
        %v3436 = vmul.f32 %v3434, %v3324
        %3439 = vrot.lane.b32.xlu0 %v3435, 126
        %v3440 = vpop.permute.xlu0 %3439
        %3441 = vrot.lane.b32.xlu0 %v3436, 126
        %v3442 = vpop.permute.xlu0 %3441
        %v3445 = vadd.f32 %v3389, %v3440
        %v3446 = vadd.f32 %v3390, %v3442
        %s3447 = sld [smem:[#allocation4 + $0x107]]
        %v3448 = vstv %s3447
        %v3449 = vmul.f32 %v3448, %v3323
        %v3450 = vmul.f32 %v3448, %v3324
        %3453 = vrot.lane.b32.xlu0 %v3449, 126
        %v3454 = vpop.permute.xlu0 %3453
        %3455 = vrot.lane.b32.xlu0 %v3450, 126
        %v3456 = vpop.permute.xlu0 %3455
        %v3459 = vadd.f32 %v3403, %v3454
        %v3460 = vadd.f32 %v3404, %v3456
        %v3461 = vld [vmem:[%s908 + $0x1] sm:$0xff]
        %v3462 = vld [vmem:[%s908 + $0x9] sm:$0xff]
        %s3463 = sld [smem:[#allocation4 + $0x30]]
        %v3464 = vstv %s3463
        %v3465 = vmul.f32 %v3464, %v3461
        %v3466 = vmul.f32 %v3464, %v3462
        %v3467 = vadd.f32 %v3417, %v3465
        %v3468 = vadd.f32 %v3418, %v3466
        %s3469 = sld [smem:[#allocation4 + $0x78]]
        %v3470 = vstv %s3469
        %v3471 = vmul.f32 %v3470, %v3461
        %v3472 = vmul.f32 %v3470, %v3462
        %v3473 = vadd.f32 %v3431, %v3471
        %v3474 = vadd.f32 %v3432, %v3472
        %s3475 = sld [smem:[#allocation4 + $0xc0]]
        %v3476 = vstv %s3475
        %v3477 = vmul.f32 %v3476, %v3461
        %v3478 = vmul.f32 %v3476, %v3462
        %v3479 = vadd.f32 %v3445, %v3477
        %v3480 = vadd.f32 %v3446, %v3478
        %s3481 = sld [smem:[#allocation4 + $0x108]]
        %v3482 = vstv %s3481
        %v3483 = vmul.f32 %v3482, %v3461
        %v3484 = vmul.f32 %v3482, %v3462
        %v3485 = vadd.f32 %v3459, %v3483
        %v3486 = vadd.f32 %v3460, %v3484
        %s3487 = sld [smem:[#allocation4 + $0x31]]
        %v3488 = vstv %s3487
        %v3489 = vmul.f32 %v3488, %v3461
        %v3490 = vmul.f32 %v3488, %v3462
        %3493 = vrot.lane.b32.xlu0 %v3489, 127
        %v3494 = vpop.permute.xlu0 %3493
        %3495 = vrot.lane.b32.xlu0 %v3490, 127
        %v3496 = vpop.permute.xlu0 %3495
        %v3499 = vadd.f32 %v3467, %v3494
        %v3500 = vadd.f32 %v3468, %v3496
        %s3501 = sld [smem:[#allocation4 + $0x79]]
        %v3502 = vstv %s3501
        %v3503 = vmul.f32 %v3502, %v3461
        %v3504 = vmul.f32 %v3502, %v3462
        %3507 = vrot.lane.b32.xlu0 %v3503, 127
        %v3508 = vpop.permute.xlu0 %3507
        %3509 = vrot.lane.b32.xlu0 %v3504, 127
        %v3510 = vpop.permute.xlu0 %3509
        %v3513 = vadd.f32 %v3473, %v3508
        %v3514 = vadd.f32 %v3474, %v3510
        %s3515 = sld [smem:[#allocation4 + $0xc1]]
        %v3516 = vstv %s3515
        %v3517 = vmul.f32 %v3516, %v3461
        %v3518 = vmul.f32 %v3516, %v3462
        %3521 = vrot.lane.b32.xlu0 %v3517, 127
        %v3522 = vpop.permute.xlu0 %3521
        %3523 = vrot.lane.b32.xlu0 %v3518, 127
        %v3524 = vpop.permute.xlu0 %3523
        %v3527 = vadd.f32 %v3479, %v3522
        %v3528 = vadd.f32 %v3480, %v3524
        %s3529 = sld [smem:[#allocation4 + $0x109]]
        %v3530 = vstv %s3529
        %v3531 = vmul.f32 %v3530, %v3461
        %v3532 = vmul.f32 %v3530, %v3462
        %3535 = vrot.lane.b32.xlu0 %v3531, 127
        %v3536 = vpop.permute.xlu0 %3535
        %3537 = vrot.lane.b32.xlu0 %v3532, 127
        %v3538 = vpop.permute.xlu0 %3537
        %v3541 = vadd.f32 %v3485, %v3536
        %v3542 = vadd.f32 %v3486, %v3538
        %s3543 = sld [smem:[#allocation4 + $0x32]]
        %v3544 = vstv %s3543
        %v3545 = vmul.f32 %v3544, %v3461
        %v3546 = vmul.f32 %v3544, %v3462
        %3549 = vrot.lane.b32.xlu0 %v3545, 126
        %v3550 = vpop.permute.xlu0 %3549
        %3551 = vrot.lane.b32.xlu0 %v3546, 126
        %v3552 = vpop.permute.xlu0 %3551
        %v3555 = vadd.f32 %v3499, %v3550
        %v3556 = vadd.f32 %v3500, %v3552
        %s3557 = sld [smem:[#allocation4 + $0x7a]]
        %v3558 = vstv %s3557
        %v3559 = vmul.f32 %v3558, %v3461
        %v3560 = vmul.f32 %v3558, %v3462
        %3563 = vrot.lane.b32.xlu0 %v3559, 126
        %v3564 = vpop.permute.xlu0 %3563
        %3565 = vrot.lane.b32.xlu0 %v3560, 126
        %v3566 = vpop.permute.xlu0 %3565
        %v3569 = vadd.f32 %v3513, %v3564
        %v3570 = vadd.f32 %v3514, %v3566
        %s3571 = sld [smem:[#allocation4 + $0xc2]]
        %v3572 = vstv %s3571
        %v3573 = vmul.f32 %v3572, %v3461
        %v3574 = vmul.f32 %v3572, %v3462
        %3577 = vrot.lane.b32.xlu0 %v3573, 126
        %v3578 = vpop.permute.xlu0 %3577
        %3579 = vrot.lane.b32.xlu0 %v3574, 126
        %v3580 = vpop.permute.xlu0 %3579
        %v3583 = vadd.f32 %v3527, %v3578
        %v3584 = vadd.f32 %v3528, %v3580
        %s3585 = sld [smem:[#allocation4 + $0x10a]]
        %v3586 = vstv %s3585
        %v3587 = vmul.f32 %v3586, %v3461
        %v3588 = vmul.f32 %v3586, %v3462
        %3591 = vrot.lane.b32.xlu0 %v3587, 126
        %v3592 = vpop.permute.xlu0 %3591
        %3593 = vrot.lane.b32.xlu0 %v3588, 126
        %v3594 = vpop.permute.xlu0 %3593
        %v3597 = vadd.f32 %v3541, %v3592
        %v3598 = vadd.f32 %v3542, %v3594
        %v3599 = vld [vmem:[%s908 + $0x2] sm:$0xff]
        %v3600 = vld [vmem:[%s908 + $0xa] sm:$0xff]
        %s3601 = sld [smem:[#allocation4 + $0x33]]
        %v3602 = vstv %s3601
        %v3603 = vmul.f32 %v3602, %v3599
        %v3604 = vmul.f32 %v3602, %v3600
        %v3605 = vadd.f32 %v3555, %v3603
        %v3606 = vadd.f32 %v3556, %v3604
        %s3607 = sld [smem:[#allocation4 + $0x7b]]
        %v3608 = vstv %s3607
        %v3609 = vmul.f32 %v3608, %v3599
        %v3610 = vmul.f32 %v3608, %v3600
        %v3611 = vadd.f32 %v3569, %v3609
        %v3612 = vadd.f32 %v3570, %v3610
        %s3613 = sld [smem:[#allocation4 + $0xc3]]
        %v3614 = vstv %s3613
        %v3615 = vmul.f32 %v3614, %v3599
        %v3616 = vmul.f32 %v3614, %v3600
        %v3617 = vadd.f32 %v3583, %v3615
        %v3618 = vadd.f32 %v3584, %v3616
        %s3619 = sld [smem:[#allocation4 + $0x10b]]
        %v3620 = vstv %s3619
        %v3621 = vmul.f32 %v3620, %v3599
        %v3622 = vmul.f32 %v3620, %v3600
        %v3623 = vadd.f32 %v3597, %v3621
        %v3624 = vadd.f32 %v3598, %v3622
        %s3625 = sld [smem:[#allocation4 + $0x34]]
        %v3626 = vstv %s3625
        %v3627 = vmul.f32 %v3626, %v3599
        %v3628 = vmul.f32 %v3626, %v3600
        %3631 = vrot.lane.b32.xlu0 %v3627, 127
        %v3632 = vpop.permute.xlu0 %3631
        %3633 = vrot.lane.b32.xlu0 %v3628, 127
        %v3634 = vpop.permute.xlu0 %3633
        %v3637 = vadd.f32 %v3605, %v3632
        %v3638 = vadd.f32 %v3606, %v3634
        %s3639 = sld [smem:[#allocation4 + $0x7c]]
        %v3640 = vstv %s3639
        %v3641 = vmul.f32 %v3640, %v3599
        %v3642 = vmul.f32 %v3640, %v3600
        %3645 = vrot.lane.b32.xlu0 %v3641, 127
        %v3646 = vpop.permute.xlu0 %3645
        %3647 = vrot.lane.b32.xlu0 %v3642, 127
        %v3648 = vpop.permute.xlu0 %3647
        %v3651 = vadd.f32 %v3611, %v3646
        %v3652 = vadd.f32 %v3612, %v3648
        %s3653 = sld [smem:[#allocation4 + $0xc4]]
        %v3654 = vstv %s3653
        %v3655 = vmul.f32 %v3654, %v3599
        %v3656 = vmul.f32 %v3654, %v3600
        %3659 = vrot.lane.b32.xlu0 %v3655, 127
        %v3660 = vpop.permute.xlu0 %3659
        %3661 = vrot.lane.b32.xlu0 %v3656, 127
        %v3662 = vpop.permute.xlu0 %3661
        %v3665 = vadd.f32 %v3617, %v3660
        %v3666 = vadd.f32 %v3618, %v3662
        %s3667 = sld [smem:[#allocation4 + $0x10c]]
        %v3668 = vstv %s3667
        %v3669 = vmul.f32 %v3668, %v3599
        %v3670 = vmul.f32 %v3668, %v3600
        %3673 = vrot.lane.b32.xlu0 %v3669, 127
        %v3674 = vpop.permute.xlu0 %3673
        %3675 = vrot.lane.b32.xlu0 %v3670, 127
        %v3676 = vpop.permute.xlu0 %3675
        %v3679 = vadd.f32 %v3623, %v3674
        %v3680 = vadd.f32 %v3624, %v3676
        %s3681 = sld [smem:[#allocation4 + $0x35]]
        %v3682 = vstv %s3681
        %v3683 = vmul.f32 %v3682, %v3599
        %v3684 = vmul.f32 %v3682, %v3600
        %3687 = vrot.lane.b32.xlu0 %v3683, 126
        %v3688 = vpop.permute.xlu0 %3687
        %3689 = vrot.lane.b32.xlu0 %v3684, 126
        %v3690 = vpop.permute.xlu0 %3689
        %v3693 = vadd.f32 %v3637, %v3688
        %v3694 = vadd.f32 %v3638, %v3690
        %s3695 = sld [smem:[#allocation4 + $0x7d]]
        %v3696 = vstv %s3695
        %v3697 = vmul.f32 %v3696, %v3599
        %v3698 = vmul.f32 %v3696, %v3600
        %3701 = vrot.lane.b32.xlu0 %v3697, 126
        %v3702 = vpop.permute.xlu0 %3701
        %3703 = vrot.lane.b32.xlu0 %v3698, 126
        %v3704 = vpop.permute.xlu0 %3703
        %v3707 = vadd.f32 %v3651, %v3702
        %v3708 = vadd.f32 %v3652, %v3704
        %s3709 = sld [smem:[#allocation4 + $0xc5]]
        %v3710 = vstv %s3709
        %v3711 = vmul.f32 %v3710, %v3599
        %v3712 = vmul.f32 %v3710, %v3600
        %3715 = vrot.lane.b32.xlu0 %v3711, 126
        %v3716 = vpop.permute.xlu0 %3715
        %3717 = vrot.lane.b32.xlu0 %v3712, 126
        %v3718 = vpop.permute.xlu0 %3717
        %v3721 = vadd.f32 %v3665, %v3716
        %v3722 = vadd.f32 %v3666, %v3718
        %s3723 = sld [smem:[#allocation4 + $0x10d]]
        %v3724 = vstv %s3723
        %v3725 = vmul.f32 %v3724, %v3599
        %v3726 = vmul.f32 %v3724, %v3600
        %3729 = vrot.lane.b32.xlu0 %v3725, 126
        %v3730 = vpop.permute.xlu0 %3729
        %3731 = vrot.lane.b32.xlu0 %v3726, 126
        %v3732 = vpop.permute.xlu0 %3731
        %v3735 = vadd.f32 %v3679, %v3730
        %v3736 = vadd.f32 %v3680, %v3732
        %v3737 = vld [vmem:[%s1079] sm:$0xff]
        %v3738 = vld [vmem:[%s1079 + $0x8] sm:$0xff]
        %s3739 = sld [smem:[#allocation4 + $0x36]]
        %v3740 = vstv %s3739
        %v3741 = vmul.f32 %v3740, %v3737
        %v3742 = vmul.f32 %v3740, %v3738
        %v3743 = vadd.f32 %v3693, %v3741
        %v3744 = vadd.f32 %v3694, %v3742
        %s3745 = sld [smem:[#allocation4 + $0x7e]]
        %v3746 = vstv %s3745
        %v3747 = vmul.f32 %v3746, %v3737
        %v3748 = vmul.f32 %v3746, %v3738
        %v3749 = vadd.f32 %v3707, %v3747
        %v3750 = vadd.f32 %v3708, %v3748
        %s3751 = sld [smem:[#allocation4 + $0xc6]]
        %v3752 = vstv %s3751
        %v3753 = vmul.f32 %v3752, %v3737
        %v3754 = vmul.f32 %v3752, %v3738
        %v3755 = vadd.f32 %v3721, %v3753
        %v3756 = vadd.f32 %v3722, %v3754
        %s3757 = sld [smem:[#allocation4 + $0x10e]]
        %v3758 = vstv %s3757
        %v3759 = vmul.f32 %v3758, %v3737
        %v3760 = vmul.f32 %v3758, %v3738
        %v3761 = vadd.f32 %v3735, %v3759
        %v3762 = vadd.f32 %v3736, %v3760
        %s3763 = sld [smem:[#allocation4 + $0x37]]
        %v3764 = vstv %s3763
        %v3765 = vmul.f32 %v3764, %v3737
        %v3766 = vmul.f32 %v3764, %v3738
        %3769 = vrot.lane.b32.xlu0 %v3765, 127
        %v3770 = vpop.permute.xlu0 %3769
        %3771 = vrot.lane.b32.xlu0 %v3766, 127
        %v3772 = vpop.permute.xlu0 %3771
        %v3775 = vadd.f32 %v3743, %v3770
        %v3776 = vadd.f32 %v3744, %v3772
        %s3777 = sld [smem:[#allocation4 + $0x7f]]
        %v3778 = vstv %s3777
        %v3779 = vmul.f32 %v3778, %v3737
        %v3780 = vmul.f32 %v3778, %v3738
        %3783 = vrot.lane.b32.xlu0 %v3779, 127
        %v3784 = vpop.permute.xlu0 %3783
        %3785 = vrot.lane.b32.xlu0 %v3780, 127
        %v3786 = vpop.permute.xlu0 %3785
        %v3789 = vadd.f32 %v3749, %v3784
        %v3790 = vadd.f32 %v3750, %v3786
        %s3791 = sld [smem:[#allocation4 + $0xc7]]
        %v3792 = vstv %s3791
        %v3793 = vmul.f32 %v3792, %v3737
        %v3794 = vmul.f32 %v3792, %v3738
        %3797 = vrot.lane.b32.xlu0 %v3793, 127
        %v3798 = vpop.permute.xlu0 %3797
        %3799 = vrot.lane.b32.xlu0 %v3794, 127
        %v3800 = vpop.permute.xlu0 %3799
        %v3803 = vadd.f32 %v3755, %v3798
        %v3804 = vadd.f32 %v3756, %v3800
        %s3805 = sld [smem:[#allocation4 + $0x10f]]
        %v3806 = vstv %s3805
        %v3807 = vmul.f32 %v3806, %v3737
        %v3808 = vmul.f32 %v3806, %v3738
        %3811 = vrot.lane.b32.xlu0 %v3807, 127
        %v3812 = vpop.permute.xlu0 %3811
        %3813 = vrot.lane.b32.xlu0 %v3808, 127
        %v3814 = vpop.permute.xlu0 %3813
        %v3817 = vadd.f32 %v3761, %v3812
        %v3818 = vadd.f32 %v3762, %v3814
        %s3819 = sld [smem:[#allocation4 + $0x38]]
        %v3820 = vstv %s3819
        %v3821 = vmul.f32 %v3820, %v3737
        %v3822 = vmul.f32 %v3820, %v3738
        %3825 = vrot.lane.b32.xlu0 %v3821, 126
        %v3826 = vpop.permute.xlu0 %3825
        %3827 = vrot.lane.b32.xlu0 %v3822, 126
        %v3828 = vpop.permute.xlu0 %3827
        %v3831 = vadd.f32 %v3775, %v3826
        %v3832 = vadd.f32 %v3776, %v3828
        %s3833 = sld [smem:[#allocation4 + $0x80]]
        %v3834 = vstv %s3833
        %v3835 = vmul.f32 %v3834, %v3737
        %v3836 = vmul.f32 %v3834, %v3738
        %3839 = vrot.lane.b32.xlu0 %v3835, 126
        %v3840 = vpop.permute.xlu0 %3839
        %3841 = vrot.lane.b32.xlu0 %v3836, 126
        %v3842 = vpop.permute.xlu0 %3841
        %v3845 = vadd.f32 %v3789, %v3840
        %v3846 = vadd.f32 %v3790, %v3842
        %s3847 = sld [smem:[#allocation4 + $0xc8]]
        %v3848 = vstv %s3847
        %v3849 = vmul.f32 %v3848, %v3737
        %v3850 = vmul.f32 %v3848, %v3738
        %3853 = vrot.lane.b32.xlu0 %v3849, 126
        %v3854 = vpop.permute.xlu0 %3853
        %3855 = vrot.lane.b32.xlu0 %v3850, 126
        %v3856 = vpop.permute.xlu0 %3855
        %v3859 = vadd.f32 %v3803, %v3854
        %v3860 = vadd.f32 %v3804, %v3856
        %s3861 = sld [smem:[#allocation4 + $0x110]]
        %v3862 = vstv %s3861
        %v3863 = vmul.f32 %v3862, %v3737
        %v3864 = vmul.f32 %v3862, %v3738
        %3867 = vrot.lane.b32.xlu0 %v3863, 126
        %v3868 = vpop.permute.xlu0 %3867
        %3869 = vrot.lane.b32.xlu0 %v3864, 126
        %v3870 = vpop.permute.xlu0 %3869
        %v3873 = vadd.f32 %v3817, %v3868
        %v3874 = vadd.f32 %v3818, %v3870
        %v3875 = vld [vmem:[%s1079 + $0x1] sm:$0xff]
        %v3876 = vld [vmem:[%s1079 + $0x9] sm:$0xff]
        %s3877 = sld [smem:[#allocation4 + $0x39]]
        %v3878 = vstv %s3877
        %v3879 = vmul.f32 %v3878, %v3875
        %v3880 = vmul.f32 %v3878, %v3876
        %v3881 = vadd.f32 %v3831, %v3879
        %v3882 = vadd.f32 %v3832, %v3880
        %s3883 = sld [smem:[#allocation4 + $0x81]]
        %v3884 = vstv %s3883
        %v3885 = vmul.f32 %v3884, %v3875
        %v3886 = vmul.f32 %v3884, %v3876
        %v3887 = vadd.f32 %v3845, %v3885
        %v3888 = vadd.f32 %v3846, %v3886
        %s3889 = sld [smem:[#allocation4 + $0xc9]]
        %v3890 = vstv %s3889
        %v3891 = vmul.f32 %v3890, %v3875
        %v3892 = vmul.f32 %v3890, %v3876
        %v3893 = vadd.f32 %v3859, %v3891
        %v3894 = vadd.f32 %v3860, %v3892
        %s3895 = sld [smem:[#allocation4 + $0x111]]
        %v3896 = vstv %s3895
        %v3897 = vmul.f32 %v3896, %v3875
        %v3898 = vmul.f32 %v3896, %v3876
        %v3899 = vadd.f32 %v3873, %v3897
        %v3900 = vadd.f32 %v3874, %v3898
        %s3901 = sld [smem:[#allocation4 + $0x3a]]
        %v3902 = vstv %s3901
        %v3903 = vmul.f32 %v3902, %v3875
        %v3904 = vmul.f32 %v3902, %v3876
        %3907 = vrot.lane.b32.xlu0 %v3903, 127
        %v3908 = vpop.permute.xlu0 %3907
        %3909 = vrot.lane.b32.xlu0 %v3904, 127
        %v3910 = vpop.permute.xlu0 %3909
        %v3913 = vadd.f32 %v3881, %v3908
        %v3914 = vadd.f32 %v3882, %v3910
        %s3915 = sld [smem:[#allocation4 + $0x82]]
        %v3916 = vstv %s3915
        %v3917 = vmul.f32 %v3916, %v3875
        %v3918 = vmul.f32 %v3916, %v3876
        %3921 = vrot.lane.b32.xlu0 %v3917, 127
        %v3922 = vpop.permute.xlu0 %3921
        %3923 = vrot.lane.b32.xlu0 %v3918, 127
        %v3924 = vpop.permute.xlu0 %3923
        %v3927 = vadd.f32 %v3887, %v3922
        %v3928 = vadd.f32 %v3888, %v3924
        %s3929 = sld [smem:[#allocation4 + $0xca]]
        %v3930 = vstv %s3929
        %v3931 = vmul.f32 %v3930, %v3875
        %v3932 = vmul.f32 %v3930, %v3876
        %3935 = vrot.lane.b32.xlu0 %v3931, 127
        %v3936 = vpop.permute.xlu0 %3935
        %3937 = vrot.lane.b32.xlu0 %v3932, 127
        %v3938 = vpop.permute.xlu0 %3937
        %v3941 = vadd.f32 %v3893, %v3936
        %v3942 = vadd.f32 %v3894, %v3938
        %s3943 = sld [smem:[#allocation4 + $0x112]]
        %v3944 = vstv %s3943
        %v3945 = vmul.f32 %v3944, %v3875
        %v3946 = vmul.f32 %v3944, %v3876
        %3949 = vrot.lane.b32.xlu0 %v3945, 127
        %v3950 = vpop.permute.xlu0 %3949
        %3951 = vrot.lane.b32.xlu0 %v3946, 127
        %v3952 = vpop.permute.xlu0 %3951
        %v3955 = vadd.f32 %v3899, %v3950
        %v3956 = vadd.f32 %v3900, %v3952
        %s3957 = sld [smem:[#allocation4 + $0x3b]]
        %v3958 = vstv %s3957
        %v3959 = vmul.f32 %v3958, %v3875
        %v3960 = vmul.f32 %v3958, %v3876
        %3963 = vrot.lane.b32.xlu0 %v3959, 126
        %v3964 = vpop.permute.xlu0 %3963
        %3965 = vrot.lane.b32.xlu0 %v3960, 126
        %v3966 = vpop.permute.xlu0 %3965
        %v3969 = vadd.f32 %v3913, %v3964
        %v3970 = vadd.f32 %v3914, %v3966
        %s3971 = sld [smem:[#allocation4 + $0x83]]
        %v3972 = vstv %s3971
        %v3973 = vmul.f32 %v3972, %v3875
        %v3974 = vmul.f32 %v3972, %v3876
        %3977 = vrot.lane.b32.xlu0 %v3973, 126
        %v3978 = vpop.permute.xlu0 %3977
        %3979 = vrot.lane.b32.xlu0 %v3974, 126
        %v3980 = vpop.permute.xlu0 %3979
        %v3983 = vadd.f32 %v3927, %v3978
        %v3984 = vadd.f32 %v3928, %v3980
        %s3985 = sld [smem:[#allocation4 + $0xcb]]
        %v3986 = vstv %s3985
        %v3987 = vmul.f32 %v3986, %v3875
        %v3988 = vmul.f32 %v3986, %v3876
        %3991 = vrot.lane.b32.xlu0 %v3987, 126
        %v3992 = vpop.permute.xlu0 %3991
        %3993 = vrot.lane.b32.xlu0 %v3988, 126
        %v3994 = vpop.permute.xlu0 %3993
        %v3997 = vadd.f32 %v3941, %v3992
        %v3998 = vadd.f32 %v3942, %v3994
        %s3999 = sld [smem:[#allocation4 + $0x113]]
        %v4000 = vstv %s3999
        %v4001 = vmul.f32 %v4000, %v3875
        %v4002 = vmul.f32 %v4000, %v3876
        %4005 = vrot.lane.b32.xlu0 %v4001, 126
        %v4006 = vpop.permute.xlu0 %4005
        %4007 = vrot.lane.b32.xlu0 %v4002, 126
        %v4008 = vpop.permute.xlu0 %4007
        %v4011 = vadd.f32 %v3955, %v4006
        %v4012 = vadd.f32 %v3956, %v4008
        %v4013 = vld [vmem:[%s1079 + $0x2] sm:$0xff]
        %v4014 = vld [vmem:[%s1079 + $0xa] sm:$0xff]
        %s4015 = sld [smem:[#allocation4 + $0x3c]]
        %v4016 = vstv %s4015
        %v4017 = vmul.f32 %v4016, %v4013
        %v4018 = vmul.f32 %v4016, %v4014
        %v4019 = vadd.f32 %v3969, %v4017
        %v4020 = vadd.f32 %v3970, %v4018
        %s4021 = sld [smem:[#allocation4 + $0x84]]
        %v4022 = vstv %s4021
        %v4023 = vmul.f32 %v4022, %v4013
        %v4024 = vmul.f32 %v4022, %v4014
        %v4025 = vadd.f32 %v3983, %v4023
        %v4026 = vadd.f32 %v3984, %v4024
        %s4027 = sld [smem:[#allocation4 + $0xcc]]
        %v4028 = vstv %s4027
        %v4029 = vmul.f32 %v4028, %v4013
        %v4030 = vmul.f32 %v4028, %v4014
        %v4031 = vadd.f32 %v3997, %v4029
        %v4032 = vadd.f32 %v3998, %v4030
        %s4033 = sld [smem:[#allocation4 + $0x114]]
        %v4034 = vstv %s4033
        %v4035 = vmul.f32 %v4034, %v4013
        %v4036 = vmul.f32 %v4034, %v4014
        %v4037 = vadd.f32 %v4011, %v4035
        %v4038 = vadd.f32 %v4012, %v4036
        %s4039 = sld [smem:[#allocation4 + $0x3d]]
        %v4040 = vstv %s4039
        %v4041 = vmul.f32 %v4040, %v4013
        %v4042 = vmul.f32 %v4040, %v4014
        %4045 = vrot.lane.b32.xlu0 %v4041, 127
        %v4046 = vpop.permute.xlu0 %4045
        %4047 = vrot.lane.b32.xlu0 %v4042, 127
        %v4048 = vpop.permute.xlu0 %4047
        %v4051 = vadd.f32 %v4019, %v4046
        %v4052 = vadd.f32 %v4020, %v4048
        %s4053 = sld [smem:[#allocation4 + $0x85]]
        %v4054 = vstv %s4053
        %v4055 = vmul.f32 %v4054, %v4013
        %v4056 = vmul.f32 %v4054, %v4014
        %4059 = vrot.lane.b32.xlu0 %v4055, 127
        %v4060 = vpop.permute.xlu0 %4059
        %4061 = vrot.lane.b32.xlu0 %v4056, 127
        %v4062 = vpop.permute.xlu0 %4061
        %v4065 = vadd.f32 %v4025, %v4060
        %v4066 = vadd.f32 %v4026, %v4062
        %s4067 = sld [smem:[#allocation4 + $0xcd]]
        %v4068 = vstv %s4067
        %v4069 = vmul.f32 %v4068, %v4013
        %v4070 = vmul.f32 %v4068, %v4014
        %4073 = vrot.lane.b32.xlu0 %v4069, 127
        %v4074 = vpop.permute.xlu0 %4073
        %4075 = vrot.lane.b32.xlu0 %v4070, 127
        %v4076 = vpop.permute.xlu0 %4075
        %v4079 = vadd.f32 %v4031, %v4074
        %v4080 = vadd.f32 %v4032, %v4076
        %s4081 = sld [smem:[#allocation4 + $0x115]]
        %v4082 = vstv %s4081
        %v4083 = vmul.f32 %v4082, %v4013
        %v4084 = vmul.f32 %v4082, %v4014
        %4087 = vrot.lane.b32.xlu0 %v4083, 127
        %v4088 = vpop.permute.xlu0 %4087
        %4089 = vrot.lane.b32.xlu0 %v4084, 127
        %v4090 = vpop.permute.xlu0 %4089
        %v4093 = vadd.f32 %v4037, %v4088
        %v4094 = vadd.f32 %v4038, %v4090
        %s4095 = sld [smem:[#allocation4 + $0x3e]]
        %v4096 = vstv %s4095
        %v4097 = vmul.f32 %v4096, %v4013
        %v4098 = vmul.f32 %v4096, %v4014
        %4101 = vrot.lane.b32.xlu0 %v4097, 126
        %v4102 = vpop.permute.xlu0 %4101
        %4103 = vrot.lane.b32.xlu0 %v4098, 126
        %v4104 = vpop.permute.xlu0 %4103
        %v4107 = vadd.f32 %v4051, %v4102
        %v4108 = vadd.f32 %v4052, %v4104
        %s4109 = sld [smem:[#allocation4 + $0x86]]
        %v4110 = vstv %s4109
        %v4111 = vmul.f32 %v4110, %v4013
        %v4112 = vmul.f32 %v4110, %v4014
        %4115 = vrot.lane.b32.xlu0 %v4111, 126
        %v4116 = vpop.permute.xlu0 %4115
        %4117 = vrot.lane.b32.xlu0 %v4112, 126
        %v4118 = vpop.permute.xlu0 %4117
        %v4121 = vadd.f32 %v4065, %v4116
        %v4122 = vadd.f32 %v4066, %v4118
        %s4123 = sld [smem:[#allocation4 + $0xce]]
        %v4124 = vstv %s4123
        %v4125 = vmul.f32 %v4124, %v4013
        %v4126 = vmul.f32 %v4124, %v4014
        %4129 = vrot.lane.b32.xlu0 %v4125, 126
        %v4130 = vpop.permute.xlu0 %4129
        %4131 = vrot.lane.b32.xlu0 %v4126, 126
        %v4132 = vpop.permute.xlu0 %4131
        %v4135 = vadd.f32 %v4079, %v4130
        %v4136 = vadd.f32 %v4080, %v4132
        %s4137 = sld [smem:[#allocation4 + $0x116]]
        %v4138 = vstv %s4137
        %v4139 = vmul.f32 %v4138, %v4013
        %v4140 = vmul.f32 %v4138, %v4014
        %4143 = vrot.lane.b32.xlu0 %v4139, 126
        %v4144 = vpop.permute.xlu0 %4143
        %4145 = vrot.lane.b32.xlu0 %v4140, 126
        %v4146 = vpop.permute.xlu0 %4145
        %v4149 = vadd.f32 %v4093, %v4144
        %v4150 = vadd.f32 %v4094, %v4146
        %v4151 = vld [vmem:[%s1250] sm:$0xff]
        %v4152 = vld [vmem:[%s1250 + $0x8] sm:$0xff]
        %s4153 = sld [smem:[#allocation4 + $0x3f]]
        %v4154 = vstv %s4153
        %v4155 = vmul.f32 %v4154, %v4151
        %v4156 = vmul.f32 %v4154, %v4152
        %v4157 = vadd.f32 %v4107, %v4155
        %v4158 = vadd.f32 %v4108, %v4156
        %s4159 = sld [smem:[#allocation4 + $0x87]]
        %v4160 = vstv %s4159
        %v4161 = vmul.f32 %v4160, %v4151
        %v4162 = vmul.f32 %v4160, %v4152
        %v4163 = vadd.f32 %v4121, %v4161
        %v4164 = vadd.f32 %v4122, %v4162
        %s4165 = sld [smem:[#allocation4 + $0xcf]]
        %v4166 = vstv %s4165
        %v4167 = vmul.f32 %v4166, %v4151
        %v4168 = vmul.f32 %v4166, %v4152
        %v4169 = vadd.f32 %v4135, %v4167
        %v4170 = vadd.f32 %v4136, %v4168
        %s4171 = sld [smem:[#allocation4 + $0x117]]
        %v4172 = vstv %s4171
        %v4173 = vmul.f32 %v4172, %v4151
        %v4174 = vmul.f32 %v4172, %v4152
        %v4175 = vadd.f32 %v4149, %v4173
        %v4176 = vadd.f32 %v4150, %v4174
        %s4177 = sld [smem:[#allocation4 + $0x40]]
        %v4178 = vstv %s4177
        %v4179 = vmul.f32 %v4178, %v4151
        %v4180 = vmul.f32 %v4178, %v4152
        %4183 = vrot.lane.b32.xlu0 %v4179, 127
        %v4184 = vpop.permute.xlu0 %4183
        %4185 = vrot.lane.b32.xlu0 %v4180, 127
        %v4186 = vpop.permute.xlu0 %4185
        %v4189 = vadd.f32 %v4157, %v4184
        %v4190 = vadd.f32 %v4158, %v4186
        %s4191 = sld [smem:[#allocation4 + $0x88]]
        %v4192 = vstv %s4191
        %v4193 = vmul.f32 %v4192, %v4151
        %v4194 = vmul.f32 %v4192, %v4152
        %4197 = vrot.lane.b32.xlu0 %v4193, 127
        %v4198 = vpop.permute.xlu0 %4197
        %4199 = vrot.lane.b32.xlu0 %v4194, 127
        %v4200 = vpop.permute.xlu0 %4199
        %v4203 = vadd.f32 %v4163, %v4198
        %v4204 = vadd.f32 %v4164, %v4200
        %s4205 = sld [smem:[#allocation4 + $0xd0]]
        %v4206 = vstv %s4205
        %v4207 = vmul.f32 %v4206, %v4151
        %v4208 = vmul.f32 %v4206, %v4152
        %4211 = vrot.lane.b32.xlu0 %v4207, 127
        %v4212 = vpop.permute.xlu0 %4211
        %4213 = vrot.lane.b32.xlu0 %v4208, 127
        %v4214 = vpop.permute.xlu0 %4213
        %v4217 = vadd.f32 %v4169, %v4212
        %v4218 = vadd.f32 %v4170, %v4214
        %s4219 = sld [smem:[#allocation4 + $0x118]]
        %v4220 = vstv %s4219
        %v4221 = vmul.f32 %v4220, %v4151
        %v4222 = vmul.f32 %v4220, %v4152
        %4225 = vrot.lane.b32.xlu0 %v4221, 127
        %v4226 = vpop.permute.xlu0 %4225
        %4227 = vrot.lane.b32.xlu0 %v4222, 127
        %v4228 = vpop.permute.xlu0 %4227
        %v4231 = vadd.f32 %v4175, %v4226
        %v4232 = vadd.f32 %v4176, %v4228
        %s4233 = sld [smem:[#allocation4 + $0x41]]
        %v4234 = vstv %s4233
        %v4235 = vmul.f32 %v4234, %v4151
        %v4236 = vmul.f32 %v4234, %v4152
        %4239 = vrot.lane.b32.xlu0 %v4235, 126
        %v4240 = vpop.permute.xlu0 %4239
        %4241 = vrot.lane.b32.xlu0 %v4236, 126
        %v4242 = vpop.permute.xlu0 %4241
        %v4245 = vadd.f32 %v4189, %v4240
        %v4246 = vadd.f32 %v4190, %v4242
        %s4247 = sld [smem:[#allocation4 + $0x89]]
        %v4248 = vstv %s4247
        %v4249 = vmul.f32 %v4248, %v4151
        %v4250 = vmul.f32 %v4248, %v4152
        %4253 = vrot.lane.b32.xlu0 %v4249, 126
        %v4254 = vpop.permute.xlu0 %4253
        %4255 = vrot.lane.b32.xlu0 %v4250, 126
        %v4256 = vpop.permute.xlu0 %4255
        %v4259 = vadd.f32 %v4203, %v4254
        %v4260 = vadd.f32 %v4204, %v4256
        %s4261 = sld [smem:[#allocation4 + $0xd1]]
        %v4262 = vstv %s4261
        %v4263 = vmul.f32 %v4262, %v4151
        %v4264 = vmul.f32 %v4262, %v4152
        %4267 = vrot.lane.b32.xlu0 %v4263, 126
        %v4268 = vpop.permute.xlu0 %4267
        %4269 = vrot.lane.b32.xlu0 %v4264, 126
        %v4270 = vpop.permute.xlu0 %4269
        %v4273 = vadd.f32 %v4217, %v4268
        %v4274 = vadd.f32 %v4218, %v4270
        %s4275 = sld [smem:[#allocation4 + $0x119]]
        %v4276 = vstv %s4275
        %v4277 = vmul.f32 %v4276, %v4151
        %v4278 = vmul.f32 %v4276, %v4152
        %4281 = vrot.lane.b32.xlu0 %v4277, 126
        %v4282 = vpop.permute.xlu0 %4281
        %4283 = vrot.lane.b32.xlu0 %v4278, 126
        %v4284 = vpop.permute.xlu0 %4283
        %v4287 = vadd.f32 %v4231, %v4282
        %v4288 = vadd.f32 %v4232, %v4284
        %v4289 = vld [vmem:[%s1250 + $0x1] sm:$0xff]
        %v4290 = vld [vmem:[%s1250 + $0x9] sm:$0xff]
        %s4291 = sld [smem:[#allocation4 + $0x42]]
        %v4292 = vstv %s4291
        %v4293 = vmul.f32 %v4292, %v4289
        %v4294 = vmul.f32 %v4292, %v4290
        %v4295 = vadd.f32 %v4245, %v4293
        %v4296 = vadd.f32 %v4246, %v4294
        %s4297 = sld [smem:[#allocation4 + $0x8a]]
        %v4298 = vstv %s4297
        %v4299 = vmul.f32 %v4298, %v4289
        %v4300 = vmul.f32 %v4298, %v4290
        %v4301 = vadd.f32 %v4259, %v4299
        %v4302 = vadd.f32 %v4260, %v4300
        %s4303 = sld [smem:[#allocation4 + $0xd2]]
        %v4304 = vstv %s4303
        %v4305 = vmul.f32 %v4304, %v4289
        %v4306 = vmul.f32 %v4304, %v4290
        %v4307 = vadd.f32 %v4273, %v4305
        %v4308 = vadd.f32 %v4274, %v4306
        %s4309 = sld [smem:[#allocation4 + $0x11a]]
        %v4310 = vstv %s4309
        %v4311 = vmul.f32 %v4310, %v4289
        %v4312 = vmul.f32 %v4310, %v4290
        %v4313 = vadd.f32 %v4287, %v4311
        %v4314 = vadd.f32 %v4288, %v4312
        %s4315 = sld [smem:[#allocation4 + $0x43]]
        %v4316 = vstv %s4315
        %v4317 = vmul.f32 %v4316, %v4289
        %v4318 = vmul.f32 %v4316, %v4290
        %4321 = vrot.lane.b32.xlu0 %v4317, 127
        %v4322 = vpop.permute.xlu0 %4321
        %4323 = vrot.lane.b32.xlu0 %v4318, 127
        %v4324 = vpop.permute.xlu0 %4323
        %v4327 = vadd.f32 %v4295, %v4322
        %v4328 = vadd.f32 %v4296, %v4324
        %s4329 = sld [smem:[#allocation4 + $0x8b]]
        %v4330 = vstv %s4329
        %v4331 = vmul.f32 %v4330, %v4289
        %v4332 = vmul.f32 %v4330, %v4290
        %4335 = vrot.lane.b32.xlu0 %v4331, 127
        %v4336 = vpop.permute.xlu0 %4335
        %4337 = vrot.lane.b32.xlu0 %v4332, 127
        %v4338 = vpop.permute.xlu0 %4337
        %v4341 = vadd.f32 %v4301, %v4336
        %v4342 = vadd.f32 %v4302, %v4338
        %s4343 = sld [smem:[#allocation4 + $0xd3]]
        %v4344 = vstv %s4343
        %v4345 = vmul.f32 %v4344, %v4289
        %v4346 = vmul.f32 %v4344, %v4290
        %4349 = vrot.lane.b32.xlu0 %v4345, 127
        %v4350 = vpop.permute.xlu0 %4349
        %4351 = vrot.lane.b32.xlu0 %v4346, 127
        %v4352 = vpop.permute.xlu0 %4351
        %v4355 = vadd.f32 %v4307, %v4350
        %v4356 = vadd.f32 %v4308, %v4352
        %s4357 = sld [smem:[#allocation4 + $0x11b]]
        %v4358 = vstv %s4357
        %v4359 = vmul.f32 %v4358, %v4289
        %v4360 = vmul.f32 %v4358, %v4290
        %4363 = vrot.lane.b32.xlu0 %v4359, 127
        %v4364 = vpop.permute.xlu0 %4363
        %4365 = vrot.lane.b32.xlu0 %v4360, 127
        %v4366 = vpop.permute.xlu0 %4365
        %v4369 = vadd.f32 %v4313, %v4364
        %v4370 = vadd.f32 %v4314, %v4366
        %s4371 = sld [smem:[#allocation4 + $0x44]]
        %v4372 = vstv %s4371
        %v4373 = vmul.f32 %v4372, %v4289
        %v4374 = vmul.f32 %v4372, %v4290
        %4377 = vrot.lane.b32.xlu0 %v4373, 126
        %v4378 = vpop.permute.xlu0 %4377
        %4379 = vrot.lane.b32.xlu0 %v4374, 126
        %v4380 = vpop.permute.xlu0 %4379
        %v4383 = vadd.f32 %v4327, %v4378
        %v4384 = vadd.f32 %v4328, %v4380
        %s4385 = sld [smem:[#allocation4 + $0x8c]]
        %v4386 = vstv %s4385
        %v4387 = vmul.f32 %v4386, %v4289
        %v4388 = vmul.f32 %v4386, %v4290
        %4391 = vrot.lane.b32.xlu0 %v4387, 126
        %v4392 = vpop.permute.xlu0 %4391
        %4393 = vrot.lane.b32.xlu0 %v4388, 126
        %v4394 = vpop.permute.xlu0 %4393
        %v4397 = vadd.f32 %v4341, %v4392
        %v4398 = vadd.f32 %v4342, %v4394
        %s4399 = sld [smem:[#allocation4 + $0xd4]]
        %v4400 = vstv %s4399
        %v4401 = vmul.f32 %v4400, %v4289
        %v4402 = vmul.f32 %v4400, %v4290
        %4405 = vrot.lane.b32.xlu0 %v4401, 126
        %v4406 = vpop.permute.xlu0 %4405
        %4407 = vrot.lane.b32.xlu0 %v4402, 126
        %v4408 = vpop.permute.xlu0 %4407
        %v4411 = vadd.f32 %v4355, %v4406
        %v4412 = vadd.f32 %v4356, %v4408
        %s4413 = sld [smem:[#allocation4 + $0x11c]]
        %v4414 = vstv %s4413
        %v4415 = vmul.f32 %v4414, %v4289
        %v4416 = vmul.f32 %v4414, %v4290
        %4419 = vrot.lane.b32.xlu0 %v4415, 126
        %v4420 = vpop.permute.xlu0 %4419
        %4421 = vrot.lane.b32.xlu0 %v4416, 126
        %v4422 = vpop.permute.xlu0 %4421
        %v4425 = vadd.f32 %v4369, %v4420
        %v4426 = vadd.f32 %v4370, %v4422
        %v4427 = vld [vmem:[%s1250 + $0x2] sm:$0xff]
        %v4428 = vld [vmem:[%s1250 + $0xa] sm:$0xff]
        %s4429 = sld [smem:[#allocation4 + $0x45]]
        %v4430 = vstv %s4429
        %v4431 = vmul.f32 %v4430, %v4427
        %v4432 = vmul.f32 %v4430, %v4428
        %v4433 = vadd.f32 %v4383, %v4431
        %v4434 = vadd.f32 %v4384, %v4432
        %s4435 = sld [smem:[#allocation4 + $0x8d]]
        %v4436 = vstv %s4435
        %v4437 = vmul.f32 %v4436, %v4427
        %v4438 = vmul.f32 %v4436, %v4428
        %v4439 = vadd.f32 %v4397, %v4437
        %v4440 = vadd.f32 %v4398, %v4438
        %s4441 = sld [smem:[#allocation4 + $0xd5]]
        %v4442 = vstv %s4441
        %v4443 = vmul.f32 %v4442, %v4427
        %v4444 = vmul.f32 %v4442, %v4428
        %v4445 = vadd.f32 %v4411, %v4443
        %v4446 = vadd.f32 %v4412, %v4444
        %s4447 = sld [smem:[#allocation4 + $0x11d]]
        %v4448 = vstv %s4447
        %v4449 = vmul.f32 %v4448, %v4427
        %v4450 = vmul.f32 %v4448, %v4428
        %v4451 = vadd.f32 %v4425, %v4449
        %v4452 = vadd.f32 %v4426, %v4450
        %s4453 = sld [smem:[#allocation4 + $0x46]]
        %v4454 = vstv %s4453
        %v4455 = vmul.f32 %v4454, %v4427
        %v4456 = vmul.f32 %v4454, %v4428
        %4459 = vrot.lane.b32.xlu0 %v4455, 127
        %v4460 = vpop.permute.xlu0 %4459
        %4461 = vrot.lane.b32.xlu0 %v4456, 127
        %v4462 = vpop.permute.xlu0 %4461
        %v4465 = vadd.f32 %v4433, %v4460
        %v4466 = vadd.f32 %v4434, %v4462
        %s4467 = sld [smem:[#allocation4 + $0x8e]]
        %v4468 = vstv %s4467
        %v4469 = vmul.f32 %v4468, %v4427
        %v4470 = vmul.f32 %v4468, %v4428
        %4473 = vrot.lane.b32.xlu0 %v4469, 127
        %v4474 = vpop.permute.xlu0 %4473
        %4475 = vrot.lane.b32.xlu0 %v4470, 127
        %v4476 = vpop.permute.xlu0 %4475
        %v4479 = vadd.f32 %v4439, %v4474
        %v4480 = vadd.f32 %v4440, %v4476
        %s4481 = sld [smem:[#allocation4 + $0xd6]]
        %v4482 = vstv %s4481
        %v4483 = vmul.f32 %v4482, %v4427
        %v4484 = vmul.f32 %v4482, %v4428
        %4487 = vrot.lane.b32.xlu0 %v4483, 127
        %v4488 = vpop.permute.xlu0 %4487
        %4489 = vrot.lane.b32.xlu0 %v4484, 127
        %v4490 = vpop.permute.xlu0 %4489
        %v4493 = vadd.f32 %v4445, %v4488
        %v4494 = vadd.f32 %v4446, %v4490
        %s4495 = sld [smem:[#allocation4 + $0x11e]]
        %v4496 = vstv %s4495
        %v4497 = vmul.f32 %v4496, %v4427
        %v4498 = vmul.f32 %v4496, %v4428
        %4501 = vrot.lane.b32.xlu0 %v4497, 127
        %v4502 = vpop.permute.xlu0 %4501
        %4503 = vrot.lane.b32.xlu0 %v4498, 127
        %v4504 = vpop.permute.xlu0 %4503
        %v4507 = vadd.f32 %v4451, %v4502
        %v4508 = vadd.f32 %v4452, %v4504
        %s4509 = sld [smem:[#allocation4 + $0x47]]
        %v4510 = vstv %s4509
        %v4511 = vmul.f32 %v4510, %v4427
        %v4512 = vmul.f32 %v4510, %v4428
        %4515 = vrot.lane.b32.xlu0 %v4511, 126
        %v4516 = vpop.permute.xlu0 %4515
        %4517 = vrot.lane.b32.xlu0 %v4512, 126
        %v4518 = vpop.permute.xlu0 %4517
        %v4521 = vadd.f32 %v4465, %v4516
        %v4522 = vadd.f32 %v4466, %v4518
        %s4523 = sld [smem:[#allocation4 + $0x8f]]
        %v4524 = vstv %s4523
        %v4525 = vmul.f32 %v4524, %v4427
        %v4526 = vmul.f32 %v4524, %v4428
        %4529 = vrot.lane.b32.xlu0 %v4525, 126
        %v4530 = vpop.permute.xlu0 %4529
        %4531 = vrot.lane.b32.xlu0 %v4526, 126
        %v4532 = vpop.permute.xlu0 %4531
        %v4535 = vadd.f32 %v4479, %v4530
        %v4536 = vadd.f32 %v4480, %v4532
        %s4537 = sld [smem:[#allocation4 + $0xd7]]
        %v4538 = vstv %s4537
        %v4539 = vmul.f32 %v4538, %v4427
        %v4540 = vmul.f32 %v4538, %v4428
        %4543 = vrot.lane.b32.xlu0 %v4539, 126
        %v4544 = vpop.permute.xlu0 %4543
        %4545 = vrot.lane.b32.xlu0 %v4540, 126
        %v4546 = vpop.permute.xlu0 %4545
        %v4549 = vadd.f32 %v4493, %v4544
        %v4550 = vadd.f32 %v4494, %v4546
        %s4551 = sld [smem:[#allocation4 + $0x11f]]
        %v4552 = vstv %s4551
        %v4553 = vmul.f32 %v4552, %v4427
        %v4554 = vmul.f32 %v4552, %v4428
        %4557 = vrot.lane.b32.xlu0 %v4553, 126
        %v4558 = vpop.permute.xlu0 %4557
        %4559 = vrot.lane.b32.xlu0 %v4554, 126
        %v4560 = vpop.permute.xlu0 %4559
        %v4563 = vadd.f32 %v4507, %v4558
        %v4564 = vadd.f32 %v4508, %v4560
        %s4565 = sld [smem:[#allocation7]]
        %v4566 = vstv %s4565
        %v4567 = vadd.f32 %v4521, %v4566
        %v4568 = vadd.f32 %v4522, %v4566
        %v4569 = vmax.f32 %v4567, 0.0
        %v4570 = vmax.f32 %v4568, 0.0
        %4573 = vrot.lane.b32.xlu0 %v4569, 1
        %v4574 = vpop.permute.xlu0 %4573
        %4575 = vrot.lane.b32.xlu0 %v4570, 1
        %v4576 = vpop.permute.xlu0 %4575
        %4579 = vst.msk [vmem:[#allocation3 + $0x1] sm:$0xff] %vm424, %v4574
        %4580 = vst.msk [vmem:[#allocation3 + $0x9] sm:$0xff] %vm424, %v4576
        %s4581 = sld [smem:[#allocation7 + $0x1]]
        %v4582 = vstv %s4581
        %v4583 = vadd.f32 %v4535, %v4582
        %v4584 = vadd.f32 %v4536, %v4582
        %v4585 = vmax.f32 %v4583, 0.0
        %v4586 = vmax.f32 %v4584, 0.0
        %4589 = vrot.lane.b32.xlu0 %v4585, 1
        %v4590 = vpop.permute.xlu0 %4589
        %4591 = vrot.lane.b32.xlu0 %v4586, 1
        %v4592 = vpop.permute.xlu0 %4591
        %s4595 = scalar_lea.vmem [#allocation3], 24
        %4596 = vst.msk [vmem:[%s4595 + $0x1] sm:$0xff] %vm424, %v4590
        %4597 = vst.msk [vmem:[%s4595 + $0x9] sm:$0xff] %vm424, %v4592
        %s4598 = sld [smem:[#allocation7 + $0x2]]
        %v4599 = vstv %s4598
        %v4600 = vadd.f32 %v4549, %v4599
        %v4601 = vadd.f32 %v4550, %v4599
        %v4602 = vmax.f32 %v4600, 0.0
        %v4603 = vmax.f32 %v4601, 0.0
        %4606 = vrot.lane.b32.xlu0 %v4602, 1
        %v4607 = vpop.permute.xlu0 %4606
        %4608 = vrot.lane.b32.xlu0 %v4603, 1
        %v4609 = vpop.permute.xlu0 %4608
        %s4612 = scalar_lea.vmem [#allocation3], 48
        %4613 = vst.msk [vmem:[%s4612 + $0x1] sm:$0xff] %vm424, %v4607
        %4614 = vst.msk [vmem:[%s4612 + $0x9] sm:$0xff] %vm424, %v4609
        %s4615 = sld [smem:[#allocation7 + $0x3]]
        %v4616 = vstv %s4615
        %v4617 = vadd.f32 %v4563, %v4616
        %v4618 = vadd.f32 %v4564, %v4616
        %v4619 = vmax.f32 %v4617, 0.0
        %v4620 = vmax.f32 %v4618, 0.0
        %4623 = vrot.lane.b32.xlu0 %v4619, 1
        %v4624 = vpop.permute.xlu0 %4623
        %4625 = vrot.lane.b32.xlu0 %v4620, 1
        %v4626 = vpop.permute.xlu0 %4625
        %s4629 = scalar_lea.vmem [#allocation3], 72
        %4630 = vst.msk [vmem:[%s4629 + $0x1] sm:$0xff] %vm424, %v4624
        %4631 = vst.msk [vmem:[%s4629 + $0x9] sm:$0xff] %vm424, %v4626
        %v4632 = vld [vmem:[#allocation3] sm:$0xff]
        %v4633 = vld [vmem:[#allocation3 + $0x8] sm:$0xff]
        %s4634 = sld [smem:[#allocation9]]
        %v4635 = vstv %s4634
        %v4636 = vmul.f32 %v4635, %v4632
        %v4637 = vmul.f32 %v4635, %v4633
        %v4638 = vadd.f32 %v4636, 0.0
        %v4639 = vadd.f32 %v4637, 0.0
        %s4640 = sld [smem:[#allocation9 + $0x24]]
        %v4641 = vstv %s4640
        %v4642 = vmul.f32 %v4641, %v4632
        %v4643 = vmul.f32 %v4641, %v4633
        %v4644 = vadd.f32 %v4642, 0.0
        %v4645 = vadd.f32 %v4643, 0.0
        %s4646 = sld [smem:[#allocation9 + $0x48]]
        %v4647 = vstv %s4646
        %v4648 = vmul.f32 %v4647, %v4632
        %v4649 = vmul.f32 %v4647, %v4633
        %v4650 = vadd.f32 %v4648, 0.0
        %v4651 = vadd.f32 %v4649, 0.0
        %s4652 = sld [smem:[#allocation9 + $0x6c]]
        %v4653 = vstv %s4652
        %v4654 = vmul.f32 %v4653, %v4632
        %v4655 = vmul.f32 %v4653, %v4633
        %v4656 = vadd.f32 %v4654, 0.0
        %v4657 = vadd.f32 %v4655, 0.0
        %s4658 = sld [smem:[#allocation9 + $0x1]]
        %v4659 = vstv %s4658
        %v4660 = vmul.f32 %v4659, %v4632
        %v4661 = vmul.f32 %v4659, %v4633
        %4664 = vrot.lane.b32.xlu0 %v4660, 127
        %v4665 = vpop.permute.xlu0 %4664
        %4666 = vrot.lane.b32.xlu0 %v4661, 127
        %v4667 = vpop.permute.xlu0 %4666
        %v4670 = vadd.f32 %v4638, %v4665
        %v4671 = vadd.f32 %v4639, %v4667
        %s4672 = sld [smem:[#allocation9 + $0x25]]
        %v4673 = vstv %s4672
        %v4674 = vmul.f32 %v4673, %v4632
        %v4675 = vmul.f32 %v4673, %v4633
        %4678 = vrot.lane.b32.xlu0 %v4674, 127
        %v4679 = vpop.permute.xlu0 %4678
        %4680 = vrot.lane.b32.xlu0 %v4675, 127
        %v4681 = vpop.permute.xlu0 %4680
        %v4684 = vadd.f32 %v4644, %v4679
        %v4685 = vadd.f32 %v4645, %v4681
        %s4686 = sld [smem:[#allocation9 + $0x49]]
        %v4687 = vstv %s4686
        %v4688 = vmul.f32 %v4687, %v4632
        %v4689 = vmul.f32 %v4687, %v4633
        %4692 = vrot.lane.b32.xlu0 %v4688, 127
        %v4693 = vpop.permute.xlu0 %4692
        %4694 = vrot.lane.b32.xlu0 %v4689, 127
        %v4695 = vpop.permute.xlu0 %4694
        %v4698 = vadd.f32 %v4650, %v4693
        %v4699 = vadd.f32 %v4651, %v4695
        %s4700 = sld [smem:[#allocation9 + $0x6d]]
        %v4701 = vstv %s4700
        %v4702 = vmul.f32 %v4701, %v4632
        %v4703 = vmul.f32 %v4701, %v4633
        %4706 = vrot.lane.b32.xlu0 %v4702, 127
        %v4707 = vpop.permute.xlu0 %4706
        %4708 = vrot.lane.b32.xlu0 %v4703, 127
        %v4709 = vpop.permute.xlu0 %4708
        %v4712 = vadd.f32 %v4656, %v4707
        %v4713 = vadd.f32 %v4657, %v4709
        %s4714 = sld [smem:[#allocation9 + $0x2]]
        %v4715 = vstv %s4714
        %v4716 = vmul.f32 %v4715, %v4632
        %v4717 = vmul.f32 %v4715, %v4633
        %4720 = vrot.lane.b32.xlu0 %v4716, 126
        %v4721 = vpop.permute.xlu0 %4720
        %4722 = vrot.lane.b32.xlu0 %v4717, 126
        %v4723 = vpop.permute.xlu0 %4722
        %v4726 = vadd.f32 %v4670, %v4721
        %v4727 = vadd.f32 %v4671, %v4723
        %s4728 = sld [smem:[#allocation9 + $0x26]]
        %v4729 = vstv %s4728
        %v4730 = vmul.f32 %v4729, %v4632
        %v4731 = vmul.f32 %v4729, %v4633
        %4734 = vrot.lane.b32.xlu0 %v4730, 126
        %v4735 = vpop.permute.xlu0 %4734
        %4736 = vrot.lane.b32.xlu0 %v4731, 126
        %v4737 = vpop.permute.xlu0 %4736
        %v4740 = vadd.f32 %v4684, %v4735
        %v4741 = vadd.f32 %v4685, %v4737
        %s4742 = sld [smem:[#allocation9 + $0x4a]]
        %v4743 = vstv %s4742
        %v4744 = vmul.f32 %v4743, %v4632
        %v4745 = vmul.f32 %v4743, %v4633
        %4748 = vrot.lane.b32.xlu0 %v4744, 126
        %v4749 = vpop.permute.xlu0 %4748
        %4750 = vrot.lane.b32.xlu0 %v4745, 126
        %v4751 = vpop.permute.xlu0 %4750
        %v4754 = vadd.f32 %v4698, %v4749
        %v4755 = vadd.f32 %v4699, %v4751
        %s4756 = sld [smem:[#allocation9 + $0x6e]]
        %v4757 = vstv %s4756
        %v4758 = vmul.f32 %v4757, %v4632
        %v4759 = vmul.f32 %v4757, %v4633
        %4762 = vrot.lane.b32.xlu0 %v4758, 126
        %v4763 = vpop.permute.xlu0 %4762
        %4764 = vrot.lane.b32.xlu0 %v4759, 126
        %v4765 = vpop.permute.xlu0 %4764
        %v4768 = vadd.f32 %v4712, %v4763
        %v4769 = vadd.f32 %v4713, %v4765
        %v4770 = vld [vmem:[#allocation3 + $0x1] sm:$0xff]
        %v4771 = vld [vmem:[#allocation3 + $0x9] sm:$0xff]
        %s4772 = sld [smem:[#allocation9 + $0x3]]
        %v4773 = vstv %s4772
        %v4774 = vmul.f32 %v4773, %v4770
        %v4775 = vmul.f32 %v4773, %v4771
        %v4776 = vadd.f32 %v4726, %v4774
        %v4777 = vadd.f32 %v4727, %v4775
        %s4778 = sld [smem:[#allocation9 + $0x27]]
        %v4779 = vstv %s4778
        %v4780 = vmul.f32 %v4779, %v4770
        %v4781 = vmul.f32 %v4779, %v4771
        %v4782 = vadd.f32 %v4740, %v4780
        %v4783 = vadd.f32 %v4741, %v4781
        %s4784 = sld [smem:[#allocation9 + $0x4b]]
        %v4785 = vstv %s4784
        %v4786 = vmul.f32 %v4785, %v4770
        %v4787 = vmul.f32 %v4785, %v4771
        %v4788 = vadd.f32 %v4754, %v4786
        %v4789 = vadd.f32 %v4755, %v4787
        %s4790 = sld [smem:[#allocation9 + $0x6f]]
        %v4791 = vstv %s4790
        %v4792 = vmul.f32 %v4791, %v4770
        %v4793 = vmul.f32 %v4791, %v4771
        %v4794 = vadd.f32 %v4768, %v4792
        %v4795 = vadd.f32 %v4769, %v4793
        %s4796 = sld [smem:[#allocation9 + $0x4]]
        %v4797 = vstv %s4796
        %v4798 = vmul.f32 %v4797, %v4770
        %v4799 = vmul.f32 %v4797, %v4771
        %4802 = vrot.lane.b32.xlu0 %v4798, 127
        %v4803 = vpop.permute.xlu0 %4802
        %4804 = vrot.lane.b32.xlu0 %v4799, 127
        %v4805 = vpop.permute.xlu0 %4804
        %v4808 = vadd.f32 %v4776, %v4803
        %v4809 = vadd.f32 %v4777, %v4805
        %s4810 = sld [smem:[#allocation9 + $0x28]]
        %v4811 = vstv %s4810
        %v4812 = vmul.f32 %v4811, %v4770
        %v4813 = vmul.f32 %v4811, %v4771
        %4816 = vrot.lane.b32.xlu0 %v4812, 127
        %v4817 = vpop.permute.xlu0 %4816
        %4818 = vrot.lane.b32.xlu0 %v4813, 127
        %v4819 = vpop.permute.xlu0 %4818
        %v4822 = vadd.f32 %v4782, %v4817
        %v4823 = vadd.f32 %v4783, %v4819
        %s4824 = sld [smem:[#allocation9 + $0x4c]]
        %v4825 = vstv %s4824
        %v4826 = vmul.f32 %v4825, %v4770
        %v4827 = vmul.f32 %v4825, %v4771
        %4830 = vrot.lane.b32.xlu0 %v4826, 127
        %v4831 = vpop.permute.xlu0 %4830
        %4832 = vrot.lane.b32.xlu0 %v4827, 127
        %v4833 = vpop.permute.xlu0 %4832
        %v4836 = vadd.f32 %v4788, %v4831
        %v4837 = vadd.f32 %v4789, %v4833
        %s4838 = sld [smem:[#allocation9 + $0x70]]
        %v4839 = vstv %s4838
        %v4840 = vmul.f32 %v4839, %v4770
        %v4841 = vmul.f32 %v4839, %v4771
        %4844 = vrot.lane.b32.xlu0 %v4840, 127
        %v4845 = vpop.permute.xlu0 %4844
        %4846 = vrot.lane.b32.xlu0 %v4841, 127
        %v4847 = vpop.permute.xlu0 %4846
        %v4850 = vadd.f32 %v4794, %v4845
        %v4851 = vadd.f32 %v4795, %v4847
        %s4852 = sld [smem:[#allocation9 + $0x5]]
        %v4853 = vstv %s4852
        %v4854 = vmul.f32 %v4853, %v4770
        %v4855 = vmul.f32 %v4853, %v4771
        %4858 = vrot.lane.b32.xlu0 %v4854, 126
        %v4859 = vpop.permute.xlu0 %4858
        %4860 = vrot.lane.b32.xlu0 %v4855, 126
        %v4861 = vpop.permute.xlu0 %4860
        %v4864 = vadd.f32 %v4808, %v4859
        %v4865 = vadd.f32 %v4809, %v4861
        %s4866 = sld [smem:[#allocation9 + $0x29]]
        %v4867 = vstv %s4866
        %v4868 = vmul.f32 %v4867, %v4770
        %v4869 = vmul.f32 %v4867, %v4771
        %4872 = vrot.lane.b32.xlu0 %v4868, 126
        %v4873 = vpop.permute.xlu0 %4872
        %4874 = vrot.lane.b32.xlu0 %v4869, 126
        %v4875 = vpop.permute.xlu0 %4874
        %v4878 = vadd.f32 %v4822, %v4873
        %v4879 = vadd.f32 %v4823, %v4875
        %s4880 = sld [smem:[#allocation9 + $0x4d]]
        %v4881 = vstv %s4880
        %v4882 = vmul.f32 %v4881, %v4770
        %v4883 = vmul.f32 %v4881, %v4771
        %4886 = vrot.lane.b32.xlu0 %v4882, 126
        %v4887 = vpop.permute.xlu0 %4886
        %4888 = vrot.lane.b32.xlu0 %v4883, 126
        %v4889 = vpop.permute.xlu0 %4888
        %v4892 = vadd.f32 %v4836, %v4887
        %v4893 = vadd.f32 %v4837, %v4889
        %s4894 = sld [smem:[#allocation9 + $0x71]]
        %v4895 = vstv %s4894
        %v4896 = vmul.f32 %v4895, %v4770
        %v4897 = vmul.f32 %v4895, %v4771
        %4900 = vrot.lane.b32.xlu0 %v4896, 126
        %v4901 = vpop.permute.xlu0 %4900
        %4902 = vrot.lane.b32.xlu0 %v4897, 126
        %v4903 = vpop.permute.xlu0 %4902
        %v4906 = vadd.f32 %v4850, %v4901
        %v4907 = vadd.f32 %v4851, %v4903
        %v4908 = vld [vmem:[#allocation3 + $0x2] sm:$0xff]
        %v4909 = vld [vmem:[#allocation3 + $0xa] sm:$0xff]
        %s4910 = sld [smem:[#allocation9 + $0x6]]
        %v4911 = vstv %s4910
        %v4912 = vmul.f32 %v4911, %v4908
        %v4913 = vmul.f32 %v4911, %v4909
        %v4914 = vadd.f32 %v4864, %v4912
        %v4915 = vadd.f32 %v4865, %v4913
        %s4916 = sld [smem:[#allocation9 + $0x2a]]
        %v4917 = vstv %s4916
        %v4918 = vmul.f32 %v4917, %v4908
        %v4919 = vmul.f32 %v4917, %v4909
        %v4920 = vadd.f32 %v4878, %v4918
        %v4921 = vadd.f32 %v4879, %v4919
        %s4922 = sld [smem:[#allocation9 + $0x4e]]
        %v4923 = vstv %s4922
        %v4924 = vmul.f32 %v4923, %v4908
        %v4925 = vmul.f32 %v4923, %v4909
        %v4926 = vadd.f32 %v4892, %v4924
        %v4927 = vadd.f32 %v4893, %v4925
        %s4928 = sld [smem:[#allocation9 + $0x72]]
        %v4929 = vstv %s4928
        %v4930 = vmul.f32 %v4929, %v4908
        %v4931 = vmul.f32 %v4929, %v4909
        %v4932 = vadd.f32 %v4906, %v4930
        %v4933 = vadd.f32 %v4907, %v4931
        %s4934 = sld [smem:[#allocation9 + $0x7]]
        %v4935 = vstv %s4934
        %v4936 = vmul.f32 %v4935, %v4908
        %v4937 = vmul.f32 %v4935, %v4909
        %4940 = vrot.lane.b32.xlu0 %v4936, 127
        %v4941 = vpop.permute.xlu0 %4940
        %4942 = vrot.lane.b32.xlu0 %v4937, 127
        %v4943 = vpop.permute.xlu0 %4942
        %v4946 = vadd.f32 %v4914, %v4941
        %v4947 = vadd.f32 %v4915, %v4943
        %s4948 = sld [smem:[#allocation9 + $0x2b]]
        %v4949 = vstv %s4948
        %v4950 = vmul.f32 %v4949, %v4908
        %v4951 = vmul.f32 %v4949, %v4909
        %4954 = vrot.lane.b32.xlu0 %v4950, 127
        %v4955 = vpop.permute.xlu0 %4954
        %4956 = vrot.lane.b32.xlu0 %v4951, 127
        %v4957 = vpop.permute.xlu0 %4956
        %v4960 = vadd.f32 %v4920, %v4955
        %v4961 = vadd.f32 %v4921, %v4957
        %s4962 = sld [smem:[#allocation9 + $0x4f]]
        %v4963 = vstv %s4962
        %v4964 = vmul.f32 %v4963, %v4908
        %v4965 = vmul.f32 %v4963, %v4909
        %4968 = vrot.lane.b32.xlu0 %v4964, 127
        %v4969 = vpop.permute.xlu0 %4968
        %4970 = vrot.lane.b32.xlu0 %v4965, 127
        %v4971 = vpop.permute.xlu0 %4970
        %v4974 = vadd.f32 %v4926, %v4969
        %v4975 = vadd.f32 %v4927, %v4971
        %s4976 = sld [smem:[#allocation9 + $0x73]]
        %v4977 = vstv %s4976
        %v4978 = vmul.f32 %v4977, %v4908
        %v4979 = vmul.f32 %v4977, %v4909
        %4982 = vrot.lane.b32.xlu0 %v4978, 127
        %v4983 = vpop.permute.xlu0 %4982
        %4984 = vrot.lane.b32.xlu0 %v4979, 127
        %v4985 = vpop.permute.xlu0 %4984
        %v4988 = vadd.f32 %v4932, %v4983
        %v4989 = vadd.f32 %v4933, %v4985
        %s4990 = sld [smem:[#allocation9 + $0x8]]
        %v4991 = vstv %s4990
        %v4992 = vmul.f32 %v4991, %v4908
        %v4993 = vmul.f32 %v4991, %v4909
        %4996 = vrot.lane.b32.xlu0 %v4992, 126
        %v4997 = vpop.permute.xlu0 %4996
        %4998 = vrot.lane.b32.xlu0 %v4993, 126
        %v4999 = vpop.permute.xlu0 %4998
        %v5002 = vadd.f32 %v4946, %v4997
        %v5003 = vadd.f32 %v4947, %v4999
        %s5004 = sld [smem:[#allocation9 + $0x2c]]
        %v5005 = vstv %s5004
        %v5006 = vmul.f32 %v5005, %v4908
        %v5007 = vmul.f32 %v5005, %v4909
        %5010 = vrot.lane.b32.xlu0 %v5006, 126
        %v5011 = vpop.permute.xlu0 %5010
        %5012 = vrot.lane.b32.xlu0 %v5007, 126
        %v5013 = vpop.permute.xlu0 %5012
        %v5016 = vadd.f32 %v4960, %v5011
        %v5017 = vadd.f32 %v4961, %v5013
        %s5018 = sld [smem:[#allocation9 + $0x50]]
        %v5019 = vstv %s5018
        %v5020 = vmul.f32 %v5019, %v4908
        %v5021 = vmul.f32 %v5019, %v4909
        %5024 = vrot.lane.b32.xlu0 %v5020, 126
        %v5025 = vpop.permute.xlu0 %5024
        %5026 = vrot.lane.b32.xlu0 %v5021, 126
        %v5027 = vpop.permute.xlu0 %5026
        %v5030 = vadd.f32 %v4974, %v5025
        %v5031 = vadd.f32 %v4975, %v5027
        %s5032 = sld [smem:[#allocation9 + $0x74]]
        %v5033 = vstv %s5032
        %v5034 = vmul.f32 %v5033, %v4908
        %v5035 = vmul.f32 %v5033, %v4909
        %5038 = vrot.lane.b32.xlu0 %v5034, 126
        %v5039 = vpop.permute.xlu0 %5038
        %5040 = vrot.lane.b32.xlu0 %v5035, 126
        %v5041 = vpop.permute.xlu0 %5040
        %v5044 = vadd.f32 %v4988, %v5039
        %v5045 = vadd.f32 %v4989, %v5041
        %v5046 = vld [vmem:[%s4595] sm:$0xff]
        %v5047 = vld [vmem:[%s4595 + $0x8] sm:$0xff]
        %s5048 = sld [smem:[#allocation9 + $0x9]]
        %v5049 = vstv %s5048
        %v5050 = vmul.f32 %v5049, %v5046
        %v5051 = vmul.f32 %v5049, %v5047
        %v5052 = vadd.f32 %v5002, %v5050
        %v5053 = vadd.f32 %v5003, %v5051
        %s5054 = sld [smem:[#allocation9 + $0x2d]]
        %v5055 = vstv %s5054
        %v5056 = vmul.f32 %v5055, %v5046
        %v5057 = vmul.f32 %v5055, %v5047
        %v5058 = vadd.f32 %v5016, %v5056
        %v5059 = vadd.f32 %v5017, %v5057
        %s5060 = sld [smem:[#allocation9 + $0x51]]
        %v5061 = vstv %s5060
        %v5062 = vmul.f32 %v5061, %v5046
        %v5063 = vmul.f32 %v5061, %v5047
        %v5064 = vadd.f32 %v5030, %v5062
        %v5065 = vadd.f32 %v5031, %v5063
        %s5066 = sld [smem:[#allocation9 + $0x75]]
        %v5067 = vstv %s5066
        %v5068 = vmul.f32 %v5067, %v5046
        %v5069 = vmul.f32 %v5067, %v5047
        %v5070 = vadd.f32 %v5044, %v5068
        %v5071 = vadd.f32 %v5045, %v5069
        %s5072 = sld [smem:[#allocation9 + $0xa]]
        %v5073 = vstv %s5072
        %v5074 = vmul.f32 %v5073, %v5046
        %v5075 = vmul.f32 %v5073, %v5047
        %5078 = vrot.lane.b32.xlu0 %v5074, 127
        %v5079 = vpop.permute.xlu0 %5078
        %5080 = vrot.lane.b32.xlu0 %v5075, 127
        %v5081 = vpop.permute.xlu0 %5080
        %v5084 = vadd.f32 %v5052, %v5079
        %v5085 = vadd.f32 %v5053, %v5081
        %s5086 = sld [smem:[#allocation9 + $0x2e]]
        %v5087 = vstv %s5086
        %v5088 = vmul.f32 %v5087, %v5046
        %v5089 = vmul.f32 %v5087, %v5047
        %5092 = vrot.lane.b32.xlu0 %v5088, 127
        %v5093 = vpop.permute.xlu0 %5092
        %5094 = vrot.lane.b32.xlu0 %v5089, 127
        %v5095 = vpop.permute.xlu0 %5094
        %v5098 = vadd.f32 %v5058, %v5093
        %v5099 = vadd.f32 %v5059, %v5095
        %s5100 = sld [smem:[#allocation9 + $0x52]]
        %v5101 = vstv %s5100
        %v5102 = vmul.f32 %v5101, %v5046
        %v5103 = vmul.f32 %v5101, %v5047
        %5106 = vrot.lane.b32.xlu0 %v5102, 127
        %v5107 = vpop.permute.xlu0 %5106
        %5108 = vrot.lane.b32.xlu0 %v5103, 127
        %v5109 = vpop.permute.xlu0 %5108
        %v5112 = vadd.f32 %v5064, %v5107
        %v5113 = vadd.f32 %v5065, %v5109
        %s5114 = sld [smem:[#allocation9 + $0x76]]
        %v5115 = vstv %s5114
        %v5116 = vmul.f32 %v5115, %v5046
        %v5117 = vmul.f32 %v5115, %v5047
        %5120 = vrot.lane.b32.xlu0 %v5116, 127
        %v5121 = vpop.permute.xlu0 %5120
        %5122 = vrot.lane.b32.xlu0 %v5117, 127
        %v5123 = vpop.permute.xlu0 %5122
        %v5126 = vadd.f32 %v5070, %v5121
        %v5127 = vadd.f32 %v5071, %v5123
        %s5128 = sld [smem:[#allocation9 + $0xb]]
        %v5129 = vstv %s5128
        %v5130 = vmul.f32 %v5129, %v5046
        %v5131 = vmul.f32 %v5129, %v5047
        %5134 = vrot.lane.b32.xlu0 %v5130, 126
        %v5135 = vpop.permute.xlu0 %5134
        %5136 = vrot.lane.b32.xlu0 %v5131, 126
        %v5137 = vpop.permute.xlu0 %5136
        %v5140 = vadd.f32 %v5084, %v5135
        %v5141 = vadd.f32 %v5085, %v5137
        %s5142 = sld [smem:[#allocation9 + $0x2f]]
        %v5143 = vstv %s5142
        %v5144 = vmul.f32 %v5143, %v5046
        %v5145 = vmul.f32 %v5143, %v5047
        %5148 = vrot.lane.b32.xlu0 %v5144, 126
        %v5149 = vpop.permute.xlu0 %5148
        %5150 = vrot.lane.b32.xlu0 %v5145, 126
        %v5151 = vpop.permute.xlu0 %5150
        %v5154 = vadd.f32 %v5098, %v5149
        %v5155 = vadd.f32 %v5099, %v5151
        %s5156 = sld [smem:[#allocation9 + $0x53]]
        %v5157 = vstv %s5156
        %v5158 = vmul.f32 %v5157, %v5046
        %v5159 = vmul.f32 %v5157, %v5047
        %5162 = vrot.lane.b32.xlu0 %v5158, 126
        %v5163 = vpop.permute.xlu0 %5162
        %5164 = vrot.lane.b32.xlu0 %v5159, 126
        %v5165 = vpop.permute.xlu0 %5164
        %v5168 = vadd.f32 %v5112, %v5163
        %v5169 = vadd.f32 %v5113, %v5165
        %s5170 = sld [smem:[#allocation9 + $0x77]]
        %v5171 = vstv %s5170
        %v5172 = vmul.f32 %v5171, %v5046
        %v5173 = vmul.f32 %v5171, %v5047
        %5176 = vrot.lane.b32.xlu0 %v5172, 126
        %v5177 = vpop.permute.xlu0 %5176
        %5178 = vrot.lane.b32.xlu0 %v5173, 126
        %v5179 = vpop.permute.xlu0 %5178
        %v5182 = vadd.f32 %v5126, %v5177
        %v5183 = vadd.f32 %v5127, %v5179
        %v5184 = vld [vmem:[%s4595 + $0x1] sm:$0xff]
        %v5185 = vld [vmem:[%s4595 + $0x9] sm:$0xff]
        %s5186 = sld [smem:[#allocation9 + $0xc]]
        %v5187 = vstv %s5186
        %v5188 = vmul.f32 %v5187, %v5184
        %v5189 = vmul.f32 %v5187, %v5185
        %v5190 = vadd.f32 %v5140, %v5188
        %v5191 = vadd.f32 %v5141, %v5189
        %s5192 = sld [smem:[#allocation9 + $0x30]]
        %v5193 = vstv %s5192
        %v5194 = vmul.f32 %v5193, %v5184
        %v5195 = vmul.f32 %v5193, %v5185
        %v5196 = vadd.f32 %v5154, %v5194
        %v5197 = vadd.f32 %v5155, %v5195
        %s5198 = sld [smem:[#allocation9 + $0x54]]
        %v5199 = vstv %s5198
        %v5200 = vmul.f32 %v5199, %v5184
        %v5201 = vmul.f32 %v5199, %v5185
        %v5202 = vadd.f32 %v5168, %v5200
        %v5203 = vadd.f32 %v5169, %v5201
        %s5204 = sld [smem:[#allocation9 + $0x78]]
        %v5205 = vstv %s5204
        %v5206 = vmul.f32 %v5205, %v5184
        %v5207 = vmul.f32 %v5205, %v5185
        %v5208 = vadd.f32 %v5182, %v5206
        %v5209 = vadd.f32 %v5183, %v5207
        %s5210 = sld [smem:[#allocation9 + $0xd]]
        %v5211 = vstv %s5210
        %v5212 = vmul.f32 %v5211, %v5184
        %v5213 = vmul.f32 %v5211, %v5185
        %5216 = vrot.lane.b32.xlu0 %v5212, 127
        %v5217 = vpop.permute.xlu0 %5216
        %5218 = vrot.lane.b32.xlu0 %v5213, 127
        %v5219 = vpop.permute.xlu0 %5218
        %v5222 = vadd.f32 %v5190, %v5217
        %v5223 = vadd.f32 %v5191, %v5219
        %s5224 = sld [smem:[#allocation9 + $0x31]]
        %v5225 = vstv %s5224
        %v5226 = vmul.f32 %v5225, %v5184
        %v5227 = vmul.f32 %v5225, %v5185
        %5230 = vrot.lane.b32.xlu0 %v5226, 127
        %v5231 = vpop.permute.xlu0 %5230
        %5232 = vrot.lane.b32.xlu0 %v5227, 127
        %v5233 = vpop.permute.xlu0 %5232
        %v5236 = vadd.f32 %v5196, %v5231
        %v5237 = vadd.f32 %v5197, %v5233
        %s5238 = sld [smem:[#allocation9 + $0x55]]
        %v5239 = vstv %s5238
        %v5240 = vmul.f32 %v5239, %v5184
        %v5241 = vmul.f32 %v5239, %v5185
        %5244 = vrot.lane.b32.xlu0 %v5240, 127
        %v5245 = vpop.permute.xlu0 %5244
        %5246 = vrot.lane.b32.xlu0 %v5241, 127
        %v5247 = vpop.permute.xlu0 %5246
        %v5250 = vadd.f32 %v5202, %v5245
        %v5251 = vadd.f32 %v5203, %v5247
        %s5252 = sld [smem:[#allocation9 + $0x79]]
        %v5253 = vstv %s5252
        %v5254 = vmul.f32 %v5253, %v5184
        %v5255 = vmul.f32 %v5253, %v5185
        %5258 = vrot.lane.b32.xlu0 %v5254, 127
        %v5259 = vpop.permute.xlu0 %5258
        %5260 = vrot.lane.b32.xlu0 %v5255, 127
        %v5261 = vpop.permute.xlu0 %5260
        %v5264 = vadd.f32 %v5208, %v5259
        %v5265 = vadd.f32 %v5209, %v5261
        %s5266 = sld [smem:[#allocation9 + $0xe]]
        %v5267 = vstv %s5266
        %v5268 = vmul.f32 %v5267, %v5184
        %v5269 = vmul.f32 %v5267, %v5185
        %5272 = vrot.lane.b32.xlu0 %v5268, 126
        %v5273 = vpop.permute.xlu0 %5272
        %5274 = vrot.lane.b32.xlu0 %v5269, 126
        %v5275 = vpop.permute.xlu0 %5274
        %v5278 = vadd.f32 %v5222, %v5273
        %v5279 = vadd.f32 %v5223, %v5275
        %s5280 = sld [smem:[#allocation9 + $0x32]]
        %v5281 = vstv %s5280
        %v5282 = vmul.f32 %v5281, %v5184
        %v5283 = vmul.f32 %v5281, %v5185
        %5286 = vrot.lane.b32.xlu0 %v5282, 126
        %v5287 = vpop.permute.xlu0 %5286
        %5288 = vrot.lane.b32.xlu0 %v5283, 126
        %v5289 = vpop.permute.xlu0 %5288
        %v5292 = vadd.f32 %v5236, %v5287
        %v5293 = vadd.f32 %v5237, %v5289
        %s5294 = sld [smem:[#allocation9 + $0x56]]
        %v5295 = vstv %s5294
        %v5296 = vmul.f32 %v5295, %v5184
        %v5297 = vmul.f32 %v5295, %v5185
        %5300 = vrot.lane.b32.xlu0 %v5296, 126
        %v5301 = vpop.permute.xlu0 %5300
        %5302 = vrot.lane.b32.xlu0 %v5297, 126
        %v5303 = vpop.permute.xlu0 %5302
        %v5306 = vadd.f32 %v5250, %v5301
        %v5307 = vadd.f32 %v5251, %v5303
        %s5308 = sld [smem:[#allocation9 + $0x7a]]
        %v5309 = vstv %s5308
        %v5310 = vmul.f32 %v5309, %v5184
        %v5311 = vmul.f32 %v5309, %v5185
        %5314 = vrot.lane.b32.xlu0 %v5310, 126
        %v5315 = vpop.permute.xlu0 %5314
        %5316 = vrot.lane.b32.xlu0 %v5311, 126
        %v5317 = vpop.permute.xlu0 %5316
        %v5320 = vadd.f32 %v5264, %v5315
        %v5321 = vadd.f32 %v5265, %v5317
        %v5322 = vld [vmem:[%s4595 + $0x2] sm:$0xff]
        %v5323 = vld [vmem:[%s4595 + $0xa] sm:$0xff]
        %s5324 = sld [smem:[#allocation9 + $0xf]]
        %v5325 = vstv %s5324
        %v5326 = vmul.f32 %v5325, %v5322
        %v5327 = vmul.f32 %v5325, %v5323
        %v5328 = vadd.f32 %v5278, %v5326
        %v5329 = vadd.f32 %v5279, %v5327
        %s5330 = sld [smem:[#allocation9 + $0x33]]
        %v5331 = vstv %s5330
        %v5332 = vmul.f32 %v5331, %v5322
        %v5333 = vmul.f32 %v5331, %v5323
        %v5334 = vadd.f32 %v5292, %v5332
        %v5335 = vadd.f32 %v5293, %v5333
        %s5336 = sld [smem:[#allocation9 + $0x57]]
        %v5337 = vstv %s5336
        %v5338 = vmul.f32 %v5337, %v5322
        %v5339 = vmul.f32 %v5337, %v5323
        %v5340 = vadd.f32 %v5306, %v5338
        %v5341 = vadd.f32 %v5307, %v5339
        %s5342 = sld [smem:[#allocation9 + $0x7b]]
        %v5343 = vstv %s5342
        %v5344 = vmul.f32 %v5343, %v5322
        %v5345 = vmul.f32 %v5343, %v5323
        %v5346 = vadd.f32 %v5320, %v5344
        %v5347 = vadd.f32 %v5321, %v5345
        %s5348 = sld [smem:[#allocation9 + $0x10]]
        %v5349 = vstv %s5348
        %v5350 = vmul.f32 %v5349, %v5322
        %v5351 = vmul.f32 %v5349, %v5323
        %5354 = vrot.lane.b32.xlu0 %v5350, 127
        %v5355 = vpop.permute.xlu0 %5354
        %5356 = vrot.lane.b32.xlu0 %v5351, 127
        %v5357 = vpop.permute.xlu0 %5356
        %v5360 = vadd.f32 %v5328, %v5355
        %v5361 = vadd.f32 %v5329, %v5357
        %s5362 = sld [smem:[#allocation9 + $0x34]]
        %v5363 = vstv %s5362
        %v5364 = vmul.f32 %v5363, %v5322
        %v5365 = vmul.f32 %v5363, %v5323
        %5368 = vrot.lane.b32.xlu0 %v5364, 127
        %v5369 = vpop.permute.xlu0 %5368
        %5370 = vrot.lane.b32.xlu0 %v5365, 127
        %v5371 = vpop.permute.xlu0 %5370
        %v5374 = vadd.f32 %v5334, %v5369
        %v5375 = vadd.f32 %v5335, %v5371
        %s5376 = sld [smem:[#allocation9 + $0x58]]
        %v5377 = vstv %s5376
        %v5378 = vmul.f32 %v5377, %v5322
        %v5379 = vmul.f32 %v5377, %v5323
        %5382 = vrot.lane.b32.xlu0 %v5378, 127
        %v5383 = vpop.permute.xlu0 %5382
        %5384 = vrot.lane.b32.xlu0 %v5379, 127
        %v5385 = vpop.permute.xlu0 %5384
        %v5388 = vadd.f32 %v5340, %v5383
        %v5389 = vadd.f32 %v5341, %v5385
        %s5390 = sld [smem:[#allocation9 + $0x7c]]
        %v5391 = vstv %s5390
        %v5392 = vmul.f32 %v5391, %v5322
        %v5393 = vmul.f32 %v5391, %v5323
        %5396 = vrot.lane.b32.xlu0 %v5392, 127
        %v5397 = vpop.permute.xlu0 %5396
        %5398 = vrot.lane.b32.xlu0 %v5393, 127
        %v5399 = vpop.permute.xlu0 %5398
        %v5402 = vadd.f32 %v5346, %v5397
        %v5403 = vadd.f32 %v5347, %v5399
        %s5404 = sld [smem:[#allocation9 + $0x11]]
        %v5405 = vstv %s5404
        %v5406 = vmul.f32 %v5405, %v5322
        %v5407 = vmul.f32 %v5405, %v5323
        %5410 = vrot.lane.b32.xlu0 %v5406, 126
        %v5411 = vpop.permute.xlu0 %5410
        %5412 = vrot.lane.b32.xlu0 %v5407, 126
        %v5413 = vpop.permute.xlu0 %5412
        %v5416 = vadd.f32 %v5360, %v5411
        %v5417 = vadd.f32 %v5361, %v5413
        %s5418 = sld [smem:[#allocation9 + $0x35]]
        %v5419 = vstv %s5418
        %v5420 = vmul.f32 %v5419, %v5322
        %v5421 = vmul.f32 %v5419, %v5323
        %5424 = vrot.lane.b32.xlu0 %v5420, 126
        %v5425 = vpop.permute.xlu0 %5424
        %5426 = vrot.lane.b32.xlu0 %v5421, 126
        %v5427 = vpop.permute.xlu0 %5426
        %v5430 = vadd.f32 %v5374, %v5425
        %v5431 = vadd.f32 %v5375, %v5427
        %s5432 = sld [smem:[#allocation9 + $0x59]]
        %v5433 = vstv %s5432
        %v5434 = vmul.f32 %v5433, %v5322
        %v5435 = vmul.f32 %v5433, %v5323
        %5438 = vrot.lane.b32.xlu0 %v5434, 126
        %v5439 = vpop.permute.xlu0 %5438
        %5440 = vrot.lane.b32.xlu0 %v5435, 126
        %v5441 = vpop.permute.xlu0 %5440
        %v5444 = vadd.f32 %v5388, %v5439
        %v5445 = vadd.f32 %v5389, %v5441
        %s5446 = sld [smem:[#allocation9 + $0x7d]]
        %v5447 = vstv %s5446
        %v5448 = vmul.f32 %v5447, %v5322
        %v5449 = vmul.f32 %v5447, %v5323
        %5452 = vrot.lane.b32.xlu0 %v5448, 126
        %v5453 = vpop.permute.xlu0 %5452
        %5454 = vrot.lane.b32.xlu0 %v5449, 126
        %v5455 = vpop.permute.xlu0 %5454
        %v5458 = vadd.f32 %v5402, %v5453
        %v5459 = vadd.f32 %v5403, %v5455
        %v5460 = vld [vmem:[%s4612] sm:$0xff]
        %v5461 = vld [vmem:[%s4612 + $0x8] sm:$0xff]
        %s5462 = sld [smem:[#allocation9 + $0x12]]
        %v5463 = vstv %s5462
        %v5464 = vmul.f32 %v5463, %v5460
        %v5465 = vmul.f32 %v5463, %v5461
        %v5466 = vadd.f32 %v5416, %v5464
        %v5467 = vadd.f32 %v5417, %v5465
        %s5468 = sld [smem:[#allocation9 + $0x36]]
        %v5469 = vstv %s5468
        %v5470 = vmul.f32 %v5469, %v5460
        %v5471 = vmul.f32 %v5469, %v5461
        %v5472 = vadd.f32 %v5430, %v5470
        %v5473 = vadd.f32 %v5431, %v5471
        %s5474 = sld [smem:[#allocation9 + $0x5a]]
        %v5475 = vstv %s5474
        %v5476 = vmul.f32 %v5475, %v5460
        %v5477 = vmul.f32 %v5475, %v5461
        %v5478 = vadd.f32 %v5444, %v5476
        %v5479 = vadd.f32 %v5445, %v5477
        %s5480 = sld [smem:[#allocation9 + $0x7e]]
        %v5481 = vstv %s5480
        %v5482 = vmul.f32 %v5481, %v5460
        %v5483 = vmul.f32 %v5481, %v5461
        %v5484 = vadd.f32 %v5458, %v5482
        %v5485 = vadd.f32 %v5459, %v5483
        %s5486 = sld [smem:[#allocation9 + $0x13]]
        %v5487 = vstv %s5486
        %v5488 = vmul.f32 %v5487, %v5460
        %v5489 = vmul.f32 %v5487, %v5461
        %5492 = vrot.lane.b32.xlu0 %v5488, 127
        %v5493 = vpop.permute.xlu0 %5492
        %5494 = vrot.lane.b32.xlu0 %v5489, 127
        %v5495 = vpop.permute.xlu0 %5494
        %v5498 = vadd.f32 %v5466, %v5493
        %v5499 = vadd.f32 %v5467, %v5495
        %s5500 = sld [smem:[#allocation9 + $0x37]]
        %v5501 = vstv %s5500
        %v5502 = vmul.f32 %v5501, %v5460
        %v5503 = vmul.f32 %v5501, %v5461
        %5506 = vrot.lane.b32.xlu0 %v5502, 127
        %v5507 = vpop.permute.xlu0 %5506
        %5508 = vrot.lane.b32.xlu0 %v5503, 127
        %v5509 = vpop.permute.xlu0 %5508
        %v5512 = vadd.f32 %v5472, %v5507
        %v5513 = vadd.f32 %v5473, %v5509
        %s5514 = sld [smem:[#allocation9 + $0x5b]]
        %v5515 = vstv %s5514
        %v5516 = vmul.f32 %v5515, %v5460
        %v5517 = vmul.f32 %v5515, %v5461
        %5520 = vrot.lane.b32.xlu0 %v5516, 127
        %v5521 = vpop.permute.xlu0 %5520
        %5522 = vrot.lane.b32.xlu0 %v5517, 127
        %v5523 = vpop.permute.xlu0 %5522
        %v5526 = vadd.f32 %v5478, %v5521
        %v5527 = vadd.f32 %v5479, %v5523
        %s5528 = sld [smem:[#allocation9 + $0x7f]]
        %v5529 = vstv %s5528
        %v5530 = vmul.f32 %v5529, %v5460
        %v5531 = vmul.f32 %v5529, %v5461
        %5534 = vrot.lane.b32.xlu0 %v5530, 127
        %v5535 = vpop.permute.xlu0 %5534
        %5536 = vrot.lane.b32.xlu0 %v5531, 127
        %v5537 = vpop.permute.xlu0 %5536
        %v5540 = vadd.f32 %v5484, %v5535
        %v5541 = vadd.f32 %v5485, %v5537
        %s5542 = sld [smem:[#allocation9 + $0x14]]
        %v5543 = vstv %s5542
        %v5544 = vmul.f32 %v5543, %v5460
        %v5545 = vmul.f32 %v5543, %v5461
        %5548 = vrot.lane.b32.xlu0 %v5544, 126
        %v5549 = vpop.permute.xlu0 %5548
        %5550 = vrot.lane.b32.xlu0 %v5545, 126
        %v5551 = vpop.permute.xlu0 %5550
        %v5554 = vadd.f32 %v5498, %v5549
        %v5555 = vadd.f32 %v5499, %v5551
        %s5556 = sld [smem:[#allocation9 + $0x38]]
        %v5557 = vstv %s5556
        %v5558 = vmul.f32 %v5557, %v5460
        %v5559 = vmul.f32 %v5557, %v5461
        %5562 = vrot.lane.b32.xlu0 %v5558, 126
        %v5563 = vpop.permute.xlu0 %5562
        %5564 = vrot.lane.b32.xlu0 %v5559, 126
        %v5565 = vpop.permute.xlu0 %5564
        %v5568 = vadd.f32 %v5512, %v5563
        %v5569 = vadd.f32 %v5513, %v5565
        %s5570 = sld [smem:[#allocation9 + $0x5c]]
        %v5571 = vstv %s5570
        %v5572 = vmul.f32 %v5571, %v5460
        %v5573 = vmul.f32 %v5571, %v5461
        %5576 = vrot.lane.b32.xlu0 %v5572, 126
        %v5577 = vpop.permute.xlu0 %5576
        %5578 = vrot.lane.b32.xlu0 %v5573, 126
        %v5579 = vpop.permute.xlu0 %5578
        %v5582 = vadd.f32 %v5526, %v5577
        %v5583 = vadd.f32 %v5527, %v5579
        %s5584 = sld [smem:[#allocation9 + $0x80]]
        %v5585 = vstv %s5584
        %v5586 = vmul.f32 %v5585, %v5460
        %v5587 = vmul.f32 %v5585, %v5461
        %5590 = vrot.lane.b32.xlu0 %v5586, 126
        %v5591 = vpop.permute.xlu0 %5590
        %5592 = vrot.lane.b32.xlu0 %v5587, 126
        %v5593 = vpop.permute.xlu0 %5592
        %v5596 = vadd.f32 %v5540, %v5591
        %v5597 = vadd.f32 %v5541, %v5593
        %v5598 = vld [vmem:[%s4612 + $0x1] sm:$0xff]
        %v5599 = vld [vmem:[%s4612 + $0x9] sm:$0xff]
        %s5600 = sld [smem:[#allocation9 + $0x15]]
        %v5601 = vstv %s5600
        %v5602 = vmul.f32 %v5601, %v5598
        %v5603 = vmul.f32 %v5601, %v5599
        %v5604 = vadd.f32 %v5554, %v5602
        %v5605 = vadd.f32 %v5555, %v5603
        %s5606 = sld [smem:[#allocation9 + $0x39]]
        %v5607 = vstv %s5606
        %v5608 = vmul.f32 %v5607, %v5598
        %v5609 = vmul.f32 %v5607, %v5599
        %v5610 = vadd.f32 %v5568, %v5608
        %v5611 = vadd.f32 %v5569, %v5609
        %s5612 = sld [smem:[#allocation9 + $0x5d]]
        %v5613 = vstv %s5612
        %v5614 = vmul.f32 %v5613, %v5598
        %v5615 = vmul.f32 %v5613, %v5599
        %v5616 = vadd.f32 %v5582, %v5614
        %v5617 = vadd.f32 %v5583, %v5615
        %s5618 = sld [smem:[#allocation9 + $0x81]]
        %v5619 = vstv %s5618
        %v5620 = vmul.f32 %v5619, %v5598
        %v5621 = vmul.f32 %v5619, %v5599
        %v5622 = vadd.f32 %v5596, %v5620
        %v5623 = vadd.f32 %v5597, %v5621
        %s5624 = sld [smem:[#allocation9 + $0x16]]
        %v5625 = vstv %s5624
        %v5626 = vmul.f32 %v5625, %v5598
        %v5627 = vmul.f32 %v5625, %v5599
        %5630 = vrot.lane.b32.xlu0 %v5626, 127
        %v5631 = vpop.permute.xlu0 %5630
        %5632 = vrot.lane.b32.xlu0 %v5627, 127
        %v5633 = vpop.permute.xlu0 %5632
        %v5636 = vadd.f32 %v5604, %v5631
        %v5637 = vadd.f32 %v5605, %v5633
        %s5638 = sld [smem:[#allocation9 + $0x3a]]
        %v5639 = vstv %s5638
        %v5640 = vmul.f32 %v5639, %v5598
        %v5641 = vmul.f32 %v5639, %v5599
        %5644 = vrot.lane.b32.xlu0 %v5640, 127
        %v5645 = vpop.permute.xlu0 %5644
        %5646 = vrot.lane.b32.xlu0 %v5641, 127
        %v5647 = vpop.permute.xlu0 %5646
        %v5650 = vadd.f32 %v5610, %v5645
        %v5651 = vadd.f32 %v5611, %v5647
        %s5652 = sld [smem:[#allocation9 + $0x5e]]
        %v5653 = vstv %s5652
        %v5654 = vmul.f32 %v5653, %v5598
        %v5655 = vmul.f32 %v5653, %v5599
        %5658 = vrot.lane.b32.xlu0 %v5654, 127
        %v5659 = vpop.permute.xlu0 %5658
        %5660 = vrot.lane.b32.xlu0 %v5655, 127
        %v5661 = vpop.permute.xlu0 %5660
        %v5664 = vadd.f32 %v5616, %v5659
        %v5665 = vadd.f32 %v5617, %v5661
        %s5666 = sld [smem:[#allocation9 + $0x82]]
        %v5667 = vstv %s5666
        %v5668 = vmul.f32 %v5667, %v5598
        %v5669 = vmul.f32 %v5667, %v5599
        %5672 = vrot.lane.b32.xlu0 %v5668, 127
        %v5673 = vpop.permute.xlu0 %5672
        %5674 = vrot.lane.b32.xlu0 %v5669, 127
        %v5675 = vpop.permute.xlu0 %5674
        %v5678 = vadd.f32 %v5622, %v5673
        %v5679 = vadd.f32 %v5623, %v5675
        %s5680 = sld [smem:[#allocation9 + $0x17]]
        %v5681 = vstv %s5680
        %v5682 = vmul.f32 %v5681, %v5598
        %v5683 = vmul.f32 %v5681, %v5599
        %5686 = vrot.lane.b32.xlu0 %v5682, 126
        %v5687 = vpop.permute.xlu0 %5686
        %5688 = vrot.lane.b32.xlu0 %v5683, 126
        %v5689 = vpop.permute.xlu0 %5688
        %v5692 = vadd.f32 %v5636, %v5687
        %v5693 = vadd.f32 %v5637, %v5689
        %s5694 = sld [smem:[#allocation9 + $0x3b]]
        %v5695 = vstv %s5694
        %v5696 = vmul.f32 %v5695, %v5598
        %v5697 = vmul.f32 %v5695, %v5599
        %5700 = vrot.lane.b32.xlu0 %v5696, 126
        %v5701 = vpop.permute.xlu0 %5700
        %5702 = vrot.lane.b32.xlu0 %v5697, 126
        %v5703 = vpop.permute.xlu0 %5702
        %v5706 = vadd.f32 %v5650, %v5701
        %v5707 = vadd.f32 %v5651, %v5703
        %s5708 = sld [smem:[#allocation9 + $0x5f]]
        %v5709 = vstv %s5708
        %v5710 = vmul.f32 %v5709, %v5598
        %v5711 = vmul.f32 %v5709, %v5599
        %5714 = vrot.lane.b32.xlu0 %v5710, 126
        %v5715 = vpop.permute.xlu0 %5714
        %5716 = vrot.lane.b32.xlu0 %v5711, 126
        %v5717 = vpop.permute.xlu0 %5716
        %v5720 = vadd.f32 %v5664, %v5715
        %v5721 = vadd.f32 %v5665, %v5717
        %s5722 = sld [smem:[#allocation9 + $0x83]]
        %v5723 = vstv %s5722
        %v5724 = vmul.f32 %v5723, %v5598
        %v5725 = vmul.f32 %v5723, %v5599
        %5728 = vrot.lane.b32.xlu0 %v5724, 126
        %v5729 = vpop.permute.xlu0 %5728
        %5730 = vrot.lane.b32.xlu0 %v5725, 126
        %v5731 = vpop.permute.xlu0 %5730
        %v5734 = vadd.f32 %v5678, %v5729
        %v5735 = vadd.f32 %v5679, %v5731
        %v5736 = vld [vmem:[%s4612 + $0x2] sm:$0xff]
        %v5737 = vld [vmem:[%s4612 + $0xa] sm:$0xff]
        %s5738 = sld [smem:[#allocation9 + $0x18]]
        %v5739 = vstv %s5738
        %v5740 = vmul.f32 %v5739, %v5736
        %v5741 = vmul.f32 %v5739, %v5737
        %v5742 = vadd.f32 %v5692, %v5740
        %v5743 = vadd.f32 %v5693, %v5741
        %s5744 = sld [smem:[#allocation9 + $0x3c]]
        %v5745 = vstv %s5744
        %v5746 = vmul.f32 %v5745, %v5736
        %v5747 = vmul.f32 %v5745, %v5737
        %v5748 = vadd.f32 %v5706, %v5746
        %v5749 = vadd.f32 %v5707, %v5747
        %s5750 = sld [smem:[#allocation9 + $0x60]]
        %v5751 = vstv %s5750
        %v5752 = vmul.f32 %v5751, %v5736
        %v5753 = vmul.f32 %v5751, %v5737
        %v5754 = vadd.f32 %v5720, %v5752
        %v5755 = vadd.f32 %v5721, %v5753
        %s5756 = sld [smem:[#allocation9 + $0x84]]
        %v5757 = vstv %s5756
        %v5758 = vmul.f32 %v5757, %v5736
        %v5759 = vmul.f32 %v5757, %v5737
        %v5760 = vadd.f32 %v5734, %v5758
        %v5761 = vadd.f32 %v5735, %v5759
        %s5762 = sld [smem:[#allocation9 + $0x19]]
        %v5763 = vstv %s5762
        %v5764 = vmul.f32 %v5763, %v5736
        %v5765 = vmul.f32 %v5763, %v5737
        %5768 = vrot.lane.b32.xlu0 %v5764, 127
        %v5769 = vpop.permute.xlu0 %5768
        %5770 = vrot.lane.b32.xlu0 %v5765, 127
        %v5771 = vpop.permute.xlu0 %5770
        %v5774 = vadd.f32 %v5742, %v5769
        %v5775 = vadd.f32 %v5743, %v5771
        %s5776 = sld [smem:[#allocation9 + $0x3d]]
        %v5777 = vstv %s5776
        %v5778 = vmul.f32 %v5777, %v5736
        %v5779 = vmul.f32 %v5777, %v5737
        %5782 = vrot.lane.b32.xlu0 %v5778, 127
        %v5783 = vpop.permute.xlu0 %5782
        %5784 = vrot.lane.b32.xlu0 %v5779, 127
        %v5785 = vpop.permute.xlu0 %5784
        %v5788 = vadd.f32 %v5748, %v5783
        %v5789 = vadd.f32 %v5749, %v5785
        %s5790 = sld [smem:[#allocation9 + $0x61]]
        %v5791 = vstv %s5790
        %v5792 = vmul.f32 %v5791, %v5736
        %v5793 = vmul.f32 %v5791, %v5737
        %5796 = vrot.lane.b32.xlu0 %v5792, 127
        %v5797 = vpop.permute.xlu0 %5796
        %5798 = vrot.lane.b32.xlu0 %v5793, 127
        %v5799 = vpop.permute.xlu0 %5798
        %v5802 = vadd.f32 %v5754, %v5797
        %v5803 = vadd.f32 %v5755, %v5799
        %s5804 = sld [smem:[#allocation9 + $0x85]]
        %v5805 = vstv %s5804
        %v5806 = vmul.f32 %v5805, %v5736
        %v5807 = vmul.f32 %v5805, %v5737
        %5810 = vrot.lane.b32.xlu0 %v5806, 127
        %v5811 = vpop.permute.xlu0 %5810
        %5812 = vrot.lane.b32.xlu0 %v5807, 127
        %v5813 = vpop.permute.xlu0 %5812
        %v5816 = vadd.f32 %v5760, %v5811
        %v5817 = vadd.f32 %v5761, %v5813
        %s5818 = sld [smem:[#allocation9 + $0x1a]]
        %v5819 = vstv %s5818
        %v5820 = vmul.f32 %v5819, %v5736
        %v5821 = vmul.f32 %v5819, %v5737
        %5824 = vrot.lane.b32.xlu0 %v5820, 126
        %v5825 = vpop.permute.xlu0 %5824
        %5826 = vrot.lane.b32.xlu0 %v5821, 126
        %v5827 = vpop.permute.xlu0 %5826
        %v5830 = vadd.f32 %v5774, %v5825
        %v5831 = vadd.f32 %v5775, %v5827
        %s5832 = sld [smem:[#allocation9 + $0x3e]]
        %v5833 = vstv %s5832
        %v5834 = vmul.f32 %v5833, %v5736
        %v5835 = vmul.f32 %v5833, %v5737
        %5838 = vrot.lane.b32.xlu0 %v5834, 126
        %v5839 = vpop.permute.xlu0 %5838
        %5840 = vrot.lane.b32.xlu0 %v5835, 126
        %v5841 = vpop.permute.xlu0 %5840
        %v5844 = vadd.f32 %v5788, %v5839
        %v5845 = vadd.f32 %v5789, %v5841
        %s5846 = sld [smem:[#allocation9 + $0x62]]
        %v5847 = vstv %s5846
        %v5848 = vmul.f32 %v5847, %v5736
        %v5849 = vmul.f32 %v5847, %v5737
        %5852 = vrot.lane.b32.xlu0 %v5848, 126
        %v5853 = vpop.permute.xlu0 %5852
        %5854 = vrot.lane.b32.xlu0 %v5849, 126
        %v5855 = vpop.permute.xlu0 %5854
        %v5858 = vadd.f32 %v5802, %v5853
        %v5859 = vadd.f32 %v5803, %v5855
        %s5860 = sld [smem:[#allocation9 + $0x86]]
        %v5861 = vstv %s5860
        %v5862 = vmul.f32 %v5861, %v5736
        %v5863 = vmul.f32 %v5861, %v5737
        %5866 = vrot.lane.b32.xlu0 %v5862, 126
        %v5867 = vpop.permute.xlu0 %5866
        %5868 = vrot.lane.b32.xlu0 %v5863, 126
        %v5869 = vpop.permute.xlu0 %5868
        %v5872 = vadd.f32 %v5816, %v5867
        %v5873 = vadd.f32 %v5817, %v5869
        %v5874 = vld [vmem:[%s4629] sm:$0xff]
        %v5875 = vld [vmem:[%s4629 + $0x8] sm:$0xff]
        %s5876 = sld [smem:[#allocation9 + $0x1b]]
        %v5877 = vstv %s5876
        %v5878 = vmul.f32 %v5877, %v5874
        %v5879 = vmul.f32 %v5877, %v5875
        %v5880 = vadd.f32 %v5830, %v5878
        %v5881 = vadd.f32 %v5831, %v5879
        %s5882 = sld [smem:[#allocation9 + $0x3f]]
        %v5883 = vstv %s5882
        %v5884 = vmul.f32 %v5883, %v5874
        %v5885 = vmul.f32 %v5883, %v5875
        %v5886 = vadd.f32 %v5844, %v5884
        %v5887 = vadd.f32 %v5845, %v5885
        %s5888 = sld [smem:[#allocation9 + $0x63]]
        %v5889 = vstv %s5888
        %v5890 = vmul.f32 %v5889, %v5874
        %v5891 = vmul.f32 %v5889, %v5875
        %v5892 = vadd.f32 %v5858, %v5890
        %v5893 = vadd.f32 %v5859, %v5891
        %s5894 = sld [smem:[#allocation9 + $0x87]]
        %v5895 = vstv %s5894
        %v5896 = vmul.f32 %v5895, %v5874
        %v5897 = vmul.f32 %v5895, %v5875
        %v5898 = vadd.f32 %v5872, %v5896
        %v5899 = vadd.f32 %v5873, %v5897
        %s5900 = sld [smem:[#allocation9 + $0x1c]]
        %v5901 = vstv %s5900
        %v5902 = vmul.f32 %v5901, %v5874
        %v5903 = vmul.f32 %v5901, %v5875
        %5906 = vrot.lane.b32.xlu0 %v5902, 127
        %v5907 = vpop.permute.xlu0 %5906
        %5908 = vrot.lane.b32.xlu0 %v5903, 127
        %v5909 = vpop.permute.xlu0 %5908
        %v5912 = vadd.f32 %v5880, %v5907
        %v5913 = vadd.f32 %v5881, %v5909
        %s5914 = sld [smem:[#allocation9 + $0x40]]
        %v5915 = vstv %s5914
        %v5916 = vmul.f32 %v5915, %v5874
        %v5917 = vmul.f32 %v5915, %v5875
        %5920 = vrot.lane.b32.xlu0 %v5916, 127
        %v5921 = vpop.permute.xlu0 %5920
        %5922 = vrot.lane.b32.xlu0 %v5917, 127
        %v5923 = vpop.permute.xlu0 %5922
        %v5926 = vadd.f32 %v5886, %v5921
        %v5927 = vadd.f32 %v5887, %v5923
        %s5928 = sld [smem:[#allocation9 + $0x64]]
        %v5929 = vstv %s5928
        %v5930 = vmul.f32 %v5929, %v5874
        %v5931 = vmul.f32 %v5929, %v5875
        %5934 = vrot.lane.b32.xlu0 %v5930, 127
        %v5935 = vpop.permute.xlu0 %5934
        %5936 = vrot.lane.b32.xlu0 %v5931, 127
        %v5937 = vpop.permute.xlu0 %5936
        %v5940 = vadd.f32 %v5892, %v5935
        %v5941 = vadd.f32 %v5893, %v5937
        %s5942 = sld [smem:[#allocation9 + $0x88]]
        %v5943 = vstv %s5942
        %v5944 = vmul.f32 %v5943, %v5874
        %v5945 = vmul.f32 %v5943, %v5875
        %5948 = vrot.lane.b32.xlu0 %v5944, 127
        %v5949 = vpop.permute.xlu0 %5948
        %5950 = vrot.lane.b32.xlu0 %v5945, 127
        %v5951 = vpop.permute.xlu0 %5950
        %v5954 = vadd.f32 %v5898, %v5949
        %v5955 = vadd.f32 %v5899, %v5951
        %s5956 = sld [smem:[#allocation9 + $0x1d]]
        %v5957 = vstv %s5956
        %v5958 = vmul.f32 %v5957, %v5874
        %v5959 = vmul.f32 %v5957, %v5875
        %5962 = vrot.lane.b32.xlu0 %v5958, 126
        %v5963 = vpop.permute.xlu0 %5962
        %5964 = vrot.lane.b32.xlu0 %v5959, 126
        %v5965 = vpop.permute.xlu0 %5964
        %v5968 = vadd.f32 %v5912, %v5963
        %v5969 = vadd.f32 %v5913, %v5965
        %s5970 = sld [smem:[#allocation9 + $0x41]]
        %v5971 = vstv %s5970
        %v5972 = vmul.f32 %v5971, %v5874
        %v5973 = vmul.f32 %v5971, %v5875
        %5976 = vrot.lane.b32.xlu0 %v5972, 126
        %v5977 = vpop.permute.xlu0 %5976
        %5978 = vrot.lane.b32.xlu0 %v5973, 126
        %v5979 = vpop.permute.xlu0 %5978
        %v5982 = vadd.f32 %v5926, %v5977
        %v5983 = vadd.f32 %v5927, %v5979
        %s5984 = sld [smem:[#allocation9 + $0x65]]
        %v5985 = vstv %s5984
        %v5986 = vmul.f32 %v5985, %v5874
        %v5987 = vmul.f32 %v5985, %v5875
        %5990 = vrot.lane.b32.xlu0 %v5986, 126
        %v5991 = vpop.permute.xlu0 %5990
        %5992 = vrot.lane.b32.xlu0 %v5987, 126
        %v5993 = vpop.permute.xlu0 %5992
        %v5996 = vadd.f32 %v5940, %v5991
        %v5997 = vadd.f32 %v5941, %v5993
        %s5998 = sld [smem:[#allocation9 + $0x89]]
        %v5999 = vstv %s5998
        %v6000 = vmul.f32 %v5999, %v5874
        %v6001 = vmul.f32 %v5999, %v5875
        %6004 = vrot.lane.b32.xlu0 %v6000, 126
        %v6005 = vpop.permute.xlu0 %6004
        %6006 = vrot.lane.b32.xlu0 %v6001, 126
        %v6007 = vpop.permute.xlu0 %6006
        %v6010 = vadd.f32 %v5954, %v6005
        %v6011 = vadd.f32 %v5955, %v6007
        %v6012 = vld [vmem:[%s4629 + $0x1] sm:$0xff]
        %v6013 = vld [vmem:[%s4629 + $0x9] sm:$0xff]
        %s6014 = sld [smem:[#allocation9 + $0x1e]]
        %v6015 = vstv %s6014
        %v6016 = vmul.f32 %v6015, %v6012
        %v6017 = vmul.f32 %v6015, %v6013
        %v6018 = vadd.f32 %v5968, %v6016
        %v6019 = vadd.f32 %v5969, %v6017
        %s6020 = sld [smem:[#allocation9 + $0x42]]
        %v6021 = vstv %s6020
        %v6022 = vmul.f32 %v6021, %v6012
        %v6023 = vmul.f32 %v6021, %v6013
        %v6024 = vadd.f32 %v5982, %v6022
        %v6025 = vadd.f32 %v5983, %v6023
        %s6026 = sld [smem:[#allocation9 + $0x66]]
        %v6027 = vstv %s6026
        %v6028 = vmul.f32 %v6027, %v6012
        %v6029 = vmul.f32 %v6027, %v6013
        %v6030 = vadd.f32 %v5996, %v6028
        %v6031 = vadd.f32 %v5997, %v6029
        %s6032 = sld [smem:[#allocation9 + $0x8a]]
        %v6033 = vstv %s6032
        %v6034 = vmul.f32 %v6033, %v6012
        %v6035 = vmul.f32 %v6033, %v6013
        %v6036 = vadd.f32 %v6010, %v6034
        %v6037 = vadd.f32 %v6011, %v6035
        %s6038 = sld [smem:[#allocation9 + $0x1f]]
        %v6039 = vstv %s6038
        %v6040 = vmul.f32 %v6039, %v6012
        %v6041 = vmul.f32 %v6039, %v6013
        %6044 = vrot.lane.b32.xlu0 %v6040, 127
        %v6045 = vpop.permute.xlu0 %6044
        %6046 = vrot.lane.b32.xlu0 %v6041, 127
        %v6047 = vpop.permute.xlu0 %6046
        %v6050 = vadd.f32 %v6018, %v6045
        %v6051 = vadd.f32 %v6019, %v6047
        %s6052 = sld [smem:[#allocation9 + $0x43]]
        %v6053 = vstv %s6052
        %v6054 = vmul.f32 %v6053, %v6012
        %v6055 = vmul.f32 %v6053, %v6013
        %6058 = vrot.lane.b32.xlu0 %v6054, 127
        %v6059 = vpop.permute.xlu0 %6058
        %6060 = vrot.lane.b32.xlu0 %v6055, 127
        %v6061 = vpop.permute.xlu0 %6060
        %v6064 = vadd.f32 %v6024, %v6059
        %v6065 = vadd.f32 %v6025, %v6061
        %s6066 = sld [smem:[#allocation9 + $0x67]]
        %v6067 = vstv %s6066
        %v6068 = vmul.f32 %v6067, %v6012
        %v6069 = vmul.f32 %v6067, %v6013
        %6072 = vrot.lane.b32.xlu0 %v6068, 127
        %v6073 = vpop.permute.xlu0 %6072
        %6074 = vrot.lane.b32.xlu0 %v6069, 127
        %v6075 = vpop.permute.xlu0 %6074
        %v6078 = vadd.f32 %v6030, %v6073
        %v6079 = vadd.f32 %v6031, %v6075
        %s6080 = sld [smem:[#allocation9 + $0x8b]]
        %v6081 = vstv %s6080
        %v6082 = vmul.f32 %v6081, %v6012
        %v6083 = vmul.f32 %v6081, %v6013
        %6086 = vrot.lane.b32.xlu0 %v6082, 127
        %v6087 = vpop.permute.xlu0 %6086
        %6088 = vrot.lane.b32.xlu0 %v6083, 127
        %v6089 = vpop.permute.xlu0 %6088
        %v6092 = vadd.f32 %v6036, %v6087
        %v6093 = vadd.f32 %v6037, %v6089
        %s6094 = sld [smem:[#allocation9 + $0x20]]
        %v6095 = vstv %s6094
        %v6096 = vmul.f32 %v6095, %v6012
        %v6097 = vmul.f32 %v6095, %v6013
        %6100 = vrot.lane.b32.xlu0 %v6096, 126
        %v6101 = vpop.permute.xlu0 %6100
        %6102 = vrot.lane.b32.xlu0 %v6097, 126
        %v6103 = vpop.permute.xlu0 %6102
        %v6106 = vadd.f32 %v6050, %v6101
        %v6107 = vadd.f32 %v6051, %v6103
        %s6108 = sld [smem:[#allocation9 + $0x44]]
        %v6109 = vstv %s6108
        %v6110 = vmul.f32 %v6109, %v6012
        %v6111 = vmul.f32 %v6109, %v6013
        %6114 = vrot.lane.b32.xlu0 %v6110, 126
        %v6115 = vpop.permute.xlu0 %6114
        %6116 = vrot.lane.b32.xlu0 %v6111, 126
        %v6117 = vpop.permute.xlu0 %6116
        %v6120 = vadd.f32 %v6064, %v6115
        %v6121 = vadd.f32 %v6065, %v6117
        %s6122 = sld [smem:[#allocation9 + $0x68]]
        %v6123 = vstv %s6122
        %v6124 = vmul.f32 %v6123, %v6012
        %v6125 = vmul.f32 %v6123, %v6013
        %6128 = vrot.lane.b32.xlu0 %v6124, 126
        %v6129 = vpop.permute.xlu0 %6128
        %6130 = vrot.lane.b32.xlu0 %v6125, 126
        %v6131 = vpop.permute.xlu0 %6130
        %v6134 = vadd.f32 %v6078, %v6129
        %v6135 = vadd.f32 %v6079, %v6131
        %s6136 = sld [smem:[#allocation9 + $0x8c]]
        %v6137 = vstv %s6136
        %v6138 = vmul.f32 %v6137, %v6012
        %v6139 = vmul.f32 %v6137, %v6013
        %6142 = vrot.lane.b32.xlu0 %v6138, 126
        %v6143 = vpop.permute.xlu0 %6142
        %6144 = vrot.lane.b32.xlu0 %v6139, 126
        %v6145 = vpop.permute.xlu0 %6144
        %v6148 = vadd.f32 %v6092, %v6143
        %v6149 = vadd.f32 %v6093, %v6145
        %v6150 = vld [vmem:[%s4629 + $0x2] sm:$0xff]
        %v6151 = vld [vmem:[%s4629 + $0xa] sm:$0xff]
        %s6152 = sld [smem:[#allocation9 + $0x21]]
        %v6153 = vstv %s6152
        %v6154 = vmul.f32 %v6153, %v6150
        %v6155 = vmul.f32 %v6153, %v6151
        %v6156 = vadd.f32 %v6106, %v6154
        %v6157 = vadd.f32 %v6107, %v6155
        %s6158 = sld [smem:[#allocation9 + $0x45]]
        %v6159 = vstv %s6158
        %v6160 = vmul.f32 %v6159, %v6150
        %v6161 = vmul.f32 %v6159, %v6151
        %v6162 = vadd.f32 %v6120, %v6160
        %v6163 = vadd.f32 %v6121, %v6161
        %s6164 = sld [smem:[#allocation9 + $0x69]]
        %v6165 = vstv %s6164
        %v6166 = vmul.f32 %v6165, %v6150
        %v6167 = vmul.f32 %v6165, %v6151
        %v6168 = vadd.f32 %v6134, %v6166
        %v6169 = vadd.f32 %v6135, %v6167
        %s6170 = sld [smem:[#allocation9 + $0x8d]]
        %v6171 = vstv %s6170
        %v6172 = vmul.f32 %v6171, %v6150
        %v6173 = vmul.f32 %v6171, %v6151
        %v6174 = vadd.f32 %v6148, %v6172
        %v6175 = vadd.f32 %v6149, %v6173
        %s6176 = sld [smem:[#allocation9 + $0x22]]
        %v6177 = vstv %s6176
        %v6178 = vmul.f32 %v6177, %v6150
        %v6179 = vmul.f32 %v6177, %v6151
        %6182 = vrot.lane.b32.xlu0 %v6178, 127
        %v6183 = vpop.permute.xlu0 %6182
        %6184 = vrot.lane.b32.xlu0 %v6179, 127
        %v6185 = vpop.permute.xlu0 %6184
        %v6188 = vadd.f32 %v6156, %v6183
        %v6189 = vadd.f32 %v6157, %v6185
        %s6190 = sld [smem:[#allocation9 + $0x46]]
        %v6191 = vstv %s6190
        %v6192 = vmul.f32 %v6191, %v6150
        %v6193 = vmul.f32 %v6191, %v6151
        %6196 = vrot.lane.b32.xlu0 %v6192, 127
        %v6197 = vpop.permute.xlu0 %6196
        %6198 = vrot.lane.b32.xlu0 %v6193, 127
        %v6199 = vpop.permute.xlu0 %6198
        %v6202 = vadd.f32 %v6162, %v6197
        %v6203 = vadd.f32 %v6163, %v6199
        %s6204 = sld [smem:[#allocation9 + $0x6a]]
        %v6205 = vstv %s6204
        %v6206 = vmul.f32 %v6205, %v6150
        %v6207 = vmul.f32 %v6205, %v6151
        %6210 = vrot.lane.b32.xlu0 %v6206, 127
        %v6211 = vpop.permute.xlu0 %6210
        %6212 = vrot.lane.b32.xlu0 %v6207, 127
        %v6213 = vpop.permute.xlu0 %6212
        %v6216 = vadd.f32 %v6168, %v6211
        %v6217 = vadd.f32 %v6169, %v6213
        %s6218 = sld [smem:[#allocation9 + $0x8e]]
        %v6219 = vstv %s6218
        %v6220 = vmul.f32 %v6219, %v6150
        %v6221 = vmul.f32 %v6219, %v6151
        %6224 = vrot.lane.b32.xlu0 %v6220, 127
        %v6225 = vpop.permute.xlu0 %6224
        %6226 = vrot.lane.b32.xlu0 %v6221, 127
        %v6227 = vpop.permute.xlu0 %6226
        %v6230 = vadd.f32 %v6174, %v6225
        %v6231 = vadd.f32 %v6175, %v6227
        %s6232 = sld [smem:[#allocation9 + $0x23]]
        %v6233 = vstv %s6232
        %v6234 = vmul.f32 %v6233, %v6150
        %v6235 = vmul.f32 %v6233, %v6151
        %6238 = vrot.lane.b32.xlu0 %v6234, 126
        %v6239 = vpop.permute.xlu0 %6238
        %6240 = vrot.lane.b32.xlu0 %v6235, 126
        %v6241 = vpop.permute.xlu0 %6240
        %v6244 = vadd.f32 %v6188, %v6239
        %v6245 = vadd.f32 %v6189, %v6241
        %s6246 = sld [smem:[#allocation9 + $0x47]]
        %v6247 = vstv %s6246
        %v6248 = vmul.f32 %v6247, %v6150
        %v6249 = vmul.f32 %v6247, %v6151
        %6252 = vrot.lane.b32.xlu0 %v6248, 126
        %v6253 = vpop.permute.xlu0 %6252
        %6254 = vrot.lane.b32.xlu0 %v6249, 126
        %v6255 = vpop.permute.xlu0 %6254
        %v6258 = vadd.f32 %v6202, %v6253
        %v6259 = vadd.f32 %v6203, %v6255
        %s6260 = sld [smem:[#allocation9 + $0x6b]]
        %v6261 = vstv %s6260
        %v6262 = vmul.f32 %v6261, %v6150
        %v6263 = vmul.f32 %v6261, %v6151
        %6266 = vrot.lane.b32.xlu0 %v6262, 126
        %v6267 = vpop.permute.xlu0 %6266
        %6268 = vrot.lane.b32.xlu0 %v6263, 126
        %v6269 = vpop.permute.xlu0 %6268
        %v6272 = vadd.f32 %v6216, %v6267
        %v6273 = vadd.f32 %v6217, %v6269
        %s6274 = sld [smem:[#allocation9 + $0x8f]]
        %v6275 = vstv %s6274
        %v6276 = vmul.f32 %v6275, %v6150
        %v6277 = vmul.f32 %v6275, %v6151
        %6280 = vrot.lane.b32.xlu0 %v6276, 126
        %v6281 = vpop.permute.xlu0 %6280
        %6282 = vrot.lane.b32.xlu0 %v6277, 126
        %v6283 = vpop.permute.xlu0 %6282
        %v6286 = vadd.f32 %v6230, %v6281
        %v6287 = vadd.f32 %v6231, %v6283
        %s6288 = sld [smem:[#allocation10]]
        %v6289 = vstv %s6288
        %v6290 = vadd.f32 %v6244, %v6289
        %v6291 = vadd.f32 %v6245, %v6289
        %v6292 = vmax.f32 %v6290, 0.0
        %v6293 = vmax.f32 %v6291, 0.0
        %vm6294 = vcmask 130048
        %6295 = vst.msk [vmem:[%s365] sm:$0xff] %vm6294, %v6292
        %6296 = vst.msk [vmem:[%s365 + $0x8] sm:$0xff] %vm6294, %v6293
        %s6297 = sld [smem:[#allocation10 + $0x1]]
        %v6298 = vstv %s6297
        %v6299 = vadd.f32 %v6258, %v6298
        %v6300 = vadd.f32 %v6259, %v6298
        %v6301 = vmax.f32 %v6299, 0.0
        %v6302 = vmax.f32 %v6300, 0.0
        %s6303 = scalar_lea.vmem %s365, 16 [#allocation12]
        %6304 = vst.msk [vmem:[%s6303] sm:$0xff] %vm6294, %v6301
        %6305 = vst.msk [vmem:[%s6303 + $0x8] sm:$0xff] %vm6294, %v6302
        %s6306 = sld [smem:[#allocation10 + $0x2]]
        %v6307 = vstv %s6306
        %v6308 = vadd.f32 %v6272, %v6307
        %v6309 = vadd.f32 %v6273, %v6307
        %v6310 = vmax.f32 %v6308, 0.0
        %v6311 = vmax.f32 %v6309, 0.0
        %s6312 = scalar_lea.vmem %s365, 32 [#allocation12]
        %6313 = vst.msk [vmem:[%s6312] sm:$0xff] %vm6294, %v6310
        %6314 = vst.msk [vmem:[%s6312 + $0x8] sm:$0xff] %vm6294, %v6311
        %s6315 = sld [smem:[#allocation10 + $0x3]]
        %v6316 = vstv %s6315
        %v6317 = vadd.f32 %v6286, %v6316
        %v6318 = vadd.f32 %v6287, %v6316
        %v6319 = vmax.f32 %v6317, 0.0
        %v6320 = vmax.f32 %v6318, 0.0
        %s6321 = scalar_lea.vmem %s365, 48 [#allocation12]
        %6322 = vst.msk [vmem:[%s6321] sm:$0xff] %vm6294, %v6319
        %6323 = vst.msk [vmem:[%s6321 + $0x8] sm:$0xff] %vm6294, %v6320
        %s6324 = sand.u32 %s211, 1
        %s6325 = scalar_lea.sflag [#allocation5], %s6324
        %s6326 = sand.u32 %s211, 1
        %s6327 = smul.addr %s6326, 64
        %s6328 = scalar_lea.vmem [#allocation12], %s6327
        // Predicated region
        $region69: #{up_forward.1} parent=51 // pred_check
          %p6329 = pneg %p221
        $region70: #{up_forward.1} parent=51 // pred_check_branch
          %6331 = sbr.rel (%p6329) target = $region72
        $region71: #{up_forward.1} parent=51 // pred_region
          %s6333 = ssub.s32 1024, 1024
          %6334 = vsyncadd %s6325, %s6333
          %s6335 = smul.addr %s25, 8
          %s6336 = smul.addr %s6335, 128
          %s6337 = scalar_lea.hbm %s8, %s6336
          %s6338 = sshll.u32 %s6328, 4
          %s6339 = int_to_ptr.vmem [resolvable:$true] %s6338
          %6344 = dma.vmem_to_hbm [thread:$0]  %s6339, 1024, %s6337, %s6325, 128, 128, 8
        $region72: #{up_forward.1} parent=51 // pred_fallthru
          _
      $region52: #{up_forward.1} parent=5 // pred_fallthru
        _
      %p6345 = scmp.le.s32.totalorder 2, %s20
      // Predicated region
      $region73: #{up_forward.1} parent=5 // pred_check
        %p6346 = pneg %p6345
      $region74: #{up_forward.1} parent=5 // pred_check_branch
        %6348 = sbr.rel (%p6346) target = $region76
      $region75: #{up_forward.1} parent=5 // pred_region
        %s6349 = ssub.s32 %s20, 2
        // Predicated region
        $region77: #{up_forward.1} parent=75 // pred_check
          %p6350 = pneg %p227
        $region78: #{up_forward.1} parent=75 // pred_check_branch
          %6352 = sbr.rel (%p6350) target = $region80
        $region79: #{up_forward.1} parent=75 // pred_region
          %s6353 = sand.u32 %s212, 1
          %s6354 = scalar_lea.sflag [#allocation5], %s6353
          %s6355 = sand.u32 %s212, 1
          %s6356 = smul.addr %s6355, 64
          %s6357 = scalar_lea.vmem [#allocation12], %s6356
          %6358 = dma.done %s6354, 1024
        $region80: #{up_forward.1} parent=75 // pred_fallthru
          _
      $region76: #{up_forward.1} parent=5 // pred_fallthru
        _
    $region6: #{up_forward.1} parent=1 // loop_footer
      %s24 = sadd.s32 1, %s20
    $region7: #{up_forward.1} parent=1 // loop_footer_branch
      %19 = sbr.rel target = $region3
    $region8: #{up_forward.1} parent=1 // loop_exit
      _
    %6359 = vsyncpa [#allocation5], 1
    %s6360 = scalar_lea.sflag [#allocation5], 1
    %6361 = vsyncpa %s6360, 1
    %6362 = vsyncpa [#allocation6], 1
    %s6363 = scalar_lea.sflag [#allocation6], 1
    %6364 = vsyncpa %s6363, 1
    %6365 = vsyncpa [#allocation8], 1
    %6366 = vsyncpa [#allocation11], 1

</llo_original>
